<compile_context>
chip_gen: v6e
topology: v6e:2x2x1
jax: 0.10.0
libtpu: 0.0.40
codegen_flags: <defaults>
</compile_context>

<pallas_src>
import functools

import jax
import jax.numpy as jnp
import numpy as np
from jax.experimental import pallas as pl
from jax.experimental.pallas import tpu as pltpu

ACT_DTYPE = jnp.bfloat16
_PARALLEL = pltpu.CompilerParams(dimension_semantics=("parallel",))


# ----------------------------------------------------------------------------
# in-kernel helper: im2col for a 3x3 valid conv over a pre-padded tile
# ----------------------------------------------------------------------------
def _im2col_3x3(xp, H, W):
    """xp: (H+2, W+2, C) -> (H*W, 9*C); taps ordered (dy, dx) row-major."""
    C = xp.shape[-1]
    cols = [xp[dy:dy + H, dx:dx + W, :] for dy in range(3) for dx in range(3)]
    return jnp.concatenate(cols, axis=-1).reshape(H * W, 9 * C)


# ----------------------------------------------------------------------------
# Pallas kernels
# ----------------------------------------------------------------------------
def _conv3x3_kernel(x_ref, w_ref, b_ref, *rest, H, W, relu, add_residual):
    """3x3 conv as a single MXU matmul (+bias, optional ReLU, optional f32 residual)."""
    if add_residual:
        r_ref, o_ref = rest
    else:
        (o_ref,) = rest
    Cout = o_ref.shape[-1]

    patches = _im2col_3x3(x_ref[0], H, W)                        # (H*W, 9*Cin)
    acc = jnp.dot(patches, w_ref[...],
                  preferred_element_type=jnp.float32)            # one K=9*Cin dot
    acc = acc + b_ref[...]                                       # (1, Cout) f32
    if add_residual:
        acc = acc + r_ref[0].astype(jnp.float32).reshape(H * W, Cout)
    if relu:
        acc = jnp.maximum(acc, 0.0)
    o_ref[0] = acc.reshape(H, W, Cout).astype(o_ref.dtype)


def _resblock_kernel(x_ref, w1_ref, b1_ref, w2_ref, b2_ref, o_ref, *, H, W):
    """Fused ResidualBlock: conv3x3 -> ReLU -> conv3x3 -> +x, all in VMEM."""
    C = o_ref.shape[-1]
    xp = x_ref[0]                                                # (H+2, W+2, C)

    h = jnp.dot(_im2col_3x3(xp, H, W), w1_ref[...],
                preferred_element_type=jnp.float32)
    h = jnp.maximum(h + b1_ref[...], 0.0)
    h3 = h.reshape(H, W, C).astype(xp.dtype)

    # zero-pad h by 1 (second conv has padding=1) without leaving VMEM
    zr = jnp.zeros((1, W, C), xp.dtype)
    zc = jnp.zeros((H + 2, 1, C), xp.dtype)
    hp = jnp.concatenate([zr, h3, zr], axis=0)
    hp = jnp.concatenate([zc, hp, zc], axis=1)

    acc = jnp.dot(_im2col_3x3(hp, H, W), w2_ref[...],
                  preferred_element_type=jnp.float32)
    acc = acc + b2_ref[...]
    acc = acc + xp[1:H + 1, 1:W + 1, :].astype(jnp.float32).reshape(H * W, C)
    o_ref[0] = acc.reshape(H, W, C).astype(o_ref.dtype)


def _deconv2x_kernel(x_ref, w_ref, b_ref, o_ref, *, H, W):
    """4-phase ConvTranspose2d(3, stride=2, pad=1, output_padding=1) + ReLU.

    x_ref : (1, H+2, W+2, Cin)  zero-padded input (interior + bottom/right pad used)
    w_ref : (4*Cin, 4*Cout)     phase-packed weight, see _pack_deconv_weight
    o_ref : (1, H, W, 4*Cout)   phases packed channel-major as (r, s, cout);
                                pixel-shuffled to (2H, 2W, Cout) by the wrapper.
    """
    Cin = x_ref.shape[-1]
    C4 = o_ref.shape[-1]
    xp = x_ref[0]
    cols = [xp[1 + dy:1 + dy + H, 1 + dx:1 + dx + W, :]
            for dy in range(2) for dx in range(2)]
    patches = jnp.concatenate(cols, axis=-1).reshape(H * W, 4 * Cin)
    acc = jnp.dot(patches, w_ref[...], preferred_element_type=jnp.float32)
    acc = jnp.maximum(acc + b_ref[...], 0.0)
    o_ref[0] = acc.reshape(H, W, C4).astype(o_ref.dtype)


# ----------------------------------------------------------------------------
# pallas_call wrappers (grid over batch, "parallel" for megacore sharding)
# ----------------------------------------------------------------------------
def _batch_spec(shape):
    nd = len(shape)
    return pl.BlockSpec((1,) + tuple(shape[1:]), lambda n: (n,) + (0,) * (nd - 1))


def _full_spec(shape):
    nd = len(shape)
    return pl.BlockSpec(tuple(shape), lambda n: (0,) * nd)


def conv3x3(xp, w9, b, *, relu, residual=None, out_dtype=ACT_DTYPE):
    """xp: (N, H+2, W+2, Cin) pre-padded NHWC. w9: (9*Cin, Cout). b: (1, Cout) f32."""
    N, Hp, Wp, _ = xp.shape
    H, W = Hp - 2, Wp - 2
    Cout = w9.shape[-1]
    args = [xp, w9, b]
    specs = [_batch_spec(xp.shape), _full_spec(w9.shape), _full_spec(b.shape)]
    if residual is not None:
        args.append(residual)
        specs.append(_batch_spec(residual.shape))
    out_shape = jax.ShapeDtypeStruct((N, H, W, Cout), out_dtype)
    kernel = functools.partial(_conv3x3_kernel, H=H, W=W, relu=relu,
                               add_residual=residual is not None)
    return pl.pallas_call(
        kernel, out_shape=out_shape, grid=(N,),
        in_specs=specs, out_specs=_batch_spec(out_shape.shape),
        compiler_params=_PARALLEL)(*args)


def resblock(xp, w1, b1, w2, b2):
    """xp: (N, H+2, W+2, nf) pre-padded; returns (N, H, W, nf)."""
    N, Hp, Wp, C = xp.shape
    H, W = Hp - 2, Wp - 2
    out_shape = jax.ShapeDtypeStruct((N, H, W, C), ACT_DTYPE)
    kernel = functools.partial(_resblock_kernel, H=H, W=W)
    specs = [_batch_spec(xp.shape), _full_spec(w1.shape), _full_spec(b1.shape),
             _full_spec(w2.shape), _full_spec(b2.shape)]
    return pl.pallas_call(
        kernel, out_shape=out_shape, grid=(N,),
        in_specs=specs, out_specs=_batch_spec(out_shape.shape),
        compiler_params=_PARALLEL)(xp, w1, b1, w2, b2)


def deconv2x(xp, wbig, b4):
    """xp: (N, H+2, W+2, Cin) pre-padded; returns (N, 2H, 2W, Cout), ReLU fused."""
    N, Hp, Wp, _ = xp.shape
    H, W = Hp - 2, Wp - 2
    Cout = wbig.shape[-1] // 4
    out_shape = jax.ShapeDtypeStruct((N, H, W, 4 * Cout), ACT_DTYPE)
    kernel = functools.partial(_deconv2x_kernel, H=H, W=W)
    specs = [_batch_spec(xp.shape), _full_spec(wbig.shape), _full_spec(b4.shape)]
    packed = pl.pallas_call(
        kernel, out_shape=out_shape, grid=(N,),
        in_specs=specs, out_specs=_batch_spec(out_shape.shape),
        compiler_params=_PARALLEL)(xp, wbig, b4)
    # pixel-shuffle the 4 phases: (N, H, W, r, s, C) -> (N, 2H, 2W, C)
    x = packed.reshape(N, H, W, 2, 2, Cout).transpose(0, 1, 3, 2, 4, 5)
    return x.reshape(N, 2 * H, 2 * W, Cout)


# ----------------------------------------------------------------------------
# Parameter packing (PyTorch layouts -> kernel-ready packed bf16)
# ----------------------------------------------------------------------------
def _round_up(x, m):
    return (x + m - 1) // m * m


def _pack_conv_weight(w, cin_pad=None):
    """PyTorch Conv2d (Cout, Cin, 3, 3) -> (9*Cin, Cout); taps (dy, dx) row-major."""
    w = np.asarray(w, np.float32)
    Cout, Cin = w.shape[:2]
    if cin_pad is not None and cin_pad > Cin:
        w = np.pad(w, ((0, 0), (0, cin_pad - Cin), (0, 0), (0, 0)))
        Cin = cin_pad
    return w.transpose(2, 3, 1, 0).reshape(9 * Cin, Cout)


def _pack_deconv_weight(wt):
    """PyTorch ConvTranspose2d (Cin, Cout, 3, 3) -> phase-packed (4*Cin, 4*Cout).

    Row block q = 2*dy + dx indexes the input shift x[a+dy, b+dx] (dy, dx in {0,1});
    col block p = 2*r + s indexes the output phase y[2a+r, 2b+s] (r, s in {0,1}).
    For stride 2 / pad 1: even output rows take kernel row 1 from dy=0; odd output
    rows take kernel row 2 from dy=0 and kernel row 0 from dy=1 (same for columns).
    """
    wt = np.asarray(wt, np.float32)
    Cin, Cout = wt.shape[0], wt.shape[1]

    def kidx(r, d):
        if r == 0:
            return 1 if d == 0 else None
        return 2 if d == 0 else 0

    wbig = np.zeros((4 * Cin, 4 * Cout), np.float32)
    for dy in range(2):
        for dx in range(2):
            q = 2 * dy + dx
            for r in range(2):
                for s in range(2):
                    ky, kx = kidx(r, dy), kidx(s, dx)
                    if ky is None or kx is None:
                        continue
                    p = 2 * r + s
                    wbig[q * Cin:(q + 1) * Cin,
                         p * Cout:(p + 1) * Cout] = wt[:, :, ky, kx]
    return wbig


def prepare_params(params):
    """Convert PyTorch-layout f32 params into kernel-ready packed weights."""
    w_ = lambda x: jnp.asarray(x, ACT_DTYPE)
    b_ = lambda x: jnp.asarray(np.asarray(x, np.float32).reshape(1, -1))
    cin0 = params["conv_in_w"].shape[1]
    cin_pad = _round_up(cin0, 32)          # aligned im2col lane offsets
    return {
        "conv_in_w": w_(_pack_conv_weight(params["conv_in_w"], cin_pad)),
        "conv_in_b": b_(params["conv_in_b"]),
        "resblocks": [
            (w_(_pack_conv_weight(w1)), b_(b1),
             w_(_pack_conv_weight(w2)), b_(b2))
            for (w1, b1, w2, b2) in params["resblocks"]],
        "up1_w": w_(_pack_deconv_weight(params["up1_w"])),
        "up1_b": b_(np.tile(np.asarray(params["up1_b"], np.float32), 4)),
        "up2_w": w_(_pack_deconv_weight(params["up2_w"])),
        "up2_b": b_(np.tile(np.asarray(params["up2_b"], np.float32), 4)),
        "conv_out_w": w_(_pack_conv_weight(params["conv_out_w"])),
        "conv_out_b": b_(params["conv_out_b"]),
    }


# ----------------------------------------------------------------------------
# SRNet forward (Pallas path).  Inputs / output NCHW like the PyTorch module.
# ----------------------------------------------------------------------------
def _halo_pad(x, extra_c=0):
    return jnp.pad(x, ((0, 0), (1, 1), (1, 1), (0, extra_c)))


def srnet_forward(prepared, lr_curr, hr_prev_tran, *, scale=4):
    N, C, H, W = lr_curr.shape

    # layout plumbing: concat channels, NCHW -> NHWC, bf16, 1-pixel halo (+channel pad)
    x = jnp.concatenate([lr_curr, hr_prev_tran], axis=1).transpose(0, 2, 3, 1)
    x = x.astype(ACT_DTYPE)
    cin_pad = prepared["conv_in_w"].shape[0] // 9
    xp = _halo_pad(x, extra_c=cin_pad - x.shape[-1])

    out = conv3x3(xp, prepared["conv_in_w"], prepared["conv_in_b"], relu=True)

    for (w1, b1, w2, b2) in prepared["resblocks"]:
        out = resblock(_halo_pad(out), w1, b1, w2, b2)

    hr1 = deconv2x(_halo_pad(out), prepared["up1_w"], prepared["up1_b"])
    hr2 = deconv2x(_halo_pad(hr1), prepared["up2_w"], prepared["up2_b"])

    # bilinear x`scale` upsample of lr_curr, fused into conv_out as a residual input
    # TODO(synk): jax.image.resize('bilinear') may differ marginally from
    # torch F.interpolate(align_corners=False) at image borders.
    lr_nhwc = lr_curr.transpose(0, 2, 3, 1).astype(jnp.float32)
    up = jax.image.resize(lr_nhwc, (N, H * scale, W * scale, C), method="bilinear")

    out = conv3x3(_halo_pad(hr2), prepared["conv_out_w"], prepared["conv_out_b"],
                  relu=False, residual=up, out_dtype=jnp.float32)
    return out.transpose(0, 3, 1, 2)


# ----------------------------------------------------------------------------
# Pure-JAX f32 reference (for a loose numerical self-check)
# ----------------------------------------------------------------------------
def _ref_conv(x, w, b):
    out = jax.lax.conv_general_dilated(
        x, jnp.transpose(w, (2, 3, 1, 0)), window_strides=(1, 1),
        padding=((1, 1), (1, 1)), dimension_numbers=("NHWC", "HWIO", "NHWC"))
    return out + b.reshape(1, 1, 1, -1)


def _ref_deconv(x, wt, b):
    w = jnp.transpose(jnp.flip(wt, (2, 3)), (2, 3, 0, 1))
    out = jax.lax.conv_general_dilated(
        x, w, window_strides=(1, 1), padding=((1, 2), (1, 2)),
        lhs_dilation=(2, 2), dimension_numbers=("NHWC", "HWIO", "NHWC"))
    return out + b.reshape(1, 1, 1, -1)


def srnet_reference(params, lr_curr, hr_prev_tran, *, scale=4):
    N, C, H, W = lr_curr.shape
    x = jnp.concatenate([lr_curr, hr_prev_tran], axis=1).transpose(0, 2, 3, 1)
    out = jax.nn.relu(_ref_conv(x, params["conv_in_w"], params["conv_in_b"]))
    for (w1, b1, w2, b2) in params["resblocks"]:
        h = jax.nn.relu(_ref_conv(out, w1, b1))
        out = _ref_conv(h, w2, b2) + out
    out = jax.nn.relu(_ref_deconv(out, params["up1_w"], params["up1_b"]))
    out = jax.nn.relu(_ref_deconv(out, params["up2_w"], params["up2_b"]))
    out = _ref_conv(out, params["conv_out_w"], params["conv_out_b"])
    lr_nhwc = lr_curr.transpose(0, 2, 3, 1)
    up = jax.image.resize(lr_nhwc, (N, H * scale, W * scale, C), method="bilinear")
    return (out + up).transpose(0, 3, 1, 2)


# ----------------------------------------------------------------------------
# Deterministic parameter init (shapes follow the PyTorch module __init__)
# ----------------------------------------------------------------------------
def init_params(key, in_nc=3, out_nc=3, nf=32, nb=2, scale=4):
    keys = iter(jax.random.split(key, 8 + 4 * nb))

    def w(shape, fan_in):
        return (jax.random.normal(next(keys), shape, jnp.float32)
                / np.sqrt(fan_in)).astype(jnp.float32)

    cin0 = (scale ** 2 + 1) * in_nc
    params = {
        "conv_in_w": w((nf, cin0, 3, 3), cin0 * 9),
        "conv_in_b": w((nf,), cin0 * 9),
        "resblocks": [],
        "up1_w": w((nf, nf, 3, 3), nf * 9),    # ConvTranspose2d: (in, out, k, k)
        "up1_b": w((nf,), nf * 9),
        "up2_w": w((nf, nf, 3, 3), nf * 9),
        "up2_b": w((nf,), nf * 9),
        "conv_out_w": w((out_nc, nf, 3, 3), nf * 9),
        "conv_out_b": w((out_nc,), nf * 9),
    }
    for _ in range(nb):
        params["resblocks"].append((
            w((nf, nf, 3, 3), nf * 9), w((nf,), nf * 9),
            w((nf, nf, 3, 3), nf * 9), w((nf,), nf * 9),
        ))
    return params


if __name__ == "__main__":
    # Small config consistent with the module: scale=4 -> concat channels (4^2+1)*in_nc
    N, in_nc, out_nc, nf, nb, scale, H, W = 2, 3, 3, 32, 2, 4, 8, 8

    key = jax.random.PRNGKey(0)
    kp, k1, k2 = jax.random.split(key, 3)
    params = init_params(kp, in_nc=in_nc, out_nc=out_nc, nf=nf, nb=nb, scale=scale)
    prepared = prepare_params(params)

    lr_curr = jax.random.normal(k1, (N, in_nc, H, W), jnp.float32)
    hr_prev_tran = jax.random.normal(
        k2, (N, scale * scale * in_nc, H, W), jnp.float32)

    fwd = jax.jit(functools.partial(srnet_forward, scale=scale))
    out = fwd(prepared, lr_curr, hr_prev_tran)
    jax.block_until_ready(out)

    assert out.shape == (N, out_nc, H * scale, W * scale), out.shape
    assert bool(jnp.all(jnp.isfinite(out)))

    # loose check vs the f32 JAX reference (kernel path runs in bf16)
    ref = srnet_reference(params, lr_curr, hr_prev_tran, scale=scale)
    max_err = float(jnp.max(jnp.abs(out.astype(jnp.float32) - ref)))
    assert max_err < 0.25, f"max abs err vs reference: {max_err}"

    print("KERNEL_OK")
</pallas_src>

<mosaic_0001>
module attributes {stable_mosaic.version = 11 : i64} {
  func.func @_deconv2x_kernel(%arg0: i32, %arg1: memref<1x10x10x32xbf16, #tpu.memory_space<vmem>>, %arg2: memref<128x128xbf16, #tpu.memory_space<vmem>>, %arg3: memref<1x128xf32, #tpu.memory_space<vmem>>, %arg4: memref<1x8x8x128xbf16, #tpu.memory_space<vmem>>) attributes {dimension_semantics = [#tpu.dimension_semantics<parallel>], iteration_bounds = array<i64: 2>, scalar_prefetch = 0 : i64, scratch_operands = 0 : i64, tpu.core_type = #tpu.core_type<tc>, window_params = [{transform_indices = @transform_0, window_bounds = array<i64: 1, 10, 10, 32>}, {pipeline_mode = #tpu.pipeline_mode<synchronous>, transform_indices = @transform_1, window_bounds = array<i64: 128, 128>}, {pipeline_mode = #tpu.pipeline_mode<synchronous>, transform_indices = @transform_2, window_bounds = array<i64: 1, 128>}, {transform_indices = @transform_3, window_bounds = array<i64: 1, 8, 8, 128>}]} {
    %c0 = arith.constant 0 : index
    %c0_0 = arith.constant 0 : index
    %c0_1 = arith.constant 0 : index
    %c0_2 = arith.constant 0 : index
    %0 = vector.load %arg1[%c0, %c0_0, %c0_1, %c0_2] : memref<1x10x10x32xbf16, #tpu.memory_space<vmem>>, vector<1x10x10x32xbf16>
    %1 = vector.shape_cast %0 : vector<1x10x10x32xbf16> to vector<10x10x32xbf16>
    %2 = vector.extract_strided_slice %1 {offsets = [1, 1, 0], sizes = [8, 8, 32], strides = [1, 1, 1]} : vector<10x10x32xbf16> to vector<8x8x32xbf16>
    %3 = vector.extract_strided_slice %1 {offsets = [1, 2, 0], sizes = [8, 8, 32], strides = [1, 1, 1]} : vector<10x10x32xbf16> to vector<8x8x32xbf16>
    %4 = vector.extract_strided_slice %1 {offsets = [2, 1, 0], sizes = [8, 8, 32], strides = [1, 1, 1]} : vector<10x10x32xbf16> to vector<8x8x32xbf16>
    %5 = vector.extract_strided_slice %1 {offsets = [2, 2, 0], sizes = [8, 8, 32], strides = [1, 1, 1]} : vector<10x10x32xbf16> to vector<8x8x32xbf16>
    %6 = tpu.concatenate %2, %3, %4, %5 in 2 : vector<8x8x32xbf16>, vector<8x8x32xbf16>, vector<8x8x32xbf16>, vector<8x8x32xbf16> -> vector<8x8x128xbf16>
    %7 = vector.shape_cast %6 : vector<8x8x128xbf16> to vector<64x128xbf16>
    %c0_3 = arith.constant 0 : index
    %c0_4 = arith.constant 0 : index
    %8 = vector.load %arg2[%c0_3, %c0_4] : memref<128x128xbf16, #tpu.memory_space<vmem>>, vector<128x128xbf16>
    %cst = arith.constant dense<0.000000e+00> : vector<64x128xf32>
    %9 = tpu.matmul %7, %8, %cst {dimension_numbers = #tpu.dot_dimension_numbers<[1], [0], [0], [1], [0, 0, 1, 1], [], []>} : vector<64x128xbf16>, vector<128x128xbf16>, vector<64x128xf32> -> vector<64x128xf32>
    %c0_5 = arith.constant 0 : index
    %c0_6 = arith.constant 0 : index
    %10 = vector.load %arg3[%c0_5, %c0_6] : memref<1x128xf32, #tpu.memory_space<vmem>>, vector<1x128xf32>
    %11 = vector.broadcast %10 : vector<1x128xf32> to vector<64x128xf32>
    %12 = arith.addf %9, %11 : vector<64x128xf32>
    %cst_7 = arith.constant 0.000000e+00 : f32
    %13 = vector.broadcast %cst_7 : f32 to vector<64x128xf32>
    %14 = arith.maximumf %12, %13 : vector<64x128xf32>
    %15 = vector.shape_cast %14 : vector<64x128xf32> to vector<8x8x128xf32>
    %16 = arith.truncf %15 : vector<8x8x128xf32> to vector<8x8x128xbf16>
    %c0_8 = arith.constant 0 : index
    %c0_9 = arith.constant 0 : index
    %c0_10 = arith.constant 0 : index
    %c0_11 = arith.constant 0 : index
    %17 = vector.load %arg4[%c0_8, %c0_9, %c0_10, %c0_11] : memref<1x8x8x128xbf16, #tpu.memory_space<vmem>>, vector<1x8x8x128xbf16>
    %18 = vector.shape_cast %17 : vector<1x8x8x128xbf16> to vector<8x8x128xbf16>
    %19 = vector.shape_cast %16 : vector<8x8x128xbf16> to vector<1x8x8x128xbf16>
    tpu.vector_store %arg4[%c0_8, %c0_9, %c0_10, %c0_11], %19 {strides = array<i32>} : memref<1x8x8x128xbf16, #tpu.memory_space<vmem>>, vector<1x8x8x128xbf16>,
    return
  }
  func.func @transform_0(%arg0: i32) -> (i32, i32, i32, i32) {
    %c0_i32 = arith.constant 0 : i32
    %c0_i32_0 = arith.constant 0 : i32
    %c0_i32_1 = arith.constant 0 : i32
    %c0_i32_2 = arith.constant 0 : i32
    return %arg0, %c0_i32, %c0_i32_0, %c0_i32_1 : i32, i32, i32, i32
  }
  func.func @transform_1(%arg0: i32) -> (i32, i32) {
    %c0_i32 = arith.constant 0 : i32
    %c0_i32_0 = arith.constant 0 : i32
    %c0_i32_1 = arith.constant 0 : i32
    return %c0_i32, %c0_i32_0 : i32, i32
  }
  func.func @transform_2(%arg0: i32) -> (i32, i32) {
    %c0_i32 = arith.constant 0 : i32
    %c0_i32_0 = arith.constant 0 : i32
    %c0_i32_1 = arith.constant 0 : i32
    return %c0_i32, %c0_i32_0 : i32, i32
  }
  func.func @transform_3(%arg0: i32) -> (i32, i32, i32, i32) {
    %c0_i32 = arith.constant 0 : i32
    %c0_i32_0 = arith.constant 0 : i32
    %c0_i32_1 = arith.constant 0 : i32
    %c0_i32_2 = arith.constant 0 : i32
    return %arg0, %c0_i32, %c0_i32_0, %c0_i32_1 : i32, i32, i32, i32
  }
}

module attributes {stable_mosaic.version = 11 : i64} {
  func.func @_conv3x3_kernel(%arg0: i32, %arg1: memref<1x10x10x64xbf16, #tpu.memory_space<vmem>>, %arg2: memref<576x32xbf16, #tpu.memory_space<vmem>>, %arg3: memref<1x32xf32, #tpu.memory_space<vmem>>, %arg4: memref<1x8x8x32xbf16, #tpu.memory_space<vmem>>) attributes {dimension_semantics = [#tpu.dimension_semantics<parallel>], iteration_bounds = array<i64: 2>, scalar_prefetch = 0 : i64, scratch_operands = 0 : i64, tpu.core_type = #tpu.core_type<tc>, window_params = [{transform_indices = @transform_0, window_bounds = array<i64: 1, 10, 10, 64>}, {pipeline_mode = #tpu.pipeline_mode<synchronous>, transform_indices = @transform_1, window_bounds = array<i64: 576, 32>}, {pipeline_mode = #tpu.pipeline_mode<synchronous>, transform_indices = @transform_2, window_bounds = array<i64: 1, 32>}, {transform_indices = @transform_3, window_bounds = array<i64: 1, 8, 8, 32>}]} {
    %c0 = arith.constant 0 : index
    %c0_0 = arith.constant 0 : index
    %c0_1 = arith.constant 0 : index
    %c0_2 = arith.constant 0 : index
    %0 = vector.load %arg1[%c0, %c0_0, %c0_1, %c0_2] : memref<1x10x10x64xbf16, #tpu.memory_space<vmem>>, vector<1x10x10x64xbf16>
    %1 = vector.shape_cast %0 : vector<1x10x10x64xbf16> to vector<10x10x64xbf16>
    %2 = vector.extract_strided_slice %1 {offsets = [0, 0, 0], sizes = [8, 8, 64], strides = [1, 1, 1]} : vector<10x10x64xbf16> to vector<8x8x64xbf16>
    %3 = vector.extract_strided_slice %1 {offsets = [0, 1, 0], sizes = [8, 8, 64], strides = [1, 1, 1]} : vector<10x10x64xbf16> to vector<8x8x64xbf16>
    %4 = vector.extract_strided_slice %1 {offsets = [0, 2, 0], sizes = [8, 8, 64], strides = [1, 1, 1]} : vector<10x10x64xbf16> to vector<8x8x64xbf16>
    %5 = vector.extract_strided_slice %1 {offsets = [1, 0, 0], sizes = [8, 8, 64], strides = [1, 1, 1]} : vector<10x10x64xbf16> to vector<8x8x64xbf16>
    %6 = vector.extract_strided_slice %1 {offsets = [1, 1, 0], sizes = [8, 8, 64], strides = [1, 1, 1]} : vector<10x10x64xbf16> to vector<8x8x64xbf16>
    %7 = vector.extract_strided_slice %1 {offsets = [1, 2, 0], sizes = [8, 8, 64], strides = [1, 1, 1]} : vector<10x10x64xbf16> to vector<8x8x64xbf16>
    %8 = vector.extract_strided_slice %1 {offsets = [2, 0, 0], sizes = [8, 8, 64], strides = [1, 1, 1]} : vector<10x10x64xbf16> to vector<8x8x64xbf16>
    %9 = vector.extract_strided_slice %1 {offsets = [2, 1, 0], sizes = [8, 8, 64], strides = [1, 1, 1]} : vector<10x10x64xbf16> to vector<8x8x64xbf16>
    %10 = vector.extract_strided_slice %1 {offsets = [2, 2, 0], sizes = [8, 8, 64], strides = [1, 1, 1]} : vector<10x10x64xbf16> to vector<8x8x64xbf16>
    %11 = tpu.concatenate %2, %3, %4, %5, %6, %7, %8, %9, %10 in 2 : vector<8x8x64xbf16>, vector<8x8x64xbf16>, vector<8x8x64xbf16>, vector<8x8x64xbf16>, vector<8x8x64xbf16>, vector<8x8x64xbf16>, vector<8x8x64xbf16>, vector<8x8x64xbf16>, vector<8x8x64xbf16> -> vector<8x8x576xbf16>
    %12 = vector.shape_cast %11 : vector<8x8x576xbf16> to vector<64x576xbf16>
    %c0_3 = arith.constant 0 : index
    %c0_4 = arith.constant 0 : index
    %13 = vector.load %arg2[%c0_3, %c0_4] : memref<576x32xbf16, #tpu.memory_space<vmem>>, vector<576x32xbf16>
    %cst = arith.constant dense<0.000000e+00> : vector<64x32xf32>
    %14 = tpu.matmul %12, %13, %cst {dimension_numbers = #tpu.dot_dimension_numbers<[1], [0], [0], [1], [0, 0, 1, 1], [], []>} : vector<64x576xbf16>, vector<576x32xbf16>, vector<64x32xf32> -> vector<64x32xf32>
    %c0_5 = arith.constant 0 : index
    %c0_6 = arith.constant 0 : index
    %15 = vector.load %arg3[%c0_5, %c0_6] : memref<1x32xf32, #tpu.memory_space<vmem>>, vector<1x32xf32>
    %16 = vector.broadcast %15 : vector<1x32xf32> to vector<64x32xf32>
    %17 = arith.addf %14, %16 : vector<64x32xf32>
    %cst_7 = arith.constant 0.000000e+00 : f32
    %18 = vector.broadcast %cst_7 : f32 to vector<64x32xf32>
    %19 = arith.maximumf %17, %18 : vector<64x32xf32>
    %20 = vector.shape_cast %19 : vector<64x32xf32> to vector<8x8x32xf32>
    %21 = arith.truncf %20 : vector<8x8x32xf32> to vector<8x8x32xbf16>
    %c0_8 = arith.constant 0 : index
    %c0_9 = arith.constant 0 : index
    %c0_10 = arith.constant 0 : index
    %c0_11 = arith.constant 0 : index
    %22 = vector.load %arg4[%c0_8, %c0_9, %c0_10, %c0_11] : memref<1x8x8x32xbf16, #tpu.memory_space<vmem>>, vector<1x8x8x32xbf16>
    %23 = vector.shape_cast %22 : vector<1x8x8x32xbf16> to vector<8x8x32xbf16>
    %24 = vector.shape_cast %21 : vector<8x8x32xbf16> to vector<1x8x8x32xbf16>
    tpu.vector_store %arg4[%c0_8, %c0_9, %c0_10, %c0_11], %24 {strides = array<i32>} : memref<1x8x8x32xbf16, #tpu.memory_space<vmem>>, vector<1x8x8x32xbf16>,
    return
  }
  func.func @transform_0(%arg0: i32) -> (i32, i32, i32, i32) {
    %c0_i32 = arith.constant 0 : i32
    %c0_i32_0 = arith.constant 0 : i32
    %c0_i32_1 = arith.constant 0 : i32
    %c0_i32_2 = arith.constant 0 : i32
    return %arg0, %c0_i32, %c0_i32_0, %c0_i32_1 : i32, i32, i32, i32
  }
  func.func @transform_1(%arg0: i32) -> (i32, i32) {
    %c0_i32 = arith.constant 0 : i32
    %c0_i32_0 = arith.constant 0 : i32
    %c0_i32_1 = arith.constant 0 : i32
    return %c0_i32, %c0_i32_0 : i32, i32
  }
  func.func @transform_2(%arg0: i32) -> (i32, i32) {
    %c0_i32 = arith.constant 0 : i32
    %c0_i32_0 = arith.constant 0 : i32
    %c0_i32_1 = arith.constant 0 : i32
    return %c0_i32, %c0_i32_0 : i32, i32
  }
  func.func @transform_3(%arg0: i32) -> (i32, i32, i32, i32) {
    %c0_i32 = arith.constant 0 : i32
    %c0_i32_0 = arith.constant 0 : i32
    %c0_i32_1 = arith.constant 0 : i32
    %c0_i32_2 = arith.constant 0 : i32
    return %arg0, %c0_i32, %c0_i32_0, %c0_i32_1 : i32, i32, i32, i32
  }
}

module attributes {stable_mosaic.version = 11 : i64} {
  func.func @_resblock_kernel(%arg0: i32, %arg1: memref<1x10x10x32xbf16, #tpu.memory_space<vmem>>, %arg2: memref<288x32xbf16, #tpu.memory_space<vmem>>, %arg3: memref<1x32xf32, #tpu.memory_space<vmem>>, %arg4: memref<288x32xbf16, #tpu.memory_space<vmem>>, %arg5: memref<1x32xf32, #tpu.memory_space<vmem>>, %arg6: memref<1x8x8x32xbf16, #tpu.memory_space<vmem>>) attributes {dimension_semantics = [#tpu.dimension_semantics<parallel>], iteration_bounds = array<i64: 2>, scalar_prefetch = 0 : i64, scratch_operands = 0 : i64, tpu.core_type = #tpu.core_type<tc>, window_params = [{transform_indices = @transform_0, window_bounds = array<i64: 1, 10, 10, 32>}, {pipeline_mode = #tpu.pipeline_mode<synchronous>, transform_indices = @transform_1, window_bounds = array<i64: 288, 32>}, {pipeline_mode = #tpu.pipeline_mode<synchronous>, transform_indices = @transform_2, window_bounds = array<i64: 1, 32>}, {pipeline_mode = #tpu.pipeline_mode<synchronous>, transform_indices = @transform_3, window_bounds = array<i64: 288, 32>}, {pipeline_mode = #tpu.pipeline_mode<synchronous>, transform_indices = @transform_4, window_bounds = array<i64: 1, 32>}, {transform_indices = @transform_5, window_bounds = array<i64: 1, 8, 8, 32>}]} {
    %c0 = arith.constant 0 : index
    %c0_0 = arith.constant 0 : index
    %c0_1 = arith.constant 0 : index
    %c0_2 = arith.constant 0 : index
    %0 = vector.load %arg1[%c0, %c0_0, %c0_1, %c0_2] : memref<1x10x10x32xbf16, #tpu.memory_space<vmem>>, vector<1x10x10x32xbf16>
    %1 = vector.shape_cast %0 : vector<1x10x10x32xbf16> to vector<10x10x32xbf16>
    %2 = vector.extract_strided_slice %1 {offsets = [0, 0, 0], sizes = [8, 8, 32], strides = [1, 1, 1]} : vector<10x10x32xbf16> to vector<8x8x32xbf16>
    %3 = vector.extract_strided_slice %1 {offsets = [0, 1, 0], sizes = [8, 8, 32], strides = [1, 1, 1]} : vector<10x10x32xbf16> to vector<8x8x32xbf16>
    %4 = vector.extract_strided_slice %1 {offsets = [0, 2, 0], sizes = [8, 8, 32], strides = [1, 1, 1]} : vector<10x10x32xbf16> to vector<8x8x32xbf16>
    %5 = vector.extract_strided_slice %1 {offsets = [1, 0, 0], sizes = [8, 8, 32], strides = [1, 1, 1]} : vector<10x10x32xbf16> to vector<8x8x32xbf16>
    %6 = vector.extract_strided_slice %1 {offsets = [1, 1, 0], sizes = [8, 8, 32], strides = [1, 1, 1]} : vector<10x10x32xbf16> to vector<8x8x32xbf16>
    %7 = vector.extract_strided_slice %1 {offsets = [1, 2, 0], sizes = [8, 8, 32], strides = [1, 1, 1]} : vector<10x10x32xbf16> to vector<8x8x32xbf16>
    %8 = vector.extract_strided_slice %1 {offsets = [2, 0, 0], sizes = [8, 8, 32], strides = [1, 1, 1]} : vector<10x10x32xbf16> to vector<8x8x32xbf16>
    %9 = vector.extract_strided_slice %1 {offsets = [2, 1, 0], sizes = [8, 8, 32], strides = [1, 1, 1]} : vector<10x10x32xbf16> to vector<8x8x32xbf16>
    %10 = vector.extract_strided_slice %1 {offsets = [2, 2, 0], sizes = [8, 8, 32], strides = [1, 1, 1]} : vector<10x10x32xbf16> to vector<8x8x32xbf16>
    %11 = tpu.concatenate %2, %3, %4, %5, %6, %7, %8, %9, %10 in 2 : vector<8x8x32xbf16>, vector<8x8x32xbf16>, vector<8x8x32xbf16>, vector<8x8x32xbf16>, vector<8x8x32xbf16>, vector<8x8x32xbf16>, vector<8x8x32xbf16>, vector<8x8x32xbf16>, vector<8x8x32xbf16> -> vector<8x8x288xbf16>
    %12 = vector.shape_cast %11 : vector<8x8x288xbf16> to vector<64x288xbf16>
    %c0_3 = arith.constant 0 : index
    %c0_4 = arith.constant 0 : index
    %13 = vector.load %arg2[%c0_3, %c0_4] : memref<288x32xbf16, #tpu.memory_space<vmem>>, vector<288x32xbf16>
    %cst = arith.constant dense<0.000000e+00> : vector<64x32xf32>
    %14 = tpu.matmul %12, %13, %cst {dimension_numbers = #tpu.dot_dimension_numbers<[1], [0], [0], [1], [0, 0, 1, 1], [], []>} : vector<64x288xbf16>, vector<288x32xbf16>, vector<64x32xf32> -> vector<64x32xf32>
    %c0_5 = arith.constant 0 : index
    %c0_6 = arith.constant 0 : index
    %15 = vector.load %arg3[%c0_5, %c0_6] : memref<1x32xf32, #tpu.memory_space<vmem>>, vector<1x32xf32>
    %16 = vector.broadcast %15 : vector<1x32xf32> to vector<64x32xf32>
    %17 = arith.addf %14, %16 : vector<64x32xf32>
    %cst_7 = arith.constant 0.000000e+00 : f32
    %18 = vector.broadcast %cst_7 : f32 to vector<64x32xf32>
    %19 = arith.maximumf %17, %18 : vector<64x32xf32>
    %20 = vector.shape_cast %19 : vector<64x32xf32> to vector<8x8x32xf32>
    %21 = arith.truncf %20 : vector<8x8x32xf32> to vector<8x8x32xbf16>
    %cst_8 = arith.constant 0.000000e+00 : bf16
    %22 = vector.broadcast %cst_8 : bf16 to vector<1x8x32xbf16>
    %cst_9 = arith.constant 0.000000e+00 : bf16
    %23 = vector.broadcast %cst_9 : bf16 to vector<10x1x32xbf16>
    %24 = tpu.concatenate %22, %21, %22 in 0 : vector<1x8x32xbf16>, vector<8x8x32xbf16>, vector<1x8x32xbf16> -> vector<10x8x32xbf16>
    %25 = tpu.concatenate %23, %24, %23 in 1 : vector<10x1x32xbf16>, vector<10x8x32xbf16>, vector<10x1x32xbf16> -> vector<10x10x32xbf16>
    %26 = vector.extract_strided_slice %25 {offsets = [0, 0, 0], sizes = [8, 8, 32], strides = [1, 1, 1]} : vector<10x10x32xbf16> to vector<8x8x32xbf16>
    %27 = vector.extract_strided_slice %25 {offsets = [0, 1, 0], sizes = [8, 8, 32], strides = [1, 1, 1]} : vector<10x10x32xbf16> to vector<8x8x32xbf16>
    %28 = vector.extract_strided_slice %25 {offsets = [0, 2, 0], sizes = [8, 8, 32], strides = [1, 1, 1]} : vector<10x10x32xbf16> to vector<8x8x32xbf16>
    %29 = vector.extract_strided_slice %25 {offsets = [1, 0, 0], sizes = [8, 8, 32], strides = [1, 1, 1]} : vector<10x10x32xbf16> to vector<8x8x32xbf16>
    %30 = vector.extract_strided_slice %25 {offsets = [1, 1, 0], sizes = [8, 8, 32], strides = [1, 1, 1]} : vector<10x10x32xbf16> to vector<8x8x32xbf16>
    %31 = vector.extract_strided_slice %25 {offsets = [1, 2, 0], sizes = [8, 8, 32], strides = [1, 1, 1]} : vector<10x10x32xbf16> to vector<8x8x32xbf16>
    %32 = vector.extract_strided_slice %25 {offsets = [2, 0, 0], sizes = [8, 8, 32], strides = [1, 1, 1]} : vector<10x10x32xbf16> to vector<8x8x32xbf16>
    %33 = vector.extract_strided_slice %25 {offsets = [2, 1, 0], sizes = [8, 8, 32], strides = [1, 1, 1]} : vector<10x10x32xbf16> to vector<8x8x32xbf16>
    %34 = vector.extract_strided_slice %25 {offsets = [2, 2, 0], sizes = [8, 8, 32], strides = [1, 1, 1]} : vector<10x10x32xbf16> to vector<8x8x32xbf16>
    %35 = tpu.concatenate %26, %27, %28, %29, %30, %31, %32, %33, %34 in 2 : vector<8x8x32xbf16>, vector<8x8x32xbf16>, vector<8x8x32xbf16>, vector<8x8x32xbf16>, vector<8x8x32xbf16>, vector<8x8x32xbf16>, vector<8x8x32xbf16>, vector<8x8x32xbf16>, vector<8x8x32xbf16> -> vector<8x8x288xbf16>
    %36 = vector.shape_cast %35 : vector<8x8x288xbf16> to vector<64x288xbf16>
    %c0_10 = arith.constant 0 : index
    %c0_11 = arith.constant 0 : index
    %37 = vector.load %arg4[%c0_10, %c0_11] : memref<288x32xbf16, #tpu.memory_space<vmem>>, vector<288x32xbf16>
    %cst_12 = arith.constant dense<0.000000e+00> : vector<64x32xf32>
    %38 = tpu.matmul %36, %37, %cst_12 {dimension_numbers = #tpu.dot_dimension_numbers<[1], [0], [0], [1], [0, 0, 1, 1], [], []>} : vector<64x288xbf16>, vector<288x32xbf16>, vector<64x32xf32> -> vector<64x32xf32>
    %c0_13 = arith.constant 0 : index
    %c0_14 = arith.constant 0 : index
    %39 = vector.load %arg5[%c0_13, %c0_14] : memref<1x32xf32, #tpu.memory_space<vmem>>, vector<1x32xf32>
    %40 = vector.broadcast %39 : vector<1x32xf32> to vector<64x32xf32>
    %41 = arith.addf %38, %40 : vector<64x32xf32>
    %42 = vector.extract_strided_slice %1 {offsets = [1, 1, 0], sizes = [8, 8, 32], strides = [1, 1, 1]} : vector<10x10x32xbf16> to vector<8x8x32xbf16>
    %43 = arith.extf %42 : vector<8x8x32xbf16> to vector<8x8x32xf32>
    %44 = vector.shape_cast %43 : vector<8x8x32xf32> to vector<64x32xf32>
    %45 = arith.addf %41, %44 : vector<64x32xf32>
    %46 = vector.shape_cast %45 : vector<64x32xf32> to vector<8x8x32xf32>
    %47 = arith.truncf %46 : vector<8x8x32xf32> to vector<8x8x32xbf16>
    %c0_15 = arith.constant 0 : index
    %c0_16 = arith.constant 0 : index
    %c0_17 = arith.constant 0 : index
    %c0_18 = arith.constant 0 : index
    %48 = vector.load %arg6[%c0_15, %c0_16, %c0_17, %c0_18] : memref<1x8x8x32xbf16, #tpu.memory_space<vmem>>, vector<1x8x8x32xbf16>
    %49 = vector.shape_cast %48 : vector<1x8x8x32xbf16> to vector<8x8x32xbf16>
    %50 = vector.shape_cast %47 : vector<8x8x32xbf16> to vector<1x8x8x32xbf16>
    tpu.vector_store %arg6[%c0_15, %c0_16, %c0_17, %c0_18], %50 {strides = array<i32>} : memref<1x8x8x32xbf16, #tpu.memory_space<vmem>>, vector<1x8x8x32xbf16>,
    return
  }
  func.func @transform_0(%arg0: i32) -> (i32, i32, i32, i32) {
    %c0_i32 = arith.constant 0 : i32
    %c0_i32_0 = arith.constant 0 : i32
    %c0_i32_1 = arith.constant 0 : i32
    %c0_i32_2 = arith.constant 0 : i32
    return %arg0, %c0_i32, %c0_i32_0, %c0_i32_1 : i32, i32, i32, i32
  }
  func.func @transform_1(%arg0: i32) -> (i32, i32) {
    %c0_i32 = arith.constant 0 : i32
    %c0_i32_0 = arith.constant 0 : i32
    %c0_i32_1 = arith.constant 0 : i32
    return %c0_i32, %c0_i32_0 : i32, i32
  }
  func.func @transform_2(%arg0: i32) -> (i32, i32) {
    %c0_i32 = arith.constant 0 : i32
    %c0_i32_0 = arith.constant 0 : i32
    %c0_i32_1 = arith.constant 0 : i32
    return %c0_i32, %c0_i32_0 : i32, i32
  }
  func.func @transform_3(%arg0: i32) -> (i32, i32) {
    %c0_i32 = arith.constant 0 : i32
    %c0_i32_0 = arith.constant 0 : i32
    %c0_i32_1 = arith.constant 0 : i32
    return %c0_i32, %c0_i32_0 : i32, i32
  }
  func.func @transform_4(%arg0: i32) -> (i32, i32) {
    %c0_i32 = arith.constant 0 : i32
    %c0_i32_0 = arith.constant 0 : i32
    %c0_i32_1 = arith.constant 0 : i32
    return %c0_i32, %c0_i32_0 : i32, i32
  }
  func.func @transform_5(%arg0: i32) -> (i32, i32, i32, i32) {
    %c0_i32 = arith.constant 0 : i32
    %c0_i32_0 = arith.constant 0 : i32
    %c0_i32_1 = arith.constant 0 : i32
    %c0_i32_2 = arith.constant 0 : i32
    return %arg0, %c0_i32, %c0_i32_0, %c0_i32_1 : i32, i32, i32, i32
  }
}

module attributes {stable_mosaic.version = 11 : i64} {
  func.func @_deconv2x_kernel(%arg0: i32, %arg1: memref<1x18x18x32xbf16, #tpu.memory_space<vmem>>, %arg2: memref<128x128xbf16, #tpu.memory_space<vmem>>, %arg3: memref<1x128xf32, #tpu.memory_space<vmem>>, %arg4: memref<1x16x16x128xbf16, #tpu.memory_space<vmem>>) attributes {dimension_semantics = [#tpu.dimension_semantics<parallel>], iteration_bounds = array<i64: 2>, scalar_prefetch = 0 : i64, scratch_operands = 0 : i64, tpu.core_type = #tpu.core_type<tc>, window_params = [{transform_indices = @transform_0, window_bounds = array<i64: 1, 18, 18, 32>}, {pipeline_mode = #tpu.pipeline_mode<synchronous>, transform_indices = @transform_1, window_bounds = array<i64: 128, 128>}, {pipeline_mode = #tpu.pipeline_mode<synchronous>, transform_indices = @transform_2, window_bounds = array<i64: 1, 128>}, {transform_indices = @transform_3, window_bounds = array<i64: 1, 16, 16, 128>}]} {
    %c0 = arith.constant 0 : index
    %c0_0 = arith.constant 0 : index
    %c0_1 = arith.constant 0 : index
    %c0_2 = arith.constant 0 : index
    %0 = vector.load %arg1[%c0, %c0_0, %c0_1, %c0_2] : memref<1x18x18x32xbf16, #tpu.memory_space<vmem>>, vector<1x18x18x32xbf16>
    %1 = vector.shape_cast %0 : vector<1x18x18x32xbf16> to vector<18x18x32xbf16>
    %2 = vector.extract_strided_slice %1 {offsets = [1, 1, 0], sizes = [16, 16, 32], strides = [1, 1, 1]} : vector<18x18x32xbf16> to vector<16x16x32xbf16>
    %3 = vector.extract_strided_slice %1 {offsets = [1, 2, 0], sizes = [16, 16, 32], strides = [1, 1, 1]} : vector<18x18x32xbf16> to vector<16x16x32xbf16>
    %4 = vector.extract_strided_slice %1 {offsets = [2, 1, 0], sizes = [16, 16, 32], strides = [1, 1, 1]} : vector<18x18x32xbf16> to vector<16x16x32xbf16>
    %5 = vector.extract_strided_slice %1 {offsets = [2, 2, 0], sizes = [16, 16, 32], strides = [1, 1, 1]} : vector<18x18x32xbf16> to vector<16x16x32xbf16>
    %6 = tpu.concatenate %2, %3, %4, %5 in 2 : vector<16x16x32xbf16>, vector<16x16x32xbf16>, vector<16x16x32xbf16>, vector<16x16x32xbf16> -> vector<16x16x128xbf16>
    %7 = vector.shape_cast %6 : vector<16x16x128xbf16> to vector<256x128xbf16>
    %c0_3 = arith.constant 0 : index
    %c0_4 = arith.constant 0 : index
    %8 = vector.load %arg2[%c0_3, %c0_4] : memref<128x128xbf16, #tpu.memory_space<vmem>>, vector<128x128xbf16>
    %cst = arith.constant dense<0.000000e+00> : vector<256x128xf32>
    %9 = tpu.matmul %7, %8, %cst {dimension_numbers = #tpu.dot_dimension_numbers<[1], [0], [0], [1], [0, 0, 1, 1], [], []>} : vector<256x128xbf16>, vector<128x128xbf16>, vector<256x128xf32> -> vector<256x128xf32>
    %c0_5 = arith.constant 0 : index
    %c0_6 = arith.constant 0 : index
    %10 = vector.load %arg3[%c0_5, %c0_6] : memref<1x128xf32, #tpu.memory_space<vmem>>, vector<1x128xf32>
    %11 = vector.broadcast %10 : vector<1x128xf32> to vector<256x128xf32>
    %12 = arith.addf %9, %11 : vector<256x128xf32>
    %cst_7 = arith.constant 0.000000e+00 : f32
    %13 = vector.broadcast %cst_7 : f32 to vector<256x128xf32>
    %14 = arith.maximumf %12, %13 : vector<256x128xf32>
    %15 = vector.shape_cast %14 : vector<256x128xf32> to vector<16x16x128xf32>
    %16 = arith.truncf %15 : vector<16x16x128xf32> to vector<16x16x128xbf16>
    %c0_8 = arith.constant 0 : index
    %c0_9 = arith.constant 0 : index
    %c0_10 = arith.constant 0 : index
    %c0_11 = arith.constant 0 : index
    %17 = vector.load %arg4[%c0_8, %c0_9, %c0_10, %c0_11] : memref<1x16x16x128xbf16, #tpu.memory_space<vmem>>, vector<1x16x16x128xbf16>
    %18 = vector.shape_cast %17 : vector<1x16x16x128xbf16> to vector<16x16x128xbf16>
    %19 = vector.shape_cast %16 : vector<16x16x128xbf16> to vector<1x16x16x128xbf16>
    tpu.vector_store %arg4[%c0_8, %c0_9, %c0_10, %c0_11], %19 {strides = array<i32>} : memref<1x16x16x128xbf16, #tpu.memory_space<vmem>>, vector<1x16x16x128xbf16>,
    return
  }
  func.func @transform_0(%arg0: i32) -> (i32, i32, i32, i32) {
    %c0_i32 = arith.constant 0 : i32
    %c0_i32_0 = arith.constant 0 : i32
    %c0_i32_1 = arith.constant 0 : i32
    %c0_i32_2 = arith.constant 0 : i32
    return %arg0, %c0_i32, %c0_i32_0, %c0_i32_1 : i32, i32, i32, i32
  }
  func.func @transform_1(%arg0: i32) -> (i32, i32) {
    %c0_i32 = arith.constant 0 : i32
    %c0_i32_0 = arith.constant 0 : i32
    %c0_i32_1 = arith.constant 0 : i32
    return %c0_i32, %c0_i32_0 : i32, i32
  }
  func.func @transform_2(%arg0: i32) -> (i32, i32) {
    %c0_i32 = arith.constant 0 : i32
    %c0_i32_0 = arith.constant 0 : i32
    %c0_i32_1 = arith.constant 0 : i32
    return %c0_i32, %c0_i32_0 : i32, i32
  }
  func.func @transform_3(%arg0: i32) -> (i32, i32, i32, i32) {
    %c0_i32 = arith.constant 0 : i32
    %c0_i32_0 = arith.constant 0 : i32
    %c0_i32_1 = arith.constant 0 : i32
    %c0_i32_2 = arith.constant 0 : i32
    return %arg0, %c0_i32, %c0_i32_0, %c0_i32_1 : i32, i32, i32, i32
  }
}

module attributes {stable_mosaic.version = 11 : i64} {
  func.func @_conv3x3_kernel(%arg0: i32, %arg1: memref<1x34x34x32xbf16, #tpu.memory_space<vmem>>, %arg2: memref<288x3xbf16, #tpu.memory_space<vmem>>, %arg3: memref<1x3xf32, #tpu.memory_space<vmem>>, %arg4: memref<1x32x32x3xf32, #tpu.memory_space<vmem>>, %arg5: memref<1x32x32x3xf32, #tpu.memory_space<vmem>>) attributes {dimension_semantics = [#tpu.dimension_semantics<parallel>], iteration_bounds = array<i64: 2>, scalar_prefetch = 0 : i64, scratch_operands = 0 : i64, tpu.core_type = #tpu.core_type<tc>, window_params = [{transform_indices = @transform_0, window_bounds = array<i64: 1, 34, 34, 32>}, {pipeline_mode = #tpu.pipeline_mode<synchronous>, transform_indices = @transform_1, window_bounds = array<i64: 288, 3>}, {pipeline_mode = #tpu.pipeline_mode<synchronous>, transform_indices = @transform_2, window_bounds = array<i64: 1, 3>}, {transform_indices = @transform_3, window_bounds = array<i64: 1, 32, 32, 3>}, {transform_indices = @transform_4, window_bounds = array<i64: 1, 32, 32, 3>}]} {
    %c0 = arith.constant 0 : index
    %c0_0 = arith.constant 0 : index
    %c0_1 = arith.constant 0 : index
    %c0_2 = arith.constant 0 : index
    %0 = vector.load %arg1[%c0, %c0_0, %c0_1, %c0_2] : memref<1x34x34x32xbf16, #tpu.memory_space<vmem>>, vector<1x34x34x32xbf16>
    %1 = vector.shape_cast %0 : vector<1x34x34x32xbf16> to vector<34x34x32xbf16>
    %2 = vector.extract_strided_slice %1 {offsets = [0, 0, 0], sizes = [32, 32, 32], strides = [1, 1, 1]} : vector<34x34x32xbf16> to vector<32x32x32xbf16>
    %3 = vector.extract_strided_slice %1 {offsets = [0, 1, 0], sizes = [32, 32, 32], strides = [1, 1, 1]} : vector<34x34x32xbf16> to vector<32x32x32xbf16>
    %4 = vector.extract_strided_slice %1 {offsets = [0, 2, 0], sizes = [32, 32, 32], strides = [1, 1, 1]} : vector<34x34x32xbf16> to vector<32x32x32xbf16>
    %5 = vector.extract_strided_slice %1 {offsets = [1, 0, 0], sizes = [32, 32, 32], strides = [1, 1, 1]} : vector<34x34x32xbf16> to vector<32x32x32xbf16>
    %6 = vector.extract_strided_slice %1 {offsets = [1, 1, 0], sizes = [32, 32, 32], strides = [1, 1, 1]} : vector<34x34x32xbf16> to vector<32x32x32xbf16>
    %7 = vector.extract_strided_slice %1 {offsets = [1, 2, 0], sizes = [32, 32, 32], strides = [1, 1, 1]} : vector<34x34x32xbf16> to vector<32x32x32xbf16>
    %8 = vector.extract_strided_slice %1 {offsets = [2, 0, 0], sizes = [32, 32, 32], strides = [1, 1, 1]} : vector<34x34x32xbf16> to vector<32x32x32xbf16>
    %9 = vector.extract_strided_slice %1 {offsets = [2, 1, 0], sizes = [32, 32, 32], strides = [1, 1, 1]} : vector<34x34x32xbf16> to vector<32x32x32xbf16>
    %10 = vector.extract_strided_slice %1 {offsets = [2, 2, 0], sizes = [32, 32, 32], strides = [1, 1, 1]} : vector<34x34x32xbf16> to vector<32x32x32xbf16>
    %11 = tpu.concatenate %2, %3, %4, %5, %6, %7, %8, %9, %10 in 2 : vector<32x32x32xbf16>, vector<32x32x32xbf16>, vector<32x32x32xbf16>, vector<32x32x32xbf16>, vector<32x32x32xbf16>, vector<32x32x32xbf16>, vector<32x32x32xbf16>, vector<32x32x32xbf16>, vector<32x32x32xbf16> -> vector<32x32x288xbf16>
    %12 = vector.shape_cast %11 : vector<32x32x288xbf16> to vector<1024x288xbf16>
    %c0_3 = arith.constant 0 : index
    %c0_4 = arith.constant 0 : index
    %13 = vector.load %arg2[%c0_3, %c0_4] : memref<288x3xbf16, #tpu.memory_space<vmem>>, vector<288x3xbf16>
    %cst = arith.constant dense<0.000000e+00> : vector<1024x3xf32>
    %14 = tpu.matmul %12, %13, %cst {dimension_numbers = #tpu.dot_dimension_numbers<[1], [0], [0], [1], [0, 0, 1, 1], [], []>} : vector<1024x288xbf16>, vector<288x3xbf16>, vector<1024x3xf32> -> vector<1024x3xf32>
    %c0_5 = arith.constant 0 : index
    %c0_6 = arith.constant 0 : index
    %15 = vector.load %arg3[%c0_5, %c0_6] : memref<1x3xf32, #tpu.memory_space<vmem>>, vector<1x3xf32>
    %16 = vector.broadcast %15 : vector<1x3xf32> to vector<1024x3xf32>
    %17 = arith.addf %14, %16 : vector<1024x3xf32>
    %c0_7 = arith.constant 0 : index
    %c0_8 = arith.constant 0 : index
    %c0_9 = arith.constant 0 : index
    %c0_10 = arith.constant 0 : index
    %18 = vector.load %arg4[%c0_7, %c0_8, %c0_9, %c0_10] : memref<1x32x32x3xf32, #tpu.memory_space<vmem>>, vector<1x32x32x3xf32>
    %19 = vector.shape_cast %18 : vector<1x32x32x3xf32> to vector<32x32x3xf32>
    %20 = vector.shape_cast %19 : vector<32x32x3xf32> to vector<1024x3xf32>
    %21 = arith.addf %17, %20 : vector<1024x3xf32>
    %22 = vector.shape_cast %21 : vector<1024x3xf32> to vector<32x32x3xf32>
    %c0_11 = arith.constant 0 : index
    %c0_12 = arith.constant 0 : index
    %c0_13 = arith.constant 0 : index
    %c0_14 = arith.constant 0 : index
    %23 = vector.load %arg5[%c0_11, %c0_12, %c0_13, %c0_14] : memref<1x32x32x3xf32, #tpu.memory_space<vmem>>, vector<1x32x32x3xf32>
    %24 = vector.shape_cast %23 : vector<1x32x32x3xf32> to vector<32x32x3xf32>
    %25 = vector.shape_cast %22 : vector<32x32x3xf32> to vector<1x32x32x3xf32>
    tpu.vector_store %arg5[%c0_11, %c0_12, %c0_13, %c0_14], %25 {strides = array<i32>} : memref<1x32x32x3xf32, #tpu.memory_space<vmem>>, vector<1x32x32x3xf32>,
    return
  }
  func.func @transform_0(%arg0: i32) -> (i32, i32, i32, i32) {
    %c0_i32 = arith.constant 0 : i32
    %c0_i32_0 = arith.constant 0 : i32
    %c0_i32_1 = arith.constant 0 : i32
    %c0_i32_2 = arith.constant 0 : i32
    return %arg0, %c0_i32, %c0_i32_0, %c0_i32_1 : i32, i32, i32, i32
  }
  func.func @transform_1(%arg0: i32) -> (i32, i32) {
    %c0_i32 = arith.constant 0 : i32
    %c0_i32_0 = arith.constant 0 : i32
    %c0_i32_1 = arith.constant 0 : i32
    return %c0_i32, %c0_i32_0 : i32, i32
  }
  func.func @transform_2(%arg0: i32) -> (i32, i32) {
    %c0_i32 = arith.constant 0 : i32
    %c0_i32_0 = arith.constant 0 : i32
    %c0_i32_1 = arith.constant 0 : i32
    return %c0_i32, %c0_i32_0 : i32, i32
  }
  func.func @transform_3(%arg0: i32) -> (i32, i32, i32, i32) {
    %c0_i32 = arith.constant 0 : i32
    %c0_i32_0 = arith.constant 0 : i32
    %c0_i32_1 = arith.constant 0 : i32
    %c0_i32_2 = arith.constant 0 : i32
    return %arg0, %c0_i32, %c0_i32_0, %c0_i32_1 : i32, i32, i32, i32
  }
  func.func @transform_4(%arg0: i32) -> (i32, i32, i32, i32) {
    %c0_i32 = arith.constant 0 : i32
    %c0_i32_0 = arith.constant 0 : i32
    %c0_i32_1 = arith.constant 0 : i32
    %c0_i32_2 = arith.constant 0 : i32
    return %arg0, %c0_i32, %c0_i32_0, %c0_i32_1 : i32, i32, i32, i32
  }
}

</mosaic_0001>

<llo_original>
// kernel: srnet_forward.9
$region0: #{srnet_forward.9}
  #allocation0 [shape = 'u32[]', space=smem, size = 0x4, offset = 0x4, fixed_abs, tag = 'smem constant byte address 0x4 - core index']
  #allocation1 [shape = 'u32[144,128]{1,0:T(1,128)}', space=vmem, size = 0x12000, scoped, tag = 'internal scratch']
  %s0 = inlined_call_operand.vmem [shape: bf16[2,10,10,32], index: 0, kind: input, shape index: {}]
  %s1 = inlined_call_operand.vmem [shape: bf16[128,128], index: 1, kind: input, shape index: {}]
  %s2 = inlined_call_operand.vmem [shape: f32[1,128], index: 2, kind: input, shape index: {}]
  %s3 = inlined_call_operand.vmem [shape: bf16[2,8,8,128], index: 3, kind: output, shape index: {}]
  %s4 = sld [smem:[#allocation0]]
  $region45: #{srnet_forward.9} parent=0
    _
  %s6 = ssub.s32 1, %s4
  %s7 = scalar_select 0, %s6, %s4
  loop: start=0, step=1, limit=4
  $region2: #{srnet_forward.9} parent=0 // loop_pre_header
    _
  $region3: #{srnet_forward.9} parent=0 // loop_header
    %s9 = sphi 0, %s13
    %p10 = scmp.ge.s32.totalorder %s9, 4
    %s19 = sphi 0, %s21
    %s22 = sphi 0, %s19
    %s23 = sphi 0, %s22
    %s39 = sphi 0, %s23
    %s43 = sphi 0, %s43
    %s45 = sphi 0, %s43
    %s46 = sphi 0, %s45
    %s60 = sphi 0, %s46
    %s64 = sphi 0, %s64
    %s66 = sphi 0, %s64
    %s67 = sphi 0, %s66
    %s81 = sphi 0, %s67
    %s87 = sphi 0, %s89
    %s90 = sphi 0, %s87
    %s91 = sphi 0, %s90
    %s107 = sphi 0, %s91
  $region4: #{srnet_forward.9} parent=0 // loop_header_branch
    %12 = sbr.rel (%p10) target = $region8
  $region5: #{srnet_forward.9} parent=0 // loop_body
    %s14 = ssub.s32 %s9, 1
    %s15 = ssub.s32 %s9, 2
    %s16 = sadd.s32 %s9, 1
    %s17 = ssub.s32 %s9, %s16
    %p18 = scmp.eq.s32.totalorder %s17, 0
    %s20 = sadd.s32 %s19, 1
    %s21 = scalar_select %p18, %s19, %s20
    %p24 = pneg %p18
    %p25 = scmp.eq.s32.totalorder %s9, 1
    %p26 = por %p24, %p25
    %p27 = scmp.ne.s32.totalorder %s19, %s22
    %p28 = scmp.eq.s32.totalorder %s9, 0
    %p29 = por %p27, %p28
    %p30 = scmp.ne.s32.totalorder %s19, %s22
    %p31 = scmp.eq.s32.totalorder %s14, 1
    %p32 = por %p30, %p31
    %p33 = scmp.ne.s32.totalorder %s22, %s23
    %p34 = scmp.eq.s32.totalorder %s14, 0
    %p35 = por %p33, %p34
    %p36 = scmp.ne.s32.totalorder %s22, %s23
    %p37 = scmp.eq.s32.totalorder %s15, 1
    %p38 = por %p36, %p37
    %p40 = scmp.ne.s32.totalorder %s23, %s39
    %p41 = scmp.eq.s32.totalorder %s15, 0
    %p42 = por %p40, %p41
    %s44 = sadd.s32 %s43, 1
    %p47 = scmp.eq.s32.totalorder %s9, 1
    %p48 = scmp.ne.s32.totalorder %s43, %s45
    %p49 = scmp.eq.s32.totalorder %s9, 0
    %p50 = por %p48, %p49
    %p51 = scmp.ne.s32.totalorder %s43, %s45
    %p52 = scmp.eq.s32.totalorder %s14, 1
    %p53 = por %p51, %p52
    %p54 = scmp.ne.s32.totalorder %s45, %s46
    %p55 = scmp.eq.s32.totalorder %s14, 0
    %p56 = por %p54, %p55
    %p57 = scmp.ne.s32.totalorder %s45, %s46
    %p58 = scmp.eq.s32.totalorder %s15, 1
    %p59 = por %p57, %p58
    %p61 = scmp.ne.s32.totalorder %s46, %s60
    %p62 = scmp.eq.s32.totalorder %s15, 0
    %p63 = por %p61, %p62
    %s65 = sadd.s32 %s64, 1
    %p68 = scmp.eq.s32.totalorder %s9, 1
    %p69 = scmp.ne.s32.totalorder %s64, %s66
    %p70 = scmp.eq.s32.totalorder %s9, 0
    %p71 = por %p69, %p70
    %p72 = scmp.ne.s32.totalorder %s64, %s66
    %p73 = scmp.eq.s32.totalorder %s14, 1
    %p74 = por %p72, %p73
    %p75 = scmp.ne.s32.totalorder %s66, %s67
    %p76 = scmp.eq.s32.totalorder %s14, 0
    %p77 = por %p75, %p76
    %p78 = scmp.ne.s32.totalorder %s66, %s67
    %p79 = scmp.eq.s32.totalorder %s15, 1
    %p80 = por %p78, %p79
    %p82 = scmp.ne.s32.totalorder %s67, %s81
    %p83 = scmp.eq.s32.totalorder %s15, 0
    %p84 = por %p82, %p83
    %s85 = ssub.s32 %s9, %s16
    %p86 = scmp.eq.s32.totalorder %s85, 0
    %s88 = sadd.s32 %s87, 1
    %s89 = scalar_select %p86, %s87, %s88
    %p92 = pneg %p86
    %p93 = scmp.eq.s32.totalorder %s9, 1
    %p94 = por %p92, %p93
    %p95 = scmp.ne.s32.totalorder %s87, %s90
    %p96 = scmp.eq.s32.totalorder %s9, 0
    %p97 = por %p95, %p96
    %p98 = scmp.ne.s32.totalorder %s87, %s90
    %p99 = scmp.eq.s32.totalorder %s14, 1
    %p100 = por %p98, %p99
    %p101 = scmp.ne.s32.totalorder %s90, %s91
    %p102 = scmp.eq.s32.totalorder %s14, 0
    %p103 = por %p101, %p102
    %p104 = scmp.ne.s32.totalorder %s90, %s91
    %p105 = scmp.eq.s32.totalorder %s15, 1
    %p106 = por %p104, %p105
    %p108 = scmp.ne.s32.totalorder %s91, %s107
    %p109 = scmp.eq.s32.totalorder %s15, 0
    %p110 = por %p108, %p109
    %p111 = scmp.le.s32.totalorder 1, %s9
    %p112 = scmp.lt.s32.totalorder %s9, 3
    %p113 = pnand %p111, %p112
    %p114 = pneg %p113
    // Predicated region
    $region9: #{srnet_forward.9} parent=5 // pred_check
      _
    $region10: #{srnet_forward.9} parent=5 // pred_check_branch
      %116 = sbr.rel (%p113) target = $region12
    $region11: #{srnet_forward.9} parent=5 // pred_region
      %s117 = ssub.s32 %s9, 1
      // Predicated region
      $region13: #{srnet_forward.9} parent=11 // pred_check
        %p118 = pneg %p56
      $region14: #{srnet_forward.9} parent=11 // pred_check_branch
        %120 = sbr.rel (%p118) target = $region16
      $region15: #{srnet_forward.9} parent=11 // pred_region
        _
      $region16: #{srnet_forward.9} parent=11 // pred_fallthru
        _
      // Predicated region
      $region17: #{srnet_forward.9} parent=11 // pred_check
        %p121 = pneg %p77
      $region18: #{srnet_forward.9} parent=11 // pred_check_branch
        %123 = sbr.rel (%p121) target = $region20
      $region19: #{srnet_forward.9} parent=11 // pred_region
        _
      $region20: #{srnet_forward.9} parent=11 // pred_fallthru
        _
    $region12: #{srnet_forward.9} parent=5 // pred_fallthru
      _
    %p124 = scmp.lt.s32.totalorder %s9, 2
    // Predicated region
    $region21: #{srnet_forward.9} parent=5 // pred_check
      %p125 = pneg %p124
    $region22: #{srnet_forward.9} parent=5 // pred_check_branch
      %127 = sbr.rel (%p125) target = $region24
    $region23: #{srnet_forward.9} parent=5 // pred_region
      // Predicated region
      $region25: #{srnet_forward.9} parent=23 // pred_check
        %p128 = pneg %p29
      $region26: #{srnet_forward.9} parent=23 // pred_check_branch
        %130 = sbr.rel (%p128) target = $region28
      $region27: #{srnet_forward.9} parent=23 // pred_region
        %p131 = scmp.lt.s32.totalorder %s9, 1
        %s132 = scalar_select %p131, %s9, 1
        %s133 = smul.addr %s132, 20
        %s134 = smul.addr %s133, 4
        %s135 = scalar_lea.vmem %s0, %s134
      $region28: #{srnet_forward.9} parent=23 // pred_fallthru
        _
    $region24: #{srnet_forward.9} parent=5 // pred_fallthru
      _
    %p136 = scmp.le.s32.totalorder 1, %s9
    %p137 = scmp.lt.s32.totalorder %s9, 3
    %p138 = pnand %p136, %p137
    %p139 = pneg %p138
    // Predicated region
    $region29: #{srnet_forward.9} parent=5 // pred_check
      _
    $region30: #{srnet_forward.9} parent=5 // pred_check_branch
      %141 = sbr.rel (%p138) target = $region32
    $region31: #{srnet_forward.9} parent=5 // pred_region
      %s142 = ssub.s32 %s9, 1
      %p143 = scmp.lt.s32.totalorder %s14, 1
      %s144 = scalar_select %p143, %s14, 1
      %s145 = smul.addr %s144, 20
      %s146 = smul.addr %s145, 4
      %s147 = scalar_lea.vmem %s0, %s146
      %p148 = pneg %p35
      %p149 = pneg %p32
      %p150 = pneg %p56
      %p151 = pneg %p53
      %p152 = pneg %p77
      %p153 = pneg %p74
      %p154 = pneg %p103
      %p155 = pneg %p100
      %p156 = scmp.lt.s32.totalorder %s14, 1
      %s157 = scalar_select %p156, %s14, 1
      %s158 = smul.addr %s157, 8
      %s159 = smul.addr %s158, 4
      %s160 = scalar_lea.vmem %s3, %s159
      %p161 = scmp.lt.s32.totalorder %s14, 1
      %s162 = scalar_select %p161, %s14, 1
      %s163 = smul.addr %s162, 20
      %s164 = smul.addr %s163, 4
      %s165 = scalar_lea.vmem %s0, %s164
      %p166 = scmp.lt.s32.totalorder %s14, 1
      %s167 = scalar_select %p166, %s14, 1
      %s168 = smul.addr %s167, 8
      %s169 = smul.addr %s168, 4
      %s170 = scalar_lea.vmem %s3, %s169
      %v172 = vld [vmem:[%s165 + $0x8] sm:$0xf]
      %v173 = vld [vmem:[%s165 + $0xc] sm:$0x1]
      %v174 = vld [vmem:[%s165 + $0x10] sm:$0xf]
      %v175 = vld [vmem:[%s165 + $0x14] sm:$0x1]
      %v176 = vld [vmem:[%s165 + $0x18] sm:$0xf]
      %v177 = vld [vmem:[%s165 + $0x1c] sm:$0x1]
      %v178 = vld [vmem:[%s165 + $0x20] sm:$0xf]
      %v179 = vld [vmem:[%s165 + $0x24] sm:$0x1]
      %v180 = vld [vmem:[%s165 + $0x28] sm:$0xf]
      %v181 = vld [vmem:[%s165 + $0x2c] sm:$0x1]
      %v182 = vld [vmem:[%s165 + $0x30] sm:$0xf]
      %v183 = vld [vmem:[%s165 + $0x34] sm:$0x1]
      %v184 = vld [vmem:[%s165 + $0x38] sm:$0xf]
      %v185 = vld [vmem:[%s165 + $0x3c] sm:$0x1]
      %v186 = vld [vmem:[%s165 + $0x40] sm:$0xf]
      %v187 = vld [vmem:[%s165 + $0x44] sm:$0x1]
      %v188 = vld [vmem:[%s165 + $0x48] sm:$0xf]
      %v189 = vld [vmem:[%s165 + $0x4c] sm:$0x1]
      %v206 = vunpack.c.l.b16 %v172
      %v207 = vunpack.c.l.b16 %v173
      %v208 = vunpack.c.l.b16 %v174
      %v209 = vunpack.c.l.b16 %v175
      %v210 = vunpack.c.l.b16 %v176
      %v211 = vunpack.c.l.b16 %v177
      %v212 = vunpack.c.l.b16 %v178
      %v213 = vunpack.c.l.b16 %v179
      %v214 = vunpack.c.l.b16 %v180
      %v215 = vunpack.c.l.b16 %v181
      %v216 = vunpack.c.l.b16 %v182
      %v217 = vunpack.c.l.b16 %v183
      %v218 = vunpack.c.l.b16 %v184
      %v219 = vunpack.c.l.b16 %v185
      %v220 = vunpack.c.l.b16 %v186
      %v221 = vunpack.c.l.b16 %v187
      %v222 = vpack.c.b16 %v207, %v206
      %v223 = vpack.c.b16 %v209, %v208
      %v224 = vpack.c.b16 %v211, %v210
      %v225 = vpack.c.b16 %v213, %v212
      %v226 = vpack.c.b16 %v215, %v214
      %v227 = vpack.c.b16 %v217, %v216
      %v228 = vpack.c.b16 %v219, %v218
      %v229 = vpack.c.b16 %v221, %v220
      %v231 = vshrl.u32 %v222, 16
      %v233 = vshll.u32 %v222, 16
      %v235 = vrot.slane %v233, 1
      %v236 = vor.u32 %v231, %v235
      %v238 = vshrl.u32 %v223, 16
      %v240 = vshll.u32 %v223, 16
      %v242 = vrot.slane %v240, 1
      %v243 = vor.u32 %v238, %v242
      %v245 = vshrl.u32 %v224, 16
      %v247 = vshll.u32 %v224, 16
      %v249 = vrot.slane %v247, 1
      %v250 = vor.u32 %v245, %v249
      %v252 = vshrl.u32 %v225, 16
      %v254 = vshll.u32 %v225, 16
      %v256 = vrot.slane %v254, 1
      %v257 = vor.u32 %v252, %v256
      %v259 = vshrl.u32 %v226, 16
      %v261 = vshll.u32 %v226, 16
      %v263 = vrot.slane %v261, 1
      %v264 = vor.u32 %v259, %v263
      %v266 = vshrl.u32 %v227, 16
      %v268 = vshll.u32 %v227, 16
      %v270 = vrot.slane %v268, 1
      %v271 = vor.u32 %v266, %v270
      %v273 = vshrl.u32 %v228, 16
      %v275 = vshll.u32 %v228, 16
      %v277 = vrot.slane %v275, 1
      %v278 = vor.u32 %v273, %v277
      %v280 = vshrl.u32 %v229, 16
      %v282 = vshll.u32 %v229, 16
      %v284 = vrot.slane %v282, 1
      %v285 = vor.u32 %v280, %v284
      %286 = vrot.lane.b32.xlu0 %v236, 32
      %v287 = vpop.permute.xlu0 %286
      %288 = vrot.lane.b32.xlu0 %v243, 32
      %v289 = vpop.permute.xlu0 %288
      %290 = vrot.lane.b32.xlu0 %v250, 32
      %v291 = vpop.permute.xlu0 %290
      %292 = vrot.lane.b32.xlu0 %v257, 32
      %v293 = vpop.permute.xlu0 %292
      %294 = vrot.lane.b32.xlu0 %v264, 32
      %v295 = vpop.permute.xlu0 %294
      %296 = vrot.lane.b32.xlu0 %v271, 32
      %v297 = vpop.permute.xlu0 %296
      %298 = vrot.lane.b32.xlu0 %v278, 32
      %v299 = vpop.permute.xlu0 %298
      %300 = vrot.lane.b32.xlu0 %v285, 32
      %v301 = vpop.permute.xlu0 %300
      %v304 = vunpack.c.l.b16 %v188
      %v305 = vunpack.c.l.b16 %v189
      %v306 = vpack.c.b16 %v305, %v304
      %307 = vrot.lane.b32.xlu0 %v223, 64
      %v308 = vpop.permute.xlu0 %307
      %309 = vrot.lane.b32.xlu0 %v224, 64
      %v310 = vpop.permute.xlu0 %309
      %311 = vrot.lane.b32.xlu0 %v225, 64
      %v312 = vpop.permute.xlu0 %311
      %313 = vrot.lane.b32.xlu0 %v226, 64
      %v314 = vpop.permute.xlu0 %313
      %315 = vrot.lane.b32.xlu0 %v227, 64
      %v316 = vpop.permute.xlu0 %315
      %317 = vrot.lane.b32.xlu0 %v228, 64
      %v318 = vpop.permute.xlu0 %317
      %319 = vrot.lane.b32.xlu0 %v229, 64
      %v320 = vpop.permute.xlu0 %319
      %321 = vrot.lane.b32.xlu0 %v306, 64
      %v322 = vpop.permute.xlu0 %321
      %v324 = vshrl.u32 %v306, 16
      %v326 = vshll.u32 %v306, 16
      %v328 = vrot.slane %v326, 1
      %v329 = vor.u32 %v324, %v328
      %330 = vrot.lane.b32.xlu0 %v243, 96
      %v331 = vpop.permute.xlu0 %330
      %332 = vrot.lane.b32.xlu0 %v250, 96
      %v333 = vpop.permute.xlu0 %332
      %334 = vrot.lane.b32.xlu0 %v257, 96
      %v335 = vpop.permute.xlu0 %334
      %336 = vrot.lane.b32.xlu0 %v264, 96
      %v337 = vpop.permute.xlu0 %336
      %338 = vrot.lane.b32.xlu0 %v271, 96
      %v339 = vpop.permute.xlu0 %338
      %340 = vrot.lane.b32.xlu0 %v278, 96
      %v341 = vpop.permute.xlu0 %340
      %342 = vrot.lane.b32.xlu0 %v285, 96
      %v343 = vpop.permute.xlu0 %342
      %344 = vrot.lane.b32.xlu0 %v329, 96
      %v345 = vpop.permute.xlu0 %344
      %vm346 = vcmask 261120
      %v348 = vsel %vm346, %v222, %v287
      %v350 = vsel %vm346, %v223, %v289
      %v352 = vsel %vm346, %v224, %v291
      %v354 = vsel %vm346, %v225, %v293
      %v356 = vsel %vm346, %v226, %v295
      %v358 = vsel %vm346, %v227, %v297
      %v360 = vsel %vm346, %v228, %v299
      %v362 = vsel %vm346, %v229, %v301
      %vm363 = vcmask 523264
      %v365 = vsel %vm363, %v348, %v308
      %v367 = vsel %vm363, %v350, %v310
      %v369 = vsel %vm363, %v352, %v312
      %v371 = vsel %vm363, %v354, %v314
      %v373 = vsel %vm363, %v356, %v316
      %v375 = vsel %vm363, %v358, %v318
      %v377 = vsel %vm363, %v360, %v320
      %v379 = vsel %vm363, %v362, %v322
      %vm380 = vcmask 785408
      %v382 = vsel %vm380, %v365, %v331
      %v384 = vsel %vm380, %v367, %v333
      %v386 = vsel %vm380, %v369, %v335
      %v388 = vsel %vm380, %v371, %v337
      %v390 = vsel %vm380, %v373, %v339
      %v392 = vsel %vm380, %v375, %v341
      %v394 = vsel %vm380, %v377, %v343
      %v396 = vsel %vm380, %v379, %v345
      %v405 = vunpack.c.l.b16 %v382
      %v406 = vunpack.c.h.b16 %v382
      %v407 = vunpack.c.l.b16 %v384
      %v408 = vunpack.c.h.b16 %v384
      %v409 = vunpack.c.l.b16 %v386
      %v410 = vunpack.c.h.b16 %v386
      %v411 = vunpack.c.l.b16 %v388
      %v412 = vunpack.c.h.b16 %v388
      %v413 = vunpack.c.l.b16 %v390
      %v414 = vunpack.c.h.b16 %v390
      %v415 = vunpack.c.l.b16 %v392
      %v416 = vunpack.c.h.b16 %v392
      %v417 = vunpack.c.l.b16 %v394
      %v418 = vunpack.c.h.b16 %v394
      %v419 = vunpack.c.l.b16 %v396
      %v420 = vunpack.c.h.b16 %v396
      %v421 = vpack.c.b16 %v405, %v405
      %v422 = vpack.c.b16 %v406, %v406
      %v423 = vpack.c.b16 %v407, %v407
      %v424 = vpack.c.b16 %v408, %v408
      %v425 = vpack.c.b16 %v409, %v409
      %v426 = vpack.c.b16 %v410, %v410
      %v427 = vpack.c.b16 %v411, %v411
      %v428 = vpack.c.b16 %v412, %v412
      %v429 = vpack.c.b16 %v413, %v413
      %v430 = vpack.c.b16 %v414, %v414
      %v431 = vpack.c.b16 %v415, %v415
      %v432 = vpack.c.b16 %v416, %v416
      %v433 = vpack.c.b16 %v417, %v417
      %v434 = vpack.c.b16 %v418, %v418
      %v435 = vpack.c.b16 %v419, %v419
      %v436 = vpack.c.b16 %v420, %v420
      %vm437 = vsmask.f32 3328
      %vm438 = vsmask.f32 7440
      %vm439 = vmor %vm437, %vm438
      %v441 = vshrl.u32 %v421, 16
      %v443 = vrot.slane %v441, 4
      %v444 = vshll.u32 %v421, 16
      %v446 = vrot.slane %v444, 5
      %v447 = vor.u32 %v443, %v446
      %v448 = vrot.slane %v447, 4
      %v450 = vshll.u32 %v422, 16
      %v452 = vrot.slane %v450, 5
      %v453 = vsel %vm439, %v448, %v452
      %v455 = vshrl.u32 %v423, 16
      %v457 = vrot.slane %v455, 4
      %v458 = vshll.u32 %v423, 16
      %v460 = vrot.slane %v458, 5
      %v461 = vor.u32 %v457, %v460
      %v462 = vrot.slane %v461, 4
      %v464 = vshll.u32 %v424, 16
      %v466 = vrot.slane %v464, 5
      %v467 = vsel %vm439, %v462, %v466
      %v469 = vshrl.u32 %v425, 16
      %v471 = vrot.slane %v469, 4
      %v472 = vshll.u32 %v425, 16
      %v474 = vrot.slane %v472, 5
      %v475 = vor.u32 %v471, %v474
      %v476 = vrot.slane %v475, 4
      %v478 = vshll.u32 %v426, 16
      %v480 = vrot.slane %v478, 5
      %v481 = vsel %vm439, %v476, %v480
      %v483 = vshrl.u32 %v427, 16
      %v485 = vrot.slane %v483, 4
      %v486 = vshll.u32 %v427, 16
      %v488 = vrot.slane %v486, 5
      %v489 = vor.u32 %v485, %v488
      %v490 = vrot.slane %v489, 4
      %v492 = vshll.u32 %v428, 16
      %v494 = vrot.slane %v492, 5
      %v495 = vsel %vm439, %v490, %v494
      %v497 = vshrl.u32 %v429, 16
      %v499 = vrot.slane %v497, 4
      %v500 = vshll.u32 %v429, 16
      %v502 = vrot.slane %v500, 5
      %v503 = vor.u32 %v499, %v502
      %v504 = vrot.slane %v503, 4
      %v506 = vshll.u32 %v430, 16
      %v508 = vrot.slane %v506, 5
      %v509 = vsel %vm439, %v504, %v508
      %v511 = vshrl.u32 %v431, 16
      %v513 = vrot.slane %v511, 4
      %v514 = vshll.u32 %v431, 16
      %v516 = vrot.slane %v514, 5
      %v517 = vor.u32 %v513, %v516
      %v518 = vrot.slane %v517, 4
      %v520 = vshll.u32 %v432, 16
      %v522 = vrot.slane %v520, 5
      %v523 = vsel %vm439, %v518, %v522
      %v525 = vshrl.u32 %v433, 16
      %v527 = vrot.slane %v525, 4
      %v528 = vshll.u32 %v433, 16
      %v530 = vrot.slane %v528, 5
      %v531 = vor.u32 %v527, %v530
      %v532 = vrot.slane %v531, 4
      %v534 = vshll.u32 %v434, 16
      %v536 = vrot.slane %v534, 5
      %v537 = vsel %vm439, %v532, %v536
      %v539 = vshrl.u32 %v435, 16
      %v541 = vrot.slane %v539, 4
      %v542 = vshll.u32 %v435, 16
      %v544 = vrot.slane %v542, 5
      %v545 = vor.u32 %v541, %v544
      %v546 = vrot.slane %v545, 4
      %v548 = vshll.u32 %v436, 16
      %v550 = vrot.slane %v548, 5
      %v551 = vsel %vm439, %v546, %v550
      %v552 = vld [vmem:[%s1] sm:$0xf]
      %v553 = vld [vmem:[%s1 + $0x4] sm:$0xf]
      %v554 = vld [vmem:[%s1 + $0x8] sm:$0xf]
      %v555 = vld [vmem:[%s1 + $0xc] sm:$0xf]
      %v556 = vld [vmem:[%s1 + $0x10] sm:$0xf]
      %v557 = vld [vmem:[%s1 + $0x14] sm:$0xf]
      %v558 = vld [vmem:[%s1 + $0x18] sm:$0xf]
      %v559 = vld [vmem:[%s1 + $0x1c] sm:$0xf]
      %v560 = vld [vmem:[%s1 + $0x20] sm:$0xf]
      %v561 = vld [vmem:[%s1 + $0x24] sm:$0xf]
      %v562 = vld [vmem:[%s1 + $0x28] sm:$0xf]
      %v563 = vld [vmem:[%s1 + $0x2c] sm:$0xf]
      %v564 = vld [vmem:[%s1 + $0x30] sm:$0xf]
      %v565 = vld [vmem:[%s1 + $0x34] sm:$0xf]
      %v566 = vld [vmem:[%s1 + $0x38] sm:$0xf]
      %v567 = vld [vmem:[%s1 + $0x3c] sm:$0xf]
      %v568 = vld [vmem:[%s2] sm:$0x1]
      %v570 = vlaneseq
      %v571 = vshrl.u32 %v570, 7
      %v572 = vsub.s32 0, %v571
      %v573 = vrot.slane %v568, %v572
      %v575 = vunpack.c.l.b16 %v453
      %v576 = vunpack.c.l.b16 %v467
      %v577 = vunpack.c.l.b16 %v481
      %v578 = vunpack.c.l.b16 %v495
      %v579 = vunpack.c.l.b16 %v509
      %v580 = vunpack.c.l.b16 %v523
      %v581 = vunpack.c.l.b16 %v537
      %v582 = vunpack.c.l.b16 %v551
      %v583 = vpack.c.b16 %v576, %v575
      %v584 = vpack.c.b16 %v578, %v577
      %v585 = vpack.c.b16 %v580, %v579
      %v586 = vpack.c.b16 %v582, %v581
      %v607 = vunpack.c.l.b16 %v552
      %v608 = vunpack.c.l.b16 %v553
      %v609 = vunpack.c.l.b16 %v554
      %v610 = vunpack.c.l.b16 %v555
      %v611 = vunpack.c.l.b16 %v556
      %v612 = vunpack.c.l.b16 %v557
      %v613 = vunpack.c.l.b16 %v558
      %v614 = vunpack.c.l.b16 %v559
      %v615 = vunpack.c.l.b16 %v560
      %v616 = vunpack.c.l.b16 %v561
      %v617 = vunpack.c.l.b16 %v562
      %v618 = vunpack.c.l.b16 %v563
      %v619 = vunpack.c.l.b16 %v564
      %v620 = vunpack.c.l.b16 %v565
      %v621 = vunpack.c.l.b16 %v566
      %v622 = vunpack.c.l.b16 %v567
      %v623 = vpack.c.b16 %v608, %v607
      %v624 = vpack.c.b16 %v610, %v609
      %v625 = vpack.c.b16 %v612, %v611
      %v626 = vpack.c.b16 %v614, %v613
      %v627 = vpack.c.b16 %v616, %v615
      %v628 = vpack.c.b16 %v618, %v617
      %v629 = vpack.c.b16 %v620, %v619
      %v630 = vpack.c.b16 %v622, %v621
      %639 = vmatprep.subr.bf16.mxu0 0
      %640 = vmatpush1.bf16.msra.mxu0 %v630
      %641 = vmatprep.subr.bf16.mxu0 0
      %642 = vmatpush1.bf16.msra.mxu0 %v629
      %643 = vmatprep.subr.bf16.mxu0 0
      %644 = vmatpush1.bf16.msra.mxu0 %v628
      %645 = vmatprep.subr.bf16.mxu0 0
      %646 = vmatpush1.bf16.msra.mxu0 %v627
      %647 = vmatprep.subr.bf16.mxu0 0
      %648 = vmatpush1.bf16.msra.mxu0 %v626
      %649 = vmatprep.subr.bf16.mxu0 0
      %650 = vmatpush1.bf16.msra.mxu0 %v625
      %651 = vmatprep.subr.bf16.mxu0 0
      %652 = vmatpush1.bf16.msra.mxu0 %v624
      %653 = vmatprep.subr.bf16.mxu0 0
      %654 = vmatpush1.bf16.msra.mxu0 %v623
      %655 = vmatprep.subr.bf16.mxu0 0
      %656 = vmatpush2.bf16.msra.mxu0 0
      %657 = vmatprep.subr.bf16.mxu0 0
      %658 = vmatpush2.bf16.msra.mxu0 0
      %659 = vmatprep.subr.bf16.mxu0 0
      %660 = vmatpush2.bf16.msra.mxu0 0
      %661 = vmatprep.subr.bf16.mxu0 0
      %662 = vmatpush2.bf16.msra.mxu0 0
      %663 = vmatprep.subr.bf16.mxu0 0
      %664 = vmatpush2.bf16.msra.mxu0 0
      %665 = vmatprep.subr.bf16.mxu0 0
      %666 = vmatpush2.bf16.msra.mxu0 0
      %667 = vmatprep.subr.bf16.mxu0 0
      %668 = vmatpush2.bf16.msra.mxu0 0
      %669 = vmatprep.subr.bf16.mxu0 0
      %670 = vmatpush2.bf16.msra.mxu0 0
      %671 = vmatprep.mubr.bf16.mxu0 0
      %672 = vmatmul.mubr.bf16.gmra.mxu0 %v583
      %v673 = vpop.f32.mrf.mxu0
      %v674 = vadd.f32 %v573, %v673
      %v675 = vpop.f32.mrf.mxu0
      %v676 = vpop.f32.mrf.mxu0
      %v677 = vadd.f32 %v573, %v676
      %v678 = vpop.f32.mrf.mxu0
      %679 = vmatprep.mubr.bf16.mxu0 0
      %680 = vmatmul.mubr.bf16.gmra.mxu0 %v584
      %v681 = vpop.f32.mrf.mxu0
      %v682 = vadd.f32 %v573, %v681
      %v683 = vpop.f32.mrf.mxu0
      %v684 = vpop.f32.mrf.mxu0
      %v685 = vadd.f32 %v573, %v684
      %v686 = vpop.f32.mrf.mxu0
      %687 = vmatprep.mubr.bf16.mxu0 0
      %688 = vmatmul.mubr.bf16.gmra.mxu0 %v585
      %v689 = vpop.f32.mrf.mxu0
      %v690 = vadd.f32 %v573, %v689
      %v691 = vpop.f32.mrf.mxu0
      %v692 = vpop.f32.mrf.mxu0
      %v693 = vadd.f32 %v573, %v692
      %v694 = vpop.f32.mrf.mxu0
      %695 = vmatprep.mubr.bf16.mxu0 0
      %696 = vmatmul.mubr.bf16.gmra.mxu0 %v586
      %v697 = vpop.f32.mrf.mxu0
      %v698 = vadd.f32 %v573, %v697
      %v699 = vpop.f32.mrf.mxu0
      %v700 = vpop.f32.mrf.mxu0
      %v701 = vadd.f32 %v573, %v700
      %v702 = vpop.f32.mrf.mxu0
      %703 = vdwg.mxu0
      %v704 = vmax.f32 %v674, 0.0
      %v705 = vmax.f32 %v677, 0.0
      %v706 = vmax.f32 %v682, 0.0
      %v707 = vmax.f32 %v685, 0.0
      %v708 = vmax.f32 %v690, 0.0
      %v709 = vmax.f32 %v693, 0.0
      %v710 = vmax.f32 %v698, 0.0
      %v711 = vmax.f32 %v701, 0.0
      %v712 = vpack.c.bf16 %v704, %v704
      %v713 = vpack.c.bf16 %v705, %v705
      %v714 = vpack.c.bf16 %v706, %v706
      %v715 = vpack.c.bf16 %v707, %v707
      %v716 = vpack.c.bf16 %v708, %v708
      %v717 = vpack.c.bf16 %v709, %v709
      %v718 = vpack.c.bf16 %v710, %v710
      %v719 = vpack.c.bf16 %v711, %v711
      %720 = vst [vmem:[%s170] sm:$0xf] %v712
      %721 = vst [vmem:[%s170 + $0x4] sm:$0xf] %v713
      %722 = vst [vmem:[%s170 + $0x8] sm:$0xf] %v714
      %723 = vst [vmem:[%s170 + $0xc] sm:$0xf] %v715
      %724 = vst [vmem:[%s170 + $0x10] sm:$0xf] %v716
      %725 = vst [vmem:[%s170 + $0x14] sm:$0xf] %v717
      %726 = vst [vmem:[%s170 + $0x18] sm:$0xf] %v718
      %727 = vst [vmem:[%s170 + $0x1c] sm:$0xf] %v719
      %p728 = scmp.lt.s32.totalorder %s14, 1
      %s729 = scalar_select %p728, %s14, 1
      %s730 = smul.addr %s729, 8
      %s731 = smul.addr %s730, 4
      %s732 = scalar_lea.vmem %s3, %s731
      // Predicated region
      $region33: #{srnet_forward.9} parent=31 // pred_check
        %p733 = pneg %p100
      $region34: #{srnet_forward.9} parent=31 // pred_check_branch
        %735 = sbr.rel (%p733) target = $region36
      $region35: #{srnet_forward.9} parent=31 // pred_region
        _
      $region36: #{srnet_forward.9} parent=31 // pred_fallthru
        _
    $region32: #{srnet_forward.9} parent=5 // pred_fallthru
      _
    %p736 = scmp.le.s32.totalorder 2, %s9
    // Predicated region
    $region37: #{srnet_forward.9} parent=5 // pred_check
      %p737 = pneg %p736
    $region38: #{srnet_forward.9} parent=5 // pred_check_branch
      %739 = sbr.rel (%p737) target = $region40
    $region39: #{srnet_forward.9} parent=5 // pred_region
      %s740 = ssub.s32 %s9, 2
      // Predicated region
      $region41: #{srnet_forward.9} parent=39 // pred_check
        %p741 = pneg %p106
      $region42: #{srnet_forward.9} parent=39 // pred_check_branch
        %743 = sbr.rel (%p741) target = $region44
      $region43: #{srnet_forward.9} parent=39 // pred_region
        %p744 = scmp.lt.s32.totalorder %s15, 1
        %s745 = scalar_select %p744, %s15, 1
        %s746 = smul.addr %s745, 8
        %s747 = smul.addr %s746, 4
        %s748 = scalar_lea.vmem %s3, %s747
      $region44: #{srnet_forward.9} parent=39 // pred_fallthru
        _
    $region40: #{srnet_forward.9} parent=5 // pred_fallthru
      _
  $region6: #{srnet_forward.9} parent=0 // loop_footer
    %s13 = sadd.s32 1, %s9
  $region7: #{srnet_forward.9} parent=0 // loop_footer_branch
    %8 = sbr.rel target = $region3
  $region8: #{srnet_forward.9} parent=0 // loop_exit
    _

// kernel: srnet_forward.6
$region0: #{srnet_forward.6}
  #allocation0 [shape = 'u32[]', space=smem, size = 0x4, offset = 0x4, fixed_abs, tag = 'smem constant byte address 0x4 - core index']
  #allocation1 [shape = 'u32[144,128]{1,0:T(1,128)}', space=vmem, size = 0x12000, scoped, tag = 'internal scratch']
  %s0 = inlined_call_operand.vmem [shape: bf16[2,10,10,64], index: 0, kind: input, shape index: {}]
  %s1 = inlined_call_operand.vmem [shape: bf16[576,32], index: 1, kind: input, shape index: {}]
  %s2 = inlined_call_operand.vmem [shape: f32[1,32], index: 2, kind: input, shape index: {}]
  %s3 = inlined_call_operand.vmem [shape: bf16[2,8,8,32], index: 3, kind: output, shape index: {}]
  %s4 = sld [smem:[#allocation0]]
  $region45: #{srnet_forward.6} parent=0
    _
  %s6 = ssub.s32 1, %s4
  %s7 = scalar_select 0, %s6, %s4
  loop: start=0, step=1, limit=4
  $region2: #{srnet_forward.6} parent=0 // loop_pre_header
    _
  $region3: #{srnet_forward.6} parent=0 // loop_header
    %s9 = sphi 0, %s13
    %p10 = scmp.ge.s32.totalorder %s9, 4
    %s19 = sphi 0, %s21
    %s22 = sphi 0, %s19
    %s23 = sphi 0, %s22
    %s39 = sphi 0, %s23
    %s43 = sphi 0, %s43
    %s45 = sphi 0, %s43
    %s46 = sphi 0, %s45
    %s60 = sphi 0, %s46
    %s64 = sphi 0, %s64
    %s66 = sphi 0, %s64
    %s67 = sphi 0, %s66
    %s81 = sphi 0, %s67
    %s87 = sphi 0, %s89
    %s90 = sphi 0, %s87
    %s91 = sphi 0, %s90
    %s107 = sphi 0, %s91
  $region4: #{srnet_forward.6} parent=0 // loop_header_branch
    %12 = sbr.rel (%p10) target = $region8
  $region5: #{srnet_forward.6} parent=0 // loop_body
    %s14 = ssub.s32 %s9, 1
    %s15 = ssub.s32 %s9, 2
    %s16 = sadd.s32 %s9, 1
    %s17 = ssub.s32 %s9, %s16
    %p18 = scmp.eq.s32.totalorder %s17, 0
    %s20 = sadd.s32 %s19, 1
    %s21 = scalar_select %p18, %s19, %s20
    %p24 = pneg %p18
    %p25 = scmp.eq.s32.totalorder %s9, 1
    %p26 = por %p24, %p25
    %p27 = scmp.ne.s32.totalorder %s19, %s22
    %p28 = scmp.eq.s32.totalorder %s9, 0
    %p29 = por %p27, %p28
    %p30 = scmp.ne.s32.totalorder %s19, %s22
    %p31 = scmp.eq.s32.totalorder %s14, 1
    %p32 = por %p30, %p31
    %p33 = scmp.ne.s32.totalorder %s22, %s23
    %p34 = scmp.eq.s32.totalorder %s14, 0
    %p35 = por %p33, %p34
    %p36 = scmp.ne.s32.totalorder %s22, %s23
    %p37 = scmp.eq.s32.totalorder %s15, 1
    %p38 = por %p36, %p37
    %p40 = scmp.ne.s32.totalorder %s23, %s39
    %p41 = scmp.eq.s32.totalorder %s15, 0
    %p42 = por %p40, %p41
    %s44 = sadd.s32 %s43, 1
    %p47 = scmp.eq.s32.totalorder %s9, 1
    %p48 = scmp.ne.s32.totalorder %s43, %s45
    %p49 = scmp.eq.s32.totalorder %s9, 0
    %p50 = por %p48, %p49
    %p51 = scmp.ne.s32.totalorder %s43, %s45
    %p52 = scmp.eq.s32.totalorder %s14, 1
    %p53 = por %p51, %p52
    %p54 = scmp.ne.s32.totalorder %s45, %s46
    %p55 = scmp.eq.s32.totalorder %s14, 0
    %p56 = por %p54, %p55
    %p57 = scmp.ne.s32.totalorder %s45, %s46
    %p58 = scmp.eq.s32.totalorder %s15, 1
    %p59 = por %p57, %p58
    %p61 = scmp.ne.s32.totalorder %s46, %s60
    %p62 = scmp.eq.s32.totalorder %s15, 0
    %p63 = por %p61, %p62
    %s65 = sadd.s32 %s64, 1
    %p68 = scmp.eq.s32.totalorder %s9, 1
    %p69 = scmp.ne.s32.totalorder %s64, %s66
    %p70 = scmp.eq.s32.totalorder %s9, 0
    %p71 = por %p69, %p70
    %p72 = scmp.ne.s32.totalorder %s64, %s66
    %p73 = scmp.eq.s32.totalorder %s14, 1
    %p74 = por %p72, %p73
    %p75 = scmp.ne.s32.totalorder %s66, %s67
    %p76 = scmp.eq.s32.totalorder %s14, 0
    %p77 = por %p75, %p76
    %p78 = scmp.ne.s32.totalorder %s66, %s67
    %p79 = scmp.eq.s32.totalorder %s15, 1
    %p80 = por %p78, %p79
    %p82 = scmp.ne.s32.totalorder %s67, %s81
    %p83 = scmp.eq.s32.totalorder %s15, 0
    %p84 = por %p82, %p83
    %s85 = ssub.s32 %s9, %s16
    %p86 = scmp.eq.s32.totalorder %s85, 0
    %s88 = sadd.s32 %s87, 1
    %s89 = scalar_select %p86, %s87, %s88
    %p92 = pneg %p86
    %p93 = scmp.eq.s32.totalorder %s9, 1
    %p94 = por %p92, %p93
    %p95 = scmp.ne.s32.totalorder %s87, %s90
    %p96 = scmp.eq.s32.totalorder %s9, 0
    %p97 = por %p95, %p96
    %p98 = scmp.ne.s32.totalorder %s87, %s90
    %p99 = scmp.eq.s32.totalorder %s14, 1
    %p100 = por %p98, %p99
    %p101 = scmp.ne.s32.totalorder %s90, %s91
    %p102 = scmp.eq.s32.totalorder %s14, 0
    %p103 = por %p101, %p102
    %p104 = scmp.ne.s32.totalorder %s90, %s91
    %p105 = scmp.eq.s32.totalorder %s15, 1
    %p106 = por %p104, %p105
    %p108 = scmp.ne.s32.totalorder %s91, %s107
    %p109 = scmp.eq.s32.totalorder %s15, 0
    %p110 = por %p108, %p109
    %p111 = scmp.le.s32.totalorder 1, %s9
    %p112 = scmp.lt.s32.totalorder %s9, 3
    %p113 = pnand %p111, %p112
    %p114 = pneg %p113
    // Predicated region
    $region9: #{srnet_forward.6} parent=5 // pred_check
      _
    $region10: #{srnet_forward.6} parent=5 // pred_check_branch
      %116 = sbr.rel (%p113) target = $region12
    $region11: #{srnet_forward.6} parent=5 // pred_region
      %s117 = ssub.s32 %s9, 1
      // Predicated region
      $region13: #{srnet_forward.6} parent=11 // pred_check
        %p118 = pneg %p56
      $region14: #{srnet_forward.6} parent=11 // pred_check_branch
        %120 = sbr.rel (%p118) target = $region16
      $region15: #{srnet_forward.6} parent=11 // pred_region
        _
      $region16: #{srnet_forward.6} parent=11 // pred_fallthru
        _
      // Predicated region
      $region17: #{srnet_forward.6} parent=11 // pred_check
        %p121 = pneg %p77
      $region18: #{srnet_forward.6} parent=11 // pred_check_branch
        %123 = sbr.rel (%p121) target = $region20
      $region19: #{srnet_forward.6} parent=11 // pred_region
        _
      $region20: #{srnet_forward.6} parent=11 // pred_fallthru
        _
    $region12: #{srnet_forward.6} parent=5 // pred_fallthru
      _
    %p124 = scmp.lt.s32.totalorder %s9, 2
    // Predicated region
    $region21: #{srnet_forward.6} parent=5 // pred_check
      %p125 = pneg %p124
    $region22: #{srnet_forward.6} parent=5 // pred_check_branch
      %127 = sbr.rel (%p125) target = $region24
    $region23: #{srnet_forward.6} parent=5 // pred_region
      // Predicated region
      $region25: #{srnet_forward.6} parent=23 // pred_check
        %p128 = pneg %p29
      $region26: #{srnet_forward.6} parent=23 // pred_check_branch
        %130 = sbr.rel (%p128) target = $region28
      $region27: #{srnet_forward.6} parent=23 // pred_region
        %p131 = scmp.lt.s32.totalorder %s9, 1
        %s132 = scalar_select %p131, %s9, 1
        %s133 = smul.addr %s132, 20
        %s134 = smul.addr %s133, 4
        %s135 = scalar_lea.vmem %s0, %s134
      $region28: #{srnet_forward.6} parent=23 // pred_fallthru
        _
    $region24: #{srnet_forward.6} parent=5 // pred_fallthru
      _
    %p136 = scmp.le.s32.totalorder 1, %s9
    %p137 = scmp.lt.s32.totalorder %s9, 3
    %p138 = pnand %p136, %p137
    %p139 = pneg %p138
    // Predicated region
    $region29: #{srnet_forward.6} parent=5 // pred_check
      _
    $region30: #{srnet_forward.6} parent=5 // pred_check_branch
      %141 = sbr.rel (%p138) target = $region32
    $region31: #{srnet_forward.6} parent=5 // pred_region
      %s142 = ssub.s32 %s9, 1
      %p143 = scmp.lt.s32.totalorder %s14, 1
      %s144 = scalar_select %p143, %s14, 1
      %s145 = smul.addr %s144, 20
      %s146 = smul.addr %s145, 4
      %s147 = scalar_lea.vmem %s0, %s146
      %p148 = pneg %p35
      %p149 = pneg %p32
      %p150 = pneg %p56
      %p151 = pneg %p53
      %p152 = pneg %p77
      %p153 = pneg %p74
      %p154 = pneg %p103
      %p155 = pneg %p100
      %p156 = scmp.lt.s32.totalorder %s14, 1
      %s157 = scalar_select %p156, %s14, 1
      %s158 = smul.addr %s157, 8
      %s159 = smul.addr %s158, 4
      %s160 = scalar_lea.vmem %s3, %s159
      %p161 = scmp.lt.s32.totalorder %s14, 1
      %s162 = scalar_select %p161, %s14, 1
      %s163 = smul.addr %s162, 20
      %s164 = smul.addr %s163, 4
      %s165 = scalar_lea.vmem %s0, %s164
      %p166 = scmp.lt.s32.totalorder %s14, 1
      %s167 = scalar_select %p166, %s14, 1
      %s168 = smul.addr %s167, 8
      %s169 = smul.addr %s168, 4
      %s170 = scalar_lea.vmem %s3, %s169
      %v172 = vld [vmem:[%s165] sm:$0xf]
      %v173 = vld [vmem:[%s165 + $0x4] sm:$0x1]
      %v174 = vld [vmem:[%s165 + $0x8] sm:$0xf]
      %v175 = vld [vmem:[%s165 + $0xc] sm:$0x1]
      %v176 = vld [vmem:[%s165 + $0x10] sm:$0xf]
      %v177 = vld [vmem:[%s165 + $0x14] sm:$0x1]
      %v178 = vld [vmem:[%s165 + $0x18] sm:$0xf]
      %v179 = vld [vmem:[%s165 + $0x1c] sm:$0x1]
      %v180 = vld [vmem:[%s165 + $0x20] sm:$0xf]
      %v181 = vld [vmem:[%s165 + $0x24] sm:$0x1]
      %v182 = vld [vmem:[%s165 + $0x28] sm:$0xf]
      %v183 = vld [vmem:[%s165 + $0x2c] sm:$0x1]
      %v184 = vld [vmem:[%s165 + $0x30] sm:$0xf]
      %v185 = vld [vmem:[%s165 + $0x34] sm:$0x1]
      %v186 = vld [vmem:[%s165 + $0x38] sm:$0xf]
      %v187 = vld [vmem:[%s165 + $0x3c] sm:$0x1]
      %v188 = vld [vmem:[%s165 + $0x40] sm:$0xf]
      %v189 = vld [vmem:[%s165 + $0x44] sm:$0x1]
      %v190 = vld [vmem:[%s165 + $0x48] sm:$0xf]
      %v191 = vld [vmem:[%s165 + $0x4c] sm:$0x1]
      %v208 = vunpack.c.l.b16 %v172
      %v209 = vunpack.c.l.b16 %v173
      %v210 = vunpack.c.l.b16 %v174
      %v211 = vunpack.c.l.b16 %v175
      %v212 = vunpack.c.l.b16 %v176
      %v213 = vunpack.c.l.b16 %v177
      %v214 = vunpack.c.l.b16 %v178
      %v215 = vunpack.c.l.b16 %v179
      %v216 = vunpack.c.l.b16 %v180
      %v217 = vunpack.c.l.b16 %v181
      %v218 = vunpack.c.l.b16 %v182
      %v219 = vunpack.c.l.b16 %v183
      %v220 = vunpack.c.l.b16 %v184
      %v221 = vunpack.c.l.b16 %v185
      %v222 = vunpack.c.l.b16 %v186
      %v223 = vunpack.c.l.b16 %v187
      %v224 = vpack.c.b16 %v209, %v208
      %v225 = vpack.c.b16 %v211, %v210
      %v226 = vpack.c.b16 %v213, %v212
      %v227 = vpack.c.b16 %v215, %v214
      %v228 = vpack.c.b16 %v217, %v216
      %v229 = vpack.c.b16 %v219, %v218
      %v230 = vpack.c.b16 %v221, %v220
      %v231 = vpack.c.b16 %v223, %v222
      %v233 = vshrl.u32 %v224, 16
      %v235 = vshll.u32 %v224, 16
      %v237 = vrot.slane %v235, 1
      %v238 = vor.u32 %v233, %v237
      %v240 = vshrl.u32 %v225, 16
      %v242 = vshll.u32 %v225, 16
      %v244 = vrot.slane %v242, 1
      %v245 = vor.u32 %v240, %v244
      %v247 = vshrl.u32 %v226, 16
      %v249 = vshll.u32 %v226, 16
      %v251 = vrot.slane %v249, 1
      %v252 = vor.u32 %v247, %v251
      %v254 = vshrl.u32 %v227, 16
      %v256 = vshll.u32 %v227, 16
      %v258 = vrot.slane %v256, 1
      %v259 = vor.u32 %v254, %v258
      %v261 = vshrl.u32 %v228, 16
      %v263 = vshll.u32 %v228, 16
      %v265 = vrot.slane %v263, 1
      %v266 = vor.u32 %v261, %v265
      %v268 = vshrl.u32 %v229, 16
      %v270 = vshll.u32 %v229, 16
      %v272 = vrot.slane %v270, 1
      %v273 = vor.u32 %v268, %v272
      %v275 = vshrl.u32 %v230, 16
      %v277 = vshll.u32 %v230, 16
      %v279 = vrot.slane %v277, 1
      %v280 = vor.u32 %v275, %v279
      %v282 = vshrl.u32 %v231, 16
      %v284 = vshll.u32 %v231, 16
      %v286 = vrot.slane %v284, 1
      %v287 = vor.u32 %v282, %v286
      %288 = vrot.lane.b32.xlu0 %v238, 64
      %v289 = vpop.permute.xlu0 %288
      %290 = vrot.lane.b32.xlu0 %v245, 64
      %v291 = vpop.permute.xlu0 %290
      %292 = vrot.lane.b32.xlu0 %v252, 64
      %v293 = vpop.permute.xlu0 %292
      %294 = vrot.lane.b32.xlu0 %v259, 64
      %v295 = vpop.permute.xlu0 %294
      %296 = vrot.lane.b32.xlu0 %v266, 64
      %v297 = vpop.permute.xlu0 %296
      %298 = vrot.lane.b32.xlu0 %v273, 64
      %v299 = vpop.permute.xlu0 %298
      %300 = vrot.lane.b32.xlu0 %v280, 64
      %v301 = vpop.permute.xlu0 %300
      %302 = vrot.lane.b32.xlu0 %v287, 64
      %v303 = vpop.permute.xlu0 %302
      %v304 = vrot.slane %v224, 1
      %v305 = vrot.slane %v225, 1
      %v306 = vrot.slane %v226, 1
      %v307 = vrot.slane %v227, 1
      %v308 = vrot.slane %v228, 1
      %v309 = vrot.slane %v229, 1
      %v310 = vrot.slane %v230, 1
      %v311 = vrot.slane %v231, 1
      %v313 = vunpack.c.l.b16 %v188
      %v314 = vpack.c.b16 %v210, %v210
      %v315 = vpack.c.b16 %v212, %v212
      %v316 = vpack.c.b16 %v214, %v214
      %v317 = vpack.c.b16 %v216, %v216
      %v318 = vpack.c.b16 %v218, %v218
      %v319 = vpack.c.b16 %v220, %v220
      %v320 = vpack.c.b16 %v222, %v222
      %v321 = vpack.c.b16 %v313, %v313
      %322 = vrot.lane.b32.xlu0 %v314, 64
      %v323 = vpop.permute.xlu0 %322
      %324 = vrot.lane.b32.xlu0 %v315, 64
      %v325 = vpop.permute.xlu0 %324
      %326 = vrot.lane.b32.xlu0 %v316, 64
      %v327 = vpop.permute.xlu0 %326
      %328 = vrot.lane.b32.xlu0 %v317, 64
      %v329 = vpop.permute.xlu0 %328
      %330 = vrot.lane.b32.xlu0 %v318, 64
      %v331 = vpop.permute.xlu0 %330
      %332 = vrot.lane.b32.xlu0 %v319, 64
      %v333 = vpop.permute.xlu0 %332
      %334 = vrot.lane.b32.xlu0 %v320, 64
      %v335 = vpop.permute.xlu0 %334
      %336 = vrot.lane.b32.xlu0 %v321, 64
      %v337 = vpop.permute.xlu0 %336
      %v339 = vunpack.c.l.b16 %v189
      %v340 = vpack.c.b16 %v339, %v313
      %v342 = vshrl.u32 %v340, 16
      %v344 = vshll.u32 %v340, 16
      %v346 = vrot.slane %v344, 1
      %v347 = vor.u32 %v342, %v346
      %v348 = vrot.slane %v340, 1
      %349 = vrot.lane.b32.xlu0 %v305, 64
      %v350 = vpop.permute.xlu0 %349
      %351 = vrot.lane.b32.xlu0 %v306, 64
      %v352 = vpop.permute.xlu0 %351
      %353 = vrot.lane.b32.xlu0 %v307, 64
      %v354 = vpop.permute.xlu0 %353
      %355 = vrot.lane.b32.xlu0 %v308, 64
      %v356 = vpop.permute.xlu0 %355
      %357 = vrot.lane.b32.xlu0 %v309, 64
      %v358 = vpop.permute.xlu0 %357
      %359 = vrot.lane.b32.xlu0 %v310, 64
      %v360 = vpop.permute.xlu0 %359
      %361 = vrot.lane.b32.xlu0 %v311, 64
      %v362 = vpop.permute.xlu0 %361
      %363 = vrot.lane.b32.xlu0 %v348, 64
      %v364 = vpop.permute.xlu0 %363
      %v367 = vunpack.c.l.b16 %v190
      %v368 = vunpack.c.l.b16 %v191
      %v369 = vpack.c.b16 %v368, %v367
      %v371 = vshrl.u32 %v369, 16
      %v373 = vshll.u32 %v369, 16
      %v375 = vrot.slane %v373, 1
      %v376 = vor.u32 %v371, %v375
      %377 = vrot.lane.b32.xlu0 %v347, 64
      %v378 = vpop.permute.xlu0 %377
      %379 = vrot.lane.b32.xlu0 %v376, 64
      %v380 = vpop.permute.xlu0 %379
      %v381 = vrot.slane %v369, 1
      %vm382 = vcmask 523264
      %v385 = vsel %vm382, %v172, %v289
      %v388 = vsel %vm382, %v174, %v291
      %v391 = vsel %vm382, %v176, %v293
      %v394 = vsel %vm382, %v178, %v295
      %v397 = vsel %vm382, %v180, %v297
      %v400 = vsel %vm382, %v182, %v299
      %v403 = vsel %vm382, %v184, %v301
      %v406 = vsel %vm382, %v186, %v303
      %v409 = vsel %vm382, %v304, %v323
      %v412 = vsel %vm382, %v305, %v325
      %v415 = vsel %vm382, %v306, %v327
      %v418 = vsel %vm382, %v307, %v329
      %v421 = vsel %vm382, %v308, %v331
      %v424 = vsel %vm382, %v309, %v333
      %v427 = vsel %vm382, %v310, %v335
      %v430 = vsel %vm382, %v311, %v337
      %v433 = vsel %vm382, %v245, %v350
      %v436 = vsel %vm382, %v252, %v352
      %v439 = vsel %vm382, %v259, %v354
      %v442 = vsel %vm382, %v266, %v356
      %v445 = vsel %vm382, %v273, %v358
      %v448 = vsel %vm382, %v280, %v360
      %v451 = vsel %vm382, %v287, %v362
      %v454 = vsel %vm382, %v347, %v364
      %v457 = vsel %vm382, %v188, %v378
      %v460 = vsel %vm382, %v190, %v380
      %v487 = vunpack.c.l.b16 %v385
      %v488 = vunpack.c.l.b16 %v409
      %v489 = vunpack.c.l.b16 %v433
      %v490 = vunpack.c.l.b16 %v391
      %v491 = vunpack.c.l.b16 %v306
      %v492 = vunpack.c.l.b16 %v388
      %v493 = vunpack.c.l.b16 %v412
      %v494 = vunpack.c.l.b16 %v436
      %v495 = vunpack.c.l.b16 %v394
      %v496 = vunpack.c.l.b16 %v307
      %v497 = vunpack.c.l.b16 %v415
      %v498 = vunpack.c.l.b16 %v439
      %v499 = vunpack.c.l.b16 %v397
      %v500 = vunpack.c.l.b16 %v308
      %v501 = vunpack.c.l.b16 %v418
      %v502 = vunpack.c.l.b16 %v442
      %v503 = vunpack.c.l.b16 %v400
      %v504 = vunpack.c.l.b16 %v309
      %v505 = vunpack.c.l.b16 %v421
      %v506 = vunpack.c.l.b16 %v445
      %v507 = vunpack.c.l.b16 %v403
      %v508 = vunpack.c.l.b16 %v310
      %v509 = vunpack.c.l.b16 %v424
      %v510 = vunpack.c.l.b16 %v448
      %v511 = vunpack.c.l.b16 %v406
      %v512 = vunpack.c.l.b16 %v311
      %v513 = vunpack.c.l.b16 %v427
      %v514 = vunpack.c.l.b16 %v451
      %v515 = vunpack.c.l.b16 %v457
      %v516 = vunpack.c.l.b16 %v348
      %v517 = vunpack.c.l.b16 %v430
      %v518 = vunpack.c.l.b16 %v454
      %v519 = vunpack.c.l.b16 %v460
      %v520 = vunpack.c.l.b16 %v381
      %v521 = vld [vmem:[%s1] sm:$0xf]
      %v522 = vld [vmem:[%s1 + $0x4] sm:$0xf]
      %v523 = vld [vmem:[%s1 + $0x8] sm:$0xf]
      %v524 = vld [vmem:[%s1 + $0xc] sm:$0xf]
      %v525 = vld [vmem:[%s1 + $0x10] sm:$0xf]
      %v526 = vld [vmem:[%s1 + $0x14] sm:$0xf]
      %v527 = vld [vmem:[%s1 + $0x18] sm:$0xf]
      %v528 = vld [vmem:[%s1 + $0x1c] sm:$0xf]
      %v529 = vld [vmem:[%s1 + $0x20] sm:$0xf]
      %v530 = vld [vmem:[%s1 + $0x24] sm:$0xf]
      %v531 = vld [vmem:[%s1 + $0x28] sm:$0xf]
      %v532 = vld [vmem:[%s1 + $0x2c] sm:$0xf]
      %v533 = vld [vmem:[%s1 + $0x30] sm:$0xf]
      %v534 = vld [vmem:[%s1 + $0x34] sm:$0xf]
      %v535 = vld [vmem:[%s1 + $0x38] sm:$0xf]
      %v536 = vld [vmem:[%s1 + $0x3c] sm:$0xf]
      %v537 = vld [vmem:[%s1 + $0x40] sm:$0xf]
      %v538 = vld [vmem:[%s1 + $0x44] sm:$0xf]
      %v539 = vld [vmem:[%s1 + $0x48] sm:$0xf]
      %v540 = vld [vmem:[%s1 + $0x4c] sm:$0xf]
      %v541 = vld [vmem:[%s1 + $0x50] sm:$0xf]
      %v542 = vld [vmem:[%s1 + $0x54] sm:$0xf]
      %v543 = vld [vmem:[%s1 + $0x58] sm:$0xf]
      %v544 = vld [vmem:[%s1 + $0x5c] sm:$0xf]
      %v545 = vld [vmem:[%s1 + $0x60] sm:$0xf]
      %v546 = vld [vmem:[%s1 + $0x64] sm:$0xf]
      %v547 = vld [vmem:[%s1 + $0x68] sm:$0xf]
      %v548 = vld [vmem:[%s1 + $0x6c] sm:$0xf]
      %v549 = vld [vmem:[%s1 + $0x70] sm:$0xf]
      %v550 = vld [vmem:[%s1 + $0x74] sm:$0xf]
      %v551 = vld [vmem:[%s1 + $0x78] sm:$0xf]
      %v552 = vld [vmem:[%s1 + $0x7c] sm:$0xf]
      %v553 = vld [vmem:[%s1 + $0x80] sm:$0xf]
      %v554 = vld [vmem:[%s1 + $0x84] sm:$0xf]
      %v555 = vld [vmem:[%s1 + $0x88] sm:$0xf]
      %v556 = vld [vmem:[%s1 + $0x8c] sm:$0xf]
      %v557 = vld [vmem:[%s1 + $0x90] sm:$0xf]
      %v558 = vld [vmem:[%s1 + $0x94] sm:$0xf]
      %v559 = vld [vmem:[%s1 + $0x98] sm:$0xf]
      %v560 = vld [vmem:[%s1 + $0x9c] sm:$0xf]
      %v561 = vld [vmem:[%s1 + $0xa0] sm:$0xf]
      %v562 = vld [vmem:[%s1 + $0xa4] sm:$0xf]
      %v563 = vld [vmem:[%s1 + $0xa8] sm:$0xf]
      %v564 = vld [vmem:[%s1 + $0xac] sm:$0xf]
      %v565 = vld [vmem:[%s1 + $0xb0] sm:$0xf]
      %v566 = vld [vmem:[%s1 + $0xb4] sm:$0xf]
      %v567 = vld [vmem:[%s1 + $0xb8] sm:$0xf]
      %v568 = vld [vmem:[%s1 + $0xbc] sm:$0xf]
      %v569 = vld [vmem:[%s1 + $0xc0] sm:$0xf]
      %v570 = vld [vmem:[%s1 + $0xc4] sm:$0xf]
      %v571 = vld [vmem:[%s1 + $0xc8] sm:$0xf]
      %v572 = vld [vmem:[%s1 + $0xcc] sm:$0xf]
      %v573 = vld [vmem:[%s1 + $0xd0] sm:$0xf]
      %v574 = vld [vmem:[%s1 + $0xd4] sm:$0xf]
      %v575 = vld [vmem:[%s1 + $0xd8] sm:$0xf]
      %v576 = vld [vmem:[%s1 + $0xdc] sm:$0xf]
      %v577 = vld [vmem:[%s1 + $0xe0] sm:$0xf]
      %v578 = vld [vmem:[%s1 + $0xe4] sm:$0xf]
      %v579 = vld [vmem:[%s1 + $0xe8] sm:$0xf]
      %v580 = vld [vmem:[%s1 + $0xec] sm:$0xf]
      %v581 = vld [vmem:[%s1 + $0xf0] sm:$0xf]
      %v582 = vld [vmem:[%s1 + $0xf4] sm:$0xf]
      %v583 = vld [vmem:[%s1 + $0xf8] sm:$0xf]
      %v584 = vld [vmem:[%s1 + $0xfc] sm:$0xf]
      %v585 = vld [vmem:[%s1 + $0x100] sm:$0xf]
      %v586 = vld [vmem:[%s1 + $0x104] sm:$0xf]
      %v587 = vld [vmem:[%s1 + $0x108] sm:$0xf]
      %v588 = vld [vmem:[%s1 + $0x10c] sm:$0xf]
      %v589 = vld [vmem:[%s1 + $0x110] sm:$0xf]
      %v590 = vld [vmem:[%s1 + $0x114] sm:$0xf]
      %v591 = vld [vmem:[%s1 + $0x118] sm:$0xf]
      %v592 = vld [vmem:[%s1 + $0x11c] sm:$0xf]
      %v593 = vld [vmem:[%s2] sm:$0x1]
      %v595 = vlaneseq
      %v596 = vshrl.u32 %v595, 7
      %v597 = vsub.s32 0, %v596
      %v598 = vrot.slane %v593, %v597
      %v600 = vpack.c.b16 %v492, %v487
      %v601 = vpack.c.b16 %v493, %v488
      %v602 = vpack.c.b16 %v494, %v489
      %v603 = vpack.c.b16 %v495, %v490
      %v604 = vpack.c.b16 %v496, %v491
      %v605 = vpack.c.b16 %v501, %v497
      %v606 = vpack.c.b16 %v502, %v498
      %v607 = vpack.c.b16 %v503, %v499
      %v608 = vpack.c.b16 %v504, %v500
      %v609 = vpack.c.b16 %v509, %v505
      %v610 = vpack.c.b16 %v510, %v506
      %v611 = vpack.c.b16 %v511, %v507
      %v612 = vpack.c.b16 %v512, %v508
      %v613 = vpack.c.b16 %v517, %v513
      %v614 = vpack.c.b16 %v518, %v514
      %v615 = vpack.c.b16 %v519, %v515
      %v616 = vpack.c.b16 %v520, %v516
      %v702 = vunpack.c.l.b16 %v521
      %v703 = vunpack.c.l.b16 %v522
      %v704 = vunpack.c.l.b16 %v523
      %v705 = vunpack.c.l.b16 %v524
      %v706 = vunpack.c.l.b16 %v525
      %v707 = vunpack.c.l.b16 %v526
      %v708 = vunpack.c.l.b16 %v527
      %v709 = vunpack.c.l.b16 %v528
      %v710 = vunpack.c.l.b16 %v529
      %v711 = vunpack.c.l.b16 %v530
      %v712 = vunpack.c.l.b16 %v531
      %v713 = vunpack.c.l.b16 %v532
      %v714 = vunpack.c.l.b16 %v533
      %v715 = vunpack.c.l.b16 %v534
      %v716 = vunpack.c.l.b16 %v535
      %v717 = vunpack.c.l.b16 %v536
      %v718 = vunpack.c.l.b16 %v537
      %v719 = vunpack.c.l.b16 %v538
      %v720 = vunpack.c.l.b16 %v539
      %v721 = vunpack.c.l.b16 %v540
      %v722 = vunpack.c.l.b16 %v541
      %v723 = vunpack.c.l.b16 %v542
      %v724 = vunpack.c.l.b16 %v543
      %v725 = vunpack.c.l.b16 %v544
      %v726 = vunpack.c.l.b16 %v545
      %v727 = vunpack.c.l.b16 %v546
      %v728 = vunpack.c.l.b16 %v547
      %v729 = vunpack.c.l.b16 %v548
      %v730 = vunpack.c.l.b16 %v549
      %v731 = vunpack.c.l.b16 %v550
      %v732 = vunpack.c.l.b16 %v551
      %v733 = vunpack.c.l.b16 %v552
      %v734 = vunpack.c.l.b16 %v553
      %v735 = vunpack.c.l.b16 %v554
      %v736 = vunpack.c.l.b16 %v555
      %v737 = vunpack.c.l.b16 %v556
      %v738 = vunpack.c.l.b16 %v557
      %v739 = vunpack.c.l.b16 %v558
      %v740 = vunpack.c.l.b16 %v559
      %v741 = vunpack.c.l.b16 %v560
      %v742 = vunpack.c.l.b16 %v561
      %v743 = vunpack.c.l.b16 %v562
      %v744 = vunpack.c.l.b16 %v563
      %v745 = vunpack.c.l.b16 %v564
      %v746 = vunpack.c.l.b16 %v565
      %v747 = vunpack.c.l.b16 %v566
      %v748 = vunpack.c.l.b16 %v567
      %v749 = vunpack.c.l.b16 %v568
      %v750 = vunpack.c.l.b16 %v569
      %v751 = vunpack.c.l.b16 %v570
      %v752 = vunpack.c.l.b16 %v571
      %v753 = vunpack.c.l.b16 %v572
      %v754 = vunpack.c.l.b16 %v573
      %v755 = vunpack.c.l.b16 %v574
      %v756 = vunpack.c.l.b16 %v575
      %v757 = vunpack.c.l.b16 %v576
      %v758 = vunpack.c.l.b16 %v577
      %v759 = vunpack.c.l.b16 %v578
      %v760 = vunpack.c.l.b16 %v579
      %v761 = vunpack.c.l.b16 %v580
      %v762 = vunpack.c.l.b16 %v581
      %v763 = vunpack.c.l.b16 %v582
      %v764 = vunpack.c.l.b16 %v583
      %v765 = vunpack.c.l.b16 %v584
      %v766 = vunpack.c.l.b16 %v585
      %v767 = vunpack.c.l.b16 %v586
      %v768 = vunpack.c.l.b16 %v587
      %v769 = vunpack.c.l.b16 %v588
      %v770 = vunpack.c.l.b16 %v589
      %v771 = vunpack.c.l.b16 %v590
      %v772 = vunpack.c.l.b16 %v591
      %v773 = vunpack.c.l.b16 %v592
      %v774 = vpack.c.b16 %v703, %v702
      %v775 = vpack.c.b16 %v705, %v704
      %v776 = vpack.c.b16 %v707, %v706
      %v777 = vpack.c.b16 %v709, %v708
      %v778 = vpack.c.b16 %v711, %v710
      %v779 = vpack.c.b16 %v713, %v712
      %v780 = vpack.c.b16 %v715, %v714
      %v781 = vpack.c.b16 %v717, %v716
      %v782 = vpack.c.b16 %v719, %v718
      %v783 = vpack.c.b16 %v721, %v720
      %v784 = vpack.c.b16 %v723, %v722
      %v785 = vpack.c.b16 %v725, %v724
      %v786 = vpack.c.b16 %v727, %v726
      %v787 = vpack.c.b16 %v729, %v728
      %v788 = vpack.c.b16 %v731, %v730
      %v789 = vpack.c.b16 %v733, %v732
      %v790 = vpack.c.b16 %v735, %v734
      %v791 = vpack.c.b16 %v737, %v736
      %v792 = vpack.c.b16 %v739, %v738
      %v793 = vpack.c.b16 %v741, %v740
      %v794 = vpack.c.b16 %v743, %v742
      %v795 = vpack.c.b16 %v745, %v744
      %v796 = vpack.c.b16 %v747, %v746
      %v797 = vpack.c.b16 %v749, %v748
      %v798 = vpack.c.b16 %v751, %v750
      %v799 = vpack.c.b16 %v753, %v752
      %v800 = vpack.c.b16 %v755, %v754
      %v801 = vpack.c.b16 %v757, %v756
      %v802 = vpack.c.b16 %v759, %v758
      %v803 = vpack.c.b16 %v761, %v760
      %v804 = vpack.c.b16 %v763, %v762
      %v805 = vpack.c.b16 %v765, %v764
      %v806 = vpack.c.b16 %v767, %v766
      %v807 = vpack.c.b16 %v769, %v768
      %v808 = vpack.c.b16 %v771, %v770
      %v809 = vpack.c.b16 %v773, %v772
      %v847 = vsel %vm382, %v604, 0
      %v850 = vsel %vm382, %v608, 0
      %v853 = vsel %vm382, %v612, 0
      %v856 = vsel %vm382, %v616, 0
      %858 = vmatprep.subr.bf16.mxu0 0
      %859 = vmatpush1.bf16.msra.mxu0 %v781
      %860 = vmatprep.subr.bf16.mxu0 0
      %861 = vmatpush1.bf16.msra.mxu0 %v780
      %862 = vmatprep.subr.bf16.mxu0 0
      %863 = vmatpush1.bf16.msra.mxu0 %v779
      %864 = vmatprep.subr.bf16.mxu0 0
      %865 = vmatpush1.bf16.msra.mxu0 %v778
      %866 = vmatprep.subr.bf16.mxu0 0
      %867 = vmatpush1.bf16.msra.mxu0 %v777
      %868 = vmatprep.subr.bf16.mxu0 0
      %869 = vmatpush1.bf16.msra.mxu0 %v776
      %870 = vmatprep.subr.bf16.mxu0 0
      %871 = vmatpush1.bf16.msra.mxu0 %v775
      %872 = vmatprep.subr.bf16.mxu0 0
      %873 = vmatpush1.bf16.msra.mxu0 %v774
      %874 = vmatprep.subr.bf16.mxu0 0
      %875 = vmatpush2.bf16.msra.mxu0 %v789
      %876 = vmatprep.subr.bf16.mxu0 0
      %877 = vmatpush2.bf16.msra.mxu0 %v788
      %878 = vmatprep.subr.bf16.mxu0 0
      %879 = vmatpush2.bf16.msra.mxu0 %v787
      %880 = vmatprep.subr.bf16.mxu0 0
      %881 = vmatpush2.bf16.msra.mxu0 %v786
      %882 = vmatprep.subr.bf16.mxu0 0
      %883 = vmatpush2.bf16.msra.mxu0 %v785
      %884 = vmatprep.subr.bf16.mxu0 0
      %885 = vmatpush2.bf16.msra.mxu0 %v784
      %886 = vmatprep.subr.bf16.mxu0 0
      %887 = vmatpush2.bf16.msra.mxu0 %v783
      %888 = vmatprep.subr.bf16.mxu0 0
      %889 = vmatpush2.bf16.msra.mxu0 %v782
      %890 = vmatprep.mubr.bf16.mxu0 %v601
      %891 = vmatmul.mubr.bf16.gmra.mxu0 %v600
      %v892 = vpop.f32.mrf.mxu0
      %v893 = vadd.f32 %v598, %v892
      %v894 = vpop.f32.mrf.mxu0
      %v895 = vpop.f32.mrf.mxu0
      %v896 = vadd.f32 %v598, %v895
      %v897 = vpop.f32.mrf.mxu0
      %898 = vmatprep.mubr.bf16.mxu0 %v605
      %899 = vmatmul.mubr.bf16.gmra.mxu0 %v603
      %v900 = vpop.f32.mrf.mxu0
      %v901 = vadd.f32 %v598, %v900
      %v902 = vpop.f32.mrf.mxu0
      %v903 = vpop.f32.mrf.mxu0
      %v904 = vadd.f32 %v598, %v903
      %v905 = vpop.f32.mrf.mxu0
      %906 = vmatprep.mubr.bf16.mxu0 %v609
      %907 = vmatmul.mubr.bf16.gmra.mxu0 %v607
      %v908 = vpop.f32.mrf.mxu0
      %v909 = vadd.f32 %v598, %v908
      %v910 = vpop.f32.mrf.mxu0
      %v911 = vpop.f32.mrf.mxu0
      %v912 = vadd.f32 %v598, %v911
      %v913 = vpop.f32.mrf.mxu0
      %914 = vmatprep.mubr.bf16.mxu0 %v613
      %915 = vmatmul.mubr.bf16.gmra.mxu0 %v611
      %v916 = vpop.f32.mrf.mxu0
      %v917 = vadd.f32 %v598, %v916
      %v918 = vpop.f32.mrf.mxu0
      %v919 = vpop.f32.mrf.mxu0
      %v920 = vadd.f32 %v598, %v919
      %v921 = vpop.f32.mrf.mxu0
      %922 = vdwg.mxu0
      %923 = vmatprep.subr.bf16.mxu0 0
      %924 = vmatpush1.bf16.msra.mxu0 %v797
      %925 = vmatprep.subr.bf16.mxu0 0
      %926 = vmatpush1.bf16.msra.mxu0 %v796
      %927 = vmatprep.subr.bf16.mxu0 0
      %928 = vmatpush1.bf16.msra.mxu0 %v795
      %929 = vmatprep.subr.bf16.mxu0 0
      %930 = vmatpush1.bf16.msra.mxu0 %v794
      %931 = vmatprep.subr.bf16.mxu0 0
      %932 = vmatpush1.bf16.msra.mxu0 %v793
      %933 = vmatprep.subr.bf16.mxu0 0
      %934 = vmatpush1.bf16.msra.mxu0 %v792
      %935 = vmatprep.subr.bf16.mxu0 0
      %936 = vmatpush1.bf16.msra.mxu0 %v791
      %937 = vmatprep.subr.bf16.mxu0 0
      %938 = vmatpush1.bf16.msra.mxu0 %v790
      %939 = vmatprep.subr.bf16.mxu0 0
      %940 = vmatpush2.bf16.msra.mxu0 %v805
      %941 = vmatprep.subr.bf16.mxu0 0
      %942 = vmatpush2.bf16.msra.mxu0 %v804
      %943 = vmatprep.subr.bf16.mxu0 0
      %944 = vmatpush2.bf16.msra.mxu0 %v803
      %945 = vmatprep.subr.bf16.mxu0 0
      %946 = vmatpush2.bf16.msra.mxu0 %v802
      %947 = vmatprep.subr.bf16.mxu0 0
      %948 = vmatpush2.bf16.msra.mxu0 %v801
      %949 = vmatprep.subr.bf16.mxu0 0
      %950 = vmatpush2.bf16.msra.mxu0 %v800
      %951 = vmatprep.subr.bf16.mxu0 0
      %952 = vmatpush2.bf16.msra.mxu0 %v799
      %953 = vmatprep.subr.bf16.mxu0 0
      %954 = vmatpush2.bf16.msra.mxu0 %v798
      %955 = vmatprep.mubr.bf16.mxu0 %v603
      %956 = vmatmul.mubr.bf16.gmra.mxu0 %v602
      %v957 = vpop.f32.mrf.mxu0
      %v958 = vadd.f32 %v893, %v957
      %v959 = vpop.f32.mrf.mxu0
      %v960 = vpop.f32.mrf.mxu0
      %v961 = vadd.f32 %v896, %v960
      %v962 = vpop.f32.mrf.mxu0
      %963 = vmatprep.mubr.bf16.mxu0 %v607
      %964 = vmatmul.mubr.bf16.gmra.mxu0 %v606
      %v965 = vpop.f32.mrf.mxu0
      %v966 = vadd.f32 %v901, %v965
      %v967 = vpop.f32.mrf.mxu0
      %v968 = vpop.f32.mrf.mxu0
      %v969 = vadd.f32 %v904, %v968
      %v970 = vpop.f32.mrf.mxu0
      %971 = vmatprep.mubr.bf16.mxu0 %v611
      %972 = vmatmul.mubr.bf16.gmra.mxu0 %v610
      %v973 = vpop.f32.mrf.mxu0
      %v974 = vadd.f32 %v909, %v973
      %v975 = vpop.f32.mrf.mxu0
      %v976 = vpop.f32.mrf.mxu0
      %v977 = vadd.f32 %v912, %v976
      %v978 = vpop.f32.mrf.mxu0
      %979 = vmatprep.mubr.bf16.mxu0 %v615
      %980 = vmatmul.mubr.bf16.gmra.mxu0 %v614
      %v981 = vpop.f32.mrf.mxu0
      %v982 = vadd.f32 %v917, %v981
      %v983 = vpop.f32.mrf.mxu0
      %v984 = vpop.f32.mrf.mxu0
      %v985 = vadd.f32 %v920, %v984
      %v986 = vpop.f32.mrf.mxu0
      %987 = vdwg.mxu0
      %988 = vmatprep.subr.bf16.mxu0 0
      %989 = vmatpush1.bf16.msra.mxu0 0
      %990 = vmatprep.subr.bf16.mxu0 0
      %991 = vmatpush1.bf16.msra.mxu0 0
      %992 = vmatprep.subr.bf16.mxu0 0
      %993 = vmatpush1.bf16.msra.mxu0 0
      %994 = vmatprep.subr.bf16.mxu0 0
      %995 = vmatpush1.bf16.msra.mxu0 0
      %996 = vmatprep.subr.bf16.mxu0 0
      %997 = vmatpush1.bf16.msra.mxu0 %v809
      %998 = vmatprep.subr.bf16.mxu0 0
      %999 = vmatpush1.bf16.msra.mxu0 %v808
      %1000 = vmatprep.subr.bf16.mxu0 0
      %1001 = vmatpush1.bf16.msra.mxu0 %v807
      %1002 = vmatprep.subr.bf16.mxu0 0
      %1003 = vmatpush1.bf16.msra.mxu0 %v806
      %1004 = vmatprep.subr.bf16.mxu0 0
      %1005 = vmatpush2.bf16.msra.mxu0 0
      %1006 = vmatprep.subr.bf16.mxu0 0
      %1007 = vmatpush2.bf16.msra.mxu0 0
      %1008 = vmatprep.subr.bf16.mxu0 0
      %1009 = vmatpush2.bf16.msra.mxu0 0
      %1010 = vmatprep.subr.bf16.mxu0 0
      %1011 = vmatpush2.bf16.msra.mxu0 0
      %1012 = vmatprep.subr.bf16.mxu0 0
      %1013 = vmatpush2.bf16.msra.mxu0 0
      %1014 = vmatprep.subr.bf16.mxu0 0
      %1015 = vmatpush2.bf16.msra.mxu0 0
      %1016 = vmatprep.subr.bf16.mxu0 0
      %1017 = vmatpush2.bf16.msra.mxu0 0
      %1018 = vmatprep.subr.bf16.mxu0 0
      %1019 = vmatpush2.bf16.msra.mxu0 0
      %1020 = vmatprep.mubr.bf16.mxu0 0
      %1021 = vmatmul.mubr.bf16.gmra.mxu0 %v847
      %v1022 = vpop.f32.mrf.mxu0
      %v1023 = vadd.f32 %v958, %v1022
      %v1024 = vpop.f32.mrf.mxu0
      %v1025 = vpop.f32.mrf.mxu0
      %v1026 = vadd.f32 %v961, %v1025
      %v1027 = vpop.f32.mrf.mxu0
      %1028 = vmatprep.mubr.bf16.mxu0 0
      %1029 = vmatmul.mubr.bf16.gmra.mxu0 %v850
      %v1030 = vpop.f32.mrf.mxu0
      %v1031 = vadd.f32 %v966, %v1030
      %v1032 = vpop.f32.mrf.mxu0
      %v1033 = vpop.f32.mrf.mxu0
      %v1034 = vadd.f32 %v969, %v1033
      %v1035 = vpop.f32.mrf.mxu0
      %1036 = vmatprep.mubr.bf16.mxu0 0
      %1037 = vmatmul.mubr.bf16.gmra.mxu0 %v853
      %v1038 = vpop.f32.mrf.mxu0
      %v1039 = vadd.f32 %v974, %v1038
      %v1040 = vpop.f32.mrf.mxu0
      %v1041 = vpop.f32.mrf.mxu0
      %v1042 = vadd.f32 %v977, %v1041
      %v1043 = vpop.f32.mrf.mxu0
      %1044 = vmatprep.mubr.bf16.mxu0 0
      %1045 = vmatmul.mubr.bf16.gmra.mxu0 %v856
      %v1046 = vpop.f32.mrf.mxu0
      %v1047 = vadd.f32 %v982, %v1046
      %v1048 = vpop.f32.mrf.mxu0
      %v1049 = vpop.f32.mrf.mxu0
      %v1050 = vadd.f32 %v985, %v1049
      %v1051 = vpop.f32.mrf.mxu0
      %1052 = vdwg.mxu0
      %v1053 = vmax.f32 %v1023, 0.0
      %v1054 = vmax.f32 %v1026, 0.0
      %v1055 = vmax.f32 %v1031, 0.0
      %v1056 = vmax.f32 %v1034, 0.0
      %v1057 = vmax.f32 %v1039, 0.0
      %v1058 = vmax.f32 %v1042, 0.0
      %v1059 = vmax.f32 %v1047, 0.0
      %v1060 = vmax.f32 %v1050, 0.0
      %v1061 = vpack.c.bf16 %v1053, %v1053
      %v1062 = vpack.c.bf16 %v1054, %v1054
      %v1063 = vpack.c.bf16 %v1055, %v1055
      %v1064 = vpack.c.bf16 %v1056, %v1056
      %v1065 = vpack.c.bf16 %v1057, %v1057
      %v1066 = vpack.c.bf16 %v1058, %v1058
      %v1067 = vpack.c.bf16 %v1059, %v1059
      %v1068 = vpack.c.bf16 %v1060, %v1060
      %vm1069 = vcmask 257024
      %1070 = vst.msk [vmem:[%s170] sm:$0xf] %vm1069, %v1061
      %1071 = vst.msk [vmem:[%s170 + $0x4] sm:$0xf] %vm1069, %v1062
      %1072 = vst.msk [vmem:[%s170 + $0x8] sm:$0xf] %vm1069, %v1063
      %1073 = vst.msk [vmem:[%s170 + $0xc] sm:$0xf] %vm1069, %v1064
      %1074 = vst.msk [vmem:[%s170 + $0x10] sm:$0xf] %vm1069, %v1065
      %1075 = vst.msk [vmem:[%s170 + $0x14] sm:$0xf] %vm1069, %v1066
      %1076 = vst.msk [vmem:[%s170 + $0x18] sm:$0xf] %vm1069, %v1067
      %1077 = vst.msk [vmem:[%s170 + $0x1c] sm:$0xf] %vm1069, %v1068
      %p1078 = scmp.lt.s32.totalorder %s14, 1
      %s1079 = scalar_select %p1078, %s14, 1
      %s1080 = smul.addr %s1079, 8
      %s1081 = smul.addr %s1080, 4
      %s1082 = scalar_lea.vmem %s3, %s1081
      // Predicated region
      $region33: #{srnet_forward.6} parent=31 // pred_check
        %p1083 = pneg %p100
      $region34: #{srnet_forward.6} parent=31 // pred_check_branch
        %1085 = sbr.rel (%p1083) target = $region36
      $region35: #{srnet_forward.6} parent=31 // pred_region
        _
      $region36: #{srnet_forward.6} parent=31 // pred_fallthru
        _
    $region32: #{srnet_forward.6} parent=5 // pred_fallthru
      _
    %p1086 = scmp.le.s32.totalorder 2, %s9
    // Predicated region
    $region37: #{srnet_forward.6} parent=5 // pred_check
      %p1087 = pneg %p1086
    $region38: #{srnet_forward.6} parent=5 // pred_check_branch
      %1089 = sbr.rel (%p1087) target = $region40
    $region39: #{srnet_forward.6} parent=5 // pred_region
      %s1090 = ssub.s32 %s9, 2
      // Predicated region
      $region41: #{srnet_forward.6} parent=39 // pred_check
        %p1091 = pneg %p106
      $region42: #{srnet_forward.6} parent=39 // pred_check_branch
        %1093 = sbr.rel (%p1091) target = $region44
      $region43: #{srnet_forward.6} parent=39 // pred_region
        %p1094 = scmp.lt.s32.totalorder %s15, 1
        %s1095 = scalar_select %p1094, %s15, 1
        %s1096 = smul.addr %s1095, 8
        %s1097 = smul.addr %s1096, 4
        %s1098 = scalar_lea.vmem %s3, %s1097
      $region44: #{srnet_forward.6} parent=39 // pred_fallthru
        _
    $region40: #{srnet_forward.6} parent=5 // pred_fallthru
      _
  $region6: #{srnet_forward.6} parent=0 // loop_footer
    %s13 = sadd.s32 1, %s9
  $region7: #{srnet_forward.6} parent=0 // loop_footer_branch
    %8 = sbr.rel target = $region3
  $region8: #{srnet_forward.6} parent=0 // loop_exit
    _

// kernel: srnet_forward.7
$region0: #{srnet_forward.7}
  #allocation0 [shape = 'u32[]', space=smem, size = 0x4, offset = 0x4, fixed_abs, tag = 'smem constant byte address 0x4 - core index']
  #allocation1 [shape = 'u32[144,128]{1,0:T(1,128)}', space=vmem, size = 0x12000, scoped, tag = 'internal scratch']
  %s0 = inlined_call_operand.vmem [shape: bf16[2,10,10,32], index: 0, kind: input, shape index: {}]
  %s1 = inlined_call_operand.vmem [shape: bf16[288,32], index: 1, kind: input, shape index: {}]
  %s2 = inlined_call_operand.vmem [shape: f32[1,32], index: 2, kind: input, shape index: {}]
  %s3 = inlined_call_operand.vmem [shape: bf16[288,32], index: 3, kind: input, shape index: {}]
  %s4 = inlined_call_operand.vmem [shape: f32[1,32], index: 4, kind: input, shape index: {}]
  %s5 = inlined_call_operand.vmem [shape: bf16[2,8,8,32], index: 5, kind: output, shape index: {}]
  %s6 = sld [smem:[#allocation0]]
  $region53: #{srnet_forward.7} parent=0
    _
  %s8 = ssub.s32 1, %s6
  %s9 = scalar_select 0, %s8, %s6
  loop: start=0, step=1, limit=4
  $region2: #{srnet_forward.7} parent=0 // loop_pre_header
    _
  $region3: #{srnet_forward.7} parent=0 // loop_header
    %s11 = sphi 0, %s15
    %p12 = scmp.ge.s32.totalorder %s11, 4
    %s21 = sphi 0, %s23
    %s24 = sphi 0, %s21
    %s25 = sphi 0, %s24
    %s41 = sphi 0, %s25
    %s45 = sphi 0, %s45
    %s47 = sphi 0, %s45
    %s48 = sphi 0, %s47
    %s62 = sphi 0, %s48
    %s66 = sphi 0, %s66
    %s68 = sphi 0, %s66
    %s69 = sphi 0, %s68
    %s83 = sphi 0, %s69
    %s87 = sphi 0, %s87
    %s89 = sphi 0, %s87
    %s90 = sphi 0, %s89
    %s104 = sphi 0, %s90
    %s108 = sphi 0, %s108
    %s110 = sphi 0, %s108
    %s111 = sphi 0, %s110
    %s125 = sphi 0, %s111
    %s131 = sphi 0, %s133
    %s134 = sphi 0, %s131
    %s135 = sphi 0, %s134
    %s151 = sphi 0, %s135
  $region4: #{srnet_forward.7} parent=0 // loop_header_branch
    %14 = sbr.rel (%p12) target = $region8
  $region5: #{srnet_forward.7} parent=0 // loop_body
    %s16 = ssub.s32 %s11, 1
    %s17 = ssub.s32 %s11, 2
    %s18 = sadd.s32 %s11, 1
    %s19 = ssub.s32 %s11, %s18
    %p20 = scmp.eq.s32.totalorder %s19, 0
    %s22 = sadd.s32 %s21, 1
    %s23 = scalar_select %p20, %s21, %s22
    %p26 = pneg %p20
    %p27 = scmp.eq.s32.totalorder %s11, 1
    %p28 = por %p26, %p27
    %p29 = scmp.ne.s32.totalorder %s21, %s24
    %p30 = scmp.eq.s32.totalorder %s11, 0
    %p31 = por %p29, %p30
    %p32 = scmp.ne.s32.totalorder %s21, %s24
    %p33 = scmp.eq.s32.totalorder %s16, 1
    %p34 = por %p32, %p33
    %p35 = scmp.ne.s32.totalorder %s24, %s25
    %p36 = scmp.eq.s32.totalorder %s16, 0
    %p37 = por %p35, %p36
    %p38 = scmp.ne.s32.totalorder %s24, %s25
    %p39 = scmp.eq.s32.totalorder %s17, 1
    %p40 = por %p38, %p39
    %p42 = scmp.ne.s32.totalorder %s25, %s41
    %p43 = scmp.eq.s32.totalorder %s17, 0
    %p44 = por %p42, %p43
    %s46 = sadd.s32 %s45, 1
    %p49 = scmp.eq.s32.totalorder %s11, 1
    %p50 = scmp.ne.s32.totalorder %s45, %s47
    %p51 = scmp.eq.s32.totalorder %s11, 0
    %p52 = por %p50, %p51
    %p53 = scmp.ne.s32.totalorder %s45, %s47
    %p54 = scmp.eq.s32.totalorder %s16, 1
    %p55 = por %p53, %p54
    %p56 = scmp.ne.s32.totalorder %s47, %s48
    %p57 = scmp.eq.s32.totalorder %s16, 0
    %p58 = por %p56, %p57
    %p59 = scmp.ne.s32.totalorder %s47, %s48
    %p60 = scmp.eq.s32.totalorder %s17, 1
    %p61 = por %p59, %p60
    %p63 = scmp.ne.s32.totalorder %s48, %s62
    %p64 = scmp.eq.s32.totalorder %s17, 0
    %p65 = por %p63, %p64
    %s67 = sadd.s32 %s66, 1
    %p70 = scmp.eq.s32.totalorder %s11, 1
    %p71 = scmp.ne.s32.totalorder %s66, %s68
    %p72 = scmp.eq.s32.totalorder %s11, 0
    %p73 = por %p71, %p72
    %p74 = scmp.ne.s32.totalorder %s66, %s68
    %p75 = scmp.eq.s32.totalorder %s16, 1
    %p76 = por %p74, %p75
    %p77 = scmp.ne.s32.totalorder %s68, %s69
    %p78 = scmp.eq.s32.totalorder %s16, 0
    %p79 = por %p77, %p78
    %p80 = scmp.ne.s32.totalorder %s68, %s69
    %p81 = scmp.eq.s32.totalorder %s17, 1
    %p82 = por %p80, %p81
    %p84 = scmp.ne.s32.totalorder %s69, %s83
    %p85 = scmp.eq.s32.totalorder %s17, 0
    %p86 = por %p84, %p85
    %s88 = sadd.s32 %s87, 1
    %p91 = scmp.eq.s32.totalorder %s11, 1
    %p92 = scmp.ne.s32.totalorder %s87, %s89
    %p93 = scmp.eq.s32.totalorder %s11, 0
    %p94 = por %p92, %p93
    %p95 = scmp.ne.s32.totalorder %s87, %s89
    %p96 = scmp.eq.s32.totalorder %s16, 1
    %p97 = por %p95, %p96
    %p98 = scmp.ne.s32.totalorder %s89, %s90
    %p99 = scmp.eq.s32.totalorder %s16, 0
    %p100 = por %p98, %p99
    %p101 = scmp.ne.s32.totalorder %s89, %s90
    %p102 = scmp.eq.s32.totalorder %s17, 1
    %p103 = por %p101, %p102
    %p105 = scmp.ne.s32.totalorder %s90, %s104
    %p106 = scmp.eq.s32.totalorder %s17, 0
    %p107 = por %p105, %p106
    %s109 = sadd.s32 %s108, 1
    %p112 = scmp.eq.s32.totalorder %s11, 1
    %p113 = scmp.ne.s32.totalorder %s108, %s110
    %p114 = scmp.eq.s32.totalorder %s11, 0
    %p115 = por %p113, %p114
    %p116 = scmp.ne.s32.totalorder %s108, %s110
    %p117 = scmp.eq.s32.totalorder %s16, 1
    %p118 = por %p116, %p117
    %p119 = scmp.ne.s32.totalorder %s110, %s111
    %p120 = scmp.eq.s32.totalorder %s16, 0
    %p121 = por %p119, %p120
    %p122 = scmp.ne.s32.totalorder %s110, %s111
    %p123 = scmp.eq.s32.totalorder %s17, 1
    %p124 = por %p122, %p123
    %p126 = scmp.ne.s32.totalorder %s111, %s125
    %p127 = scmp.eq.s32.totalorder %s17, 0
    %p128 = por %p126, %p127
    %s129 = ssub.s32 %s11, %s18
    %p130 = scmp.eq.s32.totalorder %s129, 0
    %s132 = sadd.s32 %s131, 1
    %s133 = scalar_select %p130, %s131, %s132
    %p136 = pneg %p130
    %p137 = scmp.eq.s32.totalorder %s11, 1
    %p138 = por %p136, %p137
    %p139 = scmp.ne.s32.totalorder %s131, %s134
    %p140 = scmp.eq.s32.totalorder %s11, 0
    %p141 = por %p139, %p140
    %p142 = scmp.ne.s32.totalorder %s131, %s134
    %p143 = scmp.eq.s32.totalorder %s16, 1
    %p144 = por %p142, %p143
    %p145 = scmp.ne.s32.totalorder %s134, %s135
    %p146 = scmp.eq.s32.totalorder %s16, 0
    %p147 = por %p145, %p146
    %p148 = scmp.ne.s32.totalorder %s134, %s135
    %p149 = scmp.eq.s32.totalorder %s17, 1
    %p150 = por %p148, %p149
    %p152 = scmp.ne.s32.totalorder %s135, %s151
    %p153 = scmp.eq.s32.totalorder %s17, 0
    %p154 = por %p152, %p153
    %p155 = scmp.le.s32.totalorder 1, %s11
    %p156 = scmp.lt.s32.totalorder %s11, 3
    %p157 = pnand %p155, %p156
    %p158 = pneg %p157
    // Predicated region
    $region9: #{srnet_forward.7} parent=5 // pred_check
      _
    $region10: #{srnet_forward.7} parent=5 // pred_check_branch
      %160 = sbr.rel (%p157) target = $region12
    $region11: #{srnet_forward.7} parent=5 // pred_region
      %s161 = ssub.s32 %s11, 1
      // Predicated region
      $region13: #{srnet_forward.7} parent=11 // pred_check
        %p162 = pneg %p58
      $region14: #{srnet_forward.7} parent=11 // pred_check_branch
        %164 = sbr.rel (%p162) target = $region16
      $region15: #{srnet_forward.7} parent=11 // pred_region
        _
      $region16: #{srnet_forward.7} parent=11 // pred_fallthru
        _
      // Predicated region
      $region17: #{srnet_forward.7} parent=11 // pred_check
        %p165 = pneg %p79
      $region18: #{srnet_forward.7} parent=11 // pred_check_branch
        %167 = sbr.rel (%p165) target = $region20
      $region19: #{srnet_forward.7} parent=11 // pred_region
        _
      $region20: #{srnet_forward.7} parent=11 // pred_fallthru
        _
      // Predicated region
      $region21: #{srnet_forward.7} parent=11 // pred_check
        %p168 = pneg %p100
      $region22: #{srnet_forward.7} parent=11 // pred_check_branch
        %170 = sbr.rel (%p168) target = $region24
      $region23: #{srnet_forward.7} parent=11 // pred_region
        _
      $region24: #{srnet_forward.7} parent=11 // pred_fallthru
        _
      // Predicated region
      $region25: #{srnet_forward.7} parent=11 // pred_check
        %p171 = pneg %p121
      $region26: #{srnet_forward.7} parent=11 // pred_check_branch
        %173 = sbr.rel (%p171) target = $region28
      $region27: #{srnet_forward.7} parent=11 // pred_region
        _
      $region28: #{srnet_forward.7} parent=11 // pred_fallthru
        _
    $region12: #{srnet_forward.7} parent=5 // pred_fallthru
      _
    %p174 = scmp.lt.s32.totalorder %s11, 2
    // Predicated region
    $region29: #{srnet_forward.7} parent=5 // pred_check
      %p175 = pneg %p174
    $region30: #{srnet_forward.7} parent=5 // pred_check_branch
      %177 = sbr.rel (%p175) target = $region32
    $region31: #{srnet_forward.7} parent=5 // pred_region
      // Predicated region
      $region33: #{srnet_forward.7} parent=31 // pred_check
        %p178 = pneg %p31
      $region34: #{srnet_forward.7} parent=31 // pred_check_branch
        %180 = sbr.rel (%p178) target = $region36
      $region35: #{srnet_forward.7} parent=31 // pred_region
        %p181 = scmp.lt.s32.totalorder %s11, 1
        %s182 = scalar_select %p181, %s11, 1
        %s183 = smul.addr %s182, 20
        %s184 = smul.addr %s183, 4
        %s185 = scalar_lea.vmem %s0, %s184
      $region36: #{srnet_forward.7} parent=31 // pred_fallthru
        _
    $region32: #{srnet_forward.7} parent=5 // pred_fallthru
      _
    %p186 = scmp.le.s32.totalorder 1, %s11
    %p187 = scmp.lt.s32.totalorder %s11, 3
    %p188 = pnand %p186, %p187
    %p189 = pneg %p188
    // Predicated region
    $region37: #{srnet_forward.7} parent=5 // pred_check
      _
    $region38: #{srnet_forward.7} parent=5 // pred_check_branch
      %191 = sbr.rel (%p188) target = $region40
    $region39: #{srnet_forward.7} parent=5 // pred_region
      %s192 = ssub.s32 %s11, 1
      %p193 = scmp.lt.s32.totalorder %s16, 1
      %s194 = scalar_select %p193, %s16, 1
      %s195 = smul.addr %s194, 20
      %s196 = smul.addr %s195, 4
      %s197 = scalar_lea.vmem %s0, %s196
      %p198 = pneg %p37
      %p199 = pneg %p34
      %p200 = pneg %p58
      %p201 = pneg %p55
      %p202 = pneg %p79
      %p203 = pneg %p76
      %p204 = pneg %p100
      %p205 = pneg %p97
      %p206 = pneg %p121
      %p207 = pneg %p118
      %p208 = pneg %p147
      %p209 = pneg %p144
      %p210 = scmp.lt.s32.totalorder %s16, 1
      %s211 = scalar_select %p210, %s16, 1
      %s212 = smul.addr %s211, 8
      %s213 = smul.addr %s212, 4
      %s214 = scalar_lea.vmem %s5, %s213
      %p215 = scmp.lt.s32.totalorder %s16, 1
      %s216 = scalar_select %p215, %s16, 1
      %s217 = smul.addr %s216, 20
      %s218 = smul.addr %s217, 4
      %s219 = scalar_lea.vmem %s0, %s218
      %p220 = scmp.lt.s32.totalorder %s16, 1
      %s221 = scalar_select %p220, %s16, 1
      %s222 = smul.addr %s221, 8
      %s223 = smul.addr %s222, 4
      %s224 = scalar_lea.vmem %s5, %s223
      %v226 = vld [vmem:[%s219] sm:$0xf]
      %v227 = vld [vmem:[%s219 + $0x4] sm:$0x1]
      %v228 = vld [vmem:[%s219 + $0x8] sm:$0xf]
      %v229 = vld [vmem:[%s219 + $0xc] sm:$0x1]
      %v230 = vld [vmem:[%s219 + $0x10] sm:$0xf]
      %v231 = vld [vmem:[%s219 + $0x14] sm:$0x1]
      %v232 = vld [vmem:[%s219 + $0x18] sm:$0xf]
      %v233 = vld [vmem:[%s219 + $0x1c] sm:$0x1]
      %v234 = vld [vmem:[%s219 + $0x20] sm:$0xf]
      %v235 = vld [vmem:[%s219 + $0x24] sm:$0x1]
      %v236 = vld [vmem:[%s219 + $0x28] sm:$0xf]
      %v237 = vld [vmem:[%s219 + $0x2c] sm:$0x1]
      %v238 = vld [vmem:[%s219 + $0x30] sm:$0xf]
      %v239 = vld [vmem:[%s219 + $0x34] sm:$0x1]
      %v240 = vld [vmem:[%s219 + $0x38] sm:$0xf]
      %v241 = vld [vmem:[%s219 + $0x3c] sm:$0x1]
      %v242 = vld [vmem:[%s219 + $0x40] sm:$0xf]
      %v243 = vld [vmem:[%s219 + $0x44] sm:$0x1]
      %v244 = vld [vmem:[%s219 + $0x48] sm:$0xf]
      %v245 = vld [vmem:[%s219 + $0x4c] sm:$0x1]
      %v262 = vunpack.c.l.b16 %v226
      %v263 = vunpack.c.l.b16 %v227
      %v264 = vunpack.c.l.b16 %v228
      %v265 = vunpack.c.l.b16 %v229
      %v266 = vunpack.c.l.b16 %v230
      %v267 = vunpack.c.l.b16 %v231
      %v268 = vunpack.c.l.b16 %v232
      %v269 = vunpack.c.l.b16 %v233
      %v270 = vunpack.c.l.b16 %v234
      %v271 = vunpack.c.l.b16 %v235
      %v272 = vunpack.c.l.b16 %v236
      %v273 = vunpack.c.l.b16 %v237
      %v274 = vunpack.c.l.b16 %v238
      %v275 = vunpack.c.l.b16 %v239
      %v276 = vunpack.c.l.b16 %v240
      %v277 = vunpack.c.l.b16 %v241
      %v278 = vpack.c.b16 %v263, %v262
      %v279 = vpack.c.b16 %v265, %v264
      %v280 = vpack.c.b16 %v267, %v266
      %v281 = vpack.c.b16 %v269, %v268
      %v282 = vpack.c.b16 %v271, %v270
      %v283 = vpack.c.b16 %v273, %v272
      %v284 = vpack.c.b16 %v275, %v274
      %v285 = vpack.c.b16 %v277, %v276
      %v287 = vshrl.u32 %v278, 16
      %v289 = vshll.u32 %v278, 16
      %v291 = vrot.slane %v289, 1
      %v292 = vor.u32 %v287, %v291
      %v294 = vshrl.u32 %v279, 16
      %v296 = vshll.u32 %v279, 16
      %v298 = vrot.slane %v296, 1
      %v299 = vor.u32 %v294, %v298
      %v301 = vshrl.u32 %v280, 16
      %v303 = vshll.u32 %v280, 16
      %v305 = vrot.slane %v303, 1
      %v306 = vor.u32 %v301, %v305
      %v308 = vshrl.u32 %v281, 16
      %v310 = vshll.u32 %v281, 16
      %v312 = vrot.slane %v310, 1
      %v313 = vor.u32 %v308, %v312
      %v315 = vshrl.u32 %v282, 16
      %v317 = vshll.u32 %v282, 16
      %v319 = vrot.slane %v317, 1
      %v320 = vor.u32 %v315, %v319
      %v322 = vshrl.u32 %v283, 16
      %v324 = vshll.u32 %v283, 16
      %v326 = vrot.slane %v324, 1
      %v327 = vor.u32 %v322, %v326
      %v329 = vshrl.u32 %v284, 16
      %v331 = vshll.u32 %v284, 16
      %v333 = vrot.slane %v331, 1
      %v334 = vor.u32 %v329, %v333
      %v336 = vshrl.u32 %v285, 16
      %v338 = vshll.u32 %v285, 16
      %v340 = vrot.slane %v338, 1
      %v341 = vor.u32 %v336, %v340
      %342 = vrot.lane.b32.xlu0 %v292, 32
      %v343 = vpop.permute.xlu0 %342
      %344 = vrot.lane.b32.xlu0 %v299, 32
      %v345 = vpop.permute.xlu0 %344
      %346 = vrot.lane.b32.xlu0 %v306, 32
      %v347 = vpop.permute.xlu0 %346
      %348 = vrot.lane.b32.xlu0 %v313, 32
      %v349 = vpop.permute.xlu0 %348
      %350 = vrot.lane.b32.xlu0 %v320, 32
      %v351 = vpop.permute.xlu0 %350
      %352 = vrot.lane.b32.xlu0 %v327, 32
      %v353 = vpop.permute.xlu0 %352
      %354 = vrot.lane.b32.xlu0 %v334, 32
      %v355 = vpop.permute.xlu0 %354
      %356 = vrot.lane.b32.xlu0 %v341, 32
      %v357 = vpop.permute.xlu0 %356
      %v358 = vrot.slane %v278, 1
      %v359 = vrot.slane %v279, 1
      %v360 = vrot.slane %v280, 1
      %v361 = vrot.slane %v281, 1
      %v362 = vrot.slane %v282, 1
      %v363 = vrot.slane %v283, 1
      %v364 = vrot.slane %v284, 1
      %v365 = vrot.slane %v285, 1
      %366 = vrot.lane.b32.xlu0 %v358, 64
      %v367 = vpop.permute.xlu0 %366
      %368 = vrot.lane.b32.xlu0 %v359, 64
      %v369 = vpop.permute.xlu0 %368
      %370 = vrot.lane.b32.xlu0 %v360, 64
      %v371 = vpop.permute.xlu0 %370
      %372 = vrot.lane.b32.xlu0 %v361, 64
      %v373 = vpop.permute.xlu0 %372
      %374 = vrot.lane.b32.xlu0 %v362, 64
      %v375 = vpop.permute.xlu0 %374
      %376 = vrot.lane.b32.xlu0 %v363, 64
      %v377 = vpop.permute.xlu0 %376
      %378 = vrot.lane.b32.xlu0 %v364, 64
      %v379 = vpop.permute.xlu0 %378
      %380 = vrot.lane.b32.xlu0 %v365, 64
      %v381 = vpop.permute.xlu0 %380
      %v383 = vunpack.c.l.b16 %v242
      %v384 = vpack.c.b16 %v264, %v264
      %v385 = vpack.c.b16 %v266, %v266
      %v386 = vpack.c.b16 %v268, %v268
      %v387 = vpack.c.b16 %v270, %v270
      %v388 = vpack.c.b16 %v272, %v272
      %v389 = vpack.c.b16 %v274, %v274
      %v390 = vpack.c.b16 %v276, %v276
      %v391 = vpack.c.b16 %v383, %v383
      %392 = vrot.lane.b32.xlu0 %v384, 96
      %v393 = vpop.permute.xlu0 %392
      %394 = vrot.lane.b32.xlu0 %v385, 96
      %v395 = vpop.permute.xlu0 %394
      %396 = vrot.lane.b32.xlu0 %v386, 96
      %v397 = vpop.permute.xlu0 %396
      %398 = vrot.lane.b32.xlu0 %v387, 96
      %v399 = vpop.permute.xlu0 %398
      %400 = vrot.lane.b32.xlu0 %v388, 96
      %v401 = vpop.permute.xlu0 %400
      %402 = vrot.lane.b32.xlu0 %v389, 96
      %v403 = vpop.permute.xlu0 %402
      %404 = vrot.lane.b32.xlu0 %v390, 96
      %v405 = vpop.permute.xlu0 %404
      %406 = vrot.lane.b32.xlu0 %v391, 96
      %v407 = vpop.permute.xlu0 %406
      %v409 = vunpack.c.l.b16 %v243
      %v410 = vpack.c.b16 %v409, %v383
      %v412 = vshrl.u32 %v410, 16
      %v414 = vshll.u32 %v410, 16
      %v416 = vrot.slane %v414, 1
      %v417 = vor.u32 %v412, %v416
      %v418 = vrot.slane %v410, 1
      %419 = vrot.lane.b32.xlu0 %v359, 32
      %v420 = vpop.permute.xlu0 %419
      %421 = vrot.lane.b32.xlu0 %v360, 32
      %v422 = vpop.permute.xlu0 %421
      %423 = vrot.lane.b32.xlu0 %v361, 32
      %v424 = vpop.permute.xlu0 %423
      %425 = vrot.lane.b32.xlu0 %v362, 32
      %v426 = vpop.permute.xlu0 %425
      %427 = vrot.lane.b32.xlu0 %v363, 32
      %v428 = vpop.permute.xlu0 %427
      %429 = vrot.lane.b32.xlu0 %v364, 32
      %v430 = vpop.permute.xlu0 %429
      %431 = vrot.lane.b32.xlu0 %v365, 32
      %v432 = vpop.permute.xlu0 %431
      %433 = vrot.lane.b32.xlu0 %v418, 32
      %v434 = vpop.permute.xlu0 %433
      %v436 = vunpack.c.l.b16 %v244
      %v437 = vpack.c.b16 %v436, %v436
      %438 = vrot.lane.b32.xlu0 %v385, 64
      %v439 = vpop.permute.xlu0 %438
      %440 = vrot.lane.b32.xlu0 %v386, 64
      %v441 = vpop.permute.xlu0 %440
      %442 = vrot.lane.b32.xlu0 %v387, 64
      %v443 = vpop.permute.xlu0 %442
      %444 = vrot.lane.b32.xlu0 %v388, 64
      %v445 = vpop.permute.xlu0 %444
      %446 = vrot.lane.b32.xlu0 %v389, 64
      %v447 = vpop.permute.xlu0 %446
      %448 = vrot.lane.b32.xlu0 %v390, 64
      %v449 = vpop.permute.xlu0 %448
      %450 = vrot.lane.b32.xlu0 %v391, 64
      %v451 = vpop.permute.xlu0 %450
      %452 = vrot.lane.b32.xlu0 %v437, 64
      %v453 = vpop.permute.xlu0 %452
      %v455 = vunpack.c.l.b16 %v245
      %v456 = vpack.c.b16 %v455, %v436
      %v458 = vshrl.u32 %v456, 16
      %v460 = vshll.u32 %v456, 16
      %v462 = vrot.slane %v460, 1
      %v463 = vor.u32 %v458, %v462
      %464 = vrot.lane.b32.xlu0 %v306, 96
      %v465 = vpop.permute.xlu0 %464
      %466 = vrot.lane.b32.xlu0 %v313, 96
      %v467 = vpop.permute.xlu0 %466
      %468 = vrot.lane.b32.xlu0 %v320, 96
      %v469 = vpop.permute.xlu0 %468
      %470 = vrot.lane.b32.xlu0 %v327, 96
      %v471 = vpop.permute.xlu0 %470
      %472 = vrot.lane.b32.xlu0 %v334, 96
      %v473 = vpop.permute.xlu0 %472
      %474 = vrot.lane.b32.xlu0 %v341, 96
      %v475 = vpop.permute.xlu0 %474
      %476 = vrot.lane.b32.xlu0 %v417, 96
      %v477 = vpop.permute.xlu0 %476
      %478 = vrot.lane.b32.xlu0 %v463, 96
      %v479 = vpop.permute.xlu0 %478
      %v480 = vrot.slane %v456, 1
      %vm481 = vcmask 261120
      %v484 = vsel %vm481, %v226, %v343
      %v487 = vsel %vm481, %v228, %v345
      %v490 = vsel %vm481, %v230, %v347
      %v493 = vsel %vm481, %v232, %v349
      %v496 = vsel %vm481, %v234, %v351
      %v499 = vsel %vm481, %v236, %v353
      %v502 = vsel %vm481, %v238, %v355
      %v505 = vsel %vm481, %v240, %v357
      %vm506 = vcmask 523264
      %v508 = vsel %vm506, %v484, %v367
      %v510 = vsel %vm506, %v487, %v369
      %v512 = vsel %vm506, %v490, %v371
      %v514 = vsel %vm506, %v493, %v373
      %v516 = vsel %vm506, %v496, %v375
      %v518 = vsel %vm506, %v499, %v377
      %v520 = vsel %vm506, %v502, %v379
      %v522 = vsel %vm506, %v505, %v381
      %vm523 = vcmask 785408
      %v525 = vsel %vm523, %v508, %v393
      %v527 = vsel %vm523, %v510, %v395
      %v529 = vsel %vm523, %v512, %v397
      %v531 = vsel %vm523, %v514, %v399
      %v533 = vsel %vm523, %v516, %v401
      %v535 = vsel %vm523, %v518, %v403
      %v537 = vsel %vm523, %v520, %v405
      %v539 = vsel %vm523, %v522, %v407
      %v542 = vsel %vm481, %v299, %v420
      %v545 = vsel %vm481, %v306, %v422
      %v548 = vsel %vm481, %v313, %v424
      %v551 = vsel %vm481, %v320, %v426
      %v554 = vsel %vm481, %v327, %v428
      %v557 = vsel %vm481, %v334, %v430
      %v560 = vsel %vm481, %v341, %v432
      %v563 = vsel %vm481, %v417, %v434
      %v565 = vsel %vm506, %v542, %v439
      %v567 = vsel %vm506, %v545, %v441
      %v569 = vsel %vm506, %v548, %v443
      %v571 = vsel %vm506, %v551, %v445
      %v573 = vsel %vm506, %v554, %v447
      %v575 = vsel %vm506, %v557, %v449
      %v577 = vsel %vm506, %v560, %v451
      %v579 = vsel %vm506, %v563, %v453
      %v581 = vsel %vm523, %v565, %v465
      %v583 = vsel %vm523, %v567, %v467
      %v585 = vsel %vm523, %v569, %v469
      %v587 = vsel %vm523, %v571, %v471
      %v589 = vsel %vm523, %v573, %v473
      %v591 = vsel %vm523, %v575, %v475
      %v593 = vsel %vm523, %v577, %v477
      %v595 = vsel %vm523, %v579, %v479
      %v612 = vunpack.c.l.b16 %v525
      %v613 = vunpack.c.l.b16 %v581
      %v614 = vunpack.c.l.b16 %v360
      %v615 = vunpack.c.l.b16 %v527
      %v616 = vunpack.c.l.b16 %v583
      %v617 = vunpack.c.l.b16 %v361
      %v618 = vunpack.c.l.b16 %v529
      %v619 = vunpack.c.l.b16 %v585
      %v620 = vunpack.c.l.b16 %v362
      %v621 = vunpack.c.l.b16 %v531
      %v622 = vunpack.c.l.b16 %v587
      %v623 = vunpack.c.l.b16 %v363
      %v624 = vunpack.c.l.b16 %v533
      %v625 = vunpack.c.l.b16 %v589
      %v626 = vunpack.c.l.b16 %v364
      %v627 = vunpack.c.l.b16 %v535
      %v628 = vunpack.c.l.b16 %v591
      %v629 = vunpack.c.l.b16 %v365
      %v630 = vunpack.c.l.b16 %v537
      %v631 = vunpack.c.l.b16 %v593
      %v632 = vunpack.c.l.b16 %v418
      %v633 = vunpack.c.l.b16 %v539
      %v634 = vunpack.c.l.b16 %v595
      %v635 = vunpack.c.l.b16 %v480
      %v636 = vld [vmem:[%s1] sm:$0xf]
      %v637 = vld [vmem:[%s1 + $0x4] sm:$0xf]
      %v638 = vld [vmem:[%s1 + $0x8] sm:$0xf]
      %v639 = vld [vmem:[%s1 + $0xc] sm:$0xf]
      %v640 = vld [vmem:[%s1 + $0x10] sm:$0xf]
      %v641 = vld [vmem:[%s1 + $0x14] sm:$0xf]
      %v642 = vld [vmem:[%s1 + $0x18] sm:$0xf]
      %v643 = vld [vmem:[%s1 + $0x1c] sm:$0xf]
      %v644 = vld [vmem:[%s1 + $0x20] sm:$0xf]
      %v645 = vld [vmem:[%s1 + $0x24] sm:$0xf]
      %v646 = vld [vmem:[%s1 + $0x28] sm:$0xf]
      %v647 = vld [vmem:[%s1 + $0x2c] sm:$0xf]
      %v648 = vld [vmem:[%s1 + $0x30] sm:$0xf]
      %v649 = vld [vmem:[%s1 + $0x34] sm:$0xf]
      %v650 = vld [vmem:[%s1 + $0x38] sm:$0xf]
      %v651 = vld [vmem:[%s1 + $0x3c] sm:$0xf]
      %v652 = vld [vmem:[%s1 + $0x40] sm:$0xf]
      %v653 = vld [vmem:[%s1 + $0x44] sm:$0xf]
      %v654 = vld [vmem:[%s1 + $0x48] sm:$0xf]
      %v655 = vld [vmem:[%s1 + $0x4c] sm:$0xf]
      %v656 = vld [vmem:[%s1 + $0x50] sm:$0xf]
      %v657 = vld [vmem:[%s1 + $0x54] sm:$0xf]
      %v658 = vld [vmem:[%s1 + $0x58] sm:$0xf]
      %v659 = vld [vmem:[%s1 + $0x5c] sm:$0xf]
      %v660 = vld [vmem:[%s1 + $0x60] sm:$0xf]
      %v661 = vld [vmem:[%s1 + $0x64] sm:$0xf]
      %v662 = vld [vmem:[%s1 + $0x68] sm:$0xf]
      %v663 = vld [vmem:[%s1 + $0x6c] sm:$0xf]
      %v664 = vld [vmem:[%s1 + $0x70] sm:$0xf]
      %v665 = vld [vmem:[%s1 + $0x74] sm:$0xf]
      %v666 = vld [vmem:[%s1 + $0x78] sm:$0xf]
      %v667 = vld [vmem:[%s1 + $0x7c] sm:$0xf]
      %v668 = vld [vmem:[%s1 + $0x80] sm:$0xf]
      %v669 = vld [vmem:[%s1 + $0x84] sm:$0xf]
      %v670 = vld [vmem:[%s1 + $0x88] sm:$0xf]
      %v671 = vld [vmem:[%s1 + $0x8c] sm:$0xf]
      %v672 = vld [vmem:[%s2] sm:$0x1]
      %v674 = vlaneseq
      %v675 = vshrl.u32 %v674, 7
      %v676 = vsub.s32 0, %v675
      %v677 = vrot.slane %v672, %v676
      %v679 = vpack.c.b16 %v615, %v612
      %v680 = vpack.c.b16 %v616, %v613
      %v681 = vpack.c.b16 %v617, %v614
      %v682 = vpack.c.b16 %v621, %v618
      %v683 = vpack.c.b16 %v622, %v619
      %v684 = vpack.c.b16 %v623, %v620
      %v685 = vpack.c.b16 %v627, %v624
      %v686 = vpack.c.b16 %v628, %v625
      %v687 = vpack.c.b16 %v629, %v626
      %v688 = vpack.c.b16 %v633, %v630
      %v689 = vpack.c.b16 %v634, %v631
      %v690 = vpack.c.b16 %v635, %v632
      %v735 = vunpack.c.l.b16 %v636
      %v736 = vunpack.c.l.b16 %v637
      %v737 = vunpack.c.l.b16 %v638
      %v738 = vunpack.c.l.b16 %v639
      %v739 = vunpack.c.l.b16 %v640
      %v740 = vunpack.c.l.b16 %v641
      %v741 = vunpack.c.l.b16 %v642
      %v742 = vunpack.c.l.b16 %v643
      %v743 = vunpack.c.l.b16 %v644
      %v744 = vunpack.c.l.b16 %v645
      %v745 = vunpack.c.l.b16 %v646
      %v746 = vunpack.c.l.b16 %v647
      %v747 = vunpack.c.l.b16 %v648
      %v748 = vunpack.c.l.b16 %v649
      %v749 = vunpack.c.l.b16 %v650
      %v750 = vunpack.c.l.b16 %v651
      %v751 = vunpack.c.l.b16 %v652
      %v752 = vunpack.c.l.b16 %v653
      %v753 = vunpack.c.l.b16 %v654
      %v754 = vunpack.c.l.b16 %v655
      %v755 = vunpack.c.l.b16 %v656
      %v756 = vunpack.c.l.b16 %v657
      %v757 = vunpack.c.l.b16 %v658
      %v758 = vunpack.c.l.b16 %v659
      %v759 = vunpack.c.l.b16 %v660
      %v760 = vunpack.c.l.b16 %v661
      %v761 = vunpack.c.l.b16 %v662
      %v762 = vunpack.c.l.b16 %v663
      %v763 = vunpack.c.l.b16 %v664
      %v764 = vunpack.c.l.b16 %v665
      %v765 = vunpack.c.l.b16 %v666
      %v766 = vunpack.c.l.b16 %v667
      %v767 = vunpack.c.l.b16 %v668
      %v768 = vunpack.c.l.b16 %v669
      %v769 = vunpack.c.l.b16 %v670
      %v770 = vunpack.c.l.b16 %v671
      %v771 = vpack.c.b16 %v736, %v735
      %v772 = vpack.c.b16 %v738, %v737
      %v773 = vpack.c.b16 %v740, %v739
      %v774 = vpack.c.b16 %v742, %v741
      %v775 = vpack.c.b16 %v744, %v743
      %v776 = vpack.c.b16 %v746, %v745
      %v777 = vpack.c.b16 %v748, %v747
      %v778 = vpack.c.b16 %v750, %v749
      %v779 = vpack.c.b16 %v752, %v751
      %v780 = vpack.c.b16 %v754, %v753
      %v781 = vpack.c.b16 %v756, %v755
      %v782 = vpack.c.b16 %v758, %v757
      %v783 = vpack.c.b16 %v760, %v759
      %v784 = vpack.c.b16 %v762, %v761
      %v785 = vpack.c.b16 %v764, %v763
      %v786 = vpack.c.b16 %v766, %v765
      %v787 = vpack.c.b16 %v768, %v767
      %v788 = vpack.c.b16 %v770, %v769
      %v808 = vsel %vm481, %v681, 0
      %v811 = vsel %vm481, %v684, 0
      %v814 = vsel %vm481, %v687, 0
      %v817 = vsel %vm481, %v690, 0
      %819 = vmatprep.subr.bf16.mxu0 0
      %820 = vmatpush1.bf16.msra.mxu0 %v778
      %821 = vmatprep.subr.bf16.mxu0 0
      %822 = vmatpush1.bf16.msra.mxu0 %v777
      %823 = vmatprep.subr.bf16.mxu0 0
      %824 = vmatpush1.bf16.msra.mxu0 %v776
      %825 = vmatprep.subr.bf16.mxu0 0
      %826 = vmatpush1.bf16.msra.mxu0 %v775
      %827 = vmatprep.subr.bf16.mxu0 0
      %828 = vmatpush1.bf16.msra.mxu0 %v774
      %829 = vmatprep.subr.bf16.mxu0 0
      %830 = vmatpush1.bf16.msra.mxu0 %v773
      %831 = vmatprep.subr.bf16.mxu0 0
      %832 = vmatpush1.bf16.msra.mxu0 %v772
      %833 = vmatprep.subr.bf16.mxu0 0
      %834 = vmatpush1.bf16.msra.mxu0 %v771
      %835 = vmatprep.subr.bf16.mxu0 0
      %836 = vmatpush2.bf16.msra.mxu0 %v786
      %837 = vmatprep.subr.bf16.mxu0 0
      %838 = vmatpush2.bf16.msra.mxu0 %v785
      %839 = vmatprep.subr.bf16.mxu0 0
      %840 = vmatpush2.bf16.msra.mxu0 %v784
      %841 = vmatprep.subr.bf16.mxu0 0
      %842 = vmatpush2.bf16.msra.mxu0 %v783
      %843 = vmatprep.subr.bf16.mxu0 0
      %844 = vmatpush2.bf16.msra.mxu0 %v782
      %845 = vmatprep.subr.bf16.mxu0 0
      %846 = vmatpush2.bf16.msra.mxu0 %v781
      %847 = vmatprep.subr.bf16.mxu0 0
      %848 = vmatpush2.bf16.msra.mxu0 %v780
      %849 = vmatprep.subr.bf16.mxu0 0
      %850 = vmatpush2.bf16.msra.mxu0 %v779
      %851 = vmatprep.mubr.bf16.mxu0 %v680
      %852 = vmatmul.mubr.bf16.gmra.mxu0 %v679
      %v853 = vpop.f32.mrf.mxu0
      %v854 = vadd.f32 %v677, %v853
      %v855 = vpop.f32.mrf.mxu0
      %v856 = vpop.f32.mrf.mxu0
      %v857 = vadd.f32 %v677, %v856
      %v858 = vpop.f32.mrf.mxu0
      %859 = vmatprep.mubr.bf16.mxu0 %v683
      %860 = vmatmul.mubr.bf16.gmra.mxu0 %v682
      %v861 = vpop.f32.mrf.mxu0
      %v862 = vadd.f32 %v677, %v861
      %v863 = vpop.f32.mrf.mxu0
      %v864 = vpop.f32.mrf.mxu0
      %v865 = vadd.f32 %v677, %v864
      %v866 = vpop.f32.mrf.mxu0
      %867 = vmatprep.mubr.bf16.mxu0 %v686
      %868 = vmatmul.mubr.bf16.gmra.mxu0 %v685
      %v869 = vpop.f32.mrf.mxu0
      %v870 = vadd.f32 %v677, %v869
      %v871 = vpop.f32.mrf.mxu0
      %v872 = vpop.f32.mrf.mxu0
      %v873 = vadd.f32 %v677, %v872
      %v874 = vpop.f32.mrf.mxu0
      %875 = vmatprep.mubr.bf16.mxu0 %v689
      %876 = vmatmul.mubr.bf16.gmra.mxu0 %v688
      %v877 = vpop.f32.mrf.mxu0
      %v878 = vadd.f32 %v677, %v877
      %v879 = vpop.f32.mrf.mxu0
      %v880 = vpop.f32.mrf.mxu0
      %v881 = vadd.f32 %v677, %v880
      %v882 = vpop.f32.mrf.mxu0
      %883 = vdwg.mxu0
      %884 = vmatprep.subr.bf16.mxu0 0
      %885 = vmatpush1.bf16.msra.mxu0 0
      %886 = vmatprep.subr.bf16.mxu0 0
      %887 = vmatpush1.bf16.msra.mxu0 0
      %888 = vmatprep.subr.bf16.mxu0 0
      %889 = vmatpush1.bf16.msra.mxu0 0
      %890 = vmatprep.subr.bf16.mxu0 0
      %891 = vmatpush1.bf16.msra.mxu0 0
      %892 = vmatprep.subr.bf16.mxu0 0
      %893 = vmatpush1.bf16.msra.mxu0 0
      %894 = vmatprep.subr.bf16.mxu0 0
      %895 = vmatpush1.bf16.msra.mxu0 0
      %896 = vmatprep.subr.bf16.mxu0 0
      %897 = vmatpush1.bf16.msra.mxu0 %v788
      %898 = vmatprep.subr.bf16.mxu0 0
      %899 = vmatpush1.bf16.msra.mxu0 %v787
      %900 = vmatprep.subr.bf16.mxu0 0
      %901 = vmatpush2.bf16.msra.mxu0 0
      %902 = vmatprep.subr.bf16.mxu0 0
      %903 = vmatpush2.bf16.msra.mxu0 0
      %904 = vmatprep.subr.bf16.mxu0 0
      %905 = vmatpush2.bf16.msra.mxu0 0
      %906 = vmatprep.subr.bf16.mxu0 0
      %907 = vmatpush2.bf16.msra.mxu0 0
      %908 = vmatprep.subr.bf16.mxu0 0
      %909 = vmatpush2.bf16.msra.mxu0 0
      %910 = vmatprep.subr.bf16.mxu0 0
      %911 = vmatpush2.bf16.msra.mxu0 0
      %912 = vmatprep.subr.bf16.mxu0 0
      %913 = vmatpush2.bf16.msra.mxu0 0
      %914 = vmatprep.subr.bf16.mxu0 0
      %915 = vmatpush2.bf16.msra.mxu0 0
      %916 = vmatprep.mubr.bf16.mxu0 0
      %917 = vmatmul.mubr.bf16.gmra.mxu0 %v808
      %v918 = vpop.f32.mrf.mxu0
      %v919 = vadd.f32 %v854, %v918
      %v920 = vpop.f32.mrf.mxu0
      %v921 = vpop.f32.mrf.mxu0
      %v922 = vadd.f32 %v857, %v921
      %v923 = vpop.f32.mrf.mxu0
      %924 = vmatprep.mubr.bf16.mxu0 0
      %925 = vmatmul.mubr.bf16.gmra.mxu0 %v811
      %v926 = vpop.f32.mrf.mxu0
      %v927 = vadd.f32 %v862, %v926
      %v928 = vpop.f32.mrf.mxu0
      %v929 = vpop.f32.mrf.mxu0
      %v930 = vadd.f32 %v865, %v929
      %v931 = vpop.f32.mrf.mxu0
      %932 = vmatprep.mubr.bf16.mxu0 0
      %933 = vmatmul.mubr.bf16.gmra.mxu0 %v814
      %v934 = vpop.f32.mrf.mxu0
      %v935 = vadd.f32 %v870, %v934
      %v936 = vpop.f32.mrf.mxu0
      %v937 = vpop.f32.mrf.mxu0
      %v938 = vadd.f32 %v873, %v937
      %v939 = vpop.f32.mrf.mxu0
      %940 = vmatprep.mubr.bf16.mxu0 0
      %941 = vmatmul.mubr.bf16.gmra.mxu0 %v817
      %v942 = vpop.f32.mrf.mxu0
      %v943 = vadd.f32 %v878, %v942
      %v944 = vpop.f32.mrf.mxu0
      %v945 = vpop.f32.mrf.mxu0
      %v946 = vadd.f32 %v881, %v945
      %v947 = vpop.f32.mrf.mxu0
      %948 = vdwg.mxu0
      %v949 = vmax.f32 %v919, 0.0
      %v950 = vmax.f32 %v922, 0.0
      %v951 = vmax.f32 %v927, 0.0
      %v952 = vmax.f32 %v930, 0.0
      %v953 = vmax.f32 %v935, 0.0
      %v954 = vmax.f32 %v938, 0.0
      %v955 = vmax.f32 %v943, 0.0
      %v956 = vmax.f32 %v946, 0.0
      %v957 = vpack.c.bf16 %v949, %v949
      %v958 = vpack.c.bf16 %v950, %v950
      %v959 = vpack.c.bf16 %v951, %v951
      %v960 = vpack.c.bf16 %v952, %v952
      %v961 = vpack.c.bf16 %v953, %v953
      %v962 = vpack.c.bf16 %v954, %v954
      %v963 = vpack.c.bf16 %v955, %v955
      %v964 = vpack.c.bf16 %v956, %v956
      %v966 = vshrl.u32 0, 16
      %v968 = vrot.slane %v966, 7
      %v969 = vshll.u32 0, 16
      %v971 = vor.u32 %v968, %v969
      %v973 = vshrl.u32 %v957, 16
      %v975 = vrot.slane %v973, 7
      %v976 = vshll.u32 %v957, 16
      %v978 = vor.u32 %v975, %v976
      %v980 = vshrl.u32 %v958, 16
      %v982 = vrot.slane %v980, 7
      %v983 = vshll.u32 %v958, 16
      %v985 = vor.u32 %v982, %v983
      %v987 = vshrl.u32 %v959, 16
      %v989 = vrot.slane %v987, 7
      %v990 = vshll.u32 %v959, 16
      %v992 = vor.u32 %v989, %v990
      %v994 = vshrl.u32 %v960, 16
      %v996 = vrot.slane %v994, 7
      %v997 = vshll.u32 %v960, 16
      %v999 = vor.u32 %v996, %v997
      %v1001 = vshrl.u32 %v961, 16
      %v1003 = vrot.slane %v1001, 7
      %v1004 = vshll.u32 %v961, 16
      %v1006 = vor.u32 %v1003, %v1004
      %v1008 = vshrl.u32 %v962, 16
      %v1010 = vrot.slane %v1008, 7
      %v1011 = vshll.u32 %v962, 16
      %v1013 = vor.u32 %v1010, %v1011
      %v1015 = vshrl.u32 %v963, 16
      %v1017 = vrot.slane %v1015, 7
      %v1018 = vshll.u32 %v963, 16
      %v1020 = vor.u32 %v1017, %v1018
      %v1022 = vshrl.u32 %v964, 16
      %v1024 = vrot.slane %v1022, 7
      %v1025 = vshll.u32 %v964, 16
      %v1027 = vor.u32 %v1024, %v1025
      %vm1037 = vcmask 1040384
      %vm1038 = vsmask.f32 256
      %vm1039 = vmand %vm1037, %vm1038
      %v1040 = vsel %vm1039, 0, %v971
      %v1041 = vsel %vm1039, 0, %v978
      %v1042 = vsel %vm1039, 0, %v985
      %v1043 = vsel %vm1039, 0, %v992
      %v1044 = vsel %vm1039, 0, %v999
      %v1045 = vsel %vm1039, 0, %v1006
      %v1046 = vsel %vm1039, 0, %v1013
      %v1047 = vsel %vm1039, 0, %v1020
      %v1048 = vsel %vm1039, 0, %v1027
      %vm1049 = vcmask 1044480
      %vm1050 = vsmask.f32 4352
      %vm1051 = vmand %vm1049, %vm1050
      %v1052 = vsel %vm1051, %v1040, 0
      %v1053 = vsel %vm1051, %v1041, 0
      %v1054 = vsel %vm1051, %v1042, 0
      %v1055 = vsel %vm1051, %v1043, 0
      %v1056 = vsel %vm1051, %v1044, 0
      %v1057 = vsel %vm1051, %v1045, 0
      %v1058 = vsel %vm1051, %v1046, 0
      %v1059 = vsel %vm1051, %v1047, 0
      %v1060 = vsel %vm1051, %v1048, 0
      %v1062 = vshrl.u32 %v1052, 16
      %v1064 = vshll.u32 %v1052, 16
      %v1066 = vrot.slane %v1064, 1
      %v1067 = vor.u32 %v1062, %v1066
      %v1069 = vshrl.u32 %v1053, 16
      %v1071 = vshll.u32 %v1053, 16
      %v1073 = vrot.slane %v1071, 1
      %v1074 = vor.u32 %v1069, %v1073
      %v1076 = vshrl.u32 %v1054, 16
      %v1078 = vshll.u32 %v1054, 16
      %v1080 = vrot.slane %v1078, 1
      %v1081 = vor.u32 %v1076, %v1080
      %v1083 = vshrl.u32 %v1055, 16
      %v1085 = vshll.u32 %v1055, 16
      %v1087 = vrot.slane %v1085, 1
      %v1088 = vor.u32 %v1083, %v1087
      %v1090 = vshrl.u32 %v1056, 16
      %v1092 = vshll.u32 %v1056, 16
      %v1094 = vrot.slane %v1092, 1
      %v1095 = vor.u32 %v1090, %v1094
      %v1097 = vshrl.u32 %v1057, 16
      %v1099 = vshll.u32 %v1057, 16
      %v1101 = vrot.slane %v1099, 1
      %v1102 = vor.u32 %v1097, %v1101
      %v1104 = vshrl.u32 %v1058, 16
      %v1106 = vshll.u32 %v1058, 16
      %v1108 = vrot.slane %v1106, 1
      %v1109 = vor.u32 %v1104, %v1108
      %v1111 = vshrl.u32 %v1059, 16
      %v1113 = vshll.u32 %v1059, 16
      %v1115 = vrot.slane %v1113, 1
      %v1116 = vor.u32 %v1111, %v1115
      %1117 = vrot.lane.b32.xlu0 %v1067, 32
      %v1118 = vpop.permute.xlu0 %1117
      %1119 = vrot.lane.b32.xlu0 %v1074, 32
      %v1120 = vpop.permute.xlu0 %1119
      %1121 = vrot.lane.b32.xlu0 %v1081, 32
      %v1122 = vpop.permute.xlu0 %1121
      %1123 = vrot.lane.b32.xlu0 %v1088, 32
      %v1124 = vpop.permute.xlu0 %1123
      %1125 = vrot.lane.b32.xlu0 %v1095, 32
      %v1126 = vpop.permute.xlu0 %1125
      %1127 = vrot.lane.b32.xlu0 %v1102, 32
      %v1128 = vpop.permute.xlu0 %1127
      %1129 = vrot.lane.b32.xlu0 %v1109, 32
      %v1130 = vpop.permute.xlu0 %1129
      %1131 = vrot.lane.b32.xlu0 %v1116, 32
      %v1132 = vpop.permute.xlu0 %1131
      %v1141 = vrot.slane %v1052, 1
      %v1142 = vrot.slane %v1053, 1
      %v1143 = vrot.slane %v1054, 1
      %v1144 = vrot.slane %v1055, 1
      %v1145 = vrot.slane %v1056, 1
      %v1146 = vrot.slane %v1057, 1
      %v1147 = vrot.slane %v1058, 1
      %v1148 = vrot.slane %v1059, 1
      %1149 = vrot.lane.b32.xlu0 %v1141, 64
      %v1150 = vpop.permute.xlu0 %1149
      %1151 = vrot.lane.b32.xlu0 %v1142, 64
      %v1152 = vpop.permute.xlu0 %1151
      %1153 = vrot.lane.b32.xlu0 %v1143, 64
      %v1154 = vpop.permute.xlu0 %1153
      %1155 = vrot.lane.b32.xlu0 %v1144, 64
      %v1156 = vpop.permute.xlu0 %1155
      %1157 = vrot.lane.b32.xlu0 %v1145, 64
      %v1158 = vpop.permute.xlu0 %1157
      %1159 = vrot.lane.b32.xlu0 %v1146, 64
      %v1160 = vpop.permute.xlu0 %1159
      %1161 = vrot.lane.b32.xlu0 %v1147, 64
      %v1162 = vpop.permute.xlu0 %1161
      %1163 = vrot.lane.b32.xlu0 %v1148, 64
      %v1164 = vpop.permute.xlu0 %1163
      %1166 = vrot.lane.b32.xlu0 %v1053, 96
      %v1167 = vpop.permute.xlu0 %1166
      %1168 = vrot.lane.b32.xlu0 %v1054, 96
      %v1169 = vpop.permute.xlu0 %1168
      %1170 = vrot.lane.b32.xlu0 %v1055, 96
      %v1171 = vpop.permute.xlu0 %1170
      %1172 = vrot.lane.b32.xlu0 %v1056, 96
      %v1173 = vpop.permute.xlu0 %1172
      %1174 = vrot.lane.b32.xlu0 %v1057, 96
      %v1175 = vpop.permute.xlu0 %1174
      %1176 = vrot.lane.b32.xlu0 %v1058, 96
      %v1177 = vpop.permute.xlu0 %1176
      %1178 = vrot.lane.b32.xlu0 %v1059, 96
      %v1179 = vpop.permute.xlu0 %1178
      %1180 = vrot.lane.b32.xlu0 %v1060, 96
      %v1181 = vpop.permute.xlu0 %1180
      %v1183 = vshrl.u32 %v1060, 16
      %v1185 = vshll.u32 %v1060, 16
      %v1187 = vrot.slane %v1185, 1
      %v1188 = vor.u32 %v1183, %v1187
      %v1189 = vrot.slane %v1060, 1
      %1190 = vrot.lane.b32.xlu0 %v1142, 32
      %v1191 = vpop.permute.xlu0 %1190
      %1192 = vrot.lane.b32.xlu0 %v1143, 32
      %v1193 = vpop.permute.xlu0 %1192
      %1194 = vrot.lane.b32.xlu0 %v1144, 32
      %v1195 = vpop.permute.xlu0 %1194
      %1196 = vrot.lane.b32.xlu0 %v1145, 32
      %v1197 = vpop.permute.xlu0 %1196
      %1198 = vrot.lane.b32.xlu0 %v1146, 32
      %v1199 = vpop.permute.xlu0 %1198
      %1200 = vrot.lane.b32.xlu0 %v1147, 32
      %v1201 = vpop.permute.xlu0 %1200
      %1202 = vrot.lane.b32.xlu0 %v1148, 32
      %v1203 = vpop.permute.xlu0 %1202
      %1204 = vrot.lane.b32.xlu0 %v1189, 32
      %v1205 = vpop.permute.xlu0 %1204
      %1206 = vrot.lane.b32.xlu0 %v1054, 64
      %v1207 = vpop.permute.xlu0 %1206
      %1208 = vrot.lane.b32.xlu0 %v1055, 64
      %v1209 = vpop.permute.xlu0 %1208
      %1210 = vrot.lane.b32.xlu0 %v1056, 64
      %v1211 = vpop.permute.xlu0 %1210
      %1212 = vrot.lane.b32.xlu0 %v1057, 64
      %v1213 = vpop.permute.xlu0 %1212
      %1214 = vrot.lane.b32.xlu0 %v1058, 64
      %v1215 = vpop.permute.xlu0 %1214
      %1216 = vrot.lane.b32.xlu0 %v1059, 64
      %v1217 = vpop.permute.xlu0 %1216
      %1218 = vrot.lane.b32.xlu0 %v1060, 64
      %v1219 = vpop.permute.xlu0 %1218
      %1220 = vrot.lane.b32.xlu0 %v1052, 64
      %v1221 = vpop.permute.xlu0 %1220
      %1222 = vrot.lane.b32.xlu0 %v1081, 96
      %v1223 = vpop.permute.xlu0 %1222
      %1224 = vrot.lane.b32.xlu0 %v1088, 96
      %v1225 = vpop.permute.xlu0 %1224
      %1226 = vrot.lane.b32.xlu0 %v1095, 96
      %v1227 = vpop.permute.xlu0 %1226
      %1228 = vrot.lane.b32.xlu0 %v1102, 96
      %v1229 = vpop.permute.xlu0 %1228
      %1230 = vrot.lane.b32.xlu0 %v1109, 96
      %v1231 = vpop.permute.xlu0 %1230
      %1232 = vrot.lane.b32.xlu0 %v1116, 96
      %v1233 = vpop.permute.xlu0 %1232
      %1234 = vrot.lane.b32.xlu0 %v1188, 96
      %v1235 = vpop.permute.xlu0 %1234
      %1236 = vrot.lane.b32.xlu0 %v1067, 96
      %v1237 = vpop.permute.xlu0 %1236
      %v1239 = vsel %vm481, %v1052, %v1118
      %v1241 = vsel %vm481, %v1053, %v1120
      %v1243 = vsel %vm481, %v1054, %v1122
      %v1245 = vsel %vm481, %v1055, %v1124
      %v1247 = vsel %vm481, %v1056, %v1126
      %v1249 = vsel %vm481, %v1057, %v1128
      %v1251 = vsel %vm481, %v1058, %v1130
      %v1253 = vsel %vm481, %v1059, %v1132
      %v1255 = vsel %vm506, %v1239, %v1150
      %v1257 = vsel %vm506, %v1241, %v1152
      %v1259 = vsel %vm506, %v1243, %v1154
      %v1261 = vsel %vm506, %v1245, %v1156
      %v1263 = vsel %vm506, %v1247, %v1158
      %v1265 = vsel %vm506, %v1249, %v1160
      %v1267 = vsel %vm506, %v1251, %v1162
      %v1269 = vsel %vm506, %v1253, %v1164
      %v1271 = vsel %vm523, %v1255, %v1167
      %v1273 = vsel %vm523, %v1257, %v1169
      %v1275 = vsel %vm523, %v1259, %v1171
      %v1277 = vsel %vm523, %v1261, %v1173
      %v1279 = vsel %vm523, %v1263, %v1175
      %v1281 = vsel %vm523, %v1265, %v1177
      %v1283 = vsel %vm523, %v1267, %v1179
      %v1285 = vsel %vm523, %v1269, %v1181
      %v1288 = vsel %vm481, %v1074, %v1191
      %v1291 = vsel %vm481, %v1081, %v1193
      %v1294 = vsel %vm481, %v1088, %v1195
      %v1297 = vsel %vm481, %v1095, %v1197
      %v1300 = vsel %vm481, %v1102, %v1199
      %v1303 = vsel %vm481, %v1109, %v1201
      %v1306 = vsel %vm481, %v1116, %v1203
      %v1309 = vsel %vm481, %v1188, %v1205
      %v1311 = vsel %vm506, %v1288, %v1207
      %v1313 = vsel %vm506, %v1291, %v1209
      %v1315 = vsel %vm506, %v1294, %v1211
      %v1317 = vsel %vm506, %v1297, %v1213
      %v1319 = vsel %vm506, %v1300, %v1215
      %v1321 = vsel %vm506, %v1303, %v1217
      %v1323 = vsel %vm506, %v1306, %v1219
      %v1325 = vsel %vm506, %v1309, %v1221
      %v1327 = vsel %vm523, %v1311, %v1223
      %v1329 = vsel %vm523, %v1313, %v1225
      %v1331 = vsel %vm523, %v1315, %v1227
      %v1333 = vsel %vm523, %v1317, %v1229
      %v1335 = vsel %vm523, %v1319, %v1231
      %v1337 = vsel %vm523, %v1321, %v1233
      %v1339 = vsel %vm523, %v1323, %v1235
      %v1341 = vsel %vm523, %v1325, %v1237
      %v1358 = vunpack.c.l.b16 %v1271
      %v1359 = vunpack.c.l.b16 %v1327
      %v1360 = vunpack.c.l.b16 %v1143
      %v1361 = vunpack.c.l.b16 %v1273
      %v1362 = vunpack.c.l.b16 %v1329
      %v1363 = vunpack.c.l.b16 %v1144
      %v1364 = vunpack.c.l.b16 %v1275
      %v1365 = vunpack.c.l.b16 %v1331
      %v1366 = vunpack.c.l.b16 %v1145
      %v1367 = vunpack.c.l.b16 %v1277
      %v1368 = vunpack.c.l.b16 %v1333
      %v1369 = vunpack.c.l.b16 %v1146
      %v1370 = vunpack.c.l.b16 %v1279
      %v1371 = vunpack.c.l.b16 %v1335
      %v1372 = vunpack.c.l.b16 %v1147
      %v1373 = vunpack.c.l.b16 %v1281
      %v1374 = vunpack.c.l.b16 %v1337
      %v1375 = vunpack.c.l.b16 %v1148
      %v1376 = vunpack.c.l.b16 %v1283
      %v1377 = vunpack.c.l.b16 %v1339
      %v1378 = vunpack.c.l.b16 %v1189
      %v1379 = vunpack.c.l.b16 %v1285
      %v1380 = vunpack.c.l.b16 %v1341
      %v1381 = vunpack.c.l.b16 %v1141
      %v1382 = vld [vmem:[%s3] sm:$0xf]
      %v1383 = vld [vmem:[%s3 + $0x4] sm:$0xf]
      %v1384 = vld [vmem:[%s3 + $0x8] sm:$0xf]
      %v1385 = vld [vmem:[%s3 + $0xc] sm:$0xf]
      %v1386 = vld [vmem:[%s3 + $0x10] sm:$0xf]
      %v1387 = vld [vmem:[%s3 + $0x14] sm:$0xf]
      %v1388 = vld [vmem:[%s3 + $0x18] sm:$0xf]
      %v1389 = vld [vmem:[%s3 + $0x1c] sm:$0xf]
      %v1390 = vld [vmem:[%s3 + $0x20] sm:$0xf]
      %v1391 = vld [vmem:[%s3 + $0x24] sm:$0xf]
      %v1392 = vld [vmem:[%s3 + $0x28] sm:$0xf]
      %v1393 = vld [vmem:[%s3 + $0x2c] sm:$0xf]
      %v1394 = vld [vmem:[%s3 + $0x30] sm:$0xf]
      %v1395 = vld [vmem:[%s3 + $0x34] sm:$0xf]
      %v1396 = vld [vmem:[%s3 + $0x38] sm:$0xf]
      %v1397 = vld [vmem:[%s3 + $0x3c] sm:$0xf]
      %v1398 = vld [vmem:[%s3 + $0x40] sm:$0xf]
      %v1399 = vld [vmem:[%s3 + $0x44] sm:$0xf]
      %v1400 = vld [vmem:[%s3 + $0x48] sm:$0xf]
      %v1401 = vld [vmem:[%s3 + $0x4c] sm:$0xf]
      %v1402 = vld [vmem:[%s3 + $0x50] sm:$0xf]
      %v1403 = vld [vmem:[%s3 + $0x54] sm:$0xf]
      %v1404 = vld [vmem:[%s3 + $0x58] sm:$0xf]
      %v1405 = vld [vmem:[%s3 + $0x5c] sm:$0xf]
      %v1406 = vld [vmem:[%s3 + $0x60] sm:$0xf]
      %v1407 = vld [vmem:[%s3 + $0x64] sm:$0xf]
      %v1408 = vld [vmem:[%s3 + $0x68] sm:$0xf]
      %v1409 = vld [vmem:[%s3 + $0x6c] sm:$0xf]
      %v1410 = vld [vmem:[%s3 + $0x70] sm:$0xf]
      %v1411 = vld [vmem:[%s3 + $0x74] sm:$0xf]
      %v1412 = vld [vmem:[%s3 + $0x78] sm:$0xf]
      %v1413 = vld [vmem:[%s3 + $0x7c] sm:$0xf]
      %v1414 = vld [vmem:[%s3 + $0x80] sm:$0xf]
      %v1415 = vld [vmem:[%s3 + $0x84] sm:$0xf]
      %v1416 = vld [vmem:[%s3 + $0x88] sm:$0xf]
      %v1417 = vld [vmem:[%s3 + $0x8c] sm:$0xf]
      %v1418 = vld [vmem:[%s4] sm:$0x1]
      %v1420 = vlaneseq
      %v1421 = vshrl.u32 %v1420, 7
      %v1422 = vsub.s32 0, %v1421
      %v1423 = vrot.slane %v1418, %v1422
      %v1425 = vpack.c.b16 %v1361, %v1358
      %v1426 = vpack.c.b16 %v1362, %v1359
      %v1427 = vpack.c.b16 %v1363, %v1360
      %v1428 = vpack.c.b16 %v1367, %v1364
      %v1429 = vpack.c.b16 %v1368, %v1365
      %v1430 = vpack.c.b16 %v1369, %v1366
      %v1431 = vpack.c.b16 %v1373, %v1370
      %v1432 = vpack.c.b16 %v1374, %v1371
      %v1433 = vpack.c.b16 %v1375, %v1372
      %v1434 = vpack.c.b16 %v1379, %v1376
      %v1435 = vpack.c.b16 %v1380, %v1377
      %v1436 = vpack.c.b16 %v1381, %v1378
      %v1481 = vunpack.c.l.b16 %v1382
      %v1482 = vunpack.c.l.b16 %v1383
      %v1483 = vunpack.c.l.b16 %v1384
      %v1484 = vunpack.c.l.b16 %v1385
      %v1485 = vunpack.c.l.b16 %v1386
      %v1486 = vunpack.c.l.b16 %v1387
      %v1487 = vunpack.c.l.b16 %v1388
      %v1488 = vunpack.c.l.b16 %v1389
      %v1489 = vunpack.c.l.b16 %v1390
      %v1490 = vunpack.c.l.b16 %v1391
      %v1491 = vunpack.c.l.b16 %v1392
      %v1492 = vunpack.c.l.b16 %v1393
      %v1493 = vunpack.c.l.b16 %v1394
      %v1494 = vunpack.c.l.b16 %v1395
      %v1495 = vunpack.c.l.b16 %v1396
      %v1496 = vunpack.c.l.b16 %v1397
      %v1497 = vunpack.c.l.b16 %v1398
      %v1498 = vunpack.c.l.b16 %v1399
      %v1499 = vunpack.c.l.b16 %v1400
      %v1500 = vunpack.c.l.b16 %v1401
      %v1501 = vunpack.c.l.b16 %v1402
      %v1502 = vunpack.c.l.b16 %v1403
      %v1503 = vunpack.c.l.b16 %v1404
      %v1504 = vunpack.c.l.b16 %v1405
      %v1505 = vunpack.c.l.b16 %v1406
      %v1506 = vunpack.c.l.b16 %v1407
      %v1507 = vunpack.c.l.b16 %v1408
      %v1508 = vunpack.c.l.b16 %v1409
      %v1509 = vunpack.c.l.b16 %v1410
      %v1510 = vunpack.c.l.b16 %v1411
      %v1511 = vunpack.c.l.b16 %v1412
      %v1512 = vunpack.c.l.b16 %v1413
      %v1513 = vunpack.c.l.b16 %v1414
      %v1514 = vunpack.c.l.b16 %v1415
      %v1515 = vunpack.c.l.b16 %v1416
      %v1516 = vunpack.c.l.b16 %v1417
      %v1517 = vpack.c.b16 %v1482, %v1481
      %v1518 = vpack.c.b16 %v1484, %v1483
      %v1519 = vpack.c.b16 %v1486, %v1485
      %v1520 = vpack.c.b16 %v1488, %v1487
      %v1521 = vpack.c.b16 %v1490, %v1489
      %v1522 = vpack.c.b16 %v1492, %v1491
      %v1523 = vpack.c.b16 %v1494, %v1493
      %v1524 = vpack.c.b16 %v1496, %v1495
      %v1525 = vpack.c.b16 %v1498, %v1497
      %v1526 = vpack.c.b16 %v1500, %v1499
      %v1527 = vpack.c.b16 %v1502, %v1501
      %v1528 = vpack.c.b16 %v1504, %v1503
      %v1529 = vpack.c.b16 %v1506, %v1505
      %v1530 = vpack.c.b16 %v1508, %v1507
      %v1531 = vpack.c.b16 %v1510, %v1509
      %v1532 = vpack.c.b16 %v1512, %v1511
      %v1533 = vpack.c.b16 %v1514, %v1513
      %v1534 = vpack.c.b16 %v1516, %v1515
      %v1554 = vsel %vm481, %v1427, 0
      %v1557 = vsel %vm481, %v1430, 0
      %v1560 = vsel %vm481, %v1433, 0
      %v1563 = vsel %vm481, %v1436, 0
      %1565 = vmatprep.subr.bf16.mxu0 0
      %1566 = vmatpush1.bf16.msra.mxu0 %v1524
      %1567 = vmatprep.subr.bf16.mxu0 0
      %1568 = vmatpush1.bf16.msra.mxu0 %v1523
      %1569 = vmatprep.subr.bf16.mxu0 0
      %1570 = vmatpush1.bf16.msra.mxu0 %v1522
      %1571 = vmatprep.subr.bf16.mxu0 0
      %1572 = vmatpush1.bf16.msra.mxu0 %v1521
      %1573 = vmatprep.subr.bf16.mxu0 0
      %1574 = vmatpush1.bf16.msra.mxu0 %v1520
      %1575 = vmatprep.subr.bf16.mxu0 0
      %1576 = vmatpush1.bf16.msra.mxu0 %v1519
      %1577 = vmatprep.subr.bf16.mxu0 0
      %1578 = vmatpush1.bf16.msra.mxu0 %v1518
      %1579 = vmatprep.subr.bf16.mxu0 0
      %1580 = vmatpush1.bf16.msra.mxu0 %v1517
      %1581 = vmatprep.subr.bf16.mxu0 0
      %1582 = vmatpush2.bf16.msra.mxu0 %v1532
      %1583 = vmatprep.subr.bf16.mxu0 0
      %1584 = vmatpush2.bf16.msra.mxu0 %v1531
      %1585 = vmatprep.subr.bf16.mxu0 0
      %1586 = vmatpush2.bf16.msra.mxu0 %v1530
      %1587 = vmatprep.subr.bf16.mxu0 0
      %1588 = vmatpush2.bf16.msra.mxu0 %v1529
      %1589 = vmatprep.subr.bf16.mxu0 0
      %1590 = vmatpush2.bf16.msra.mxu0 %v1528
      %1591 = vmatprep.subr.bf16.mxu0 0
      %1592 = vmatpush2.bf16.msra.mxu0 %v1527
      %1593 = vmatprep.subr.bf16.mxu0 0
      %1594 = vmatpush2.bf16.msra.mxu0 %v1526
      %1595 = vmatprep.subr.bf16.mxu0 0
      %1596 = vmatpush2.bf16.msra.mxu0 %v1525
      %1597 = vmatprep.mubr.bf16.mxu0 %v1426
      %1598 = vmatmul.mubr.bf16.gmra.mxu0 %v1425
      %v1599 = vpop.f32.mrf.mxu0
      %v1600 = vadd.f32 %v1423, %v1599
      %v1601 = vpop.f32.mrf.mxu0
      %v1602 = vpop.f32.mrf.mxu0
      %v1603 = vadd.f32 %v1423, %v1602
      %v1604 = vpop.f32.mrf.mxu0
      %1605 = vmatprep.mubr.bf16.mxu0 %v1429
      %1606 = vmatmul.mubr.bf16.gmra.mxu0 %v1428
      %v1607 = vpop.f32.mrf.mxu0
      %v1608 = vadd.f32 %v1423, %v1607
      %v1609 = vpop.f32.mrf.mxu0
      %v1610 = vpop.f32.mrf.mxu0
      %v1611 = vadd.f32 %v1423, %v1610
      %v1612 = vpop.f32.mrf.mxu0
      %1613 = vmatprep.mubr.bf16.mxu0 %v1432
      %1614 = vmatmul.mubr.bf16.gmra.mxu0 %v1431
      %v1615 = vpop.f32.mrf.mxu0
      %v1616 = vadd.f32 %v1423, %v1615
      %v1617 = vpop.f32.mrf.mxu0
      %v1618 = vpop.f32.mrf.mxu0
      %v1619 = vadd.f32 %v1423, %v1618
      %v1620 = vpop.f32.mrf.mxu0
      %1621 = vmatprep.mubr.bf16.mxu0 %v1435
      %1622 = vmatmul.mubr.bf16.gmra.mxu0 %v1434
      %v1623 = vpop.f32.mrf.mxu0
      %v1624 = vadd.f32 %v1423, %v1623
      %v1625 = vpop.f32.mrf.mxu0
      %v1626 = vpop.f32.mrf.mxu0
      %v1627 = vadd.f32 %v1423, %v1626
      %v1628 = vpop.f32.mrf.mxu0
      %1629 = vdwg.mxu0
      %1630 = vmatprep.subr.bf16.mxu0 0
      %1631 = vmatpush1.bf16.msra.mxu0 0
      %1632 = vmatprep.subr.bf16.mxu0 0
      %1633 = vmatpush1.bf16.msra.mxu0 0
      %1634 = vmatprep.subr.bf16.mxu0 0
      %1635 = vmatpush1.bf16.msra.mxu0 0
      %1636 = vmatprep.subr.bf16.mxu0 0
      %1637 = vmatpush1.bf16.msra.mxu0 0
      %1638 = vmatprep.subr.bf16.mxu0 0
      %1639 = vmatpush1.bf16.msra.mxu0 0
      %1640 = vmatprep.subr.bf16.mxu0 0
      %1641 = vmatpush1.bf16.msra.mxu0 0
      %1642 = vmatprep.subr.bf16.mxu0 0
      %1643 = vmatpush1.bf16.msra.mxu0 %v1534
      %1644 = vmatprep.subr.bf16.mxu0 0
      %1645 = vmatpush1.bf16.msra.mxu0 %v1533
      %1646 = vmatprep.subr.bf16.mxu0 0
      %1647 = vmatpush2.bf16.msra.mxu0 0
      %1648 = vmatprep.subr.bf16.mxu0 0
      %1649 = vmatpush2.bf16.msra.mxu0 0
      %1650 = vmatprep.subr.bf16.mxu0 0
      %1651 = vmatpush2.bf16.msra.mxu0 0
      %1652 = vmatprep.subr.bf16.mxu0 0
      %1653 = vmatpush2.bf16.msra.mxu0 0
      %1654 = vmatprep.subr.bf16.mxu0 0
      %1655 = vmatpush2.bf16.msra.mxu0 0
      %1656 = vmatprep.subr.bf16.mxu0 0
      %1657 = vmatpush2.bf16.msra.mxu0 0
      %1658 = vmatprep.subr.bf16.mxu0 0
      %1659 = vmatpush2.bf16.msra.mxu0 0
      %1660 = vmatprep.subr.bf16.mxu0 0
      %1661 = vmatpush2.bf16.msra.mxu0 0
      %1662 = vmatprep.mubr.bf16.mxu0 0
      %1663 = vmatmul.mubr.bf16.gmra.mxu0 %v1554
      %v1664 = vpop.f32.mrf.mxu0
      %v1665 = vadd.f32 %v1600, %v1664
      %v1666 = vpop.f32.mrf.mxu0
      %v1667 = vpop.f32.mrf.mxu0
      %v1668 = vadd.f32 %v1603, %v1667
      %v1669 = vpop.f32.mrf.mxu0
      %1670 = vmatprep.mubr.bf16.mxu0 0
      %1671 = vmatmul.mubr.bf16.gmra.mxu0 %v1557
      %v1672 = vpop.f32.mrf.mxu0
      %v1673 = vadd.f32 %v1608, %v1672
      %v1674 = vpop.f32.mrf.mxu0
      %v1675 = vpop.f32.mrf.mxu0
      %v1676 = vadd.f32 %v1611, %v1675
      %v1677 = vpop.f32.mrf.mxu0
      %1678 = vmatprep.mubr.bf16.mxu0 0
      %1679 = vmatmul.mubr.bf16.gmra.mxu0 %v1560
      %v1680 = vpop.f32.mrf.mxu0
      %v1681 = vadd.f32 %v1616, %v1680
      %v1682 = vpop.f32.mrf.mxu0
      %v1683 = vpop.f32.mrf.mxu0
      %v1684 = vadd.f32 %v1619, %v1683
      %v1685 = vpop.f32.mrf.mxu0
      %1686 = vmatprep.mubr.bf16.mxu0 0
      %1687 = vmatmul.mubr.bf16.gmra.mxu0 %v1563
      %v1688 = vpop.f32.mrf.mxu0
      %v1689 = vadd.f32 %v1624, %v1688
      %v1690 = vpop.f32.mrf.mxu0
      %v1691 = vpop.f32.mrf.mxu0
      %v1692 = vadd.f32 %v1627, %v1691
      %v1693 = vpop.f32.mrf.mxu0
      %1694 = vdwg.mxu0
      %v1695 = vunpack.c.l.bf16 %v228
      %v1696 = vunpack.c.l.bf16 %v229
      %v1697 = vunpack.c.l.bf16 %v230
      %v1698 = vunpack.c.l.bf16 %v231
      %v1699 = vunpack.c.l.bf16 %v232
      %v1700 = vunpack.c.l.bf16 %v233
      %v1701 = vunpack.c.l.bf16 %v234
      %v1702 = vunpack.c.l.bf16 %v235
      %v1703 = vunpack.c.l.bf16 %v236
      %v1704 = vunpack.c.l.bf16 %v237
      %v1705 = vunpack.c.l.bf16 %v238
      %v1706 = vunpack.c.l.bf16 %v239
      %v1707 = vunpack.c.l.bf16 %v240
      %v1708 = vunpack.c.l.bf16 %v241
      %v1709 = vunpack.c.l.bf16 %v242
      %v1710 = vunpack.c.l.bf16 %v243
      %vm1727 = vcmask 1046528
      %v1728 = vrot.slane %v1695, 1
      %v1729 = vrot.slane %v1696, 1
      %v1730 = vsel %vm1727, %v1728, %v1729
      %v1731 = vrot.slane %v1697, 1
      %v1732 = vrot.slane %v1698, 1
      %v1733 = vsel %vm1727, %v1731, %v1732
      %v1734 = vrot.slane %v1699, 1
      %v1735 = vrot.slane %v1700, 1
      %v1736 = vsel %vm1727, %v1734, %v1735
      %v1737 = vrot.slane %v1701, 1
      %v1738 = vrot.slane %v1702, 1
      %v1739 = vsel %vm1727, %v1737, %v1738
      %v1740 = vrot.slane %v1703, 1
      %v1741 = vrot.slane %v1704, 1
      %v1742 = vsel %vm1727, %v1740, %v1741
      %v1743 = vrot.slane %v1705, 1
      %v1744 = vrot.slane %v1706, 1
      %v1745 = vsel %vm1727, %v1743, %v1744
      %v1746 = vrot.slane %v1707, 1
      %v1747 = vrot.slane %v1708, 1
      %v1748 = vsel %vm1727, %v1746, %v1747
      %v1749 = vrot.slane %v1709, 1
      %v1750 = vrot.slane %v1710, 1
      %v1751 = vsel %vm1727, %v1749, %v1750
      %v1760 = vadd.f32 %v1665, %v1730
      %v1761 = vadd.f32 %v1668, %v1733
      %v1762 = vadd.f32 %v1673, %v1736
      %v1763 = vadd.f32 %v1676, %v1739
      %v1764 = vadd.f32 %v1681, %v1742
      %v1765 = vadd.f32 %v1684, %v1745
      %v1766 = vadd.f32 %v1689, %v1748
      %v1767 = vadd.f32 %v1692, %v1751
      %v1768 = vpack.c.bf16 %v1760, %v1760
      %v1769 = vpack.c.bf16 %v1761, %v1761
      %v1770 = vpack.c.bf16 %v1762, %v1762
      %v1771 = vpack.c.bf16 %v1763, %v1763
      %v1772 = vpack.c.bf16 %v1764, %v1764
      %v1773 = vpack.c.bf16 %v1765, %v1765
      %v1774 = vpack.c.bf16 %v1766, %v1766
      %v1775 = vpack.c.bf16 %v1767, %v1767
      %vm1776 = vcmask 257024
      %1777 = vst.msk [vmem:[%s224] sm:$0xf] %vm1776, %v1768
      %1778 = vst.msk [vmem:[%s224 + $0x4] sm:$0xf] %vm1776, %v1769
      %1779 = vst.msk [vmem:[%s224 + $0x8] sm:$0xf] %vm1776, %v1770
      %1780 = vst.msk [vmem:[%s224 + $0xc] sm:$0xf] %vm1776, %v1771
      %1781 = vst.msk [vmem:[%s224 + $0x10] sm:$0xf] %vm1776, %v1772
      %1782 = vst.msk [vmem:[%s224 + $0x14] sm:$0xf] %vm1776, %v1773
      %1783 = vst.msk [vmem:[%s224 + $0x18] sm:$0xf] %vm1776, %v1774
      %1784 = vst.msk [vmem:[%s224 + $0x1c] sm:$0xf] %vm1776, %v1775
      %p1785 = scmp.lt.s32.totalorder %s16, 1
      %s1786 = scalar_select %p1785, %s16, 1
      %s1787 = smul.addr %s1786, 8
      %s1788 = smul.addr %s1787, 4
      %s1789 = scalar_lea.vmem %s5, %s1788
      // Predicated region
      $region41: #{srnet_forward.7} parent=39 // pred_check
        %p1790 = pneg %p144
      $region42: #{srnet_forward.7} parent=39 // pred_check_branch
        %1792 = sbr.rel (%p1790) target = $region44
      $region43: #{srnet_forward.7} parent=39 // pred_region
        _
      $region44: #{srnet_forward.7} parent=39 // pred_fallthru
        _
    $region40: #{srnet_forward.7} parent=5 // pred_fallthru
      _
    %p1793 = scmp.le.s32.totalorder 2, %s11
    // Predicated region
    $region45: #{srnet_forward.7} parent=5 // pred_check
      %p1794 = pneg %p1793
    $region46: #{srnet_forward.7} parent=5 // pred_check_branch
      %1796 = sbr.rel (%p1794) target = $region48
    $region47: #{srnet_forward.7} parent=5 // pred_region
      %s1797 = ssub.s32 %s11, 2
      // Predicated region
      $region49: #{srnet_forward.7} parent=47 // pred_check
        %p1798 = pneg %p150
      $region50: #{srnet_forward.7} parent=47 // pred_check_branch
        %1800 = sbr.rel (%p1798) target = $region52
      $region51: #{srnet_forward.7} parent=47 // pred_region
        %p1801 = scmp.lt.s32.totalorder %s17, 1
        %s1802 = scalar_select %p1801, %s17, 1
        %s1803 = smul.addr %s1802, 8
        %s1804 = smul.addr %s1803, 4
        %s1805 = scalar_lea.vmem %s5, %s1804
      $region52: #{srnet_forward.7} parent=47 // pred_fallthru
        _
    $region48: #{srnet_forward.7} parent=5 // pred_fallthru
      _
  $region6: #{srnet_forward.7} parent=0 // loop_footer
    %s15 = sadd.s32 1, %s11
  $region7: #{srnet_forward.7} parent=0 // loop_footer_branch
    %10 = sbr.rel target = $region3
  $region8: #{srnet_forward.7} parent=0 // loop_exit
    _

// kernel: srnet_forward.10
$region0: #{srnet_forward.10}
  #allocation0 [shape = 'u32[]', space=smem, size = 0x4, offset = 0x4, fixed_abs, tag = 'smem constant byte address 0x4 - core index']
  #allocation1 [shape = 'u32[144,128]{1,0:T(1,128)}', space=vmem, size = 0x12000, scoped, tag = 'internal scratch']
  %s0 = inlined_call_operand.vmem [shape: bf16[2,18,18,32], index: 0, kind: input, shape index: {}]
  %s1 = inlined_call_operand.vmem [shape: bf16[128,128], index: 1, kind: input, shape index: {}]
  %s2 = inlined_call_operand.vmem [shape: f32[1,128], index: 2, kind: input, shape index: {}]
  %s3 = inlined_call_operand.vmem [shape: bf16[2,16,16,128], index: 3, kind: output, shape index: {}]
  %s4 = sld [smem:[#allocation0]]
  $region45: #{srnet_forward.10} parent=0
    _
  %s6 = ssub.s32 1, %s4
  %s7 = scalar_select 0, %s6, %s4
  loop: start=0, step=1, limit=4
  $region2: #{srnet_forward.10} parent=0 // loop_pre_header
    _
  $region3: #{srnet_forward.10} parent=0 // loop_header
    %s9 = sphi 0, %s13
    %p10 = scmp.ge.s32.totalorder %s9, 4
    %s19 = sphi 0, %s21
    %s22 = sphi 0, %s19
    %s23 = sphi 0, %s22
    %s39 = sphi 0, %s23
    %s43 = sphi 0, %s43
    %s45 = sphi 0, %s43
    %s46 = sphi 0, %s45
    %s60 = sphi 0, %s46
    %s64 = sphi 0, %s64
    %s66 = sphi 0, %s64
    %s67 = sphi 0, %s66
    %s81 = sphi 0, %s67
    %s87 = sphi 0, %s89
    %s90 = sphi 0, %s87
    %s91 = sphi 0, %s90
    %s107 = sphi 0, %s91
  $region4: #{srnet_forward.10} parent=0 // loop_header_branch
    %12 = sbr.rel (%p10) target = $region8
  $region5: #{srnet_forward.10} parent=0 // loop_body
    %s14 = ssub.s32 %s9, 1
    %s15 = ssub.s32 %s9, 2
    %s16 = sadd.s32 %s9, 1
    %s17 = ssub.s32 %s9, %s16
    %p18 = scmp.eq.s32.totalorder %s17, 0
    %s20 = sadd.s32 %s19, 1
    %s21 = scalar_select %p18, %s19, %s20
    %p24 = pneg %p18
    %p25 = scmp.eq.s32.totalorder %s9, 1
    %p26 = por %p24, %p25
    %p27 = scmp.ne.s32.totalorder %s19, %s22
    %p28 = scmp.eq.s32.totalorder %s9, 0
    %p29 = por %p27, %p28
    %p30 = scmp.ne.s32.totalorder %s19, %s22
    %p31 = scmp.eq.s32.totalorder %s14, 1
    %p32 = por %p30, %p31
    %p33 = scmp.ne.s32.totalorder %s22, %s23
    %p34 = scmp.eq.s32.totalorder %s14, 0
    %p35 = por %p33, %p34
    %p36 = scmp.ne.s32.totalorder %s22, %s23
    %p37 = scmp.eq.s32.totalorder %s15, 1
    %p38 = por %p36, %p37
    %p40 = scmp.ne.s32.totalorder %s23, %s39
    %p41 = scmp.eq.s32.totalorder %s15, 0
    %p42 = por %p40, %p41
    %s44 = sadd.s32 %s43, 1
    %p47 = scmp.eq.s32.totalorder %s9, 1
    %p48 = scmp.ne.s32.totalorder %s43, %s45
    %p49 = scmp.eq.s32.totalorder %s9, 0
    %p50 = por %p48, %p49
    %p51 = scmp.ne.s32.totalorder %s43, %s45
    %p52 = scmp.eq.s32.totalorder %s14, 1
    %p53 = por %p51, %p52
    %p54 = scmp.ne.s32.totalorder %s45, %s46
    %p55 = scmp.eq.s32.totalorder %s14, 0
    %p56 = por %p54, %p55
    %p57 = scmp.ne.s32.totalorder %s45, %s46
    %p58 = scmp.eq.s32.totalorder %s15, 1
    %p59 = por %p57, %p58
    %p61 = scmp.ne.s32.totalorder %s46, %s60
    %p62 = scmp.eq.s32.totalorder %s15, 0
    %p63 = por %p61, %p62
    %s65 = sadd.s32 %s64, 1
    %p68 = scmp.eq.s32.totalorder %s9, 1
    %p69 = scmp.ne.s32.totalorder %s64, %s66
    %p70 = scmp.eq.s32.totalorder %s9, 0
    %p71 = por %p69, %p70
    %p72 = scmp.ne.s32.totalorder %s64, %s66
    %p73 = scmp.eq.s32.totalorder %s14, 1
    %p74 = por %p72, %p73
    %p75 = scmp.ne.s32.totalorder %s66, %s67
    %p76 = scmp.eq.s32.totalorder %s14, 0
    %p77 = por %p75, %p76
    %p78 = scmp.ne.s32.totalorder %s66, %s67
    %p79 = scmp.eq.s32.totalorder %s15, 1
    %p80 = por %p78, %p79
    %p82 = scmp.ne.s32.totalorder %s67, %s81
    %p83 = scmp.eq.s32.totalorder %s15, 0
    %p84 = por %p82, %p83
    %s85 = ssub.s32 %s9, %s16
    %p86 = scmp.eq.s32.totalorder %s85, 0
    %s88 = sadd.s32 %s87, 1
    %s89 = scalar_select %p86, %s87, %s88
    %p92 = pneg %p86
    %p93 = scmp.eq.s32.totalorder %s9, 1
    %p94 = por %p92, %p93
    %p95 = scmp.ne.s32.totalorder %s87, %s90
    %p96 = scmp.eq.s32.totalorder %s9, 0
    %p97 = por %p95, %p96
    %p98 = scmp.ne.s32.totalorder %s87, %s90
    %p99 = scmp.eq.s32.totalorder %s14, 1
    %p100 = por %p98, %p99
    %p101 = scmp.ne.s32.totalorder %s90, %s91
    %p102 = scmp.eq.s32.totalorder %s14, 0
    %p103 = por %p101, %p102
    %p104 = scmp.ne.s32.totalorder %s90, %s91
    %p105 = scmp.eq.s32.totalorder %s15, 1
    %p106 = por %p104, %p105
    %p108 = scmp.ne.s32.totalorder %s91, %s107
    %p109 = scmp.eq.s32.totalorder %s15, 0
    %p110 = por %p108, %p109
    %p111 = scmp.le.s32.totalorder 1, %s9
    %p112 = scmp.lt.s32.totalorder %s9, 3
    %p113 = pnand %p111, %p112
    %p114 = pneg %p113
    // Predicated region
    $region9: #{srnet_forward.10} parent=5 // pred_check
      _
    $region10: #{srnet_forward.10} parent=5 // pred_check_branch
      %116 = sbr.rel (%p113) target = $region12
    $region11: #{srnet_forward.10} parent=5 // pred_region
      %s117 = ssub.s32 %s9, 1
      // Predicated region
      $region13: #{srnet_forward.10} parent=11 // pred_check
        %p118 = pneg %p56
      $region14: #{srnet_forward.10} parent=11 // pred_check_branch
        %120 = sbr.rel (%p118) target = $region16
      $region15: #{srnet_forward.10} parent=11 // pred_region
        _
      $region16: #{srnet_forward.10} parent=11 // pred_fallthru
        _
      // Predicated region
      $region17: #{srnet_forward.10} parent=11 // pred_check
        %p121 = pneg %p77
      $region18: #{srnet_forward.10} parent=11 // pred_check_branch
        %123 = sbr.rel (%p121) target = $region20
      $region19: #{srnet_forward.10} parent=11 // pred_region
        _
      $region20: #{srnet_forward.10} parent=11 // pred_fallthru
        _
    $region12: #{srnet_forward.10} parent=5 // pred_fallthru
      _
    %p124 = scmp.lt.s32.totalorder %s9, 2
    // Predicated region
    $region21: #{srnet_forward.10} parent=5 // pred_check
      %p125 = pneg %p124
    $region22: #{srnet_forward.10} parent=5 // pred_check_branch
      %127 = sbr.rel (%p125) target = $region24
    $region23: #{srnet_forward.10} parent=5 // pred_region
      // Predicated region
      $region25: #{srnet_forward.10} parent=23 // pred_check
        %p128 = pneg %p29
      $region26: #{srnet_forward.10} parent=23 // pred_check_branch
        %130 = sbr.rel (%p128) target = $region28
      $region27: #{srnet_forward.10} parent=23 // pred_region
        %p131 = scmp.lt.s32.totalorder %s9, 1
        %s132 = scalar_select %p131, %s9, 1
        %s133 = smul.addr %s132, 54
        %s134 = smul.addr %s133, 4
        %s135 = scalar_lea.vmem %s0, %s134
      $region28: #{srnet_forward.10} parent=23 // pred_fallthru
        _
    $region24: #{srnet_forward.10} parent=5 // pred_fallthru
      _
    %p136 = scmp.le.s32.totalorder 1, %s9
    %p137 = scmp.lt.s32.totalorder %s9, 3
    %p138 = pnand %p136, %p137
    %p139 = pneg %p138
    // Predicated region
    $region29: #{srnet_forward.10} parent=5 // pred_check
      _
    $region30: #{srnet_forward.10} parent=5 // pred_check_branch
      %141 = sbr.rel (%p138) target = $region32
    $region31: #{srnet_forward.10} parent=5 // pred_region
      %s142 = ssub.s32 %s9, 1
      %p143 = scmp.lt.s32.totalorder %s14, 1
      %s144 = scalar_select %p143, %s14, 1
      %s145 = smul.addr %s144, 54
      %s146 = smul.addr %s145, 4
      %s147 = scalar_lea.vmem %s0, %s146
      %p148 = pneg %p35
      %p149 = pneg %p32
      %p150 = pneg %p56
      %p151 = pneg %p53
      %p152 = pneg %p77
      %p153 = pneg %p74
      %p154 = pneg %p103
      %p155 = pneg %p100
      %p156 = scmp.lt.s32.totalorder %s14, 1
      %s157 = scalar_select %p156, %s14, 1
      %s158 = smul.addr %s157, 32
      %s159 = smul.addr %s158, 4
      %s160 = scalar_lea.vmem %s3, %s159
      %p161 = scmp.lt.s32.totalorder %s14, 1
      %s162 = scalar_select %p161, %s14, 1
      %s163 = smul.addr %s162, 54
      %s164 = smul.addr %s163, 4
      %s165 = scalar_lea.vmem %s0, %s164
      %p166 = scmp.lt.s32.totalorder %s14, 1
      %s167 = scalar_select %p166, %s14, 1
      %s168 = smul.addr %s167, 32
      %s169 = smul.addr %s168, 4
      %s170 = scalar_lea.vmem %s3, %s169
      %v172 = vld [vmem:[%s165 + $0xc] sm:$0xf]
      %v173 = vld [vmem:[%s165 + $0x10] sm:$0xf]
      %v174 = vld [vmem:[%s165 + $0x14] sm:$0x1]
      %v175 = vld [vmem:[%s165 + $0x18] sm:$0xf]
      %v176 = vld [vmem:[%s165 + $0x1c] sm:$0xf]
      %v177 = vld [vmem:[%s165 + $0x20] sm:$0x1]
      %v178 = vld [vmem:[%s165 + $0x24] sm:$0xf]
      %v179 = vld [vmem:[%s165 + $0x28] sm:$0xf]
      %v180 = vld [vmem:[%s165 + $0x2c] sm:$0x1]
      %v181 = vld [vmem:[%s165 + $0x30] sm:$0xf]
      %v182 = vld [vmem:[%s165 + $0x34] sm:$0xf]
      %v183 = vld [vmem:[%s165 + $0x38] sm:$0x1]
      %v184 = vld [vmem:[%s165 + $0x3c] sm:$0xf]
      %v185 = vld [vmem:[%s165 + $0x40] sm:$0xf]
      %v186 = vld [vmem:[%s165 + $0x44] sm:$0x1]
      %v187 = vld [vmem:[%s165 + $0x48] sm:$0xf]
      %v188 = vld [vmem:[%s165 + $0x4c] sm:$0xf]
      %v189 = vld [vmem:[%s165 + $0x50] sm:$0x1]
      %v190 = vld [vmem:[%s165 + $0x54] sm:$0xf]
      %v191 = vld [vmem:[%s165 + $0x58] sm:$0xf]
      %v192 = vld [vmem:[%s165 + $0x5c] sm:$0x1]
      %v193 = vld [vmem:[%s165 + $0x60] sm:$0xf]
      %v194 = vld [vmem:[%s165 + $0x64] sm:$0xf]
      %v195 = vld [vmem:[%s165 + $0x68] sm:$0x1]
      %v196 = vld [vmem:[%s165 + $0x6c] sm:$0xf]
      %v197 = vld [vmem:[%s165 + $0x70] sm:$0xf]
      %v198 = vld [vmem:[%s165 + $0x74] sm:$0x1]
      %v199 = vld [vmem:[%s165 + $0x78] sm:$0xf]
      %v200 = vld [vmem:[%s165 + $0x7c] sm:$0xf]
      %v201 = vld [vmem:[%s165 + $0x80] sm:$0x1]
      %v202 = vld [vmem:[%s165 + $0x84] sm:$0xf]
      %v203 = vld [vmem:[%s165 + $0x88] sm:$0xf]
      %v204 = vld [vmem:[%s165 + $0x8c] sm:$0x1]
      %v205 = vld [vmem:[%s165 + $0x90] sm:$0xf]
      %v206 = vld [vmem:[%s165 + $0x94] sm:$0xf]
      %v207 = vld [vmem:[%s165 + $0x98] sm:$0x1]
      %v208 = vld [vmem:[%s165 + $0x9c] sm:$0xf]
      %v209 = vld [vmem:[%s165 + $0xa0] sm:$0xf]
      %v210 = vld [vmem:[%s165 + $0xa4] sm:$0x1]
      %v211 = vld [vmem:[%s165 + $0xa8] sm:$0xf]
      %v212 = vld [vmem:[%s165 + $0xac] sm:$0xf]
      %v213 = vld [vmem:[%s165 + $0xb0] sm:$0x1]
      %v214 = vld [vmem:[%s165 + $0xb4] sm:$0xf]
      %v215 = vld [vmem:[%s165 + $0xb8] sm:$0xf]
      %v216 = vld [vmem:[%s165 + $0xbc] sm:$0x1]
      %v217 = vld [vmem:[%s165 + $0xc0] sm:$0xf]
      %v218 = vld [vmem:[%s165 + $0xc4] sm:$0xf]
      %v219 = vld [vmem:[%s165 + $0xc8] sm:$0x1]
      %v220 = vld [vmem:[%s165 + $0xcc] sm:$0xf]
      %v221 = vld [vmem:[%s165 + $0xd0] sm:$0xf]
      %v222 = vld [vmem:[%s165 + $0xd4] sm:$0x1]
      %v271 = vunpack.c.l.b16 %v172
      %v272 = vunpack.c.l.b16 %v173
      %v273 = vunpack.c.l.b16 %v174
      %v274 = vunpack.c.l.b16 %v175
      %v275 = vunpack.c.l.b16 %v176
      %v276 = vunpack.c.l.b16 %v177
      %v277 = vunpack.c.l.b16 %v178
      %v278 = vunpack.c.l.b16 %v179
      %v279 = vunpack.c.l.b16 %v180
      %v280 = vunpack.c.l.b16 %v181
      %v281 = vunpack.c.l.b16 %v182
      %v282 = vunpack.c.l.b16 %v183
      %v283 = vunpack.c.l.b16 %v184
      %v284 = vunpack.c.l.b16 %v185
      %v285 = vunpack.c.l.b16 %v186
      %v286 = vunpack.c.l.b16 %v187
      %v287 = vunpack.c.l.b16 %v188
      %v288 = vunpack.c.l.b16 %v189
      %v289 = vunpack.c.l.b16 %v190
      %v290 = vunpack.c.l.b16 %v191
      %v291 = vunpack.c.l.b16 %v192
      %v292 = vunpack.c.l.b16 %v193
      %v293 = vunpack.c.l.b16 %v194
      %v294 = vunpack.c.l.b16 %v195
      %v295 = vunpack.c.l.b16 %v196
      %v296 = vunpack.c.l.b16 %v197
      %v297 = vunpack.c.l.b16 %v198
      %v298 = vunpack.c.l.b16 %v199
      %v299 = vunpack.c.l.b16 %v200
      %v300 = vunpack.c.l.b16 %v201
      %v301 = vunpack.c.l.b16 %v202
      %v302 = vunpack.c.l.b16 %v203
      %v303 = vunpack.c.l.b16 %v204
      %v304 = vunpack.c.l.b16 %v205
      %v305 = vunpack.c.l.b16 %v206
      %v306 = vunpack.c.l.b16 %v207
      %v307 = vunpack.c.l.b16 %v208
      %v308 = vunpack.c.l.b16 %v209
      %v309 = vunpack.c.l.b16 %v210
      %v310 = vunpack.c.l.b16 %v211
      %v311 = vunpack.c.l.b16 %v212
      %v312 = vunpack.c.l.b16 %v213
      %v313 = vunpack.c.l.b16 %v214
      %v314 = vunpack.c.l.b16 %v215
      %v315 = vunpack.c.l.b16 %v216
      %v316 = vunpack.c.l.b16 %v217
      %v317 = vunpack.c.l.b16 %v218
      %v318 = vunpack.c.l.b16 %v219
      %v319 = vpack.c.b16 %v272, %v271
      %v320 = vpack.c.b16 %v273, %v273
      %v321 = vpack.c.b16 %v275, %v274
      %v322 = vpack.c.b16 %v276, %v276
      %v323 = vpack.c.b16 %v278, %v277
      %v324 = vpack.c.b16 %v279, %v279
      %v325 = vpack.c.b16 %v281, %v280
      %v326 = vpack.c.b16 %v282, %v282
      %v327 = vpack.c.b16 %v284, %v283
      %v328 = vpack.c.b16 %v285, %v285
      %v329 = vpack.c.b16 %v287, %v286
      %v330 = vpack.c.b16 %v288, %v288
      %v331 = vpack.c.b16 %v290, %v289
      %v332 = vpack.c.b16 %v291, %v291
      %v333 = vpack.c.b16 %v293, %v292
      %v334 = vpack.c.b16 %v294, %v294
      %v335 = vpack.c.b16 %v296, %v295
      %v336 = vpack.c.b16 %v297, %v297
      %v337 = vpack.c.b16 %v299, %v298
      %v338 = vpack.c.b16 %v300, %v300
      %v339 = vpack.c.b16 %v302, %v301
      %v340 = vpack.c.b16 %v303, %v303
      %v341 = vpack.c.b16 %v305, %v304
      %v342 = vpack.c.b16 %v306, %v306
      %v343 = vpack.c.b16 %v308, %v307
      %v344 = vpack.c.b16 %v309, %v309
      %v345 = vpack.c.b16 %v311, %v310
      %v346 = vpack.c.b16 %v312, %v312
      %v347 = vpack.c.b16 %v314, %v313
      %v348 = vpack.c.b16 %v315, %v315
      %v349 = vpack.c.b16 %v317, %v316
      %v350 = vpack.c.b16 %v318, %v318
      %vm351 = vsmask.f32 7424
      %v353 = vshrl.u32 %v319, 16
      %v355 = vshll.u32 %v319, 16
      %v357 = vrot.slane %v355, 1
      %v358 = vor.u32 %v353, %v357
      %v360 = vshll.u32 %v320, 16
      %v362 = vrot.slane %v360, 1
      %v363 = vsel %vm351, %v358, %v362
      %v364 = vshrl.u32 %v320, 16
      %v367 = vshrl.u32 %v321, 16
      %v369 = vshll.u32 %v321, 16
      %v371 = vrot.slane %v369, 1
      %v372 = vor.u32 %v367, %v371
      %v374 = vshll.u32 %v322, 16
      %v376 = vrot.slane %v374, 1
      %v377 = vsel %vm351, %v372, %v376
      %v378 = vshrl.u32 %v322, 16
      %v381 = vshrl.u32 %v323, 16
      %v383 = vshll.u32 %v323, 16
      %v385 = vrot.slane %v383, 1
      %v386 = vor.u32 %v381, %v385
      %v388 = vshll.u32 %v324, 16
      %v390 = vrot.slane %v388, 1
      %v391 = vsel %vm351, %v386, %v390
      %v392 = vshrl.u32 %v324, 16
      %v395 = vshrl.u32 %v325, 16
      %v397 = vshll.u32 %v325, 16
      %v399 = vrot.slane %v397, 1
      %v400 = vor.u32 %v395, %v399
      %v402 = vshll.u32 %v326, 16
      %v404 = vrot.slane %v402, 1
      %v405 = vsel %vm351, %v400, %v404
      %v406 = vshrl.u32 %v326, 16
      %v409 = vshrl.u32 %v327, 16
      %v411 = vshll.u32 %v327, 16
      %v413 = vrot.slane %v411, 1
      %v414 = vor.u32 %v409, %v413
      %v416 = vshll.u32 %v328, 16
      %v418 = vrot.slane %v416, 1
      %v419 = vsel %vm351, %v414, %v418
      %v420 = vshrl.u32 %v328, 16
      %v423 = vshrl.u32 %v329, 16
      %v425 = vshll.u32 %v329, 16
      %v427 = vrot.slane %v425, 1
      %v428 = vor.u32 %v423, %v427
      %v430 = vshll.u32 %v330, 16
      %v432 = vrot.slane %v430, 1
      %v433 = vsel %vm351, %v428, %v432
      %v434 = vshrl.u32 %v330, 16
      %v437 = vshrl.u32 %v331, 16
      %v439 = vshll.u32 %v331, 16
      %v441 = vrot.slane %v439, 1
      %v442 = vor.u32 %v437, %v441
      %v444 = vshll.u32 %v332, 16
      %v446 = vrot.slane %v444, 1
      %v447 = vsel %vm351, %v442, %v446
      %v448 = vshrl.u32 %v332, 16
      %v451 = vshrl.u32 %v333, 16
      %v453 = vshll.u32 %v333, 16
      %v455 = vrot.slane %v453, 1
      %v456 = vor.u32 %v451, %v455
      %v458 = vshll.u32 %v334, 16
      %v460 = vrot.slane %v458, 1
      %v461 = vsel %vm351, %v456, %v460
      %v462 = vshrl.u32 %v334, 16
      %v465 = vshrl.u32 %v335, 16
      %v467 = vshll.u32 %v335, 16
      %v469 = vrot.slane %v467, 1
      %v470 = vor.u32 %v465, %v469
      %v472 = vshll.u32 %v336, 16
      %v474 = vrot.slane %v472, 1
      %v475 = vsel %vm351, %v470, %v474
      %v476 = vshrl.u32 %v336, 16
      %v479 = vshrl.u32 %v337, 16
      %v481 = vshll.u32 %v337, 16
      %v483 = vrot.slane %v481, 1
      %v484 = vor.u32 %v479, %v483
      %v486 = vshll.u32 %v338, 16
      %v488 = vrot.slane %v486, 1
      %v489 = vsel %vm351, %v484, %v488
      %v490 = vshrl.u32 %v338, 16
      %v493 = vshrl.u32 %v339, 16
      %v495 = vshll.u32 %v339, 16
      %v497 = vrot.slane %v495, 1
      %v498 = vor.u32 %v493, %v497
      %v500 = vshll.u32 %v340, 16
      %v502 = vrot.slane %v500, 1
      %v503 = vsel %vm351, %v498, %v502
      %v504 = vshrl.u32 %v340, 16
      %v507 = vshrl.u32 %v341, 16
      %v509 = vshll.u32 %v341, 16
      %v511 = vrot.slane %v509, 1
      %v512 = vor.u32 %v507, %v511
      %v514 = vshll.u32 %v342, 16
      %v516 = vrot.slane %v514, 1
      %v517 = vsel %vm351, %v512, %v516
      %v518 = vshrl.u32 %v342, 16
      %v521 = vshrl.u32 %v343, 16
      %v523 = vshll.u32 %v343, 16
      %v525 = vrot.slane %v523, 1
      %v526 = vor.u32 %v521, %v525
      %v528 = vshll.u32 %v344, 16
      %v530 = vrot.slane %v528, 1
      %v531 = vsel %vm351, %v526, %v530
      %v532 = vshrl.u32 %v344, 16
      %v535 = vshrl.u32 %v345, 16
      %v537 = vshll.u32 %v345, 16
      %v539 = vrot.slane %v537, 1
      %v540 = vor.u32 %v535, %v539
      %v542 = vshll.u32 %v346, 16
      %v544 = vrot.slane %v542, 1
      %v545 = vsel %vm351, %v540, %v544
      %v546 = vshrl.u32 %v346, 16
      %v549 = vshrl.u32 %v347, 16
      %v551 = vshll.u32 %v347, 16
      %v553 = vrot.slane %v551, 1
      %v554 = vor.u32 %v549, %v553
      %v556 = vshll.u32 %v348, 16
      %v558 = vrot.slane %v556, 1
      %v559 = vsel %vm351, %v554, %v558
      %v560 = vshrl.u32 %v348, 16
      %v563 = vshrl.u32 %v349, 16
      %v565 = vshll.u32 %v349, 16
      %v567 = vrot.slane %v565, 1
      %v568 = vor.u32 %v563, %v567
      %v570 = vshll.u32 %v350, 16
      %v572 = vrot.slane %v570, 1
      %v573 = vsel %vm351, %v568, %v572
      %v574 = vshrl.u32 %v350, 16
      %576 = vrot.lane.b32.xlu0 %v363, 32
      %v577 = vpop.permute.xlu0 %576
      %578 = vrot.lane.b32.xlu0 %v364, 32
      %v579 = vpop.permute.xlu0 %578
      %580 = vrot.lane.b32.xlu0 %v377, 32
      %v581 = vpop.permute.xlu0 %580
      %582 = vrot.lane.b32.xlu0 %v378, 32
      %v583 = vpop.permute.xlu0 %582
      %584 = vrot.lane.b32.xlu0 %v391, 32
      %v585 = vpop.permute.xlu0 %584
      %586 = vrot.lane.b32.xlu0 %v392, 32
      %v587 = vpop.permute.xlu0 %586
      %588 = vrot.lane.b32.xlu0 %v405, 32
      %v589 = vpop.permute.xlu0 %588
      %590 = vrot.lane.b32.xlu0 %v406, 32
      %v591 = vpop.permute.xlu0 %590
      %592 = vrot.lane.b32.xlu0 %v419, 32
      %v593 = vpop.permute.xlu0 %592
      %594 = vrot.lane.b32.xlu0 %v420, 32
      %v595 = vpop.permute.xlu0 %594
      %596 = vrot.lane.b32.xlu0 %v433, 32
      %v597 = vpop.permute.xlu0 %596
      %598 = vrot.lane.b32.xlu0 %v434, 32
      %v599 = vpop.permute.xlu0 %598
      %600 = vrot.lane.b32.xlu0 %v447, 32
      %v601 = vpop.permute.xlu0 %600
      %602 = vrot.lane.b32.xlu0 %v448, 32
      %v603 = vpop.permute.xlu0 %602
      %604 = vrot.lane.b32.xlu0 %v461, 32
      %v605 = vpop.permute.xlu0 %604
      %606 = vrot.lane.b32.xlu0 %v462, 32
      %v607 = vpop.permute.xlu0 %606
      %608 = vrot.lane.b32.xlu0 %v475, 32
      %v609 = vpop.permute.xlu0 %608
      %610 = vrot.lane.b32.xlu0 %v476, 32
      %v611 = vpop.permute.xlu0 %610
      %612 = vrot.lane.b32.xlu0 %v489, 32
      %v613 = vpop.permute.xlu0 %612
      %614 = vrot.lane.b32.xlu0 %v490, 32
      %v615 = vpop.permute.xlu0 %614
      %616 = vrot.lane.b32.xlu0 %v503, 32
      %v617 = vpop.permute.xlu0 %616
      %618 = vrot.lane.b32.xlu0 %v504, 32
      %v619 = vpop.permute.xlu0 %618
      %620 = vrot.lane.b32.xlu0 %v517, 32
      %v621 = vpop.permute.xlu0 %620
      %622 = vrot.lane.b32.xlu0 %v518, 32
      %v623 = vpop.permute.xlu0 %622
      %624 = vrot.lane.b32.xlu0 %v531, 32
      %v625 = vpop.permute.xlu0 %624
      %626 = vrot.lane.b32.xlu0 %v532, 32
      %v627 = vpop.permute.xlu0 %626
      %628 = vrot.lane.b32.xlu0 %v545, 32
      %v629 = vpop.permute.xlu0 %628
      %630 = vrot.lane.b32.xlu0 %v546, 32
      %v631 = vpop.permute.xlu0 %630
      %632 = vrot.lane.b32.xlu0 %v559, 32
      %v633 = vpop.permute.xlu0 %632
      %634 = vrot.lane.b32.xlu0 %v560, 32
      %v635 = vpop.permute.xlu0 %634
      %636 = vrot.lane.b32.xlu0 %v573, 32
      %v637 = vpop.permute.xlu0 %636
      %638 = vrot.lane.b32.xlu0 %v574, 32
      %v639 = vpop.permute.xlu0 %638
      %v643 = vunpack.c.l.b16 %v220
      %v644 = vunpack.c.l.b16 %v221
      %v645 = vunpack.c.l.b16 %v222
      %v646 = vpack.c.b16 %v644, %v643
      %v647 = vpack.c.b16 %v645, %v645
      %648 = vrot.lane.b32.xlu0 %v321, 64
      %v649 = vpop.permute.xlu0 %648
      %650 = vrot.lane.b32.xlu0 %v322, 64
      %v651 = vpop.permute.xlu0 %650
      %652 = vrot.lane.b32.xlu0 %v323, 64
      %v653 = vpop.permute.xlu0 %652
      %654 = vrot.lane.b32.xlu0 %v324, 64
      %v655 = vpop.permute.xlu0 %654
      %656 = vrot.lane.b32.xlu0 %v325, 64
      %v657 = vpop.permute.xlu0 %656
      %658 = vrot.lane.b32.xlu0 %v326, 64
      %v659 = vpop.permute.xlu0 %658
      %660 = vrot.lane.b32.xlu0 %v327, 64
      %v661 = vpop.permute.xlu0 %660
      %662 = vrot.lane.b32.xlu0 %v328, 64
      %v663 = vpop.permute.xlu0 %662
      %664 = vrot.lane.b32.xlu0 %v329, 64
      %v665 = vpop.permute.xlu0 %664
      %666 = vrot.lane.b32.xlu0 %v330, 64
      %v667 = vpop.permute.xlu0 %666
      %668 = vrot.lane.b32.xlu0 %v331, 64
      %v669 = vpop.permute.xlu0 %668
      %670 = vrot.lane.b32.xlu0 %v332, 64
      %v671 = vpop.permute.xlu0 %670
      %672 = vrot.lane.b32.xlu0 %v333, 64
      %v673 = vpop.permute.xlu0 %672
      %674 = vrot.lane.b32.xlu0 %v334, 64
      %v675 = vpop.permute.xlu0 %674
      %676 = vrot.lane.b32.xlu0 %v335, 64
      %v677 = vpop.permute.xlu0 %676
      %678 = vrot.lane.b32.xlu0 %v336, 64
      %v679 = vpop.permute.xlu0 %678
      %680 = vrot.lane.b32.xlu0 %v337, 64
      %v681 = vpop.permute.xlu0 %680
      %682 = vrot.lane.b32.xlu0 %v338, 64
      %v683 = vpop.permute.xlu0 %682
      %684 = vrot.lane.b32.xlu0 %v339, 64
      %v685 = vpop.permute.xlu0 %684
      %686 = vrot.lane.b32.xlu0 %v340, 64
      %v687 = vpop.permute.xlu0 %686
      %688 = vrot.lane.b32.xlu0 %v341, 64
      %v689 = vpop.permute.xlu0 %688
      %690 = vrot.lane.b32.xlu0 %v342, 64
      %v691 = vpop.permute.xlu0 %690
      %692 = vrot.lane.b32.xlu0 %v343, 64
      %v693 = vpop.permute.xlu0 %692
      %694 = vrot.lane.b32.xlu0 %v344, 64
      %v695 = vpop.permute.xlu0 %694
      %696 = vrot.lane.b32.xlu0 %v345, 64
      %v697 = vpop.permute.xlu0 %696
      %698 = vrot.lane.b32.xlu0 %v346, 64
      %v699 = vpop.permute.xlu0 %698
      %700 = vrot.lane.b32.xlu0 %v347, 64
      %v701 = vpop.permute.xlu0 %700
      %702 = vrot.lane.b32.xlu0 %v348, 64
      %v703 = vpop.permute.xlu0 %702
      %704 = vrot.lane.b32.xlu0 %v349, 64
      %v705 = vpop.permute.xlu0 %704
      %706 = vrot.lane.b32.xlu0 %v350, 64
      %v707 = vpop.permute.xlu0 %706
      %708 = vrot.lane.b32.xlu0 %v646, 64
      %v709 = vpop.permute.xlu0 %708
      %710 = vrot.lane.b32.xlu0 %v647, 64
      %v711 = vpop.permute.xlu0 %710
      %v713 = vshrl.u32 %v646, 16
      %v715 = vshll.u32 %v646, 16
      %v717 = vrot.slane %v715, 1
      %v718 = vor.u32 %v713, %v717
      %v720 = vshll.u32 %v647, 16
      %v722 = vrot.slane %v720, 1
      %v723 = vsel %vm351, %v718, %v722
      %v724 = vshrl.u32 %v647, 16
      %726 = vrot.lane.b32.xlu0 %v377, 96
      %v727 = vpop.permute.xlu0 %726
      %728 = vrot.lane.b32.xlu0 %v378, 96
      %v729 = vpop.permute.xlu0 %728
      %730 = vrot.lane.b32.xlu0 %v391, 96
      %v731 = vpop.permute.xlu0 %730
      %732 = vrot.lane.b32.xlu0 %v392, 96
      %v733 = vpop.permute.xlu0 %732
      %734 = vrot.lane.b32.xlu0 %v405, 96
      %v735 = vpop.permute.xlu0 %734
      %736 = vrot.lane.b32.xlu0 %v406, 96
      %v737 = vpop.permute.xlu0 %736
      %738 = vrot.lane.b32.xlu0 %v419, 96
      %v739 = vpop.permute.xlu0 %738
      %740 = vrot.lane.b32.xlu0 %v420, 96
      %v741 = vpop.permute.xlu0 %740
      %742 = vrot.lane.b32.xlu0 %v433, 96
      %v743 = vpop.permute.xlu0 %742
      %744 = vrot.lane.b32.xlu0 %v434, 96
      %v745 = vpop.permute.xlu0 %744
      %746 = vrot.lane.b32.xlu0 %v447, 96
      %v747 = vpop.permute.xlu0 %746
      %748 = vrot.lane.b32.xlu0 %v448, 96
      %v749 = vpop.permute.xlu0 %748
      %750 = vrot.lane.b32.xlu0 %v461, 96
      %v751 = vpop.permute.xlu0 %750
      %752 = vrot.lane.b32.xlu0 %v462, 96
      %v753 = vpop.permute.xlu0 %752
      %754 = vrot.lane.b32.xlu0 %v475, 96
      %v755 = vpop.permute.xlu0 %754
      %756 = vrot.lane.b32.xlu0 %v476, 96
      %v757 = vpop.permute.xlu0 %756
      %758 = vrot.lane.b32.xlu0 %v489, 96
      %v759 = vpop.permute.xlu0 %758
      %760 = vrot.lane.b32.xlu0 %v490, 96
      %v761 = vpop.permute.xlu0 %760
      %762 = vrot.lane.b32.xlu0 %v503, 96
      %v763 = vpop.permute.xlu0 %762
      %764 = vrot.lane.b32.xlu0 %v504, 96
      %v765 = vpop.permute.xlu0 %764
      %766 = vrot.lane.b32.xlu0 %v517, 96
      %v767 = vpop.permute.xlu0 %766
      %768 = vrot.lane.b32.xlu0 %v518, 96
      %v769 = vpop.permute.xlu0 %768
      %770 = vrot.lane.b32.xlu0 %v531, 96
      %v771 = vpop.permute.xlu0 %770
      %772 = vrot.lane.b32.xlu0 %v532, 96
      %v773 = vpop.permute.xlu0 %772
      %774 = vrot.lane.b32.xlu0 %v545, 96
      %v775 = vpop.permute.xlu0 %774
      %776 = vrot.lane.b32.xlu0 %v546, 96
      %v777 = vpop.permute.xlu0 %776
      %778 = vrot.lane.b32.xlu0 %v559, 96
      %v779 = vpop.permute.xlu0 %778
      %780 = vrot.lane.b32.xlu0 %v560, 96
      %v781 = vpop.permute.xlu0 %780
      %782 = vrot.lane.b32.xlu0 %v573, 96
      %v783 = vpop.permute.xlu0 %782
      %784 = vrot.lane.b32.xlu0 %v574, 96
      %v785 = vpop.permute.xlu0 %784
      %786 = vrot.lane.b32.xlu0 %v723, 96
      %v787 = vpop.permute.xlu0 %786
      %788 = vrot.lane.b32.xlu0 %v724, 96
      %v789 = vpop.permute.xlu0 %788
      %vm790 = vcmask 261120
      %v792 = vsel %vm790, %v319, %v577
      %v794 = vsel %vm790, %v320, %v579
      %v796 = vsel %vm790, %v321, %v581
      %v798 = vsel %vm790, %v322, %v583
      %v800 = vsel %vm790, %v323, %v585
      %v802 = vsel %vm790, %v324, %v587
      %v804 = vsel %vm790, %v325, %v589
      %v806 = vsel %vm790, %v326, %v591
      %v808 = vsel %vm790, %v327, %v593
      %v810 = vsel %vm790, %v328, %v595
      %v812 = vsel %vm790, %v329, %v597
      %v814 = vsel %vm790, %v330, %v599
      %v816 = vsel %vm790, %v331, %v601
      %v818 = vsel %vm790, %v332, %v603
      %v820 = vsel %vm790, %v333, %v605
      %v822 = vsel %vm790, %v334, %v607
      %v824 = vsel %vm790, %v335, %v609
      %v826 = vsel %vm790, %v336, %v611
      %v828 = vsel %vm790, %v337, %v613
      %v830 = vsel %vm790, %v338, %v615
      %v832 = vsel %vm790, %v339, %v617
      %v834 = vsel %vm790, %v340, %v619
      %v836 = vsel %vm790, %v341, %v621
      %v838 = vsel %vm790, %v342, %v623
      %v840 = vsel %vm790, %v343, %v625
      %v842 = vsel %vm790, %v344, %v627
      %v844 = vsel %vm790, %v345, %v629
      %v846 = vsel %vm790, %v346, %v631
      %v848 = vsel %vm790, %v347, %v633
      %v850 = vsel %vm790, %v348, %v635
      %v852 = vsel %vm790, %v349, %v637
      %v854 = vsel %vm790, %v350, %v639
      %vm855 = vcmask 523264
      %v857 = vsel %vm855, %v792, %v649
      %v859 = vsel %vm855, %v794, %v651
      %v861 = vsel %vm855, %v796, %v653
      %v863 = vsel %vm855, %v798, %v655
      %v865 = vsel %vm855, %v800, %v657
      %v867 = vsel %vm855, %v802, %v659
      %v869 = vsel %vm855, %v804, %v661
      %v871 = vsel %vm855, %v806, %v663
      %v873 = vsel %vm855, %v808, %v665
      %v875 = vsel %vm855, %v810, %v667
      %v877 = vsel %vm855, %v812, %v669
      %v879 = vsel %vm855, %v814, %v671
      %v881 = vsel %vm855, %v816, %v673
      %v883 = vsel %vm855, %v818, %v675
      %v885 = vsel %vm855, %v820, %v677
      %v887 = vsel %vm855, %v822, %v679
      %v889 = vsel %vm855, %v824, %v681
      %v891 = vsel %vm855, %v826, %v683
      %v893 = vsel %vm855, %v828, %v685
      %v895 = vsel %vm855, %v830, %v687
      %v897 = vsel %vm855, %v832, %v689
      %v899 = vsel %vm855, %v834, %v691
      %v901 = vsel %vm855, %v836, %v693
      %v903 = vsel %vm855, %v838, %v695
      %v905 = vsel %vm855, %v840, %v697
      %v907 = vsel %vm855, %v842, %v699
      %v909 = vsel %vm855, %v844, %v701
      %v911 = vsel %vm855, %v846, %v703
      %v913 = vsel %vm855, %v848, %v705
      %v915 = vsel %vm855, %v850, %v707
      %v917 = vsel %vm855, %v852, %v709
      %v919 = vsel %vm855, %v854, %v711
      %vm920 = vcmask 785408
      %v922 = vsel %vm920, %v857, %v727
      %v924 = vsel %vm920, %v859, %v729
      %v926 = vsel %vm920, %v861, %v731
      %v928 = vsel %vm920, %v863, %v733
      %v930 = vsel %vm920, %v865, %v735
      %v932 = vsel %vm920, %v867, %v737
      %v934 = vsel %vm920, %v869, %v739
      %v936 = vsel %vm920, %v871, %v741
      %v938 = vsel %vm920, %v873, %v743
      %v940 = vsel %vm920, %v875, %v745
      %v942 = vsel %vm920, %v877, %v747
      %v944 = vsel %vm920, %v879, %v749
      %v946 = vsel %vm920, %v881, %v751
      %v948 = vsel %vm920, %v883, %v753
      %v950 = vsel %vm920, %v885, %v755
      %v952 = vsel %vm920, %v887, %v757
      %v954 = vsel %vm920, %v889, %v759
      %v956 = vsel %vm920, %v891, %v761
      %v958 = vsel %vm920, %v893, %v763
      %v960 = vsel %vm920, %v895, %v765
      %v962 = vsel %vm920, %v897, %v767
      %v964 = vsel %vm920, %v899, %v769
      %v966 = vsel %vm920, %v901, %v771
      %v968 = vsel %vm920, %v903, %v773
      %v970 = vsel %vm920, %v905, %v775
      %v972 = vsel %vm920, %v907, %v777
      %v974 = vsel %vm920, %v909, %v779
      %v976 = vsel %vm920, %v911, %v781
      %v978 = vsel %vm920, %v913, %v783
      %v980 = vsel %vm920, %v915, %v785
      %v982 = vsel %vm920, %v917, %v787
      %v984 = vsel %vm920, %v919, %v789
      %v985 = vshrl.u32 %v922, 16
      %v987 = vshll.u32 %v922, 16
      %v989 = vrot.slane %v987, 1
      %v990 = vor.u32 %v985, %v989
      %v991 = vshll.u32 %v924, 16
      %v993 = vrot.slane %v991, 1
      %v994 = vsel %vm351, %v990, %v993
      %v995 = vshrl.u32 %v926, 16
      %v997 = vshll.u32 %v926, 16
      %v999 = vrot.slane %v997, 1
      %v1000 = vor.u32 %v995, %v999
      %v1001 = vshll.u32 %v928, 16
      %v1003 = vrot.slane %v1001, 1
      %v1004 = vsel %vm351, %v1000, %v1003
      %v1005 = vshrl.u32 %v930, 16
      %v1007 = vshll.u32 %v930, 16
      %v1009 = vrot.slane %v1007, 1
      %v1010 = vor.u32 %v1005, %v1009
      %v1011 = vshll.u32 %v932, 16
      %v1013 = vrot.slane %v1011, 1
      %v1014 = vsel %vm351, %v1010, %v1013
      %v1015 = vshrl.u32 %v934, 16
      %v1017 = vshll.u32 %v934, 16
      %v1019 = vrot.slane %v1017, 1
      %v1020 = vor.u32 %v1015, %v1019
      %v1021 = vshll.u32 %v936, 16
      %v1023 = vrot.slane %v1021, 1
      %v1024 = vsel %vm351, %v1020, %v1023
      %v1025 = vshrl.u32 %v938, 16
      %v1027 = vshll.u32 %v938, 16
      %v1029 = vrot.slane %v1027, 1
      %v1030 = vor.u32 %v1025, %v1029
      %v1031 = vshll.u32 %v940, 16
      %v1033 = vrot.slane %v1031, 1
      %v1034 = vsel %vm351, %v1030, %v1033
      %v1035 = vshrl.u32 %v942, 16
      %v1037 = vshll.u32 %v942, 16
      %v1039 = vrot.slane %v1037, 1
      %v1040 = vor.u32 %v1035, %v1039
      %v1041 = vshll.u32 %v944, 16
      %v1043 = vrot.slane %v1041, 1
      %v1044 = vsel %vm351, %v1040, %v1043
      %v1045 = vshrl.u32 %v946, 16
      %v1047 = vshll.u32 %v946, 16
      %v1049 = vrot.slane %v1047, 1
      %v1050 = vor.u32 %v1045, %v1049
      %v1051 = vshll.u32 %v948, 16
      %v1053 = vrot.slane %v1051, 1
      %v1054 = vsel %vm351, %v1050, %v1053
      %v1055 = vshrl.u32 %v950, 16
      %v1057 = vshll.u32 %v950, 16
      %v1059 = vrot.slane %v1057, 1
      %v1060 = vor.u32 %v1055, %v1059
      %v1061 = vshll.u32 %v952, 16
      %v1063 = vrot.slane %v1061, 1
      %v1064 = vsel %vm351, %v1060, %v1063
      %v1065 = vshrl.u32 %v954, 16
      %v1067 = vshll.u32 %v954, 16
      %v1069 = vrot.slane %v1067, 1
      %v1070 = vor.u32 %v1065, %v1069
      %v1071 = vshll.u32 %v956, 16
      %v1073 = vrot.slane %v1071, 1
      %v1074 = vsel %vm351, %v1070, %v1073
      %v1075 = vshrl.u32 %v958, 16
      %v1077 = vshll.u32 %v958, 16
      %v1079 = vrot.slane %v1077, 1
      %v1080 = vor.u32 %v1075, %v1079
      %v1081 = vshll.u32 %v960, 16
      %v1083 = vrot.slane %v1081, 1
      %v1084 = vsel %vm351, %v1080, %v1083
      %v1085 = vshrl.u32 %v962, 16
      %v1087 = vshll.u32 %v962, 16
      %v1089 = vrot.slane %v1087, 1
      %v1090 = vor.u32 %v1085, %v1089
      %v1091 = vshll.u32 %v964, 16
      %v1093 = vrot.slane %v1091, 1
      %v1094 = vsel %vm351, %v1090, %v1093
      %v1095 = vshrl.u32 %v966, 16
      %v1097 = vshll.u32 %v966, 16
      %v1099 = vrot.slane %v1097, 1
      %v1100 = vor.u32 %v1095, %v1099
      %v1101 = vshll.u32 %v968, 16
      %v1103 = vrot.slane %v1101, 1
      %v1104 = vsel %vm351, %v1100, %v1103
      %v1105 = vshrl.u32 %v970, 16
      %v1107 = vshll.u32 %v970, 16
      %v1109 = vrot.slane %v1107, 1
      %v1110 = vor.u32 %v1105, %v1109
      %v1111 = vshll.u32 %v972, 16
      %v1113 = vrot.slane %v1111, 1
      %v1114 = vsel %vm351, %v1110, %v1113
      %v1115 = vshrl.u32 %v974, 16
      %v1117 = vshll.u32 %v974, 16
      %v1119 = vrot.slane %v1117, 1
      %v1120 = vor.u32 %v1115, %v1119
      %v1121 = vshll.u32 %v976, 16
      %v1123 = vrot.slane %v1121, 1
      %v1124 = vsel %vm351, %v1120, %v1123
      %v1125 = vshrl.u32 %v978, 16
      %v1127 = vshll.u32 %v978, 16
      %v1129 = vrot.slane %v1127, 1
      %v1130 = vor.u32 %v1125, %v1129
      %v1131 = vshll.u32 %v980, 16
      %v1133 = vrot.slane %v1131, 1
      %v1134 = vsel %vm351, %v1130, %v1133
      %v1135 = vshrl.u32 %v982, 16
      %v1137 = vshll.u32 %v982, 16
      %v1139 = vrot.slane %v1137, 1
      %v1140 = vor.u32 %v1135, %v1139
      %v1141 = vshll.u32 %v984, 16
      %v1143 = vrot.slane %v1141, 1
      %v1144 = vsel %vm351, %v1140, %v1143
      %v1161 = vld [vmem:[%s1] sm:$0xf]
      %v1162 = vld [vmem:[%s1 + $0x4] sm:$0xf]
      %v1163 = vld [vmem:[%s1 + $0x8] sm:$0xf]
      %v1164 = vld [vmem:[%s1 + $0xc] sm:$0xf]
      %v1165 = vld [vmem:[%s1 + $0x10] sm:$0xf]
      %v1166 = vld [vmem:[%s1 + $0x14] sm:$0xf]
      %v1167 = vld [vmem:[%s1 + $0x18] sm:$0xf]
      %v1168 = vld [vmem:[%s1 + $0x1c] sm:$0xf]
      %v1169 = vld [vmem:[%s1 + $0x20] sm:$0xf]
      %v1170 = vld [vmem:[%s1 + $0x24] sm:$0xf]
      %v1171 = vld [vmem:[%s1 + $0x28] sm:$0xf]
      %v1172 = vld [vmem:[%s1 + $0x2c] sm:$0xf]
      %v1173 = vld [vmem:[%s1 + $0x30] sm:$0xf]
      %v1174 = vld [vmem:[%s1 + $0x34] sm:$0xf]
      %v1175 = vld [vmem:[%s1 + $0x38] sm:$0xf]
      %v1176 = vld [vmem:[%s1 + $0x3c] sm:$0xf]
      %v1177 = vld [vmem:[%s2] sm:$0x1]
      %v1179 = vlaneseq
      %v1180 = vshrl.u32 %v1179, 7
      %v1181 = vsub.s32 0, %v1180
      %v1182 = vrot.slane %v1177, %v1181
      %v1200 = vunpack.c.l.b16 %v1161
      %v1201 = vunpack.c.l.b16 %v1162
      %v1202 = vunpack.c.l.b16 %v1163
      %v1203 = vunpack.c.l.b16 %v1164
      %v1204 = vunpack.c.l.b16 %v1165
      %v1205 = vunpack.c.l.b16 %v1166
      %v1206 = vunpack.c.l.b16 %v1167
      %v1207 = vunpack.c.l.b16 %v1168
      %v1208 = vunpack.c.l.b16 %v1169
      %v1209 = vunpack.c.l.b16 %v1170
      %v1210 = vunpack.c.l.b16 %v1171
      %v1211 = vunpack.c.l.b16 %v1172
      %v1212 = vunpack.c.l.b16 %v1173
      %v1213 = vunpack.c.l.b16 %v1174
      %v1214 = vunpack.c.l.b16 %v1175
      %v1215 = vunpack.c.l.b16 %v1176
      %v1216 = vpack.c.b16 %v1201, %v1200
      %v1217 = vpack.c.b16 %v1203, %v1202
      %v1218 = vpack.c.b16 %v1205, %v1204
      %v1219 = vpack.c.b16 %v1207, %v1206
      %v1220 = vpack.c.b16 %v1209, %v1208
      %v1221 = vpack.c.b16 %v1211, %v1210
      %v1222 = vpack.c.b16 %v1213, %v1212
      %v1223 = vpack.c.b16 %v1215, %v1214
      %1232 = vmatprep.subr.bf16.mxu0 0
      %1233 = vmatpush1.bf16.msra.mxu0 %v1223
      %1234 = vmatprep.subr.bf16.mxu0 0
      %1235 = vmatpush1.bf16.msra.mxu0 %v1222
      %1236 = vmatprep.subr.bf16.mxu0 0
      %1237 = vmatpush1.bf16.msra.mxu0 %v1221
      %1238 = vmatprep.subr.bf16.mxu0 0
      %1239 = vmatpush1.bf16.msra.mxu0 %v1220
      %1240 = vmatprep.subr.bf16.mxu0 0
      %1241 = vmatpush1.bf16.msra.mxu0 %v1219
      %1242 = vmatprep.subr.bf16.mxu0 0
      %1243 = vmatpush1.bf16.msra.mxu0 %v1218
      %1244 = vmatprep.subr.bf16.mxu0 0
      %1245 = vmatpush1.bf16.msra.mxu0 %v1217
      %1246 = vmatprep.subr.bf16.mxu0 0
      %1247 = vmatpush1.bf16.msra.mxu0 %v1216
      %1248 = vmatprep.subr.bf16.mxu0 0
      %1249 = vmatpush2.bf16.msra.mxu0 0
      %1250 = vmatprep.subr.bf16.mxu0 0
      %1251 = vmatpush2.bf16.msra.mxu0 0
      %1252 = vmatprep.subr.bf16.mxu0 0
      %1253 = vmatpush2.bf16.msra.mxu0 0
      %1254 = vmatprep.subr.bf16.mxu0 0
      %1255 = vmatpush2.bf16.msra.mxu0 0
      %1256 = vmatprep.subr.bf16.mxu0 0
      %1257 = vmatpush2.bf16.msra.mxu0 0
      %1258 = vmatprep.subr.bf16.mxu0 0
      %1259 = vmatpush2.bf16.msra.mxu0 0
      %1260 = vmatprep.subr.bf16.mxu0 0
      %1261 = vmatpush2.bf16.msra.mxu0 0
      %1262 = vmatprep.subr.bf16.mxu0 0
      %1263 = vmatpush2.bf16.msra.mxu0 0
      %1264 = vmatprep.mubr.bf16.mxu0 0
      %1265 = vmatmul.mubr.bf16.gmra.mxu0 %v994
      %v1266 = vpop.f32.mrf.mxu0
      %v1267 = vadd.f32 %v1182, %v1266
      %v1268 = vpop.f32.mrf.mxu0
      %v1269 = vpop.f32.mrf.mxu0
      %v1270 = vadd.f32 %v1182, %v1269
      %v1271 = vpop.f32.mrf.mxu0
      %1272 = vmatprep.mubr.bf16.mxu0 0
      %1273 = vmatmul.mubr.bf16.gmra.mxu0 %v1004
      %v1274 = vpop.f32.mrf.mxu0
      %v1275 = vadd.f32 %v1182, %v1274
      %v1276 = vpop.f32.mrf.mxu0
      %v1277 = vpop.f32.mrf.mxu0
      %v1278 = vadd.f32 %v1182, %v1277
      %v1279 = vpop.f32.mrf.mxu0
      %1280 = vmatprep.mubr.bf16.mxu0 0
      %1281 = vmatmul.mubr.bf16.gmra.mxu0 %v1014
      %v1282 = vpop.f32.mrf.mxu0
      %v1283 = vadd.f32 %v1182, %v1282
      %v1284 = vpop.f32.mrf.mxu0
      %v1285 = vpop.f32.mrf.mxu0
      %v1286 = vadd.f32 %v1182, %v1285
      %v1287 = vpop.f32.mrf.mxu0
      %1288 = vmatprep.mubr.bf16.mxu0 0
      %1289 = vmatmul.mubr.bf16.gmra.mxu0 %v1024
      %v1290 = vpop.f32.mrf.mxu0
      %v1291 = vadd.f32 %v1182, %v1290
      %v1292 = vpop.f32.mrf.mxu0
      %v1293 = vpop.f32.mrf.mxu0
      %v1294 = vadd.f32 %v1182, %v1293
      %v1295 = vpop.f32.mrf.mxu0
      %1296 = vmatprep.mubr.bf16.mxu0 0
      %1297 = vmatmul.mubr.bf16.gmra.mxu0 %v1034
      %v1298 = vpop.f32.mrf.mxu0
      %v1299 = vadd.f32 %v1182, %v1298
      %v1300 = vpop.f32.mrf.mxu0
      %v1301 = vpop.f32.mrf.mxu0
      %v1302 = vadd.f32 %v1182, %v1301
      %v1303 = vpop.f32.mrf.mxu0
      %1304 = vmatprep.mubr.bf16.mxu0 0
      %1305 = vmatmul.mubr.bf16.gmra.mxu0 %v1044
      %v1306 = vpop.f32.mrf.mxu0
      %v1307 = vadd.f32 %v1182, %v1306
      %v1308 = vpop.f32.mrf.mxu0
      %v1309 = vpop.f32.mrf.mxu0
      %v1310 = vadd.f32 %v1182, %v1309
      %v1311 = vpop.f32.mrf.mxu0
      %1312 = vmatprep.mubr.bf16.mxu0 0
      %1313 = vmatmul.mubr.bf16.gmra.mxu0 %v1054
      %v1314 = vpop.f32.mrf.mxu0
      %v1315 = vadd.f32 %v1182, %v1314
      %v1316 = vpop.f32.mrf.mxu0
      %v1317 = vpop.f32.mrf.mxu0
      %v1318 = vadd.f32 %v1182, %v1317
      %v1319 = vpop.f32.mrf.mxu0
      %1320 = vmatprep.mubr.bf16.mxu0 0
      %1321 = vmatmul.mubr.bf16.gmra.mxu0 %v1064
      %v1322 = vpop.f32.mrf.mxu0
      %v1323 = vadd.f32 %v1182, %v1322
      %v1324 = vpop.f32.mrf.mxu0
      %v1325 = vpop.f32.mrf.mxu0
      %v1326 = vadd.f32 %v1182, %v1325
      %v1327 = vpop.f32.mrf.mxu0
      %1328 = vmatprep.mubr.bf16.mxu0 0
      %1329 = vmatmul.mubr.bf16.gmra.mxu0 %v1074
      %v1330 = vpop.f32.mrf.mxu0
      %v1331 = vadd.f32 %v1182, %v1330
      %v1332 = vpop.f32.mrf.mxu0
      %v1333 = vpop.f32.mrf.mxu0
      %v1334 = vadd.f32 %v1182, %v1333
      %v1335 = vpop.f32.mrf.mxu0
      %1336 = vmatprep.mubr.bf16.mxu0 0
      %1337 = vmatmul.mubr.bf16.gmra.mxu0 %v1084
      %v1338 = vpop.f32.mrf.mxu0
      %v1339 = vadd.f32 %v1182, %v1338
      %v1340 = vpop.f32.mrf.mxu0
      %v1341 = vpop.f32.mrf.mxu0
      %v1342 = vadd.f32 %v1182, %v1341
      %v1343 = vpop.f32.mrf.mxu0
      %1344 = vmatprep.mubr.bf16.mxu0 0
      %1345 = vmatmul.mubr.bf16.gmra.mxu0 %v1094
      %v1346 = vpop.f32.mrf.mxu0
      %v1347 = vadd.f32 %v1182, %v1346
      %v1348 = vpop.f32.mrf.mxu0
      %v1349 = vpop.f32.mrf.mxu0
      %v1350 = vadd.f32 %v1182, %v1349
      %v1351 = vpop.f32.mrf.mxu0
      %1352 = vmatprep.mubr.bf16.mxu0 0
      %1353 = vmatmul.mubr.bf16.gmra.mxu0 %v1104
      %v1354 = vpop.f32.mrf.mxu0
      %v1355 = vadd.f32 %v1182, %v1354
      %v1356 = vpop.f32.mrf.mxu0
      %v1357 = vpop.f32.mrf.mxu0
      %v1358 = vadd.f32 %v1182, %v1357
      %v1359 = vpop.f32.mrf.mxu0
      %1360 = vmatprep.mubr.bf16.mxu0 0
      %1361 = vmatmul.mubr.bf16.gmra.mxu0 %v1114
      %v1362 = vpop.f32.mrf.mxu0
      %v1363 = vadd.f32 %v1182, %v1362
      %v1364 = vpop.f32.mrf.mxu0
      %v1365 = vpop.f32.mrf.mxu0
      %v1366 = vadd.f32 %v1182, %v1365
      %v1367 = vpop.f32.mrf.mxu0
      %1368 = vmatprep.mubr.bf16.mxu0 0
      %1369 = vmatmul.mubr.bf16.gmra.mxu0 %v1124
      %v1370 = vpop.f32.mrf.mxu0
      %v1371 = vadd.f32 %v1182, %v1370
      %v1372 = vpop.f32.mrf.mxu0
      %v1373 = vpop.f32.mrf.mxu0
      %v1374 = vadd.f32 %v1182, %v1373
      %v1375 = vpop.f32.mrf.mxu0
      %1376 = vmatprep.mubr.bf16.mxu0 0
      %1377 = vmatmul.mubr.bf16.gmra.mxu0 %v1134
      %v1378 = vpop.f32.mrf.mxu0
      %v1379 = vadd.f32 %v1182, %v1378
      %v1380 = vpop.f32.mrf.mxu0
      %v1381 = vpop.f32.mrf.mxu0
      %v1382 = vadd.f32 %v1182, %v1381
      %v1383 = vpop.f32.mrf.mxu0
      %1384 = vmatprep.mubr.bf16.mxu0 0
      %1385 = vmatmul.mubr.bf16.gmra.mxu0 %v1144
      %v1386 = vpop.f32.mrf.mxu0
      %v1387 = vadd.f32 %v1182, %v1386
      %v1388 = vpop.f32.mrf.mxu0
      %v1389 = vpop.f32.mrf.mxu0
      %v1390 = vadd.f32 %v1182, %v1389
      %v1391 = vpop.f32.mrf.mxu0
      %1392 = vdwg.mxu0
      %v1393 = vmax.f32 %v1267, 0.0
      %v1394 = vmax.f32 %v1270, 0.0
      %v1395 = vmax.f32 %v1275, 0.0
      %v1396 = vmax.f32 %v1278, 0.0
      %v1397 = vmax.f32 %v1283, 0.0
      %v1398 = vmax.f32 %v1286, 0.0
      %v1399 = vmax.f32 %v1291, 0.0
      %v1400 = vmax.f32 %v1294, 0.0
      %v1401 = vmax.f32 %v1299, 0.0
      %v1402 = vmax.f32 %v1302, 0.0
      %v1403 = vmax.f32 %v1307, 0.0
      %v1404 = vmax.f32 %v1310, 0.0
      %v1405 = vmax.f32 %v1315, 0.0
      %v1406 = vmax.f32 %v1318, 0.0
      %v1407 = vmax.f32 %v1323, 0.0
      %v1408 = vmax.f32 %v1326, 0.0
      %v1409 = vmax.f32 %v1331, 0.0
      %v1410 = vmax.f32 %v1334, 0.0
      %v1411 = vmax.f32 %v1339, 0.0
      %v1412 = vmax.f32 %v1342, 0.0
      %v1413 = vmax.f32 %v1347, 0.0
      %v1414 = vmax.f32 %v1350, 0.0
      %v1415 = vmax.f32 %v1355, 0.0
      %v1416 = vmax.f32 %v1358, 0.0
      %v1417 = vmax.f32 %v1363, 0.0
      %v1418 = vmax.f32 %v1366, 0.0
      %v1419 = vmax.f32 %v1371, 0.0
      %v1420 = vmax.f32 %v1374, 0.0
      %v1421 = vmax.f32 %v1379, 0.0
      %v1422 = vmax.f32 %v1382, 0.0
      %v1423 = vmax.f32 %v1387, 0.0
      %v1424 = vmax.f32 %v1390, 0.0
      %v1425 = vpack.c.bf16 %v1394, %v1393
      %v1426 = vpack.c.bf16 %v1396, %v1395
      %v1427 = vpack.c.bf16 %v1398, %v1397
      %v1428 = vpack.c.bf16 %v1400, %v1399
      %v1429 = vpack.c.bf16 %v1402, %v1401
      %v1430 = vpack.c.bf16 %v1404, %v1403
      %v1431 = vpack.c.bf16 %v1406, %v1405
      %v1432 = vpack.c.bf16 %v1408, %v1407
      %v1433 = vpack.c.bf16 %v1410, %v1409
      %v1434 = vpack.c.bf16 %v1412, %v1411
      %v1435 = vpack.c.bf16 %v1414, %v1413
      %v1436 = vpack.c.bf16 %v1416, %v1415
      %v1437 = vpack.c.bf16 %v1418, %v1417
      %v1438 = vpack.c.bf16 %v1420, %v1419
      %v1439 = vpack.c.bf16 %v1422, %v1421
      %v1440 = vpack.c.bf16 %v1424, %v1423
      %v1457 = vunpack.c.l.b16 %v1425
      %v1458 = vunpack.c.h.b16 %v1425
      %v1459 = vunpack.c.l.b16 %v1426
      %v1460 = vunpack.c.h.b16 %v1426
      %v1461 = vunpack.c.l.b16 %v1427
      %v1462 = vunpack.c.h.b16 %v1427
      %v1463 = vunpack.c.l.b16 %v1428
      %v1464 = vunpack.c.h.b16 %v1428
      %v1465 = vunpack.c.l.b16 %v1429
      %v1466 = vunpack.c.h.b16 %v1429
      %v1467 = vunpack.c.l.b16 %v1430
      %v1468 = vunpack.c.h.b16 %v1430
      %v1469 = vunpack.c.l.b16 %v1431
      %v1470 = vunpack.c.h.b16 %v1431
      %v1471 = vunpack.c.l.b16 %v1432
      %v1472 = vunpack.c.h.b16 %v1432
      %v1473 = vunpack.c.l.b16 %v1433
      %v1474 = vunpack.c.h.b16 %v1433
      %v1475 = vunpack.c.l.b16 %v1434
      %v1476 = vunpack.c.h.b16 %v1434
      %v1477 = vunpack.c.l.b16 %v1435
      %v1478 = vunpack.c.h.b16 %v1435
      %v1479 = vunpack.c.l.b16 %v1436
      %v1480 = vunpack.c.h.b16 %v1436
      %v1481 = vunpack.c.l.b16 %v1437
      %v1482 = vunpack.c.h.b16 %v1437
      %v1483 = vunpack.c.l.b16 %v1438
      %v1484 = vunpack.c.h.b16 %v1438
      %v1485 = vunpack.c.l.b16 %v1439
      %v1486 = vunpack.c.h.b16 %v1439
      %v1487 = vunpack.c.l.b16 %v1440
      %v1488 = vunpack.c.h.b16 %v1440
      %v1489 = vpack.c.b16 %v1457, %v1457
      %v1490 = vpack.c.b16 %v1458, %v1458
      %v1491 = vpack.c.b16 %v1459, %v1459
      %v1492 = vpack.c.b16 %v1460, %v1460
      %v1493 = vpack.c.b16 %v1461, %v1461
      %v1494 = vpack.c.b16 %v1462, %v1462
      %v1495 = vpack.c.b16 %v1463, %v1463
      %v1496 = vpack.c.b16 %v1464, %v1464
      %v1497 = vpack.c.b16 %v1465, %v1465
      %v1498 = vpack.c.b16 %v1466, %v1466
      %v1499 = vpack.c.b16 %v1467, %v1467
      %v1500 = vpack.c.b16 %v1468, %v1468
      %v1501 = vpack.c.b16 %v1469, %v1469
      %v1502 = vpack.c.b16 %v1470, %v1470
      %v1503 = vpack.c.b16 %v1471, %v1471
      %v1504 = vpack.c.b16 %v1472, %v1472
      %v1505 = vpack.c.b16 %v1473, %v1473
      %v1506 = vpack.c.b16 %v1474, %v1474
      %v1507 = vpack.c.b16 %v1475, %v1475
      %v1508 = vpack.c.b16 %v1476, %v1476
      %v1509 = vpack.c.b16 %v1477, %v1477
      %v1510 = vpack.c.b16 %v1478, %v1478
      %v1511 = vpack.c.b16 %v1479, %v1479
      %v1512 = vpack.c.b16 %v1480, %v1480
      %v1513 = vpack.c.b16 %v1481, %v1481
      %v1514 = vpack.c.b16 %v1482, %v1482
      %v1515 = vpack.c.b16 %v1483, %v1483
      %v1516 = vpack.c.b16 %v1484, %v1484
      %v1517 = vpack.c.b16 %v1485, %v1485
      %v1518 = vpack.c.b16 %v1486, %v1486
      %v1519 = vpack.c.b16 %v1487, %v1487
      %v1520 = vpack.c.b16 %v1488, %v1488
      %1553 = vst [vmem:[%s170] sm:$0xf] %v1489
      %1554 = vst [vmem:[%s170 + $0x4] sm:$0xf] %v1490
      %1555 = vst [vmem:[%s170 + $0x8] sm:$0xf] %v1491
      %1556 = vst [vmem:[%s170 + $0xc] sm:$0xf] %v1492
      %1557 = vst [vmem:[%s170 + $0x10] sm:$0xf] %v1493
      %1558 = vst [vmem:[%s170 + $0x14] sm:$0xf] %v1494
      %1559 = vst [vmem:[%s170 + $0x18] sm:$0xf] %v1495
      %1560 = vst [vmem:[%s170 + $0x1c] sm:$0xf] %v1496
      %1561 = vst [vmem:[%s170 + $0x20] sm:$0xf] %v1497
      %1562 = vst [vmem:[%s170 + $0x24] sm:$0xf] %v1498
      %1563 = vst [vmem:[%s170 + $0x28] sm:$0xf] %v1499
      %1564 = vst [vmem:[%s170 + $0x2c] sm:$0xf] %v1500
      %1565 = vst [vmem:[%s170 + $0x30] sm:$0xf] %v1501
      %1566 = vst [vmem:[%s170 + $0x34] sm:$0xf] %v1502
      %1567 = vst [vmem:[%s170 + $0x38] sm:$0xf] %v1503
      %1568 = vst [vmem:[%s170 + $0x3c] sm:$0xf] %v1504
      %1569 = vst [vmem:[%s170 + $0x40] sm:$0xf] %v1505
      %1570 = vst [vmem:[%s170 + $0x44] sm:$0xf] %v1506
      %1571 = vst [vmem:[%s170 + $0x48] sm:$0xf] %v1507
      %1572 = vst [vmem:[%s170 + $0x4c] sm:$0xf] %v1508
      %1573 = vst [vmem:[%s170 + $0x50] sm:$0xf] %v1509
      %1574 = vst [vmem:[%s170 + $0x54] sm:$0xf] %v1510
      %1575 = vst [vmem:[%s170 + $0x58] sm:$0xf] %v1511
      %1576 = vst [vmem:[%s170 + $0x5c] sm:$0xf] %v1512
      %1577 = vst [vmem:[%s170 + $0x60] sm:$0xf] %v1513
      %1578 = vst [vmem:[%s170 + $0x64] sm:$0xf] %v1514
      %1579 = vst [vmem:[%s170 + $0x68] sm:$0xf] %v1515
      %1580 = vst [vmem:[%s170 + $0x6c] sm:$0xf] %v1516
      %1581 = vst [vmem:[%s170 + $0x70] sm:$0xf] %v1517
      %1582 = vst [vmem:[%s170 + $0x74] sm:$0xf] %v1518
      %1583 = vst [vmem:[%s170 + $0x78] sm:$0xf] %v1519
      %1584 = vst [vmem:[%s170 + $0x7c] sm:$0xf] %v1520
      %p1585 = scmp.lt.s32.totalorder %s14, 1
      %s1586 = scalar_select %p1585, %s14, 1
      %s1587 = smul.addr %s1586, 32
      %s1588 = smul.addr %s1587, 4
      %s1589 = scalar_lea.vmem %s3, %s1588
      // Predicated region
      $region33: #{srnet_forward.10} parent=31 // pred_check
        %p1590 = pneg %p100
      $region34: #{srnet_forward.10} parent=31 // pred_check_branch
        %1592 = sbr.rel (%p1590) target = $region36
      $region35: #{srnet_forward.10} parent=31 // pred_region
        _
      $region36: #{srnet_forward.10} parent=31 // pred_fallthru
        _
    $region32: #{srnet_forward.10} parent=5 // pred_fallthru
      _
    %p1593 = scmp.le.s32.totalorder 2, %s9
    // Predicated region
    $region37: #{srnet_forward.10} parent=5 // pred_check
      %p1594 = pneg %p1593
    $region38: #{srnet_forward.10} parent=5 // pred_check_branch
      %1596 = sbr.rel (%p1594) target = $region40
    $region39: #{srnet_forward.10} parent=5 // pred_region
      %s1597 = ssub.s32 %s9, 2
      // Predicated region
      $region41: #{srnet_forward.10} parent=39 // pred_check
        %p1598 = pneg %p106
      $region42: #{srnet_forward.10} parent=39 // pred_check_branch
        %1600 = sbr.rel (%p1598) target = $region44
      $region43: #{srnet_forward.10} parent=39 // pred_region
        %p1601 = scmp.lt.s32.totalorder %s15, 1
        %s1602 = scalar_select %p1601, %s15, 1
        %s1603 = smul.addr %s1602, 32
        %s1604 = smul.addr %s1603, 4
        %s1605 = scalar_lea.vmem %s3, %s1604
      $region44: #{srnet_forward.10} parent=39 // pred_fallthru
        _
    $region40: #{srnet_forward.10} parent=5 // pred_fallthru
      _
  $region6: #{srnet_forward.10} parent=0 // loop_footer
    %s13 = sadd.s32 1, %s9
  $region7: #{srnet_forward.10} parent=0 // loop_footer_branch
    %8 = sbr.rel target = $region3
  $region8: #{srnet_forward.10} parent=0 // loop_exit
    _

// kernel: srnet_forward.11
$region0: #{srnet_forward.11}
  #allocation0 [shape = 'u32[]', space=smem, size = 0x4, offset = 0x4, fixed_abs, tag = 'smem constant byte address 0x4 - core index']
  #allocation1 [shape = 'u32[144,128]{1,0:T(1,128)}', space=vmem, size = 0x12000, scoped, tag = 'internal scratch']
  %s0 = inlined_call_operand.vmem [shape: bf16[2,34,34,32], index: 0, kind: input, shape index: {}]
  %s1 = inlined_call_operand.vmem [shape: bf16[288,3], index: 1, kind: input, shape index: {}]
  %s2 = inlined_call_operand.vmem [shape: f32[1,3], index: 2, kind: input, shape index: {}]
  %s3 = inlined_call_operand.vmem [shape: f32[2,32,32,3], index: 3, kind: input, shape index: {}]
  %s4 = inlined_call_operand.vmem [shape: f32[2,32,32,3], index: 4, kind: output, shape index: {}]
  %s5 = sld [smem:[#allocation0]]
  $region49: #{srnet_forward.11} parent=0
    _
  %s7 = ssub.s32 1, %s5
  %s8 = scalar_select 0, %s7, %s5
  loop: start=0, step=1, limit=4
  $region2: #{srnet_forward.11} parent=0 // loop_pre_header
    _
  $region3: #{srnet_forward.11} parent=0 // loop_header
    %s10 = sphi 0, %s14
    %p11 = scmp.ge.s32.totalorder %s10, 4
    %s20 = sphi 0, %s22
    %s23 = sphi 0, %s20
    %s24 = sphi 0, %s23
    %s40 = sphi 0, %s24
    %s44 = sphi 0, %s44
    %s46 = sphi 0, %s44
    %s47 = sphi 0, %s46
    %s61 = sphi 0, %s47
    %s65 = sphi 0, %s65
    %s67 = sphi 0, %s65
    %s68 = sphi 0, %s67
    %s82 = sphi 0, %s68
    %s88 = sphi 0, %s90
    %s91 = sphi 0, %s88
    %s92 = sphi 0, %s91
    %s108 = sphi 0, %s92
    %s114 = sphi 0, %s116
    %s117 = sphi 0, %s114
    %s118 = sphi 0, %s117
    %s134 = sphi 0, %s118
  $region4: #{srnet_forward.11} parent=0 // loop_header_branch
    %13 = sbr.rel (%p11) target = $region8
  $region5: #{srnet_forward.11} parent=0 // loop_body
    %s15 = ssub.s32 %s10, 1
    %s16 = ssub.s32 %s10, 2
    %s17 = sadd.s32 %s10, 1
    %s18 = ssub.s32 %s10, %s17
    %p19 = scmp.eq.s32.totalorder %s18, 0
    %s21 = sadd.s32 %s20, 1
    %s22 = scalar_select %p19, %s20, %s21
    %p25 = pneg %p19
    %p26 = scmp.eq.s32.totalorder %s10, 1
    %p27 = por %p25, %p26
    %p28 = scmp.ne.s32.totalorder %s20, %s23
    %p29 = scmp.eq.s32.totalorder %s10, 0
    %p30 = por %p28, %p29
    %p31 = scmp.ne.s32.totalorder %s20, %s23
    %p32 = scmp.eq.s32.totalorder %s15, 1
    %p33 = por %p31, %p32
    %p34 = scmp.ne.s32.totalorder %s23, %s24
    %p35 = scmp.eq.s32.totalorder %s15, 0
    %p36 = por %p34, %p35
    %p37 = scmp.ne.s32.totalorder %s23, %s24
    %p38 = scmp.eq.s32.totalorder %s16, 1
    %p39 = por %p37, %p38
    %p41 = scmp.ne.s32.totalorder %s24, %s40
    %p42 = scmp.eq.s32.totalorder %s16, 0
    %p43 = por %p41, %p42
    %s45 = sadd.s32 %s44, 1
    %p48 = scmp.eq.s32.totalorder %s10, 1
    %p49 = scmp.ne.s32.totalorder %s44, %s46
    %p50 = scmp.eq.s32.totalorder %s10, 0
    %p51 = por %p49, %p50
    %p52 = scmp.ne.s32.totalorder %s44, %s46
    %p53 = scmp.eq.s32.totalorder %s15, 1
    %p54 = por %p52, %p53
    %p55 = scmp.ne.s32.totalorder %s46, %s47
    %p56 = scmp.eq.s32.totalorder %s15, 0
    %p57 = por %p55, %p56
    %p58 = scmp.ne.s32.totalorder %s46, %s47
    %p59 = scmp.eq.s32.totalorder %s16, 1
    %p60 = por %p58, %p59
    %p62 = scmp.ne.s32.totalorder %s47, %s61
    %p63 = scmp.eq.s32.totalorder %s16, 0
    %p64 = por %p62, %p63
    %s66 = sadd.s32 %s65, 1
    %p69 = scmp.eq.s32.totalorder %s10, 1
    %p70 = scmp.ne.s32.totalorder %s65, %s67
    %p71 = scmp.eq.s32.totalorder %s10, 0
    %p72 = por %p70, %p71
    %p73 = scmp.ne.s32.totalorder %s65, %s67
    %p74 = scmp.eq.s32.totalorder %s15, 1
    %p75 = por %p73, %p74
    %p76 = scmp.ne.s32.totalorder %s67, %s68
    %p77 = scmp.eq.s32.totalorder %s15, 0
    %p78 = por %p76, %p77
    %p79 = scmp.ne.s32.totalorder %s67, %s68
    %p80 = scmp.eq.s32.totalorder %s16, 1
    %p81 = por %p79, %p80
    %p83 = scmp.ne.s32.totalorder %s68, %s82
    %p84 = scmp.eq.s32.totalorder %s16, 0
    %p85 = por %p83, %p84
    %s86 = ssub.s32 %s10, %s17
    %p87 = scmp.eq.s32.totalorder %s86, 0
    %s89 = sadd.s32 %s88, 1
    %s90 = scalar_select %p87, %s88, %s89
    %p93 = pneg %p87
    %p94 = scmp.eq.s32.totalorder %s10, 1
    %p95 = por %p93, %p94
    %p96 = scmp.ne.s32.totalorder %s88, %s91
    %p97 = scmp.eq.s32.totalorder %s10, 0
    %p98 = por %p96, %p97
    %p99 = scmp.ne.s32.totalorder %s88, %s91
    %p100 = scmp.eq.s32.totalorder %s15, 1
    %p101 = por %p99, %p100
    %p102 = scmp.ne.s32.totalorder %s91, %s92
    %p103 = scmp.eq.s32.totalorder %s15, 0
    %p104 = por %p102, %p103
    %p105 = scmp.ne.s32.totalorder %s91, %s92
    %p106 = scmp.eq.s32.totalorder %s16, 1
    %p107 = por %p105, %p106
    %p109 = scmp.ne.s32.totalorder %s92, %s108
    %p110 = scmp.eq.s32.totalorder %s16, 0
    %p111 = por %p109, %p110
    %s112 = ssub.s32 %s10, %s17
    %p113 = scmp.eq.s32.totalorder %s112, 0
    %s115 = sadd.s32 %s114, 1
    %s116 = scalar_select %p113, %s114, %s115
    %p119 = pneg %p113
    %p120 = scmp.eq.s32.totalorder %s10, 1
    %p121 = por %p119, %p120
    %p122 = scmp.ne.s32.totalorder %s114, %s117
    %p123 = scmp.eq.s32.totalorder %s10, 0
    %p124 = por %p122, %p123
    %p125 = scmp.ne.s32.totalorder %s114, %s117
    %p126 = scmp.eq.s32.totalorder %s15, 1
    %p127 = por %p125, %p126
    %p128 = scmp.ne.s32.totalorder %s117, %s118
    %p129 = scmp.eq.s32.totalorder %s15, 0
    %p130 = por %p128, %p129
    %p131 = scmp.ne.s32.totalorder %s117, %s118
    %p132 = scmp.eq.s32.totalorder %s16, 1
    %p133 = por %p131, %p132
    %p135 = scmp.ne.s32.totalorder %s118, %s134
    %p136 = scmp.eq.s32.totalorder %s16, 0
    %p137 = por %p135, %p136
    %p138 = scmp.le.s32.totalorder 1, %s10
    %p139 = scmp.lt.s32.totalorder %s10, 3
    %p140 = pnand %p138, %p139
    %p141 = pneg %p140
    // Predicated region
    $region9: #{srnet_forward.11} parent=5 // pred_check
      _
    $region10: #{srnet_forward.11} parent=5 // pred_check_branch
      %143 = sbr.rel (%p140) target = $region12
    $region11: #{srnet_forward.11} parent=5 // pred_region
      %s144 = ssub.s32 %s10, 1
      // Predicated region
      $region13: #{srnet_forward.11} parent=11 // pred_check
        %p145 = pneg %p57
      $region14: #{srnet_forward.11} parent=11 // pred_check_branch
        %147 = sbr.rel (%p145) target = $region16
      $region15: #{srnet_forward.11} parent=11 // pred_region
        _
      $region16: #{srnet_forward.11} parent=11 // pred_fallthru
        _
      // Predicated region
      $region17: #{srnet_forward.11} parent=11 // pred_check
        %p148 = pneg %p78
      $region18: #{srnet_forward.11} parent=11 // pred_check_branch
        %150 = sbr.rel (%p148) target = $region20
      $region19: #{srnet_forward.11} parent=11 // pred_region
        _
      $region20: #{srnet_forward.11} parent=11 // pred_fallthru
        _
    $region12: #{srnet_forward.11} parent=5 // pred_fallthru
      _
    %p151 = scmp.lt.s32.totalorder %s10, 2
    // Predicated region
    $region21: #{srnet_forward.11} parent=5 // pred_check
      %p152 = pneg %p151
    $region22: #{srnet_forward.11} parent=5 // pred_check_branch
      %154 = sbr.rel (%p152) target = $region24
    $region23: #{srnet_forward.11} parent=5 // pred_region
      // Predicated region
      $region25: #{srnet_forward.11} parent=23 // pred_check
        %p155 = pneg %p30
      $region26: #{srnet_forward.11} parent=23 // pred_check_branch
        %157 = sbr.rel (%p155) target = $region28
      $region27: #{srnet_forward.11} parent=23 // pred_region
        %p158 = scmp.lt.s32.totalorder %s10, 1
        %s159 = scalar_select %p158, %s10, 1
        %s160 = smul.addr %s159, 170
        %s161 = smul.addr %s160, 4
        %s162 = scalar_lea.vmem %s0, %s161
      $region28: #{srnet_forward.11} parent=23 // pred_fallthru
        _
      // Predicated region
      $region29: #{srnet_forward.11} parent=23 // pred_check
        %p163 = pneg %p98
      $region30: #{srnet_forward.11} parent=23 // pred_check_branch
        %165 = sbr.rel (%p163) target = $region32
      $region31: #{srnet_forward.11} parent=23 // pred_region
        %p166 = scmp.lt.s32.totalorder %s10, 1
        %s167 = scalar_select %p166, %s10, 1
        %s168 = smul.addr %s167, 128
        %s169 = smul.addr %s168, 8
        %s170 = scalar_lea.vmem %s3, %s169
      $region32: #{srnet_forward.11} parent=23 // pred_fallthru
        _
    $region24: #{srnet_forward.11} parent=5 // pred_fallthru
      _
    %p171 = scmp.le.s32.totalorder 1, %s10
    %p172 = scmp.lt.s32.totalorder %s10, 3
    %p173 = pnand %p171, %p172
    %p174 = pneg %p173
    // Predicated region
    $region33: #{srnet_forward.11} parent=5 // pred_check
      _
    $region34: #{srnet_forward.11} parent=5 // pred_check_branch
      %176 = sbr.rel (%p173) target = $region36
    $region35: #{srnet_forward.11} parent=5 // pred_region
      %s177 = ssub.s32 %s10, 1
      %p178 = scmp.lt.s32.totalorder %s15, 1
      %s179 = scalar_select %p178, %s15, 1
      %s180 = smul.addr %s179, 170
      %s181 = smul.addr %s180, 4
      %s182 = scalar_lea.vmem %s0, %s181
      %p183 = pneg %p36
      %p184 = pneg %p33
      %p185 = pneg %p57
      %p186 = pneg %p54
      %p187 = pneg %p78
      %p188 = pneg %p75
      %p189 = scmp.lt.s32.totalorder %s15, 1
      %s190 = scalar_select %p189, %s15, 1
      %s191 = smul.addr %s190, 128
      %s192 = smul.addr %s191, 8
      %s193 = scalar_lea.vmem %s3, %s192
      %p194 = pneg %p104
      %p195 = pneg %p101
      %p196 = pneg %p130
      %p197 = pneg %p127
      %p198 = scmp.lt.s32.totalorder %s15, 1
      %s199 = scalar_select %p198, %s15, 1
      %s200 = smul.addr %s199, 128
      %s201 = smul.addr %s200, 8
      %s202 = scalar_lea.vmem %s4, %s201
      %p203 = scmp.lt.s32.totalorder %s15, 1
      %s204 = scalar_select %p203, %s15, 1
      %s205 = smul.addr %s204, 170
      %s206 = smul.addr %s205, 4
      %s207 = scalar_lea.vmem %s0, %s206
      %p208 = scmp.lt.s32.totalorder %s15, 1
      %s209 = scalar_select %p208, %s15, 1
      %s210 = smul.addr %s209, 128
      %s211 = smul.addr %s210, 8
      %s212 = scalar_lea.vmem %s3, %s211
      %p213 = scmp.lt.s32.totalorder %s15, 1
      %s214 = scalar_select %p213, %s15, 1
      %s215 = smul.addr %s214, 128
      %s216 = smul.addr %s215, 8
      %s217 = scalar_lea.vmem %s4, %s216
      %v219 = vld [vmem:[%s207] sm:$0xf]
      %v220 = vld [vmem:[%s207 + $0x4] sm:$0xf]
      %v221 = vld [vmem:[%s207 + $0x8] sm:$0xf]
      %v222 = vld [vmem:[%s207 + $0xc] sm:$0xf]
      %v223 = vld [vmem:[%s207 + $0x10] sm:$0x1]
      %v224 = vld [vmem:[%s207 + $0x14] sm:$0xf]
      %v225 = vld [vmem:[%s207 + $0x18] sm:$0xf]
      %v226 = vld [vmem:[%s207 + $0x1c] sm:$0xf]
      %v227 = vld [vmem:[%s207 + $0x20] sm:$0xf]
      %v228 = vld [vmem:[%s207 + $0x24] sm:$0x1]
      %v229 = vld [vmem:[%s207 + $0x28] sm:$0xf]
      %v230 = vld [vmem:[%s207 + $0x2c] sm:$0xf]
      %v231 = vld [vmem:[%s207 + $0x30] sm:$0xf]
      %v232 = vld [vmem:[%s207 + $0x34] sm:$0xf]
      %v233 = vld [vmem:[%s207 + $0x38] sm:$0x1]
      %v234 = vld [vmem:[%s207 + $0x3c] sm:$0xf]
      %v235 = vld [vmem:[%s207 + $0x40] sm:$0xf]
      %v236 = vld [vmem:[%s207 + $0x44] sm:$0xf]
      %v237 = vld [vmem:[%s207 + $0x48] sm:$0xf]
      %v238 = vld [vmem:[%s207 + $0x4c] sm:$0x1]
      %v239 = vld [vmem:[%s207 + $0x50] sm:$0xf]
      %v240 = vld [vmem:[%s207 + $0x54] sm:$0xf]
      %v241 = vld [vmem:[%s207 + $0x58] sm:$0xf]
      %v242 = vld [vmem:[%s207 + $0x5c] sm:$0xf]
      %v243 = vld [vmem:[%s207 + $0x60] sm:$0x1]
      %v244 = vld [vmem:[%s207 + $0x64] sm:$0xf]
      %v245 = vld [vmem:[%s207 + $0x68] sm:$0xf]
      %v246 = vld [vmem:[%s207 + $0x6c] sm:$0xf]
      %v247 = vld [vmem:[%s207 + $0x70] sm:$0xf]
      %v248 = vld [vmem:[%s207 + $0x74] sm:$0x1]
      %v249 = vld [vmem:[%s207 + $0x78] sm:$0xf]
      %v250 = vld [vmem:[%s207 + $0x7c] sm:$0xf]
      %v251 = vld [vmem:[%s207 + $0x80] sm:$0xf]
      %v252 = vld [vmem:[%s207 + $0x84] sm:$0xf]
      %v253 = vld [vmem:[%s207 + $0x88] sm:$0x1]
      %v254 = vld [vmem:[%s207 + $0x8c] sm:$0xf]
      %v255 = vld [vmem:[%s207 + $0x90] sm:$0xf]
      %v256 = vld [vmem:[%s207 + $0x94] sm:$0xf]
      %v257 = vld [vmem:[%s207 + $0x98] sm:$0xf]
      %v258 = vld [vmem:[%s207 + $0x9c] sm:$0x1]
      %v259 = vld [vmem:[%s207 + $0xa0] sm:$0xf]
      %v260 = vld [vmem:[%s207 + $0xa4] sm:$0xf]
      %v261 = vld [vmem:[%s207 + $0xa8] sm:$0xf]
      %v262 = vld [vmem:[%s207 + $0xac] sm:$0xf]
      %v263 = vld [vmem:[%s207 + $0xb0] sm:$0x1]
      %v264 = vld [vmem:[%s207 + $0xb4] sm:$0xf]
      %v265 = vld [vmem:[%s207 + $0xb8] sm:$0xf]
      %v266 = vld [vmem:[%s207 + $0xbc] sm:$0xf]
      %v267 = vld [vmem:[%s207 + $0xc0] sm:$0xf]
      %v268 = vld [vmem:[%s207 + $0xc4] sm:$0x1]
      %v269 = vld [vmem:[%s207 + $0xc8] sm:$0xf]
      %v270 = vld [vmem:[%s207 + $0xcc] sm:$0xf]
      %v271 = vld [vmem:[%s207 + $0xd0] sm:$0xf]
      %v272 = vld [vmem:[%s207 + $0xd4] sm:$0xf]
      %v273 = vld [vmem:[%s207 + $0xd8] sm:$0x1]
      %v274 = vld [vmem:[%s207 + $0xdc] sm:$0xf]
      %v275 = vld [vmem:[%s207 + $0xe0] sm:$0xf]
      %v276 = vld [vmem:[%s207 + $0xe4] sm:$0xf]
      %v277 = vld [vmem:[%s207 + $0xe8] sm:$0xf]
      %v278 = vld [vmem:[%s207 + $0xec] sm:$0x1]
      %v279 = vld [vmem:[%s207 + $0xf0] sm:$0xf]
      %v280 = vld [vmem:[%s207 + $0xf4] sm:$0xf]
      %v281 = vld [vmem:[%s207 + $0xf8] sm:$0xf]
      %v282 = vld [vmem:[%s207 + $0xfc] sm:$0xf]
      %v283 = vld [vmem:[%s207 + $0x100] sm:$0x1]
      %v284 = vld [vmem:[%s207 + $0x104] sm:$0xf]
      %v285 = vld [vmem:[%s207 + $0x108] sm:$0xf]
      %v286 = vld [vmem:[%s207 + $0x10c] sm:$0xf]
      %v287 = vld [vmem:[%s207 + $0x110] sm:$0xf]
      %v288 = vld [vmem:[%s207 + $0x114] sm:$0x1]
      %v289 = vld [vmem:[%s207 + $0x118] sm:$0xf]
      %v290 = vld [vmem:[%s207 + $0x11c] sm:$0xf]
      %v291 = vld [vmem:[%s207 + $0x120] sm:$0xf]
      %v292 = vld [vmem:[%s207 + $0x124] sm:$0xf]
      %v293 = vld [vmem:[%s207 + $0x128] sm:$0x1]
      %v294 = vld [vmem:[%s207 + $0x12c] sm:$0xf]
      %v295 = vld [vmem:[%s207 + $0x130] sm:$0xf]
      %v296 = vld [vmem:[%s207 + $0x134] sm:$0xf]
      %v297 = vld [vmem:[%s207 + $0x138] sm:$0xf]
      %v298 = vld [vmem:[%s207 + $0x13c] sm:$0x1]
      %v299 = vld [vmem:[%s207 + $0x140] sm:$0xf]
      %v300 = vld [vmem:[%s207 + $0x144] sm:$0xf]
      %v301 = vld [vmem:[%s207 + $0x148] sm:$0xf]
      %v302 = vld [vmem:[%s207 + $0x14c] sm:$0xf]
      %v303 = vld [vmem:[%s207 + $0x150] sm:$0x1]
      %v304 = vld [vmem:[%s207 + $0x154] sm:$0xf]
      %v305 = vld [vmem:[%s207 + $0x158] sm:$0xf]
      %v306 = vld [vmem:[%s207 + $0x15c] sm:$0xf]
      %v307 = vld [vmem:[%s207 + $0x160] sm:$0xf]
      %v308 = vld [vmem:[%s207 + $0x164] sm:$0x1]
      %v309 = vld [vmem:[%s207 + $0x168] sm:$0xf]
      %v310 = vld [vmem:[%s207 + $0x16c] sm:$0xf]
      %v311 = vld [vmem:[%s207 + $0x170] sm:$0xf]
      %v312 = vld [vmem:[%s207 + $0x174] sm:$0xf]
      %v313 = vld [vmem:[%s207 + $0x178] sm:$0x1]
      %v314 = vld [vmem:[%s207 + $0x17c] sm:$0xf]
      %v315 = vld [vmem:[%s207 + $0x180] sm:$0xf]
      %v316 = vld [vmem:[%s207 + $0x184] sm:$0xf]
      %v317 = vld [vmem:[%s207 + $0x188] sm:$0xf]
      %v318 = vld [vmem:[%s207 + $0x18c] sm:$0x1]
      %v319 = vld [vmem:[%s207 + $0x190] sm:$0xf]
      %v320 = vld [vmem:[%s207 + $0x194] sm:$0xf]
      %v321 = vld [vmem:[%s207 + $0x198] sm:$0xf]
      %v322 = vld [vmem:[%s207 + $0x19c] sm:$0xf]
      %v323 = vld [vmem:[%s207 + $0x1a0] sm:$0x1]
      %v324 = vld [vmem:[%s207 + $0x1a4] sm:$0xf]
      %v325 = vld [vmem:[%s207 + $0x1a8] sm:$0xf]
      %v326 = vld [vmem:[%s207 + $0x1ac] sm:$0xf]
      %v327 = vld [vmem:[%s207 + $0x1b0] sm:$0xf]
      %v328 = vld [vmem:[%s207 + $0x1b4] sm:$0x1]
      %v329 = vld [vmem:[%s207 + $0x1b8] sm:$0xf]
      %v330 = vld [vmem:[%s207 + $0x1bc] sm:$0xf]
      %v331 = vld [vmem:[%s207 + $0x1c0] sm:$0xf]
      %v332 = vld [vmem:[%s207 + $0x1c4] sm:$0xf]
      %v333 = vld [vmem:[%s207 + $0x1c8] sm:$0x1]
      %v334 = vld [vmem:[%s207 + $0x1cc] sm:$0xf]
      %v335 = vld [vmem:[%s207 + $0x1d0] sm:$0xf]
      %v336 = vld [vmem:[%s207 + $0x1d4] sm:$0xf]
      %v337 = vld [vmem:[%s207 + $0x1d8] sm:$0xf]
      %v338 = vld [vmem:[%s207 + $0x1dc] sm:$0x1]
      %v339 = vld [vmem:[%s207 + $0x1e0] sm:$0xf]
      %v340 = vld [vmem:[%s207 + $0x1e4] sm:$0xf]
      %v341 = vld [vmem:[%s207 + $0x1e8] sm:$0xf]
      %v342 = vld [vmem:[%s207 + $0x1ec] sm:$0xf]
      %v343 = vld [vmem:[%s207 + $0x1f0] sm:$0x1]
      %v344 = vld [vmem:[%s207 + $0x1f4] sm:$0xf]
      %v345 = vld [vmem:[%s207 + $0x1f8] sm:$0xf]
      %v346 = vld [vmem:[%s207 + $0x1fc] sm:$0xf]
      %v347 = vld [vmem:[%s207 + $0x200] sm:$0xf]
      %v348 = vld [vmem:[%s207 + $0x204] sm:$0x1]
      %v349 = vld [vmem:[%s207 + $0x208] sm:$0xf]
      %v350 = vld [vmem:[%s207 + $0x20c] sm:$0xf]
      %v351 = vld [vmem:[%s207 + $0x210] sm:$0xf]
      %v352 = vld [vmem:[%s207 + $0x214] sm:$0xf]
      %v353 = vld [vmem:[%s207 + $0x218] sm:$0x1]
      %v354 = vld [vmem:[%s207 + $0x21c] sm:$0xf]
      %v355 = vld [vmem:[%s207 + $0x220] sm:$0xf]
      %v356 = vld [vmem:[%s207 + $0x224] sm:$0xf]
      %v357 = vld [vmem:[%s207 + $0x228] sm:$0xf]
      %v358 = vld [vmem:[%s207 + $0x22c] sm:$0x1]
      %v359 = vld [vmem:[%s207 + $0x230] sm:$0xf]
      %v360 = vld [vmem:[%s207 + $0x234] sm:$0xf]
      %v361 = vld [vmem:[%s207 + $0x238] sm:$0xf]
      %v362 = vld [vmem:[%s207 + $0x23c] sm:$0xf]
      %v363 = vld [vmem:[%s207 + $0x240] sm:$0x1]
      %v364 = vld [vmem:[%s207 + $0x244] sm:$0xf]
      %v365 = vld [vmem:[%s207 + $0x248] sm:$0xf]
      %v366 = vld [vmem:[%s207 + $0x24c] sm:$0xf]
      %v367 = vld [vmem:[%s207 + $0x250] sm:$0xf]
      %v368 = vld [vmem:[%s207 + $0x254] sm:$0x1]
      %v369 = vld [vmem:[%s207 + $0x258] sm:$0xf]
      %v370 = vld [vmem:[%s207 + $0x25c] sm:$0xf]
      %v371 = vld [vmem:[%s207 + $0x260] sm:$0xf]
      %v372 = vld [vmem:[%s207 + $0x264] sm:$0xf]
      %v373 = vld [vmem:[%s207 + $0x268] sm:$0x1]
      %v374 = vld [vmem:[%s207 + $0x26c] sm:$0xf]
      %v375 = vld [vmem:[%s207 + $0x270] sm:$0xf]
      %v376 = vld [vmem:[%s207 + $0x274] sm:$0xf]
      %v377 = vld [vmem:[%s207 + $0x278] sm:$0xf]
      %v378 = vld [vmem:[%s207 + $0x27c] sm:$0x1]
      %v379 = vld [vmem:[%s207 + $0x280] sm:$0xf]
      %v380 = vld [vmem:[%s207 + $0x284] sm:$0xf]
      %v381 = vld [vmem:[%s207 + $0x288] sm:$0xf]
      %v382 = vld [vmem:[%s207 + $0x28c] sm:$0xf]
      %v383 = vld [vmem:[%s207 + $0x290] sm:$0x1]
      %v384 = vld [vmem:[%s207 + $0x294] sm:$0xf]
      %v385 = vld [vmem:[%s207 + $0x298] sm:$0xf]
      %v386 = vld [vmem:[%s207 + $0x29c] sm:$0xf]
      %v387 = vld [vmem:[%s207 + $0x2a0] sm:$0xf]
      %v388 = vld [vmem:[%s207 + $0x2a4] sm:$0x1]
      %v517 = vunpack.c.l.b16 %v219
      %v518 = vunpack.c.l.b16 %v220
      %v519 = vunpack.c.l.b16 %v221
      %v520 = vunpack.c.l.b16 %v222
      %v521 = vunpack.c.l.b16 %v224
      %v522 = vunpack.c.l.b16 %v225
      %v523 = vunpack.c.l.b16 %v226
      %v524 = vunpack.c.l.b16 %v227
      %v525 = vunpack.c.l.b16 %v229
      %v526 = vunpack.c.l.b16 %v230
      %v527 = vunpack.c.l.b16 %v231
      %v528 = vunpack.c.l.b16 %v232
      %v529 = vunpack.c.l.b16 %v234
      %v530 = vunpack.c.l.b16 %v235
      %v531 = vunpack.c.l.b16 %v236
      %v532 = vunpack.c.l.b16 %v237
      %v533 = vunpack.c.l.b16 %v239
      %v534 = vunpack.c.l.b16 %v240
      %v535 = vunpack.c.l.b16 %v241
      %v536 = vunpack.c.l.b16 %v242
      %v537 = vunpack.c.l.b16 %v244
      %v538 = vunpack.c.l.b16 %v245
      %v539 = vunpack.c.l.b16 %v246
      %v540 = vunpack.c.l.b16 %v247
      %v541 = vunpack.c.l.b16 %v249
      %v542 = vunpack.c.l.b16 %v250
      %v543 = vunpack.c.l.b16 %v251
      %v544 = vunpack.c.l.b16 %v252
      %v545 = vunpack.c.l.b16 %v254
      %v546 = vunpack.c.l.b16 %v255
      %v547 = vunpack.c.l.b16 %v256
      %v548 = vunpack.c.l.b16 %v257
      %v549 = vunpack.c.l.b16 %v259
      %v550 = vunpack.c.l.b16 %v260
      %v551 = vunpack.c.l.b16 %v261
      %v552 = vunpack.c.l.b16 %v262
      %v553 = vunpack.c.l.b16 %v264
      %v554 = vunpack.c.l.b16 %v265
      %v555 = vunpack.c.l.b16 %v266
      %v556 = vunpack.c.l.b16 %v267
      %v557 = vunpack.c.l.b16 %v269
      %v558 = vunpack.c.l.b16 %v270
      %v559 = vunpack.c.l.b16 %v271
      %v560 = vunpack.c.l.b16 %v272
      %v561 = vunpack.c.l.b16 %v274
      %v562 = vunpack.c.l.b16 %v275
      %v563 = vunpack.c.l.b16 %v276
      %v564 = vunpack.c.l.b16 %v277
      %v565 = vunpack.c.l.b16 %v279
      %v566 = vunpack.c.l.b16 %v280
      %v567 = vunpack.c.l.b16 %v281
      %v568 = vunpack.c.l.b16 %v282
      %v569 = vunpack.c.l.b16 %v284
      %v570 = vunpack.c.l.b16 %v285
      %v571 = vunpack.c.l.b16 %v286
      %v572 = vunpack.c.l.b16 %v287
      %v573 = vunpack.c.l.b16 %v289
      %v574 = vunpack.c.l.b16 %v290
      %v575 = vunpack.c.l.b16 %v291
      %v576 = vunpack.c.l.b16 %v292
      %v577 = vunpack.c.l.b16 %v294
      %v578 = vunpack.c.l.b16 %v295
      %v579 = vunpack.c.l.b16 %v296
      %v580 = vunpack.c.l.b16 %v297
      %v581 = vunpack.c.l.b16 %v299
      %v582 = vunpack.c.l.b16 %v300
      %v583 = vunpack.c.l.b16 %v301
      %v584 = vunpack.c.l.b16 %v302
      %v585 = vunpack.c.l.b16 %v304
      %v586 = vunpack.c.l.b16 %v305
      %v587 = vunpack.c.l.b16 %v306
      %v588 = vunpack.c.l.b16 %v307
      %v589 = vunpack.c.l.b16 %v309
      %v590 = vunpack.c.l.b16 %v310
      %v591 = vunpack.c.l.b16 %v311
      %v592 = vunpack.c.l.b16 %v312
      %v593 = vunpack.c.l.b16 %v314
      %v594 = vunpack.c.l.b16 %v315
      %v595 = vunpack.c.l.b16 %v316
      %v596 = vunpack.c.l.b16 %v317
      %v597 = vunpack.c.l.b16 %v319
      %v598 = vunpack.c.l.b16 %v320
      %v599 = vunpack.c.l.b16 %v321
      %v600 = vunpack.c.l.b16 %v322
      %v601 = vunpack.c.l.b16 %v324
      %v602 = vunpack.c.l.b16 %v325
      %v603 = vunpack.c.l.b16 %v326
      %v604 = vunpack.c.l.b16 %v327
      %v605 = vunpack.c.l.b16 %v329
      %v606 = vunpack.c.l.b16 %v330
      %v607 = vunpack.c.l.b16 %v331
      %v608 = vunpack.c.l.b16 %v332
      %v609 = vunpack.c.l.b16 %v334
      %v610 = vunpack.c.l.b16 %v335
      %v611 = vunpack.c.l.b16 %v336
      %v612 = vunpack.c.l.b16 %v337
      %v613 = vunpack.c.l.b16 %v339
      %v614 = vunpack.c.l.b16 %v340
      %v615 = vunpack.c.l.b16 %v341
      %v616 = vunpack.c.l.b16 %v342
      %v617 = vunpack.c.l.b16 %v344
      %v618 = vunpack.c.l.b16 %v345
      %v619 = vunpack.c.l.b16 %v346
      %v620 = vunpack.c.l.b16 %v347
      %v621 = vunpack.c.l.b16 %v349
      %v622 = vunpack.c.l.b16 %v350
      %v623 = vunpack.c.l.b16 %v351
      %v624 = vunpack.c.l.b16 %v352
      %v625 = vunpack.c.l.b16 %v354
      %v626 = vunpack.c.l.b16 %v355
      %v627 = vunpack.c.l.b16 %v356
      %v628 = vunpack.c.l.b16 %v357
      %v629 = vunpack.c.l.b16 %v359
      %v630 = vunpack.c.l.b16 %v360
      %v631 = vunpack.c.l.b16 %v361
      %v632 = vunpack.c.l.b16 %v362
      %v633 = vunpack.c.l.b16 %v364
      %v634 = vunpack.c.l.b16 %v365
      %v635 = vunpack.c.l.b16 %v366
      %v636 = vunpack.c.l.b16 %v367
      %v637 = vunpack.c.l.b16 %v369
      %v638 = vunpack.c.l.b16 %v370
      %v639 = vunpack.c.l.b16 %v371
      %v640 = vunpack.c.l.b16 %v372
      %v641 = vunpack.c.l.b16 %v374
      %v642 = vunpack.c.l.b16 %v375
      %v643 = vunpack.c.l.b16 %v376
      %v644 = vunpack.c.l.b16 %v377
      %v645 = vpack.c.b16 %v518, %v517
      %v646 = vpack.c.b16 %v520, %v519
      %v647 = vpack.c.b16 %v522, %v521
      %v648 = vpack.c.b16 %v524, %v523
      %v649 = vpack.c.b16 %v526, %v525
      %v650 = vpack.c.b16 %v528, %v527
      %v651 = vpack.c.b16 %v530, %v529
      %v652 = vpack.c.b16 %v532, %v531
      %v653 = vpack.c.b16 %v534, %v533
      %v654 = vpack.c.b16 %v536, %v535
      %v655 = vpack.c.b16 %v538, %v537
      %v656 = vpack.c.b16 %v540, %v539
      %v657 = vpack.c.b16 %v542, %v541
      %v658 = vpack.c.b16 %v544, %v543
      %v659 = vpack.c.b16 %v546, %v545
      %v660 = vpack.c.b16 %v548, %v547
      %v661 = vpack.c.b16 %v550, %v549
      %v662 = vpack.c.b16 %v552, %v551
      %v663 = vpack.c.b16 %v554, %v553
      %v664 = vpack.c.b16 %v556, %v555
      %v665 = vpack.c.b16 %v558, %v557
      %v666 = vpack.c.b16 %v560, %v559
      %v667 = vpack.c.b16 %v562, %v561
      %v668 = vpack.c.b16 %v564, %v563
      %v669 = vpack.c.b16 %v566, %v565
      %v670 = vpack.c.b16 %v568, %v567
      %v671 = vpack.c.b16 %v570, %v569
      %v672 = vpack.c.b16 %v572, %v571
      %v673 = vpack.c.b16 %v574, %v573
      %v674 = vpack.c.b16 %v576, %v575
      %v675 = vpack.c.b16 %v578, %v577
      %v676 = vpack.c.b16 %v580, %v579
      %v677 = vpack.c.b16 %v582, %v581
      %v678 = vpack.c.b16 %v584, %v583
      %v679 = vpack.c.b16 %v586, %v585
      %v680 = vpack.c.b16 %v588, %v587
      %v681 = vpack.c.b16 %v590, %v589
      %v682 = vpack.c.b16 %v592, %v591
      %v683 = vpack.c.b16 %v594, %v593
      %v684 = vpack.c.b16 %v596, %v595
      %v685 = vpack.c.b16 %v598, %v597
      %v686 = vpack.c.b16 %v600, %v599
      %v687 = vpack.c.b16 %v602, %v601
      %v688 = vpack.c.b16 %v604, %v603
      %v689 = vpack.c.b16 %v606, %v605
      %v690 = vpack.c.b16 %v608, %v607
      %v691 = vpack.c.b16 %v610, %v609
      %v692 = vpack.c.b16 %v612, %v611
      %v693 = vpack.c.b16 %v614, %v613
      %v694 = vpack.c.b16 %v616, %v615
      %v695 = vpack.c.b16 %v618, %v617
      %v696 = vpack.c.b16 %v620, %v619
      %v697 = vpack.c.b16 %v622, %v621
      %v698 = vpack.c.b16 %v624, %v623
      %v699 = vpack.c.b16 %v626, %v625
      %v700 = vpack.c.b16 %v628, %v627
      %v701 = vpack.c.b16 %v630, %v629
      %v702 = vpack.c.b16 %v632, %v631
      %v703 = vpack.c.b16 %v634, %v633
      %v704 = vpack.c.b16 %v636, %v635
      %v705 = vpack.c.b16 %v638, %v637
      %v706 = vpack.c.b16 %v640, %v639
      %v707 = vpack.c.b16 %v642, %v641
      %v708 = vpack.c.b16 %v644, %v643
      %v741 = vunpack.c.l.b16 %v223
      %v742 = vunpack.c.l.b16 %v228
      %v743 = vunpack.c.l.b16 %v233
      %v744 = vunpack.c.l.b16 %v238
      %v745 = vunpack.c.l.b16 %v243
      %v746 = vunpack.c.l.b16 %v248
      %v747 = vunpack.c.l.b16 %v253
      %v748 = vunpack.c.l.b16 %v258
      %v749 = vunpack.c.l.b16 %v263
      %v750 = vunpack.c.l.b16 %v268
      %v751 = vunpack.c.l.b16 %v273
      %v752 = vunpack.c.l.b16 %v278
      %v753 = vunpack.c.l.b16 %v283
      %v754 = vunpack.c.l.b16 %v288
      %v755 = vunpack.c.l.b16 %v293
      %v756 = vunpack.c.l.b16 %v298
      %v757 = vunpack.c.l.b16 %v303
      %v758 = vunpack.c.l.b16 %v308
      %v759 = vunpack.c.l.b16 %v313
      %v760 = vunpack.c.l.b16 %v318
      %v761 = vunpack.c.l.b16 %v323
      %v762 = vunpack.c.l.b16 %v328
      %v763 = vunpack.c.l.b16 %v333
      %v764 = vunpack.c.l.b16 %v338
      %v765 = vunpack.c.l.b16 %v343
      %v766 = vunpack.c.l.b16 %v348
      %v767 = vunpack.c.l.b16 %v353
      %v768 = vunpack.c.l.b16 %v358
      %v769 = vunpack.c.l.b16 %v363
      %v770 = vunpack.c.l.b16 %v368
      %v771 = vunpack.c.l.b16 %v373
      %v772 = vunpack.c.l.b16 %v378
      %v773 = vpack.c.b16 %v741, %v741
      %v774 = vpack.c.b16 %v742, %v742
      %v775 = vpack.c.b16 %v743, %v743
      %v776 = vpack.c.b16 %v744, %v744
      %v777 = vpack.c.b16 %v745, %v745
      %v778 = vpack.c.b16 %v746, %v746
      %v779 = vpack.c.b16 %v747, %v747
      %v780 = vpack.c.b16 %v748, %v748
      %v781 = vpack.c.b16 %v749, %v749
      %v782 = vpack.c.b16 %v750, %v750
      %v783 = vpack.c.b16 %v751, %v751
      %v784 = vpack.c.b16 %v752, %v752
      %v785 = vpack.c.b16 %v753, %v753
      %v786 = vpack.c.b16 %v754, %v754
      %v787 = vpack.c.b16 %v755, %v755
      %v788 = vpack.c.b16 %v756, %v756
      %v789 = vpack.c.b16 %v757, %v757
      %v790 = vpack.c.b16 %v758, %v758
      %v791 = vpack.c.b16 %v759, %v759
      %v792 = vpack.c.b16 %v760, %v760
      %v793 = vpack.c.b16 %v761, %v761
      %v794 = vpack.c.b16 %v762, %v762
      %v795 = vpack.c.b16 %v763, %v763
      %v796 = vpack.c.b16 %v764, %v764
      %v797 = vpack.c.b16 %v765, %v765
      %v798 = vpack.c.b16 %v766, %v766
      %v799 = vpack.c.b16 %v767, %v767
      %v800 = vpack.c.b16 %v768, %v768
      %v801 = vpack.c.b16 %v769, %v769
      %v802 = vpack.c.b16 %v770, %v770
      %v803 = vpack.c.b16 %v771, %v771
      %v804 = vpack.c.b16 %v772, %v772
      %vm805 = vsmask.f32 7424
      %v807 = vshrl.u32 %v645, 16
      %v809 = vshll.u32 %v645, 16
      %v811 = vrot.slane %v809, 1
      %v812 = vor.u32 %v807, %v811
      %v814 = vshll.u32 %v646, 16
      %v816 = vrot.slane %v814, 1
      %v817 = vsel %vm805, %v812, %v816
      %v818 = vshrl.u32 %v646, 16
      %v820 = vor.u32 %v818, %v816
      %v822 = vshll.u32 %v773, 16
      %v824 = vrot.slane %v822, 1
      %v825 = vsel %vm805, %v820, %v824
      %v827 = vshrl.u32 %v647, 16
      %v829 = vshll.u32 %v647, 16
      %v831 = vrot.slane %v829, 1
      %v832 = vor.u32 %v827, %v831
      %v834 = vshll.u32 %v648, 16
      %v836 = vrot.slane %v834, 1
      %v837 = vsel %vm805, %v832, %v836
      %v838 = vshrl.u32 %v648, 16
      %v840 = vor.u32 %v838, %v836
      %v842 = vshll.u32 %v774, 16
      %v844 = vrot.slane %v842, 1
      %v845 = vsel %vm805, %v840, %v844
      %v847 = vshrl.u32 %v649, 16
      %v849 = vshll.u32 %v649, 16
      %v851 = vrot.slane %v849, 1
      %v852 = vor.u32 %v847, %v851
      %v854 = vshll.u32 %v650, 16
      %v856 = vrot.slane %v854, 1
      %v857 = vsel %vm805, %v852, %v856
      %v858 = vshrl.u32 %v650, 16
      %v860 = vor.u32 %v858, %v856
      %v862 = vshll.u32 %v775, 16
      %v864 = vrot.slane %v862, 1
      %v865 = vsel %vm805, %v860, %v864
      %v867 = vshrl.u32 %v651, 16
      %v869 = vshll.u32 %v651, 16
      %v871 = vrot.slane %v869, 1
      %v872 = vor.u32 %v867, %v871
      %v874 = vshll.u32 %v652, 16
      %v876 = vrot.slane %v874, 1
      %v877 = vsel %vm805, %v872, %v876
      %v878 = vshrl.u32 %v652, 16
      %v880 = vor.u32 %v878, %v876
      %v882 = vshll.u32 %v776, 16
      %v884 = vrot.slane %v882, 1
      %v885 = vsel %vm805, %v880, %v884
      %v887 = vshrl.u32 %v653, 16
      %v889 = vshll.u32 %v653, 16
      %v891 = vrot.slane %v889, 1
      %v892 = vor.u32 %v887, %v891
      %v894 = vshll.u32 %v654, 16
      %v896 = vrot.slane %v894, 1
      %v897 = vsel %vm805, %v892, %v896
      %v898 = vshrl.u32 %v654, 16
      %v900 = vor.u32 %v898, %v896
      %v902 = vshll.u32 %v777, 16
      %v904 = vrot.slane %v902, 1
      %v905 = vsel %vm805, %v900, %v904
      %v907 = vshrl.u32 %v655, 16
      %v909 = vshll.u32 %v655, 16
      %v911 = vrot.slane %v909, 1
      %v912 = vor.u32 %v907, %v911
      %v914 = vshll.u32 %v656, 16
      %v916 = vrot.slane %v914, 1
      %v917 = vsel %vm805, %v912, %v916
      %v918 = vshrl.u32 %v656, 16
      %v920 = vor.u32 %v918, %v916
      %v922 = vshll.u32 %v778, 16
      %v924 = vrot.slane %v922, 1
      %v925 = vsel %vm805, %v920, %v924
      %v927 = vshrl.u32 %v657, 16
      %v929 = vshll.u32 %v657, 16
      %v931 = vrot.slane %v929, 1
      %v932 = vor.u32 %v927, %v931
      %v934 = vshll.u32 %v658, 16
      %v936 = vrot.slane %v934, 1
      %v937 = vsel %vm805, %v932, %v936
      %v938 = vshrl.u32 %v658, 16
      %v940 = vor.u32 %v938, %v936
      %v942 = vshll.u32 %v779, 16
      %v944 = vrot.slane %v942, 1
      %v945 = vsel %vm805, %v940, %v944
      %v947 = vshrl.u32 %v659, 16
      %v949 = vshll.u32 %v659, 16
      %v951 = vrot.slane %v949, 1
      %v952 = vor.u32 %v947, %v951
      %v954 = vshll.u32 %v660, 16
      %v956 = vrot.slane %v954, 1
      %v957 = vsel %vm805, %v952, %v956
      %v958 = vshrl.u32 %v660, 16
      %v960 = vor.u32 %v958, %v956
      %v962 = vshll.u32 %v780, 16
      %v964 = vrot.slane %v962, 1
      %v965 = vsel %vm805, %v960, %v964
      %v967 = vshrl.u32 %v661, 16
      %v969 = vshll.u32 %v661, 16
      %v971 = vrot.slane %v969, 1
      %v972 = vor.u32 %v967, %v971
      %v974 = vshll.u32 %v662, 16
      %v976 = vrot.slane %v974, 1
      %v977 = vsel %vm805, %v972, %v976
      %v978 = vshrl.u32 %v662, 16
      %v980 = vor.u32 %v978, %v976
      %v982 = vshll.u32 %v781, 16
      %v984 = vrot.slane %v982, 1
      %v985 = vsel %vm805, %v980, %v984
      %v987 = vshrl.u32 %v663, 16
      %v989 = vshll.u32 %v663, 16
      %v991 = vrot.slane %v989, 1
      %v992 = vor.u32 %v987, %v991
      %v994 = vshll.u32 %v664, 16
      %v996 = vrot.slane %v994, 1
      %v997 = vsel %vm805, %v992, %v996
      %v998 = vshrl.u32 %v664, 16
      %v1000 = vor.u32 %v998, %v996
      %v1002 = vshll.u32 %v782, 16
      %v1004 = vrot.slane %v1002, 1
      %v1005 = vsel %vm805, %v1000, %v1004
      %v1007 = vshrl.u32 %v665, 16
      %v1009 = vshll.u32 %v665, 16
      %v1011 = vrot.slane %v1009, 1
      %v1012 = vor.u32 %v1007, %v1011
      %v1014 = vshll.u32 %v666, 16
      %v1016 = vrot.slane %v1014, 1
      %v1017 = vsel %vm805, %v1012, %v1016
      %v1018 = vshrl.u32 %v666, 16
      %v1020 = vor.u32 %v1018, %v1016
      %v1022 = vshll.u32 %v783, 16
      %v1024 = vrot.slane %v1022, 1
      %v1025 = vsel %vm805, %v1020, %v1024
      %v1027 = vshrl.u32 %v667, 16
      %v1029 = vshll.u32 %v667, 16
      %v1031 = vrot.slane %v1029, 1
      %v1032 = vor.u32 %v1027, %v1031
      %v1034 = vshll.u32 %v668, 16
      %v1036 = vrot.slane %v1034, 1
      %v1037 = vsel %vm805, %v1032, %v1036
      %v1038 = vshrl.u32 %v668, 16
      %v1040 = vor.u32 %v1038, %v1036
      %v1042 = vshll.u32 %v784, 16
      %v1044 = vrot.slane %v1042, 1
      %v1045 = vsel %vm805, %v1040, %v1044
      %v1047 = vshrl.u32 %v669, 16
      %v1049 = vshll.u32 %v669, 16
      %v1051 = vrot.slane %v1049, 1
      %v1052 = vor.u32 %v1047, %v1051
      %v1054 = vshll.u32 %v670, 16
      %v1056 = vrot.slane %v1054, 1
      %v1057 = vsel %vm805, %v1052, %v1056
      %v1058 = vshrl.u32 %v670, 16
      %v1060 = vor.u32 %v1058, %v1056
      %v1062 = vshll.u32 %v785, 16
      %v1064 = vrot.slane %v1062, 1
      %v1065 = vsel %vm805, %v1060, %v1064
      %v1067 = vshrl.u32 %v671, 16
      %v1069 = vshll.u32 %v671, 16
      %v1071 = vrot.slane %v1069, 1
      %v1072 = vor.u32 %v1067, %v1071
      %v1074 = vshll.u32 %v672, 16
      %v1076 = vrot.slane %v1074, 1
      %v1077 = vsel %vm805, %v1072, %v1076
      %v1078 = vshrl.u32 %v672, 16
      %v1080 = vor.u32 %v1078, %v1076
      %v1082 = vshll.u32 %v786, 16
      %v1084 = vrot.slane %v1082, 1
      %v1085 = vsel %vm805, %v1080, %v1084
      %v1087 = vshrl.u32 %v673, 16
      %v1089 = vshll.u32 %v673, 16
      %v1091 = vrot.slane %v1089, 1
      %v1092 = vor.u32 %v1087, %v1091
      %v1094 = vshll.u32 %v674, 16
      %v1096 = vrot.slane %v1094, 1
      %v1097 = vsel %vm805, %v1092, %v1096
      %v1098 = vshrl.u32 %v674, 16
      %v1100 = vor.u32 %v1098, %v1096
      %v1102 = vshll.u32 %v787, 16
      %v1104 = vrot.slane %v1102, 1
      %v1105 = vsel %vm805, %v1100, %v1104
      %v1107 = vshrl.u32 %v675, 16
      %v1109 = vshll.u32 %v675, 16
      %v1111 = vrot.slane %v1109, 1
      %v1112 = vor.u32 %v1107, %v1111
      %v1114 = vshll.u32 %v676, 16
      %v1116 = vrot.slane %v1114, 1
      %v1117 = vsel %vm805, %v1112, %v1116
      %v1118 = vshrl.u32 %v676, 16
      %v1120 = vor.u32 %v1118, %v1116
      %v1122 = vshll.u32 %v788, 16
      %v1124 = vrot.slane %v1122, 1
      %v1125 = vsel %vm805, %v1120, %v1124
      %v1127 = vshrl.u32 %v677, 16
      %v1129 = vshll.u32 %v677, 16
      %v1131 = vrot.slane %v1129, 1
      %v1132 = vor.u32 %v1127, %v1131
      %v1134 = vshll.u32 %v678, 16
      %v1136 = vrot.slane %v1134, 1
      %v1137 = vsel %vm805, %v1132, %v1136
      %v1138 = vshrl.u32 %v678, 16
      %v1140 = vor.u32 %v1138, %v1136
      %v1142 = vshll.u32 %v789, 16
      %v1144 = vrot.slane %v1142, 1
      %v1145 = vsel %vm805, %v1140, %v1144
      %v1147 = vshrl.u32 %v679, 16
      %v1149 = vshll.u32 %v679, 16
      %v1151 = vrot.slane %v1149, 1
      %v1152 = vor.u32 %v1147, %v1151
      %v1154 = vshll.u32 %v680, 16
      %v1156 = vrot.slane %v1154, 1
      %v1157 = vsel %vm805, %v1152, %v1156
      %v1158 = vshrl.u32 %v680, 16
      %v1160 = vor.u32 %v1158, %v1156
      %v1162 = vshll.u32 %v790, 16
      %v1164 = vrot.slane %v1162, 1
      %v1165 = vsel %vm805, %v1160, %v1164
      %v1167 = vshrl.u32 %v681, 16
      %v1169 = vshll.u32 %v681, 16
      %v1171 = vrot.slane %v1169, 1
      %v1172 = vor.u32 %v1167, %v1171
      %v1174 = vshll.u32 %v682, 16
      %v1176 = vrot.slane %v1174, 1
      %v1177 = vsel %vm805, %v1172, %v1176
      %v1178 = vshrl.u32 %v682, 16
      %v1180 = vor.u32 %v1178, %v1176
      %v1182 = vshll.u32 %v791, 16
      %v1184 = vrot.slane %v1182, 1
      %v1185 = vsel %vm805, %v1180, %v1184
      %v1187 = vshrl.u32 %v683, 16
      %v1189 = vshll.u32 %v683, 16
      %v1191 = vrot.slane %v1189, 1
      %v1192 = vor.u32 %v1187, %v1191
      %v1194 = vshll.u32 %v684, 16
      %v1196 = vrot.slane %v1194, 1
      %v1197 = vsel %vm805, %v1192, %v1196
      %v1198 = vshrl.u32 %v684, 16
      %v1200 = vor.u32 %v1198, %v1196
      %v1202 = vshll.u32 %v792, 16
      %v1204 = vrot.slane %v1202, 1
      %v1205 = vsel %vm805, %v1200, %v1204
      %v1207 = vshrl.u32 %v685, 16
      %v1209 = vshll.u32 %v685, 16
      %v1211 = vrot.slane %v1209, 1
      %v1212 = vor.u32 %v1207, %v1211
      %v1214 = vshll.u32 %v686, 16
      %v1216 = vrot.slane %v1214, 1
      %v1217 = vsel %vm805, %v1212, %v1216
      %v1218 = vshrl.u32 %v686, 16
      %v1220 = vor.u32 %v1218, %v1216
      %v1222 = vshll.u32 %v793, 16
      %v1224 = vrot.slane %v1222, 1
      %v1225 = vsel %vm805, %v1220, %v1224
      %v1227 = vshrl.u32 %v687, 16
      %v1229 = vshll.u32 %v687, 16
      %v1231 = vrot.slane %v1229, 1
      %v1232 = vor.u32 %v1227, %v1231
      %v1234 = vshll.u32 %v688, 16
      %v1236 = vrot.slane %v1234, 1
      %v1237 = vsel %vm805, %v1232, %v1236
      %v1238 = vshrl.u32 %v688, 16
      %v1240 = vor.u32 %v1238, %v1236
      %v1242 = vshll.u32 %v794, 16
      %v1244 = vrot.slane %v1242, 1
      %v1245 = vsel %vm805, %v1240, %v1244
      %v1247 = vshrl.u32 %v689, 16
      %v1249 = vshll.u32 %v689, 16
      %v1251 = vrot.slane %v1249, 1
      %v1252 = vor.u32 %v1247, %v1251
      %v1254 = vshll.u32 %v690, 16
      %v1256 = vrot.slane %v1254, 1
      %v1257 = vsel %vm805, %v1252, %v1256
      %v1258 = vshrl.u32 %v690, 16
      %v1260 = vor.u32 %v1258, %v1256
      %v1262 = vshll.u32 %v795, 16
      %v1264 = vrot.slane %v1262, 1
      %v1265 = vsel %vm805, %v1260, %v1264
      %v1267 = vshrl.u32 %v691, 16
      %v1269 = vshll.u32 %v691, 16
      %v1271 = vrot.slane %v1269, 1
      %v1272 = vor.u32 %v1267, %v1271
      %v1274 = vshll.u32 %v692, 16
      %v1276 = vrot.slane %v1274, 1
      %v1277 = vsel %vm805, %v1272, %v1276
      %v1278 = vshrl.u32 %v692, 16
      %v1280 = vor.u32 %v1278, %v1276
      %v1282 = vshll.u32 %v796, 16
      %v1284 = vrot.slane %v1282, 1
      %v1285 = vsel %vm805, %v1280, %v1284
      %v1287 = vshrl.u32 %v693, 16
      %v1289 = vshll.u32 %v693, 16
      %v1291 = vrot.slane %v1289, 1
      %v1292 = vor.u32 %v1287, %v1291
      %v1294 = vshll.u32 %v694, 16
      %v1296 = vrot.slane %v1294, 1
      %v1297 = vsel %vm805, %v1292, %v1296
      %v1298 = vshrl.u32 %v694, 16
      %v1300 = vor.u32 %v1298, %v1296
      %v1302 = vshll.u32 %v797, 16
      %v1304 = vrot.slane %v1302, 1
      %v1305 = vsel %vm805, %v1300, %v1304
      %v1307 = vshrl.u32 %v695, 16
      %v1309 = vshll.u32 %v695, 16
      %v1311 = vrot.slane %v1309, 1
      %v1312 = vor.u32 %v1307, %v1311
      %v1314 = vshll.u32 %v696, 16
      %v1316 = vrot.slane %v1314, 1
      %v1317 = vsel %vm805, %v1312, %v1316
      %v1318 = vshrl.u32 %v696, 16
      %v1320 = vor.u32 %v1318, %v1316
      %v1322 = vshll.u32 %v798, 16
      %v1324 = vrot.slane %v1322, 1
      %v1325 = vsel %vm805, %v1320, %v1324
      %v1327 = vshrl.u32 %v697, 16
      %v1329 = vshll.u32 %v697, 16
      %v1331 = vrot.slane %v1329, 1
      %v1332 = vor.u32 %v1327, %v1331
      %v1334 = vshll.u32 %v698, 16
      %v1336 = vrot.slane %v1334, 1
      %v1337 = vsel %vm805, %v1332, %v1336
      %v1338 = vshrl.u32 %v698, 16
      %v1340 = vor.u32 %v1338, %v1336
      %v1342 = vshll.u32 %v799, 16
      %v1344 = vrot.slane %v1342, 1
      %v1345 = vsel %vm805, %v1340, %v1344
      %v1347 = vshrl.u32 %v699, 16
      %v1349 = vshll.u32 %v699, 16
      %v1351 = vrot.slane %v1349, 1
      %v1352 = vor.u32 %v1347, %v1351
      %v1354 = vshll.u32 %v700, 16
      %v1356 = vrot.slane %v1354, 1
      %v1357 = vsel %vm805, %v1352, %v1356
      %v1358 = vshrl.u32 %v700, 16
      %v1360 = vor.u32 %v1358, %v1356
      %v1362 = vshll.u32 %v800, 16
      %v1364 = vrot.slane %v1362, 1
      %v1365 = vsel %vm805, %v1360, %v1364
      %v1367 = vshrl.u32 %v701, 16
      %v1369 = vshll.u32 %v701, 16
      %v1371 = vrot.slane %v1369, 1
      %v1372 = vor.u32 %v1367, %v1371
      %v1374 = vshll.u32 %v702, 16
      %v1376 = vrot.slane %v1374, 1
      %v1377 = vsel %vm805, %v1372, %v1376
      %v1378 = vshrl.u32 %v702, 16
      %v1380 = vor.u32 %v1378, %v1376
      %v1382 = vshll.u32 %v801, 16
      %v1384 = vrot.slane %v1382, 1
      %v1385 = vsel %vm805, %v1380, %v1384
      %v1387 = vshrl.u32 %v703, 16
      %v1389 = vshll.u32 %v703, 16
      %v1391 = vrot.slane %v1389, 1
      %v1392 = vor.u32 %v1387, %v1391
      %v1394 = vshll.u32 %v704, 16
      %v1396 = vrot.slane %v1394, 1
      %v1397 = vsel %vm805, %v1392, %v1396
      %v1398 = vshrl.u32 %v704, 16
      %v1400 = vor.u32 %v1398, %v1396
      %v1402 = vshll.u32 %v802, 16
      %v1404 = vrot.slane %v1402, 1
      %v1405 = vsel %vm805, %v1400, %v1404
      %v1407 = vshrl.u32 %v705, 16
      %v1409 = vshll.u32 %v705, 16
      %v1411 = vrot.slane %v1409, 1
      %v1412 = vor.u32 %v1407, %v1411
      %v1414 = vshll.u32 %v706, 16
      %v1416 = vrot.slane %v1414, 1
      %v1417 = vsel %vm805, %v1412, %v1416
      %v1418 = vshrl.u32 %v706, 16
      %v1420 = vor.u32 %v1418, %v1416
      %v1422 = vshll.u32 %v803, 16
      %v1424 = vrot.slane %v1422, 1
      %v1425 = vsel %vm805, %v1420, %v1424
      %v1427 = vshrl.u32 %v707, 16
      %v1429 = vshll.u32 %v707, 16
      %v1431 = vrot.slane %v1429, 1
      %v1432 = vor.u32 %v1427, %v1431
      %v1434 = vshll.u32 %v708, 16
      %v1436 = vrot.slane %v1434, 1
      %v1437 = vsel %vm805, %v1432, %v1436
      %v1438 = vshrl.u32 %v708, 16
      %v1440 = vor.u32 %v1438, %v1436
      %v1442 = vshll.u32 %v804, 16
      %v1444 = vrot.slane %v1442, 1
      %v1445 = vsel %vm805, %v1440, %v1444
      %1446 = vrot.lane.b32.xlu0 %v817, 32
      %v1447 = vpop.permute.xlu0 %1446
      %1448 = vrot.lane.b32.xlu0 %v825, 32
      %v1449 = vpop.permute.xlu0 %1448
      %1450 = vrot.lane.b32.xlu0 %v837, 32
      %v1451 = vpop.permute.xlu0 %1450
      %1452 = vrot.lane.b32.xlu0 %v845, 32
      %v1453 = vpop.permute.xlu0 %1452
      %1454 = vrot.lane.b32.xlu0 %v857, 32
      %v1455 = vpop.permute.xlu0 %1454
      %1456 = vrot.lane.b32.xlu0 %v865, 32
      %v1457 = vpop.permute.xlu0 %1456
      %1458 = vrot.lane.b32.xlu0 %v877, 32
      %v1459 = vpop.permute.xlu0 %1458
      %1460 = vrot.lane.b32.xlu0 %v885, 32
      %v1461 = vpop.permute.xlu0 %1460
      %1462 = vrot.lane.b32.xlu0 %v897, 32
      %v1463 = vpop.permute.xlu0 %1462
      %1464 = vrot.lane.b32.xlu0 %v905, 32
      %v1465 = vpop.permute.xlu0 %1464
      %1466 = vrot.lane.b32.xlu0 %v917, 32
      %v1467 = vpop.permute.xlu0 %1466
      %1468 = vrot.lane.b32.xlu0 %v925, 32
      %v1469 = vpop.permute.xlu0 %1468
      %1470 = vrot.lane.b32.xlu0 %v937, 32
      %v1471 = vpop.permute.xlu0 %1470
      %1472 = vrot.lane.b32.xlu0 %v945, 32
      %v1473 = vpop.permute.xlu0 %1472
      %1474 = vrot.lane.b32.xlu0 %v957, 32
      %v1475 = vpop.permute.xlu0 %1474
      %1476 = vrot.lane.b32.xlu0 %v965, 32
      %v1477 = vpop.permute.xlu0 %1476
      %1478 = vrot.lane.b32.xlu0 %v977, 32
      %v1479 = vpop.permute.xlu0 %1478
      %1480 = vrot.lane.b32.xlu0 %v985, 32
      %v1481 = vpop.permute.xlu0 %1480
      %1482 = vrot.lane.b32.xlu0 %v997, 32
      %v1483 = vpop.permute.xlu0 %1482
      %1484 = vrot.lane.b32.xlu0 %v1005, 32
      %v1485 = vpop.permute.xlu0 %1484
      %1486 = vrot.lane.b32.xlu0 %v1017, 32
      %v1487 = vpop.permute.xlu0 %1486
      %1488 = vrot.lane.b32.xlu0 %v1025, 32
      %v1489 = vpop.permute.xlu0 %1488
      %1490 = vrot.lane.b32.xlu0 %v1037, 32
      %v1491 = vpop.permute.xlu0 %1490
      %1492 = vrot.lane.b32.xlu0 %v1045, 32
      %v1493 = vpop.permute.xlu0 %1492
      %1494 = vrot.lane.b32.xlu0 %v1057, 32
      %v1495 = vpop.permute.xlu0 %1494
      %1496 = vrot.lane.b32.xlu0 %v1065, 32
      %v1497 = vpop.permute.xlu0 %1496
      %1498 = vrot.lane.b32.xlu0 %v1077, 32
      %v1499 = vpop.permute.xlu0 %1498
      %1500 = vrot.lane.b32.xlu0 %v1085, 32
      %v1501 = vpop.permute.xlu0 %1500
      %1502 = vrot.lane.b32.xlu0 %v1097, 32
      %v1503 = vpop.permute.xlu0 %1502
      %1504 = vrot.lane.b32.xlu0 %v1105, 32
      %v1505 = vpop.permute.xlu0 %1504
      %1506 = vrot.lane.b32.xlu0 %v1117, 32
      %v1507 = vpop.permute.xlu0 %1506
      %1508 = vrot.lane.b32.xlu0 %v1125, 32
      %v1509 = vpop.permute.xlu0 %1508
      %1510 = vrot.lane.b32.xlu0 %v1137, 32
      %v1511 = vpop.permute.xlu0 %1510
      %1512 = vrot.lane.b32.xlu0 %v1145, 32
      %v1513 = vpop.permute.xlu0 %1512
      %1514 = vrot.lane.b32.xlu0 %v1157, 32
      %v1515 = vpop.permute.xlu0 %1514
      %1516 = vrot.lane.b32.xlu0 %v1165, 32
      %v1517 = vpop.permute.xlu0 %1516
      %1518 = vrot.lane.b32.xlu0 %v1177, 32
      %v1519 = vpop.permute.xlu0 %1518
      %1520 = vrot.lane.b32.xlu0 %v1185, 32
      %v1521 = vpop.permute.xlu0 %1520
      %1522 = vrot.lane.b32.xlu0 %v1197, 32
      %v1523 = vpop.permute.xlu0 %1522
      %1524 = vrot.lane.b32.xlu0 %v1205, 32
      %v1525 = vpop.permute.xlu0 %1524
      %1526 = vrot.lane.b32.xlu0 %v1217, 32
      %v1527 = vpop.permute.xlu0 %1526
      %1528 = vrot.lane.b32.xlu0 %v1225, 32
      %v1529 = vpop.permute.xlu0 %1528
      %1530 = vrot.lane.b32.xlu0 %v1237, 32
      %v1531 = vpop.permute.xlu0 %1530
      %1532 = vrot.lane.b32.xlu0 %v1245, 32
      %v1533 = vpop.permute.xlu0 %1532
      %1534 = vrot.lane.b32.xlu0 %v1257, 32
      %v1535 = vpop.permute.xlu0 %1534
      %1536 = vrot.lane.b32.xlu0 %v1265, 32
      %v1537 = vpop.permute.xlu0 %1536
      %1538 = vrot.lane.b32.xlu0 %v1277, 32
      %v1539 = vpop.permute.xlu0 %1538
      %1540 = vrot.lane.b32.xlu0 %v1285, 32
      %v1541 = vpop.permute.xlu0 %1540
      %1542 = vrot.lane.b32.xlu0 %v1297, 32
      %v1543 = vpop.permute.xlu0 %1542
      %1544 = vrot.lane.b32.xlu0 %v1305, 32
      %v1545 = vpop.permute.xlu0 %1544
      %1546 = vrot.lane.b32.xlu0 %v1317, 32
      %v1547 = vpop.permute.xlu0 %1546
      %1548 = vrot.lane.b32.xlu0 %v1325, 32
      %v1549 = vpop.permute.xlu0 %1548
      %1550 = vrot.lane.b32.xlu0 %v1337, 32
      %v1551 = vpop.permute.xlu0 %1550
      %1552 = vrot.lane.b32.xlu0 %v1345, 32
      %v1553 = vpop.permute.xlu0 %1552
      %1554 = vrot.lane.b32.xlu0 %v1357, 32
      %v1555 = vpop.permute.xlu0 %1554
      %1556 = vrot.lane.b32.xlu0 %v1365, 32
      %v1557 = vpop.permute.xlu0 %1556
      %1558 = vrot.lane.b32.xlu0 %v1377, 32
      %v1559 = vpop.permute.xlu0 %1558
      %1560 = vrot.lane.b32.xlu0 %v1385, 32
      %v1561 = vpop.permute.xlu0 %1560
      %1562 = vrot.lane.b32.xlu0 %v1397, 32
      %v1563 = vpop.permute.xlu0 %1562
      %1564 = vrot.lane.b32.xlu0 %v1405, 32
      %v1565 = vpop.permute.xlu0 %1564
      %1566 = vrot.lane.b32.xlu0 %v1417, 32
      %v1567 = vpop.permute.xlu0 %1566
      %1568 = vrot.lane.b32.xlu0 %v1425, 32
      %v1569 = vpop.permute.xlu0 %1568
      %1570 = vrot.lane.b32.xlu0 %v1437, 32
      %v1571 = vpop.permute.xlu0 %1570
      %1572 = vrot.lane.b32.xlu0 %v1445, 32
      %v1573 = vpop.permute.xlu0 %1572
      %vm1574 = vcmask 1046528
      %v1575 = vrot.slane %v645, 1
      %v1576 = vrot.slane %v646, 1
      %v1577 = vsel %vm1574, %v1575, %v1576
      %v1578 = vrot.slane %v773, 1
      %v1579 = vsel %vm1574, %v1576, %v1578
      %v1580 = vrot.slane %v647, 1
      %v1581 = vrot.slane %v648, 1
      %v1582 = vsel %vm1574, %v1580, %v1581
      %v1583 = vrot.slane %v774, 1
      %v1584 = vsel %vm1574, %v1581, %v1583
      %v1585 = vrot.slane %v649, 1
      %v1586 = vrot.slane %v650, 1
      %v1587 = vsel %vm1574, %v1585, %v1586
      %v1588 = vrot.slane %v775, 1
      %v1589 = vsel %vm1574, %v1586, %v1588
      %v1590 = vrot.slane %v651, 1
      %v1591 = vrot.slane %v652, 1
      %v1592 = vsel %vm1574, %v1590, %v1591
      %v1593 = vrot.slane %v776, 1
      %v1594 = vsel %vm1574, %v1591, %v1593
      %v1595 = vrot.slane %v653, 1
      %v1596 = vrot.slane %v654, 1
      %v1597 = vsel %vm1574, %v1595, %v1596
      %v1598 = vrot.slane %v777, 1
      %v1599 = vsel %vm1574, %v1596, %v1598
      %v1600 = vrot.slane %v655, 1
      %v1601 = vrot.slane %v656, 1
      %v1602 = vsel %vm1574, %v1600, %v1601
      %v1603 = vrot.slane %v778, 1
      %v1604 = vsel %vm1574, %v1601, %v1603
      %v1605 = vrot.slane %v657, 1
      %v1606 = vrot.slane %v658, 1
      %v1607 = vsel %vm1574, %v1605, %v1606
      %v1608 = vrot.slane %v779, 1
      %v1609 = vsel %vm1574, %v1606, %v1608
      %v1610 = vrot.slane %v659, 1
      %v1611 = vrot.slane %v660, 1
      %v1612 = vsel %vm1574, %v1610, %v1611
      %v1613 = vrot.slane %v780, 1
      %v1614 = vsel %vm1574, %v1611, %v1613
      %v1615 = vrot.slane %v661, 1
      %v1616 = vrot.slane %v662, 1
      %v1617 = vsel %vm1574, %v1615, %v1616
      %v1618 = vrot.slane %v781, 1
      %v1619 = vsel %vm1574, %v1616, %v1618
      %v1620 = vrot.slane %v663, 1
      %v1621 = vrot.slane %v664, 1
      %v1622 = vsel %vm1574, %v1620, %v1621
      %v1623 = vrot.slane %v782, 1
      %v1624 = vsel %vm1574, %v1621, %v1623
      %v1625 = vrot.slane %v665, 1
      %v1626 = vrot.slane %v666, 1
      %v1627 = vsel %vm1574, %v1625, %v1626
      %v1628 = vrot.slane %v783, 1
      %v1629 = vsel %vm1574, %v1626, %v1628
      %v1630 = vrot.slane %v667, 1
      %v1631 = vrot.slane %v668, 1
      %v1632 = vsel %vm1574, %v1630, %v1631
      %v1633 = vrot.slane %v784, 1
      %v1634 = vsel %vm1574, %v1631, %v1633
      %v1635 = vrot.slane %v669, 1
      %v1636 = vrot.slane %v670, 1
      %v1637 = vsel %vm1574, %v1635, %v1636
      %v1638 = vrot.slane %v785, 1
      %v1639 = vsel %vm1574, %v1636, %v1638
      %v1640 = vrot.slane %v671, 1
      %v1641 = vrot.slane %v672, 1
      %v1642 = vsel %vm1574, %v1640, %v1641
      %v1643 = vrot.slane %v786, 1
      %v1644 = vsel %vm1574, %v1641, %v1643
      %v1645 = vrot.slane %v673, 1
      %v1646 = vrot.slane %v674, 1
      %v1647 = vsel %vm1574, %v1645, %v1646
      %v1648 = vrot.slane %v787, 1
      %v1649 = vsel %vm1574, %v1646, %v1648
      %v1650 = vrot.slane %v675, 1
      %v1651 = vrot.slane %v676, 1
      %v1652 = vsel %vm1574, %v1650, %v1651
      %v1653 = vrot.slane %v788, 1
      %v1654 = vsel %vm1574, %v1651, %v1653
      %v1655 = vrot.slane %v677, 1
      %v1656 = vrot.slane %v678, 1
      %v1657 = vsel %vm1574, %v1655, %v1656
      %v1658 = vrot.slane %v789, 1
      %v1659 = vsel %vm1574, %v1656, %v1658
      %v1660 = vrot.slane %v679, 1
      %v1661 = vrot.slane %v680, 1
      %v1662 = vsel %vm1574, %v1660, %v1661
      %v1663 = vrot.slane %v790, 1
      %v1664 = vsel %vm1574, %v1661, %v1663
      %v1665 = vrot.slane %v681, 1
      %v1666 = vrot.slane %v682, 1
      %v1667 = vsel %vm1574, %v1665, %v1666
      %v1668 = vrot.slane %v791, 1
      %v1669 = vsel %vm1574, %v1666, %v1668
      %v1670 = vrot.slane %v683, 1
      %v1671 = vrot.slane %v684, 1
      %v1672 = vsel %vm1574, %v1670, %v1671
      %v1673 = vrot.slane %v792, 1
      %v1674 = vsel %vm1574, %v1671, %v1673
      %v1675 = vrot.slane %v685, 1
      %v1676 = vrot.slane %v686, 1
      %v1677 = vsel %vm1574, %v1675, %v1676
      %v1678 = vrot.slane %v793, 1
      %v1679 = vsel %vm1574, %v1676, %v1678
      %v1680 = vrot.slane %v687, 1
      %v1681 = vrot.slane %v688, 1
      %v1682 = vsel %vm1574, %v1680, %v1681
      %v1683 = vrot.slane %v794, 1
      %v1684 = vsel %vm1574, %v1681, %v1683
      %v1685 = vrot.slane %v689, 1
      %v1686 = vrot.slane %v690, 1
      %v1687 = vsel %vm1574, %v1685, %v1686
      %v1688 = vrot.slane %v795, 1
      %v1689 = vsel %vm1574, %v1686, %v1688
      %v1690 = vrot.slane %v691, 1
      %v1691 = vrot.slane %v692, 1
      %v1692 = vsel %vm1574, %v1690, %v1691
      %v1693 = vrot.slane %v796, 1
      %v1694 = vsel %vm1574, %v1691, %v1693
      %v1695 = vrot.slane %v693, 1
      %v1696 = vrot.slane %v694, 1
      %v1697 = vsel %vm1574, %v1695, %v1696
      %v1698 = vrot.slane %v797, 1
      %v1699 = vsel %vm1574, %v1696, %v1698
      %v1700 = vrot.slane %v695, 1
      %v1701 = vrot.slane %v696, 1
      %v1702 = vsel %vm1574, %v1700, %v1701
      %v1703 = vrot.slane %v798, 1
      %v1704 = vsel %vm1574, %v1701, %v1703
      %v1705 = vrot.slane %v697, 1
      %v1706 = vrot.slane %v698, 1
      %v1707 = vsel %vm1574, %v1705, %v1706
      %v1708 = vrot.slane %v799, 1
      %v1709 = vsel %vm1574, %v1706, %v1708
      %v1710 = vrot.slane %v699, 1
      %v1711 = vrot.slane %v700, 1
      %v1712 = vsel %vm1574, %v1710, %v1711
      %v1713 = vrot.slane %v800, 1
      %v1714 = vsel %vm1574, %v1711, %v1713
      %v1715 = vrot.slane %v701, 1
      %v1716 = vrot.slane %v702, 1
      %v1717 = vsel %vm1574, %v1715, %v1716
      %v1718 = vrot.slane %v801, 1
      %v1719 = vsel %vm1574, %v1716, %v1718
      %v1720 = vrot.slane %v703, 1
      %v1721 = vrot.slane %v704, 1
      %v1722 = vsel %vm1574, %v1720, %v1721
      %v1723 = vrot.slane %v802, 1
      %v1724 = vsel %vm1574, %v1721, %v1723
      %v1725 = vrot.slane %v705, 1
      %v1726 = vrot.slane %v706, 1
      %v1727 = vsel %vm1574, %v1725, %v1726
      %v1728 = vrot.slane %v803, 1
      %v1729 = vsel %vm1574, %v1726, %v1728
      %v1730 = vrot.slane %v707, 1
      %v1731 = vrot.slane %v708, 1
      %v1732 = vsel %vm1574, %v1730, %v1731
      %v1733 = vrot.slane %v804, 1
      %v1734 = vsel %vm1574, %v1731, %v1733
      %1735 = vrot.lane.b32.xlu0 %v1577, 64
      %v1736 = vpop.permute.xlu0 %1735
      %1737 = vrot.lane.b32.xlu0 %v1579, 64
      %v1738 = vpop.permute.xlu0 %1737
      %1739 = vrot.lane.b32.xlu0 %v1582, 64
      %v1740 = vpop.permute.xlu0 %1739
      %1741 = vrot.lane.b32.xlu0 %v1584, 64
      %v1742 = vpop.permute.xlu0 %1741
      %1743 = vrot.lane.b32.xlu0 %v1587, 64
      %v1744 = vpop.permute.xlu0 %1743
      %1745 = vrot.lane.b32.xlu0 %v1589, 64
      %v1746 = vpop.permute.xlu0 %1745
      %1747 = vrot.lane.b32.xlu0 %v1592, 64
      %v1748 = vpop.permute.xlu0 %1747
      %1749 = vrot.lane.b32.xlu0 %v1594, 64
      %v1750 = vpop.permute.xlu0 %1749
      %1751 = vrot.lane.b32.xlu0 %v1597, 64
      %v1752 = vpop.permute.xlu0 %1751
      %1753 = vrot.lane.b32.xlu0 %v1599, 64
      %v1754 = vpop.permute.xlu0 %1753
      %1755 = vrot.lane.b32.xlu0 %v1602, 64
      %v1756 = vpop.permute.xlu0 %1755
      %1757 = vrot.lane.b32.xlu0 %v1604, 64
      %v1758 = vpop.permute.xlu0 %1757
      %1759 = vrot.lane.b32.xlu0 %v1607, 64
      %v1760 = vpop.permute.xlu0 %1759
      %1761 = vrot.lane.b32.xlu0 %v1609, 64
      %v1762 = vpop.permute.xlu0 %1761
      %1763 = vrot.lane.b32.xlu0 %v1612, 64
      %v1764 = vpop.permute.xlu0 %1763
      %1765 = vrot.lane.b32.xlu0 %v1614, 64
      %v1766 = vpop.permute.xlu0 %1765
      %1767 = vrot.lane.b32.xlu0 %v1617, 64
      %v1768 = vpop.permute.xlu0 %1767
      %1769 = vrot.lane.b32.xlu0 %v1619, 64
      %v1770 = vpop.permute.xlu0 %1769
      %1771 = vrot.lane.b32.xlu0 %v1622, 64
      %v1772 = vpop.permute.xlu0 %1771
      %1773 = vrot.lane.b32.xlu0 %v1624, 64
      %v1774 = vpop.permute.xlu0 %1773
      %1775 = vrot.lane.b32.xlu0 %v1627, 64
      %v1776 = vpop.permute.xlu0 %1775
      %1777 = vrot.lane.b32.xlu0 %v1629, 64
      %v1778 = vpop.permute.xlu0 %1777
      %1779 = vrot.lane.b32.xlu0 %v1632, 64
      %v1780 = vpop.permute.xlu0 %1779
      %1781 = vrot.lane.b32.xlu0 %v1634, 64
      %v1782 = vpop.permute.xlu0 %1781
      %1783 = vrot.lane.b32.xlu0 %v1637, 64
      %v1784 = vpop.permute.xlu0 %1783
      %1785 = vrot.lane.b32.xlu0 %v1639, 64
      %v1786 = vpop.permute.xlu0 %1785
      %1787 = vrot.lane.b32.xlu0 %v1642, 64
      %v1788 = vpop.permute.xlu0 %1787
      %1789 = vrot.lane.b32.xlu0 %v1644, 64
      %v1790 = vpop.permute.xlu0 %1789
      %1791 = vrot.lane.b32.xlu0 %v1647, 64
      %v1792 = vpop.permute.xlu0 %1791
      %1793 = vrot.lane.b32.xlu0 %v1649, 64
      %v1794 = vpop.permute.xlu0 %1793
      %1795 = vrot.lane.b32.xlu0 %v1652, 64
      %v1796 = vpop.permute.xlu0 %1795
      %1797 = vrot.lane.b32.xlu0 %v1654, 64
      %v1798 = vpop.permute.xlu0 %1797
      %1799 = vrot.lane.b32.xlu0 %v1657, 64
      %v1800 = vpop.permute.xlu0 %1799
      %1801 = vrot.lane.b32.xlu0 %v1659, 64
      %v1802 = vpop.permute.xlu0 %1801
      %1803 = vrot.lane.b32.xlu0 %v1662, 64
      %v1804 = vpop.permute.xlu0 %1803
      %1805 = vrot.lane.b32.xlu0 %v1664, 64
      %v1806 = vpop.permute.xlu0 %1805
      %1807 = vrot.lane.b32.xlu0 %v1667, 64
      %v1808 = vpop.permute.xlu0 %1807
      %1809 = vrot.lane.b32.xlu0 %v1669, 64
      %v1810 = vpop.permute.xlu0 %1809
      %1811 = vrot.lane.b32.xlu0 %v1672, 64
      %v1812 = vpop.permute.xlu0 %1811
      %1813 = vrot.lane.b32.xlu0 %v1674, 64
      %v1814 = vpop.permute.xlu0 %1813
      %1815 = vrot.lane.b32.xlu0 %v1677, 64
      %v1816 = vpop.permute.xlu0 %1815
      %1817 = vrot.lane.b32.xlu0 %v1679, 64
      %v1818 = vpop.permute.xlu0 %1817
      %1819 = vrot.lane.b32.xlu0 %v1682, 64
      %v1820 = vpop.permute.xlu0 %1819
      %1821 = vrot.lane.b32.xlu0 %v1684, 64
      %v1822 = vpop.permute.xlu0 %1821
      %1823 = vrot.lane.b32.xlu0 %v1687, 64
      %v1824 = vpop.permute.xlu0 %1823
      %1825 = vrot.lane.b32.xlu0 %v1689, 64
      %v1826 = vpop.permute.xlu0 %1825
      %1827 = vrot.lane.b32.xlu0 %v1692, 64
      %v1828 = vpop.permute.xlu0 %1827
      %1829 = vrot.lane.b32.xlu0 %v1694, 64
      %v1830 = vpop.permute.xlu0 %1829
      %1831 = vrot.lane.b32.xlu0 %v1697, 64
      %v1832 = vpop.permute.xlu0 %1831
      %1833 = vrot.lane.b32.xlu0 %v1699, 64
      %v1834 = vpop.permute.xlu0 %1833
      %1835 = vrot.lane.b32.xlu0 %v1702, 64
      %v1836 = vpop.permute.xlu0 %1835
      %1837 = vrot.lane.b32.xlu0 %v1704, 64
      %v1838 = vpop.permute.xlu0 %1837
      %1839 = vrot.lane.b32.xlu0 %v1707, 64
      %v1840 = vpop.permute.xlu0 %1839
      %1841 = vrot.lane.b32.xlu0 %v1709, 64
      %v1842 = vpop.permute.xlu0 %1841
      %1843 = vrot.lane.b32.xlu0 %v1712, 64
      %v1844 = vpop.permute.xlu0 %1843
      %1845 = vrot.lane.b32.xlu0 %v1714, 64
      %v1846 = vpop.permute.xlu0 %1845
      %1847 = vrot.lane.b32.xlu0 %v1717, 64
      %v1848 = vpop.permute.xlu0 %1847
      %1849 = vrot.lane.b32.xlu0 %v1719, 64
      %v1850 = vpop.permute.xlu0 %1849
      %1851 = vrot.lane.b32.xlu0 %v1722, 64
      %v1852 = vpop.permute.xlu0 %1851
      %1853 = vrot.lane.b32.xlu0 %v1724, 64
      %v1854 = vpop.permute.xlu0 %1853
      %1855 = vrot.lane.b32.xlu0 %v1727, 64
      %v1856 = vpop.permute.xlu0 %1855
      %1857 = vrot.lane.b32.xlu0 %v1729, 64
      %v1858 = vpop.permute.xlu0 %1857
      %1859 = vrot.lane.b32.xlu0 %v1732, 64
      %v1860 = vpop.permute.xlu0 %1859
      %1861 = vrot.lane.b32.xlu0 %v1734, 64
      %v1862 = vpop.permute.xlu0 %1861
      %v1867 = vunpack.c.l.b16 %v379
      %v1868 = vunpack.c.l.b16 %v380
      %v1869 = vunpack.c.l.b16 %v381
      %v1870 = vunpack.c.l.b16 %v382
      %v1871 = vpack.c.b16 %v1868, %v1867
      %v1872 = vpack.c.b16 %v1870, %v1869
      %1873 = vrot.lane.b32.xlu0 %v647, 96
      %v1874 = vpop.permute.xlu0 %1873
      %1875 = vrot.lane.b32.xlu0 %v648, 96
      %v1876 = vpop.permute.xlu0 %1875
      %1877 = vrot.lane.b32.xlu0 %v649, 96
      %v1878 = vpop.permute.xlu0 %1877
      %1879 = vrot.lane.b32.xlu0 %v650, 96
      %v1880 = vpop.permute.xlu0 %1879
      %1881 = vrot.lane.b32.xlu0 %v651, 96
      %v1882 = vpop.permute.xlu0 %1881
      %1883 = vrot.lane.b32.xlu0 %v652, 96
      %v1884 = vpop.permute.xlu0 %1883
      %1885 = vrot.lane.b32.xlu0 %v653, 96
      %v1886 = vpop.permute.xlu0 %1885
      %1887 = vrot.lane.b32.xlu0 %v654, 96
      %v1888 = vpop.permute.xlu0 %1887
      %1889 = vrot.lane.b32.xlu0 %v655, 96
      %v1890 = vpop.permute.xlu0 %1889
      %1891 = vrot.lane.b32.xlu0 %v656, 96
      %v1892 = vpop.permute.xlu0 %1891
      %1893 = vrot.lane.b32.xlu0 %v657, 96
      %v1894 = vpop.permute.xlu0 %1893
      %1895 = vrot.lane.b32.xlu0 %v658, 96
      %v1896 = vpop.permute.xlu0 %1895
      %1897 = vrot.lane.b32.xlu0 %v659, 96
      %v1898 = vpop.permute.xlu0 %1897
      %1899 = vrot.lane.b32.xlu0 %v660, 96
      %v1900 = vpop.permute.xlu0 %1899
      %1901 = vrot.lane.b32.xlu0 %v661, 96
      %v1902 = vpop.permute.xlu0 %1901
      %1903 = vrot.lane.b32.xlu0 %v662, 96
      %v1904 = vpop.permute.xlu0 %1903
      %1905 = vrot.lane.b32.xlu0 %v663, 96
      %v1906 = vpop.permute.xlu0 %1905
      %1907 = vrot.lane.b32.xlu0 %v664, 96
      %v1908 = vpop.permute.xlu0 %1907
      %1909 = vrot.lane.b32.xlu0 %v665, 96
      %v1910 = vpop.permute.xlu0 %1909
      %1911 = vrot.lane.b32.xlu0 %v666, 96
      %v1912 = vpop.permute.xlu0 %1911
      %1913 = vrot.lane.b32.xlu0 %v667, 96
      %v1914 = vpop.permute.xlu0 %1913
      %1915 = vrot.lane.b32.xlu0 %v668, 96
      %v1916 = vpop.permute.xlu0 %1915
      %1917 = vrot.lane.b32.xlu0 %v669, 96
      %v1918 = vpop.permute.xlu0 %1917
      %1919 = vrot.lane.b32.xlu0 %v670, 96
      %v1920 = vpop.permute.xlu0 %1919
      %1921 = vrot.lane.b32.xlu0 %v671, 96
      %v1922 = vpop.permute.xlu0 %1921
      %1923 = vrot.lane.b32.xlu0 %v672, 96
      %v1924 = vpop.permute.xlu0 %1923
      %1925 = vrot.lane.b32.xlu0 %v673, 96
      %v1926 = vpop.permute.xlu0 %1925
      %1927 = vrot.lane.b32.xlu0 %v674, 96
      %v1928 = vpop.permute.xlu0 %1927
      %1929 = vrot.lane.b32.xlu0 %v675, 96
      %v1930 = vpop.permute.xlu0 %1929
      %1931 = vrot.lane.b32.xlu0 %v676, 96
      %v1932 = vpop.permute.xlu0 %1931
      %1933 = vrot.lane.b32.xlu0 %v677, 96
      %v1934 = vpop.permute.xlu0 %1933
      %1935 = vrot.lane.b32.xlu0 %v678, 96
      %v1936 = vpop.permute.xlu0 %1935
      %1937 = vrot.lane.b32.xlu0 %v679, 96
      %v1938 = vpop.permute.xlu0 %1937
      %1939 = vrot.lane.b32.xlu0 %v680, 96
      %v1940 = vpop.permute.xlu0 %1939
      %1941 = vrot.lane.b32.xlu0 %v681, 96
      %v1942 = vpop.permute.xlu0 %1941
      %1943 = vrot.lane.b32.xlu0 %v682, 96
      %v1944 = vpop.permute.xlu0 %1943
      %1945 = vrot.lane.b32.xlu0 %v683, 96
      %v1946 = vpop.permute.xlu0 %1945
      %1947 = vrot.lane.b32.xlu0 %v684, 96
      %v1948 = vpop.permute.xlu0 %1947
      %1949 = vrot.lane.b32.xlu0 %v685, 96
      %v1950 = vpop.permute.xlu0 %1949
      %1951 = vrot.lane.b32.xlu0 %v686, 96
      %v1952 = vpop.permute.xlu0 %1951
      %1953 = vrot.lane.b32.xlu0 %v687, 96
      %v1954 = vpop.permute.xlu0 %1953
      %1955 = vrot.lane.b32.xlu0 %v688, 96
      %v1956 = vpop.permute.xlu0 %1955
      %1957 = vrot.lane.b32.xlu0 %v689, 96
      %v1958 = vpop.permute.xlu0 %1957
      %1959 = vrot.lane.b32.xlu0 %v690, 96
      %v1960 = vpop.permute.xlu0 %1959
      %1961 = vrot.lane.b32.xlu0 %v691, 96
      %v1962 = vpop.permute.xlu0 %1961
      %1963 = vrot.lane.b32.xlu0 %v692, 96
      %v1964 = vpop.permute.xlu0 %1963
      %1965 = vrot.lane.b32.xlu0 %v693, 96
      %v1966 = vpop.permute.xlu0 %1965
      %1967 = vrot.lane.b32.xlu0 %v694, 96
      %v1968 = vpop.permute.xlu0 %1967
      %1969 = vrot.lane.b32.xlu0 %v695, 96
      %v1970 = vpop.permute.xlu0 %1969
      %1971 = vrot.lane.b32.xlu0 %v696, 96
      %v1972 = vpop.permute.xlu0 %1971
      %1973 = vrot.lane.b32.xlu0 %v697, 96
      %v1974 = vpop.permute.xlu0 %1973
      %1975 = vrot.lane.b32.xlu0 %v698, 96
      %v1976 = vpop.permute.xlu0 %1975
      %1977 = vrot.lane.b32.xlu0 %v699, 96
      %v1978 = vpop.permute.xlu0 %1977
      %1979 = vrot.lane.b32.xlu0 %v700, 96
      %v1980 = vpop.permute.xlu0 %1979
      %1981 = vrot.lane.b32.xlu0 %v701, 96
      %v1982 = vpop.permute.xlu0 %1981
      %1983 = vrot.lane.b32.xlu0 %v702, 96
      %v1984 = vpop.permute.xlu0 %1983
      %1985 = vrot.lane.b32.xlu0 %v703, 96
      %v1986 = vpop.permute.xlu0 %1985
      %1987 = vrot.lane.b32.xlu0 %v704, 96
      %v1988 = vpop.permute.xlu0 %1987
      %1989 = vrot.lane.b32.xlu0 %v705, 96
      %v1990 = vpop.permute.xlu0 %1989
      %1991 = vrot.lane.b32.xlu0 %v706, 96
      %v1992 = vpop.permute.xlu0 %1991
      %1993 = vrot.lane.b32.xlu0 %v707, 96
      %v1994 = vpop.permute.xlu0 %1993
      %1995 = vrot.lane.b32.xlu0 %v708, 96
      %v1996 = vpop.permute.xlu0 %1995
      %1997 = vrot.lane.b32.xlu0 %v1871, 96
      %v1998 = vpop.permute.xlu0 %1997
      %1999 = vrot.lane.b32.xlu0 %v1872, 96
      %v2000 = vpop.permute.xlu0 %1999
      %v2002 = vunpack.c.l.b16 %v383
      %v2003 = vpack.c.b16 %v2002, %v2002
      %v2005 = vshrl.u32 %v1871, 16
      %v2007 = vshll.u32 %v1871, 16
      %v2009 = vrot.slane %v2007, 1
      %v2010 = vor.u32 %v2005, %v2009
      %v2012 = vshll.u32 %v1872, 16
      %v2014 = vrot.slane %v2012, 1
      %v2015 = vsel %vm805, %v2010, %v2014
      %v2016 = vshrl.u32 %v1872, 16
      %v2018 = vor.u32 %v2016, %v2014
      %v2020 = vshll.u32 %v2003, 16
      %v2022 = vrot.slane %v2020, 1
      %v2023 = vsel %vm805, %v2018, %v2022
      %v2024 = vrot.slane %v1871, 1
      %v2025 = vrot.slane %v1872, 1
      %v2026 = vsel %vm1574, %v2024, %v2025
      %v2027 = vrot.slane %v2003, 1
      %v2028 = vsel %vm1574, %v2025, %v2027
      %2029 = vrot.lane.b32.xlu0 %v1582, 32
      %v2030 = vpop.permute.xlu0 %2029
      %2031 = vrot.lane.b32.xlu0 %v1584, 32
      %v2032 = vpop.permute.xlu0 %2031
      %2033 = vrot.lane.b32.xlu0 %v1587, 32
      %v2034 = vpop.permute.xlu0 %2033
      %2035 = vrot.lane.b32.xlu0 %v1589, 32
      %v2036 = vpop.permute.xlu0 %2035
      %2037 = vrot.lane.b32.xlu0 %v1592, 32
      %v2038 = vpop.permute.xlu0 %2037
      %2039 = vrot.lane.b32.xlu0 %v1594, 32
      %v2040 = vpop.permute.xlu0 %2039
      %2041 = vrot.lane.b32.xlu0 %v1597, 32
      %v2042 = vpop.permute.xlu0 %2041
      %2043 = vrot.lane.b32.xlu0 %v1599, 32
      %v2044 = vpop.permute.xlu0 %2043
      %2045 = vrot.lane.b32.xlu0 %v1602, 32
      %v2046 = vpop.permute.xlu0 %2045
      %2047 = vrot.lane.b32.xlu0 %v1604, 32
      %v2048 = vpop.permute.xlu0 %2047
      %2049 = vrot.lane.b32.xlu0 %v1607, 32
      %v2050 = vpop.permute.xlu0 %2049
      %2051 = vrot.lane.b32.xlu0 %v1609, 32
      %v2052 = vpop.permute.xlu0 %2051
      %2053 = vrot.lane.b32.xlu0 %v1612, 32
      %v2054 = vpop.permute.xlu0 %2053
      %2055 = vrot.lane.b32.xlu0 %v1614, 32
      %v2056 = vpop.permute.xlu0 %2055
      %2057 = vrot.lane.b32.xlu0 %v1617, 32
      %v2058 = vpop.permute.xlu0 %2057
      %2059 = vrot.lane.b32.xlu0 %v1619, 32
      %v2060 = vpop.permute.xlu0 %2059
      %2061 = vrot.lane.b32.xlu0 %v1622, 32
      %v2062 = vpop.permute.xlu0 %2061
      %2063 = vrot.lane.b32.xlu0 %v1624, 32
      %v2064 = vpop.permute.xlu0 %2063
      %2065 = vrot.lane.b32.xlu0 %v1627, 32
      %v2066 = vpop.permute.xlu0 %2065
      %2067 = vrot.lane.b32.xlu0 %v1629, 32
      %v2068 = vpop.permute.xlu0 %2067
      %2069 = vrot.lane.b32.xlu0 %v1632, 32
      %v2070 = vpop.permute.xlu0 %2069
      %2071 = vrot.lane.b32.xlu0 %v1634, 32
      %v2072 = vpop.permute.xlu0 %2071
      %2073 = vrot.lane.b32.xlu0 %v1637, 32
      %v2074 = vpop.permute.xlu0 %2073
      %2075 = vrot.lane.b32.xlu0 %v1639, 32
      %v2076 = vpop.permute.xlu0 %2075
      %2077 = vrot.lane.b32.xlu0 %v1642, 32
      %v2078 = vpop.permute.xlu0 %2077
      %2079 = vrot.lane.b32.xlu0 %v1644, 32
      %v2080 = vpop.permute.xlu0 %2079
      %2081 = vrot.lane.b32.xlu0 %v1647, 32
      %v2082 = vpop.permute.xlu0 %2081
      %2083 = vrot.lane.b32.xlu0 %v1649, 32
      %v2084 = vpop.permute.xlu0 %2083
      %2085 = vrot.lane.b32.xlu0 %v1652, 32
      %v2086 = vpop.permute.xlu0 %2085
      %2087 = vrot.lane.b32.xlu0 %v1654, 32
      %v2088 = vpop.permute.xlu0 %2087
      %2089 = vrot.lane.b32.xlu0 %v1657, 32
      %v2090 = vpop.permute.xlu0 %2089
      %2091 = vrot.lane.b32.xlu0 %v1659, 32
      %v2092 = vpop.permute.xlu0 %2091
      %2093 = vrot.lane.b32.xlu0 %v1662, 32
      %v2094 = vpop.permute.xlu0 %2093
      %2095 = vrot.lane.b32.xlu0 %v1664, 32
      %v2096 = vpop.permute.xlu0 %2095
      %2097 = vrot.lane.b32.xlu0 %v1667, 32
      %v2098 = vpop.permute.xlu0 %2097
      %2099 = vrot.lane.b32.xlu0 %v1669, 32
      %v2100 = vpop.permute.xlu0 %2099
      %2101 = vrot.lane.b32.xlu0 %v1672, 32
      %v2102 = vpop.permute.xlu0 %2101
      %2103 = vrot.lane.b32.xlu0 %v1674, 32
      %v2104 = vpop.permute.xlu0 %2103
      %2105 = vrot.lane.b32.xlu0 %v1677, 32
      %v2106 = vpop.permute.xlu0 %2105
      %2107 = vrot.lane.b32.xlu0 %v1679, 32
      %v2108 = vpop.permute.xlu0 %2107
      %2109 = vrot.lane.b32.xlu0 %v1682, 32
      %v2110 = vpop.permute.xlu0 %2109
      %2111 = vrot.lane.b32.xlu0 %v1684, 32
      %v2112 = vpop.permute.xlu0 %2111
      %2113 = vrot.lane.b32.xlu0 %v1687, 32
      %v2114 = vpop.permute.xlu0 %2113
      %2115 = vrot.lane.b32.xlu0 %v1689, 32
      %v2116 = vpop.permute.xlu0 %2115
      %2117 = vrot.lane.b32.xlu0 %v1692, 32
      %v2118 = vpop.permute.xlu0 %2117
      %2119 = vrot.lane.b32.xlu0 %v1694, 32
      %v2120 = vpop.permute.xlu0 %2119
      %2121 = vrot.lane.b32.xlu0 %v1697, 32
      %v2122 = vpop.permute.xlu0 %2121
      %2123 = vrot.lane.b32.xlu0 %v1699, 32
      %v2124 = vpop.permute.xlu0 %2123
      %2125 = vrot.lane.b32.xlu0 %v1702, 32
      %v2126 = vpop.permute.xlu0 %2125
      %2127 = vrot.lane.b32.xlu0 %v1704, 32
      %v2128 = vpop.permute.xlu0 %2127
      %2129 = vrot.lane.b32.xlu0 %v1707, 32
      %v2130 = vpop.permute.xlu0 %2129
      %2131 = vrot.lane.b32.xlu0 %v1709, 32
      %v2132 = vpop.permute.xlu0 %2131
      %2133 = vrot.lane.b32.xlu0 %v1712, 32
      %v2134 = vpop.permute.xlu0 %2133
      %2135 = vrot.lane.b32.xlu0 %v1714, 32
      %v2136 = vpop.permute.xlu0 %2135
      %2137 = vrot.lane.b32.xlu0 %v1717, 32
      %v2138 = vpop.permute.xlu0 %2137
      %2139 = vrot.lane.b32.xlu0 %v1719, 32
      %v2140 = vpop.permute.xlu0 %2139
      %2141 = vrot.lane.b32.xlu0 %v1722, 32
      %v2142 = vpop.permute.xlu0 %2141
      %2143 = vrot.lane.b32.xlu0 %v1724, 32
      %v2144 = vpop.permute.xlu0 %2143
      %2145 = vrot.lane.b32.xlu0 %v1727, 32
      %v2146 = vpop.permute.xlu0 %2145
      %2147 = vrot.lane.b32.xlu0 %v1729, 32
      %v2148 = vpop.permute.xlu0 %2147
      %2149 = vrot.lane.b32.xlu0 %v1732, 32
      %v2150 = vpop.permute.xlu0 %2149
      %2151 = vrot.lane.b32.xlu0 %v1734, 32
      %v2152 = vpop.permute.xlu0 %2151
      %2153 = vrot.lane.b32.xlu0 %v2026, 32
      %v2154 = vpop.permute.xlu0 %2153
      %2155 = vrot.lane.b32.xlu0 %v2028, 32
      %v2156 = vpop.permute.xlu0 %2155
      %v2161 = vunpack.c.l.b16 %v384
      %v2162 = vunpack.c.l.b16 %v385
      %v2163 = vunpack.c.l.b16 %v386
      %v2164 = vunpack.c.l.b16 %v387
      %v2165 = vpack.c.b16 %v2162, %v2161
      %v2166 = vpack.c.b16 %v2164, %v2163
      %2167 = vrot.lane.b32.xlu0 %v649, 64
      %v2168 = vpop.permute.xlu0 %2167
      %2169 = vrot.lane.b32.xlu0 %v650, 64
      %v2170 = vpop.permute.xlu0 %2169
      %2171 = vrot.lane.b32.xlu0 %v651, 64
      %v2172 = vpop.permute.xlu0 %2171
      %2173 = vrot.lane.b32.xlu0 %v652, 64
      %v2174 = vpop.permute.xlu0 %2173
      %2175 = vrot.lane.b32.xlu0 %v653, 64
      %v2176 = vpop.permute.xlu0 %2175
      %2177 = vrot.lane.b32.xlu0 %v654, 64
      %v2178 = vpop.permute.xlu0 %2177
      %2179 = vrot.lane.b32.xlu0 %v655, 64
      %v2180 = vpop.permute.xlu0 %2179
      %2181 = vrot.lane.b32.xlu0 %v656, 64
      %v2182 = vpop.permute.xlu0 %2181
      %2183 = vrot.lane.b32.xlu0 %v657, 64
      %v2184 = vpop.permute.xlu0 %2183
      %2185 = vrot.lane.b32.xlu0 %v658, 64
      %v2186 = vpop.permute.xlu0 %2185
      %2187 = vrot.lane.b32.xlu0 %v659, 64
      %v2188 = vpop.permute.xlu0 %2187
      %2189 = vrot.lane.b32.xlu0 %v660, 64
      %v2190 = vpop.permute.xlu0 %2189
      %2191 = vrot.lane.b32.xlu0 %v661, 64
      %v2192 = vpop.permute.xlu0 %2191
      %2193 = vrot.lane.b32.xlu0 %v662, 64
      %v2194 = vpop.permute.xlu0 %2193
      %2195 = vrot.lane.b32.xlu0 %v663, 64
      %v2196 = vpop.permute.xlu0 %2195
      %2197 = vrot.lane.b32.xlu0 %v664, 64
      %v2198 = vpop.permute.xlu0 %2197
      %2199 = vrot.lane.b32.xlu0 %v665, 64
      %v2200 = vpop.permute.xlu0 %2199
      %2201 = vrot.lane.b32.xlu0 %v666, 64
      %v2202 = vpop.permute.xlu0 %2201
      %2203 = vrot.lane.b32.xlu0 %v667, 64
      %v2204 = vpop.permute.xlu0 %2203
      %2205 = vrot.lane.b32.xlu0 %v668, 64
      %v2206 = vpop.permute.xlu0 %2205
      %2207 = vrot.lane.b32.xlu0 %v669, 64
      %v2208 = vpop.permute.xlu0 %2207
      %2209 = vrot.lane.b32.xlu0 %v670, 64
      %v2210 = vpop.permute.xlu0 %2209
      %2211 = vrot.lane.b32.xlu0 %v671, 64
      %v2212 = vpop.permute.xlu0 %2211
      %2213 = vrot.lane.b32.xlu0 %v672, 64
      %v2214 = vpop.permute.xlu0 %2213
      %2215 = vrot.lane.b32.xlu0 %v673, 64
      %v2216 = vpop.permute.xlu0 %2215
      %2217 = vrot.lane.b32.xlu0 %v674, 64
      %v2218 = vpop.permute.xlu0 %2217
      %2219 = vrot.lane.b32.xlu0 %v675, 64
      %v2220 = vpop.permute.xlu0 %2219
      %2221 = vrot.lane.b32.xlu0 %v676, 64
      %v2222 = vpop.permute.xlu0 %2221
      %2223 = vrot.lane.b32.xlu0 %v677, 64
      %v2224 = vpop.permute.xlu0 %2223
      %2225 = vrot.lane.b32.xlu0 %v678, 64
      %v2226 = vpop.permute.xlu0 %2225
      %2227 = vrot.lane.b32.xlu0 %v679, 64
      %v2228 = vpop.permute.xlu0 %2227
      %2229 = vrot.lane.b32.xlu0 %v680, 64
      %v2230 = vpop.permute.xlu0 %2229
      %2231 = vrot.lane.b32.xlu0 %v681, 64
      %v2232 = vpop.permute.xlu0 %2231
      %2233 = vrot.lane.b32.xlu0 %v682, 64
      %v2234 = vpop.permute.xlu0 %2233
      %2235 = vrot.lane.b32.xlu0 %v683, 64
      %v2236 = vpop.permute.xlu0 %2235
      %2237 = vrot.lane.b32.xlu0 %v684, 64
      %v2238 = vpop.permute.xlu0 %2237
      %2239 = vrot.lane.b32.xlu0 %v685, 64
      %v2240 = vpop.permute.xlu0 %2239
      %2241 = vrot.lane.b32.xlu0 %v686, 64
      %v2242 = vpop.permute.xlu0 %2241
      %2243 = vrot.lane.b32.xlu0 %v687, 64
      %v2244 = vpop.permute.xlu0 %2243
      %2245 = vrot.lane.b32.xlu0 %v688, 64
      %v2246 = vpop.permute.xlu0 %2245
      %2247 = vrot.lane.b32.xlu0 %v689, 64
      %v2248 = vpop.permute.xlu0 %2247
      %2249 = vrot.lane.b32.xlu0 %v690, 64
      %v2250 = vpop.permute.xlu0 %2249
      %2251 = vrot.lane.b32.xlu0 %v691, 64
      %v2252 = vpop.permute.xlu0 %2251
      %2253 = vrot.lane.b32.xlu0 %v692, 64
      %v2254 = vpop.permute.xlu0 %2253
      %2255 = vrot.lane.b32.xlu0 %v693, 64
      %v2256 = vpop.permute.xlu0 %2255
      %2257 = vrot.lane.b32.xlu0 %v694, 64
      %v2258 = vpop.permute.xlu0 %2257
      %2259 = vrot.lane.b32.xlu0 %v695, 64
      %v2260 = vpop.permute.xlu0 %2259
      %2261 = vrot.lane.b32.xlu0 %v696, 64
      %v2262 = vpop.permute.xlu0 %2261
      %2263 = vrot.lane.b32.xlu0 %v697, 64
      %v2264 = vpop.permute.xlu0 %2263
      %2265 = vrot.lane.b32.xlu0 %v698, 64
      %v2266 = vpop.permute.xlu0 %2265
      %2267 = vrot.lane.b32.xlu0 %v699, 64
      %v2268 = vpop.permute.xlu0 %2267
      %2269 = vrot.lane.b32.xlu0 %v700, 64
      %v2270 = vpop.permute.xlu0 %2269
      %2271 = vrot.lane.b32.xlu0 %v701, 64
      %v2272 = vpop.permute.xlu0 %2271
      %2273 = vrot.lane.b32.xlu0 %v702, 64
      %v2274 = vpop.permute.xlu0 %2273
      %2275 = vrot.lane.b32.xlu0 %v703, 64
      %v2276 = vpop.permute.xlu0 %2275
      %2277 = vrot.lane.b32.xlu0 %v704, 64
      %v2278 = vpop.permute.xlu0 %2277
      %2279 = vrot.lane.b32.xlu0 %v705, 64
      %v2280 = vpop.permute.xlu0 %2279
      %2281 = vrot.lane.b32.xlu0 %v706, 64
      %v2282 = vpop.permute.xlu0 %2281
      %2283 = vrot.lane.b32.xlu0 %v707, 64
      %v2284 = vpop.permute.xlu0 %2283
      %2285 = vrot.lane.b32.xlu0 %v708, 64
      %v2286 = vpop.permute.xlu0 %2285
      %2287 = vrot.lane.b32.xlu0 %v1871, 64
      %v2288 = vpop.permute.xlu0 %2287
      %2289 = vrot.lane.b32.xlu0 %v1872, 64
      %v2290 = vpop.permute.xlu0 %2289
      %2291 = vrot.lane.b32.xlu0 %v2165, 64
      %v2292 = vpop.permute.xlu0 %2291
      %2293 = vrot.lane.b32.xlu0 %v2166, 64
      %v2294 = vpop.permute.xlu0 %2293
      %v2296 = vunpack.c.l.b16 %v388
      %v2297 = vpack.c.b16 %v2296, %v2296
      %v2299 = vshrl.u32 %v2165, 16
      %v2301 = vshll.u32 %v2165, 16
      %v2303 = vrot.slane %v2301, 1
      %v2304 = vor.u32 %v2299, %v2303
      %v2306 = vshll.u32 %v2166, 16
      %v2308 = vrot.slane %v2306, 1
      %v2309 = vsel %vm805, %v2304, %v2308
      %v2310 = vshrl.u32 %v2166, 16
      %v2312 = vor.u32 %v2310, %v2308
      %v2314 = vshll.u32 %v2297, 16
      %v2316 = vrot.slane %v2314, 1
      %v2317 = vsel %vm805, %v2312, %v2316
      %2318 = vrot.lane.b32.xlu0 %v857, 96
      %v2319 = vpop.permute.xlu0 %2318
      %2320 = vrot.lane.b32.xlu0 %v865, 96
      %v2321 = vpop.permute.xlu0 %2320
      %2322 = vrot.lane.b32.xlu0 %v877, 96
      %v2323 = vpop.permute.xlu0 %2322
      %2324 = vrot.lane.b32.xlu0 %v885, 96
      %v2325 = vpop.permute.xlu0 %2324
      %2326 = vrot.lane.b32.xlu0 %v897, 96
      %v2327 = vpop.permute.xlu0 %2326
      %2328 = vrot.lane.b32.xlu0 %v905, 96
      %v2329 = vpop.permute.xlu0 %2328
      %2330 = vrot.lane.b32.xlu0 %v917, 96
      %v2331 = vpop.permute.xlu0 %2330
      %2332 = vrot.lane.b32.xlu0 %v925, 96
      %v2333 = vpop.permute.xlu0 %2332
      %2334 = vrot.lane.b32.xlu0 %v937, 96
      %v2335 = vpop.permute.xlu0 %2334
      %2336 = vrot.lane.b32.xlu0 %v945, 96
      %v2337 = vpop.permute.xlu0 %2336
      %2338 = vrot.lane.b32.xlu0 %v957, 96
      %v2339 = vpop.permute.xlu0 %2338
      %2340 = vrot.lane.b32.xlu0 %v965, 96
      %v2341 = vpop.permute.xlu0 %2340
      %2342 = vrot.lane.b32.xlu0 %v977, 96
      %v2343 = vpop.permute.xlu0 %2342
      %2344 = vrot.lane.b32.xlu0 %v985, 96
      %v2345 = vpop.permute.xlu0 %2344
      %2346 = vrot.lane.b32.xlu0 %v997, 96
      %v2347 = vpop.permute.xlu0 %2346
      %2348 = vrot.lane.b32.xlu0 %v1005, 96
      %v2349 = vpop.permute.xlu0 %2348
      %2350 = vrot.lane.b32.xlu0 %v1017, 96
      %v2351 = vpop.permute.xlu0 %2350
      %2352 = vrot.lane.b32.xlu0 %v1025, 96
      %v2353 = vpop.permute.xlu0 %2352
      %2354 = vrot.lane.b32.xlu0 %v1037, 96
      %v2355 = vpop.permute.xlu0 %2354
      %2356 = vrot.lane.b32.xlu0 %v1045, 96
      %v2357 = vpop.permute.xlu0 %2356
      %2358 = vrot.lane.b32.xlu0 %v1057, 96
      %v2359 = vpop.permute.xlu0 %2358
      %2360 = vrot.lane.b32.xlu0 %v1065, 96
      %v2361 = vpop.permute.xlu0 %2360
      %2362 = vrot.lane.b32.xlu0 %v1077, 96
      %v2363 = vpop.permute.xlu0 %2362
      %2364 = vrot.lane.b32.xlu0 %v1085, 96
      %v2365 = vpop.permute.xlu0 %2364
      %2366 = vrot.lane.b32.xlu0 %v1097, 96
      %v2367 = vpop.permute.xlu0 %2366
      %2368 = vrot.lane.b32.xlu0 %v1105, 96
      %v2369 = vpop.permute.xlu0 %2368
      %2370 = vrot.lane.b32.xlu0 %v1117, 96
      %v2371 = vpop.permute.xlu0 %2370
      %2372 = vrot.lane.b32.xlu0 %v1125, 96
      %v2373 = vpop.permute.xlu0 %2372
      %2374 = vrot.lane.b32.xlu0 %v1137, 96
      %v2375 = vpop.permute.xlu0 %2374
      %2376 = vrot.lane.b32.xlu0 %v1145, 96
      %v2377 = vpop.permute.xlu0 %2376
      %2378 = vrot.lane.b32.xlu0 %v1157, 96
      %v2379 = vpop.permute.xlu0 %2378
      %2380 = vrot.lane.b32.xlu0 %v1165, 96
      %v2381 = vpop.permute.xlu0 %2380
      %2382 = vrot.lane.b32.xlu0 %v1177, 96
      %v2383 = vpop.permute.xlu0 %2382
      %2384 = vrot.lane.b32.xlu0 %v1185, 96
      %v2385 = vpop.permute.xlu0 %2384
      %2386 = vrot.lane.b32.xlu0 %v1197, 96
      %v2387 = vpop.permute.xlu0 %2386
      %2388 = vrot.lane.b32.xlu0 %v1205, 96
      %v2389 = vpop.permute.xlu0 %2388
      %2390 = vrot.lane.b32.xlu0 %v1217, 96
      %v2391 = vpop.permute.xlu0 %2390
      %2392 = vrot.lane.b32.xlu0 %v1225, 96
      %v2393 = vpop.permute.xlu0 %2392
      %2394 = vrot.lane.b32.xlu0 %v1237, 96
      %v2395 = vpop.permute.xlu0 %2394
      %2396 = vrot.lane.b32.xlu0 %v1245, 96
      %v2397 = vpop.permute.xlu0 %2396
      %2398 = vrot.lane.b32.xlu0 %v1257, 96
      %v2399 = vpop.permute.xlu0 %2398
      %2400 = vrot.lane.b32.xlu0 %v1265, 96
      %v2401 = vpop.permute.xlu0 %2400
      %2402 = vrot.lane.b32.xlu0 %v1277, 96
      %v2403 = vpop.permute.xlu0 %2402
      %2404 = vrot.lane.b32.xlu0 %v1285, 96
      %v2405 = vpop.permute.xlu0 %2404
      %2406 = vrot.lane.b32.xlu0 %v1297, 96
      %v2407 = vpop.permute.xlu0 %2406
      %2408 = vrot.lane.b32.xlu0 %v1305, 96
      %v2409 = vpop.permute.xlu0 %2408
      %2410 = vrot.lane.b32.xlu0 %v1317, 96
      %v2411 = vpop.permute.xlu0 %2410
      %2412 = vrot.lane.b32.xlu0 %v1325, 96
      %v2413 = vpop.permute.xlu0 %2412
      %2414 = vrot.lane.b32.xlu0 %v1337, 96
      %v2415 = vpop.permute.xlu0 %2414
      %2416 = vrot.lane.b32.xlu0 %v1345, 96
      %v2417 = vpop.permute.xlu0 %2416
      %2418 = vrot.lane.b32.xlu0 %v1357, 96
      %v2419 = vpop.permute.xlu0 %2418
      %2420 = vrot.lane.b32.xlu0 %v1365, 96
      %v2421 = vpop.permute.xlu0 %2420
      %2422 = vrot.lane.b32.xlu0 %v1377, 96
      %v2423 = vpop.permute.xlu0 %2422
      %2424 = vrot.lane.b32.xlu0 %v1385, 96
      %v2425 = vpop.permute.xlu0 %2424
      %2426 = vrot.lane.b32.xlu0 %v1397, 96
      %v2427 = vpop.permute.xlu0 %2426
      %2428 = vrot.lane.b32.xlu0 %v1405, 96
      %v2429 = vpop.permute.xlu0 %2428
      %2430 = vrot.lane.b32.xlu0 %v1417, 96
      %v2431 = vpop.permute.xlu0 %2430
      %2432 = vrot.lane.b32.xlu0 %v1425, 96
      %v2433 = vpop.permute.xlu0 %2432
      %2434 = vrot.lane.b32.xlu0 %v1437, 96
      %v2435 = vpop.permute.xlu0 %2434
      %2436 = vrot.lane.b32.xlu0 %v1445, 96
      %v2437 = vpop.permute.xlu0 %2436
      %2438 = vrot.lane.b32.xlu0 %v2015, 96
      %v2439 = vpop.permute.xlu0 %2438
      %2440 = vrot.lane.b32.xlu0 %v2023, 96
      %v2441 = vpop.permute.xlu0 %2440
      %2442 = vrot.lane.b32.xlu0 %v2309, 96
      %v2443 = vpop.permute.xlu0 %2442
      %2444 = vrot.lane.b32.xlu0 %v2317, 96
      %v2445 = vpop.permute.xlu0 %2444
      %v2446 = vrot.slane %v2165, 1
      %v2447 = vrot.slane %v2166, 1
      %v2448 = vsel %vm1574, %v2446, %v2447
      %v2449 = vrot.slane %v2297, 1
      %v2450 = vsel %vm1574, %v2447, %v2449
      %vm2451 = vcmask 261120
      %v2453 = vsel %vm2451, %v645, %v1447
      %v2455 = vsel %vm2451, %v646, %v1449
      %v2457 = vsel %vm2451, %v647, %v1451
      %v2459 = vsel %vm2451, %v648, %v1453
      %v2461 = vsel %vm2451, %v649, %v1455
      %v2463 = vsel %vm2451, %v650, %v1457
      %v2465 = vsel %vm2451, %v651, %v1459
      %v2467 = vsel %vm2451, %v652, %v1461
      %v2469 = vsel %vm2451, %v653, %v1463
      %v2471 = vsel %vm2451, %v654, %v1465
      %v2473 = vsel %vm2451, %v655, %v1467
      %v2475 = vsel %vm2451, %v656, %v1469
      %v2477 = vsel %vm2451, %v657, %v1471
      %v2479 = vsel %vm2451, %v658, %v1473
      %v2481 = vsel %vm2451, %v659, %v1475
      %v2483 = vsel %vm2451, %v660, %v1477
      %v2485 = vsel %vm2451, %v661, %v1479
      %v2487 = vsel %vm2451, %v662, %v1481
      %v2489 = vsel %vm2451, %v663, %v1483
      %v2491 = vsel %vm2451, %v664, %v1485
      %v2493 = vsel %vm2451, %v665, %v1487
      %v2495 = vsel %vm2451, %v666, %v1489
      %v2497 = vsel %vm2451, %v667, %v1491
      %v2499 = vsel %vm2451, %v668, %v1493
      %v2501 = vsel %vm2451, %v669, %v1495
      %v2503 = vsel %vm2451, %v670, %v1497
      %v2505 = vsel %vm2451, %v671, %v1499
      %v2507 = vsel %vm2451, %v672, %v1501
      %v2509 = vsel %vm2451, %v673, %v1503
      %v2511 = vsel %vm2451, %v674, %v1505
      %v2513 = vsel %vm2451, %v675, %v1507
      %v2515 = vsel %vm2451, %v676, %v1509
      %v2517 = vsel %vm2451, %v677, %v1511
      %v2519 = vsel %vm2451, %v678, %v1513
      %v2521 = vsel %vm2451, %v679, %v1515
      %v2523 = vsel %vm2451, %v680, %v1517
      %v2525 = vsel %vm2451, %v681, %v1519
      %v2527 = vsel %vm2451, %v682, %v1521
      %v2529 = vsel %vm2451, %v683, %v1523
      %v2531 = vsel %vm2451, %v684, %v1525
      %v2533 = vsel %vm2451, %v685, %v1527
      %v2535 = vsel %vm2451, %v686, %v1529
      %v2537 = vsel %vm2451, %v687, %v1531
      %v2539 = vsel %vm2451, %v688, %v1533
      %v2541 = vsel %vm2451, %v689, %v1535
      %v2543 = vsel %vm2451, %v690, %v1537
      %v2545 = vsel %vm2451, %v691, %v1539
      %v2547 = vsel %vm2451, %v692, %v1541
      %v2549 = vsel %vm2451, %v693, %v1543
      %v2551 = vsel %vm2451, %v694, %v1545
      %v2553 = vsel %vm2451, %v695, %v1547
      %v2555 = vsel %vm2451, %v696, %v1549
      %v2557 = vsel %vm2451, %v697, %v1551
      %v2559 = vsel %vm2451, %v698, %v1553
      %v2561 = vsel %vm2451, %v699, %v1555
      %v2563 = vsel %vm2451, %v700, %v1557
      %v2565 = vsel %vm2451, %v701, %v1559
      %v2567 = vsel %vm2451, %v702, %v1561
      %v2569 = vsel %vm2451, %v703, %v1563
      %v2571 = vsel %vm2451, %v704, %v1565
      %v2573 = vsel %vm2451, %v705, %v1567
      %v2575 = vsel %vm2451, %v706, %v1569
      %v2577 = vsel %vm2451, %v707, %v1571
      %v2579 = vsel %vm2451, %v708, %v1573
      %vm2580 = vcmask 523264
      %v2582 = vsel %vm2580, %v2453, %v1736
      %v2584 = vsel %vm2580, %v2455, %v1738
      %v2586 = vsel %vm2580, %v2457, %v1740
      %v2588 = vsel %vm2580, %v2459, %v1742
      %v2590 = vsel %vm2580, %v2461, %v1744
      %v2592 = vsel %vm2580, %v2463, %v1746
      %v2594 = vsel %vm2580, %v2465, %v1748
      %v2596 = vsel %vm2580, %v2467, %v1750
      %v2598 = vsel %vm2580, %v2469, %v1752
      %v2600 = vsel %vm2580, %v2471, %v1754
      %v2602 = vsel %vm2580, %v2473, %v1756
      %v2604 = vsel %vm2580, %v2475, %v1758
      %v2606 = vsel %vm2580, %v2477, %v1760
      %v2608 = vsel %vm2580, %v2479, %v1762
      %v2610 = vsel %vm2580, %v2481, %v1764
      %v2612 = vsel %vm2580, %v2483, %v1766
      %v2614 = vsel %vm2580, %v2485, %v1768
      %v2616 = vsel %vm2580, %v2487, %v1770
      %v2618 = vsel %vm2580, %v2489, %v1772
      %v2620 = vsel %vm2580, %v2491, %v1774
      %v2622 = vsel %vm2580, %v2493, %v1776
      %v2624 = vsel %vm2580, %v2495, %v1778
      %v2626 = vsel %vm2580, %v2497, %v1780
      %v2628 = vsel %vm2580, %v2499, %v1782
      %v2630 = vsel %vm2580, %v2501, %v1784
      %v2632 = vsel %vm2580, %v2503, %v1786
      %v2634 = vsel %vm2580, %v2505, %v1788
      %v2636 = vsel %vm2580, %v2507, %v1790
      %v2638 = vsel %vm2580, %v2509, %v1792
      %v2640 = vsel %vm2580, %v2511, %v1794
      %v2642 = vsel %vm2580, %v2513, %v1796
      %v2644 = vsel %vm2580, %v2515, %v1798
      %v2646 = vsel %vm2580, %v2517, %v1800
      %v2648 = vsel %vm2580, %v2519, %v1802
      %v2650 = vsel %vm2580, %v2521, %v1804
      %v2652 = vsel %vm2580, %v2523, %v1806
      %v2654 = vsel %vm2580, %v2525, %v1808
      %v2656 = vsel %vm2580, %v2527, %v1810
      %v2658 = vsel %vm2580, %v2529, %v1812
      %v2660 = vsel %vm2580, %v2531, %v1814
      %v2662 = vsel %vm2580, %v2533, %v1816
      %v2664 = vsel %vm2580, %v2535, %v1818
      %v2666 = vsel %vm2580, %v2537, %v1820
      %v2668 = vsel %vm2580, %v2539, %v1822
      %v2670 = vsel %vm2580, %v2541, %v1824
      %v2672 = vsel %vm2580, %v2543, %v1826
      %v2674 = vsel %vm2580, %v2545, %v1828
      %v2676 = vsel %vm2580, %v2547, %v1830
      %v2678 = vsel %vm2580, %v2549, %v1832
      %v2680 = vsel %vm2580, %v2551, %v1834
      %v2682 = vsel %vm2580, %v2553, %v1836
      %v2684 = vsel %vm2580, %v2555, %v1838
      %v2686 = vsel %vm2580, %v2557, %v1840
      %v2688 = vsel %vm2580, %v2559, %v1842
      %v2690 = vsel %vm2580, %v2561, %v1844
      %v2692 = vsel %vm2580, %v2563, %v1846
      %v2694 = vsel %vm2580, %v2565, %v1848
      %v2696 = vsel %vm2580, %v2567, %v1850
      %v2698 = vsel %vm2580, %v2569, %v1852
      %v2700 = vsel %vm2580, %v2571, %v1854
      %v2702 = vsel %vm2580, %v2573, %v1856
      %v2704 = vsel %vm2580, %v2575, %v1858
      %v2706 = vsel %vm2580, %v2577, %v1860
      %v2708 = vsel %vm2580, %v2579, %v1862
      %vm2709 = vcmask 785408
      %v2711 = vsel %vm2709, %v2582, %v1874
      %v2714 = vsel %vm2709, %v2584, %v1876
      %v2717 = vsel %vm2709, %v2586, %v1878
      %v2720 = vsel %vm2709, %v2588, %v1880
      %v2723 = vsel %vm2709, %v2590, %v1882
      %v2726 = vsel %vm2709, %v2592, %v1884
      %v2729 = vsel %vm2709, %v2594, %v1886
      %v2732 = vsel %vm2709, %v2596, %v1888
      %v2735 = vsel %vm2709, %v2598, %v1890
      %v2738 = vsel %vm2709, %v2600, %v1892
      %v2741 = vsel %vm2709, %v2602, %v1894
      %v2744 = vsel %vm2709, %v2604, %v1896
      %v2747 = vsel %vm2709, %v2606, %v1898
      %v2750 = vsel %vm2709, %v2608, %v1900
      %v2753 = vsel %vm2709, %v2610, %v1902
      %v2756 = vsel %vm2709, %v2612, %v1904
      %v2759 = vsel %vm2709, %v2614, %v1906
      %v2762 = vsel %vm2709, %v2616, %v1908
      %v2765 = vsel %vm2709, %v2618, %v1910
      %v2768 = vsel %vm2709, %v2620, %v1912
      %v2771 = vsel %vm2709, %v2622, %v1914
      %v2774 = vsel %vm2709, %v2624, %v1916
      %v2777 = vsel %vm2709, %v2626, %v1918
      %v2780 = vsel %vm2709, %v2628, %v1920
      %v2783 = vsel %vm2709, %v2630, %v1922
      %v2786 = vsel %vm2709, %v2632, %v1924
      %v2789 = vsel %vm2709, %v2634, %v1926
      %v2792 = vsel %vm2709, %v2636, %v1928
      %v2795 = vsel %vm2709, %v2638, %v1930
      %v2798 = vsel %vm2709, %v2640, %v1932
      %v2801 = vsel %vm2709, %v2642, %v1934
      %v2804 = vsel %vm2709, %v2644, %v1936
      %v2807 = vsel %vm2709, %v2646, %v1938
      %v2810 = vsel %vm2709, %v2648, %v1940
      %v2813 = vsel %vm2709, %v2650, %v1942
      %v2816 = vsel %vm2709, %v2652, %v1944
      %v2819 = vsel %vm2709, %v2654, %v1946
      %v2822 = vsel %vm2709, %v2656, %v1948
      %v2825 = vsel %vm2709, %v2658, %v1950
      %v2828 = vsel %vm2709, %v2660, %v1952
      %v2831 = vsel %vm2709, %v2662, %v1954
      %v2834 = vsel %vm2709, %v2664, %v1956
      %v2837 = vsel %vm2709, %v2666, %v1958
      %v2840 = vsel %vm2709, %v2668, %v1960
      %v2843 = vsel %vm2709, %v2670, %v1962
      %v2846 = vsel %vm2709, %v2672, %v1964
      %v2849 = vsel %vm2709, %v2674, %v1966
      %v2852 = vsel %vm2709, %v2676, %v1968
      %v2855 = vsel %vm2709, %v2678, %v1970
      %v2858 = vsel %vm2709, %v2680, %v1972
      %v2861 = vsel %vm2709, %v2682, %v1974
      %v2864 = vsel %vm2709, %v2684, %v1976
      %v2867 = vsel %vm2709, %v2686, %v1978
      %v2870 = vsel %vm2709, %v2688, %v1980
      %v2873 = vsel %vm2709, %v2690, %v1982
      %v2876 = vsel %vm2709, %v2692, %v1984
      %v2879 = vsel %vm2709, %v2694, %v1986
      %v2882 = vsel %vm2709, %v2696, %v1988
      %v2885 = vsel %vm2709, %v2698, %v1990
      %v2888 = vsel %vm2709, %v2700, %v1992
      %v2891 = vsel %vm2709, %v2702, %v1994
      %v2894 = vsel %vm2709, %v2704, %v1996
      %v2897 = vsel %vm2709, %v2706, %v1998
      %v2900 = vsel %vm2709, %v2708, %v2000
      %v2904 = vsel %vm2451, %v837, %v2030
      %v2907 = vsel %vm2451, %v845, %v2032
      %v2910 = vsel %vm2451, %v857, %v2034
      %v2913 = vsel %vm2451, %v865, %v2036
      %v2916 = vsel %vm2451, %v877, %v2038
      %v2919 = vsel %vm2451, %v885, %v2040
      %v2922 = vsel %vm2451, %v897, %v2042
      %v2925 = vsel %vm2451, %v905, %v2044
      %v2928 = vsel %vm2451, %v917, %v2046
      %v2931 = vsel %vm2451, %v925, %v2048
      %v2934 = vsel %vm2451, %v937, %v2050
      %v2937 = vsel %vm2451, %v945, %v2052
      %v2940 = vsel %vm2451, %v957, %v2054
      %v2943 = vsel %vm2451, %v965, %v2056
      %v2946 = vsel %vm2451, %v977, %v2058
      %v2949 = vsel %vm2451, %v985, %v2060
      %v2952 = vsel %vm2451, %v997, %v2062
      %v2955 = vsel %vm2451, %v1005, %v2064
      %v2958 = vsel %vm2451, %v1017, %v2066
      %v2961 = vsel %vm2451, %v1025, %v2068
      %v2964 = vsel %vm2451, %v1037, %v2070
      %v2967 = vsel %vm2451, %v1045, %v2072
      %v2970 = vsel %vm2451, %v1057, %v2074
      %v2973 = vsel %vm2451, %v1065, %v2076
      %v2976 = vsel %vm2451, %v1077, %v2078
      %v2979 = vsel %vm2451, %v1085, %v2080
      %v2982 = vsel %vm2451, %v1097, %v2082
      %v2985 = vsel %vm2451, %v1105, %v2084
      %v2988 = vsel %vm2451, %v1117, %v2086
      %v2991 = vsel %vm2451, %v1125, %v2088
      %v2994 = vsel %vm2451, %v1137, %v2090
      %v2997 = vsel %vm2451, %v1145, %v2092
      %v3000 = vsel %vm2451, %v1157, %v2094
      %v3003 = vsel %vm2451, %v1165, %v2096
      %v3006 = vsel %vm2451, %v1177, %v2098
      %v3009 = vsel %vm2451, %v1185, %v2100
      %v3012 = vsel %vm2451, %v1197, %v2102
      %v3015 = vsel %vm2451, %v1205, %v2104
      %v3018 = vsel %vm2451, %v1217, %v2106
      %v3021 = vsel %vm2451, %v1225, %v2108
      %v3024 = vsel %vm2451, %v1237, %v2110
      %v3027 = vsel %vm2451, %v1245, %v2112
      %v3030 = vsel %vm2451, %v1257, %v2114
      %v3033 = vsel %vm2451, %v1265, %v2116
      %v3036 = vsel %vm2451, %v1277, %v2118
      %v3039 = vsel %vm2451, %v1285, %v2120
      %v3042 = vsel %vm2451, %v1297, %v2122
      %v3045 = vsel %vm2451, %v1305, %v2124
      %v3048 = vsel %vm2451, %v1317, %v2126
      %v3051 = vsel %vm2451, %v1325, %v2128
      %v3054 = vsel %vm2451, %v1337, %v2130
      %v3057 = vsel %vm2451, %v1345, %v2132
      %v3060 = vsel %vm2451, %v1357, %v2134
      %v3063 = vsel %vm2451, %v1365, %v2136
      %v3066 = vsel %vm2451, %v1377, %v2138
      %v3069 = vsel %vm2451, %v1385, %v2140
      %v3072 = vsel %vm2451, %v1397, %v2142
      %v3075 = vsel %vm2451, %v1405, %v2144
      %v3078 = vsel %vm2451, %v1417, %v2146
      %v3081 = vsel %vm2451, %v1425, %v2148
      %v3084 = vsel %vm2451, %v1437, %v2150
      %v3087 = vsel %vm2451, %v1445, %v2152
      %v3090 = vsel %vm2451, %v2015, %v2154
      %v3093 = vsel %vm2451, %v2023, %v2156
      %v3095 = vsel %vm2580, %v2904, %v2168
      %v3097 = vsel %vm2580, %v2907, %v2170
      %v3099 = vsel %vm2580, %v2910, %v2172
      %v3101 = vsel %vm2580, %v2913, %v2174
      %v3103 = vsel %vm2580, %v2916, %v2176
      %v3105 = vsel %vm2580, %v2919, %v2178
      %v3107 = vsel %vm2580, %v2922, %v2180
      %v3109 = vsel %vm2580, %v2925, %v2182
      %v3111 = vsel %vm2580, %v2928, %v2184
      %v3113 = vsel %vm2580, %v2931, %v2186
      %v3115 = vsel %vm2580, %v2934, %v2188
      %v3117 = vsel %vm2580, %v2937, %v2190
      %v3119 = vsel %vm2580, %v2940, %v2192
      %v3121 = vsel %vm2580, %v2943, %v2194
      %v3123 = vsel %vm2580, %v2946, %v2196
      %v3125 = vsel %vm2580, %v2949, %v2198
      %v3127 = vsel %vm2580, %v2952, %v2200
      %v3129 = vsel %vm2580, %v2955, %v2202
      %v3131 = vsel %vm2580, %v2958, %v2204
      %v3133 = vsel %vm2580, %v2961, %v2206
      %v3135 = vsel %vm2580, %v2964, %v2208
      %v3137 = vsel %vm2580, %v2967, %v2210
      %v3139 = vsel %vm2580, %v2970, %v2212
      %v3141 = vsel %vm2580, %v2973, %v2214
      %v3143 = vsel %vm2580, %v2976, %v2216
      %v3145 = vsel %vm2580, %v2979, %v2218
      %v3147 = vsel %vm2580, %v2982, %v2220
      %v3149 = vsel %vm2580, %v2985, %v2222
      %v3151 = vsel %vm2580, %v2988, %v2224
      %v3153 = vsel %vm2580, %v2991, %v2226
      %v3155 = vsel %vm2580, %v2994, %v2228
      %v3157 = vsel %vm2580, %v2997, %v2230
      %v3159 = vsel %vm2580, %v3000, %v2232
      %v3161 = vsel %vm2580, %v3003, %v2234
      %v3163 = vsel %vm2580, %v3006, %v2236
      %v3165 = vsel %vm2580, %v3009, %v2238
      %v3167 = vsel %vm2580, %v3012, %v2240
      %v3169 = vsel %vm2580, %v3015, %v2242
      %v3171 = vsel %vm2580, %v3018, %v2244
      %v3173 = vsel %vm2580, %v3021, %v2246
      %v3175 = vsel %vm2580, %v3024, %v2248
      %v3177 = vsel %vm2580, %v3027, %v2250
      %v3179 = vsel %vm2580, %v3030, %v2252
      %v3181 = vsel %vm2580, %v3033, %v2254
      %v3183 = vsel %vm2580, %v3036, %v2256
      %v3185 = vsel %vm2580, %v3039, %v2258
      %v3187 = vsel %vm2580, %v3042, %v2260
      %v3189 = vsel %vm2580, %v3045, %v2262
      %v3191 = vsel %vm2580, %v3048, %v2264
      %v3193 = vsel %vm2580, %v3051, %v2266
      %v3195 = vsel %vm2580, %v3054, %v2268
      %v3197 = vsel %vm2580, %v3057, %v2270
      %v3199 = vsel %vm2580, %v3060, %v2272
      %v3201 = vsel %vm2580, %v3063, %v2274
      %v3203 = vsel %vm2580, %v3066, %v2276
      %v3205 = vsel %vm2580, %v3069, %v2278
      %v3207 = vsel %vm2580, %v3072, %v2280
      %v3209 = vsel %vm2580, %v3075, %v2282
      %v3211 = vsel %vm2580, %v3078, %v2284
      %v3213 = vsel %vm2580, %v3081, %v2286
      %v3215 = vsel %vm2580, %v3084, %v2288
      %v3217 = vsel %vm2580, %v3087, %v2290
      %v3219 = vsel %vm2580, %v3090, %v2292
      %v3221 = vsel %vm2580, %v3093, %v2294
      %v3223 = vsel %vm2709, %v3095, %v2319
      %v3226 = vsel %vm2709, %v3097, %v2321
      %v3229 = vsel %vm2709, %v3099, %v2323
      %v3232 = vsel %vm2709, %v3101, %v2325
      %v3235 = vsel %vm2709, %v3103, %v2327
      %v3238 = vsel %vm2709, %v3105, %v2329
      %v3241 = vsel %vm2709, %v3107, %v2331
      %v3244 = vsel %vm2709, %v3109, %v2333
      %v3247 = vsel %vm2709, %v3111, %v2335
      %v3250 = vsel %vm2709, %v3113, %v2337
      %v3253 = vsel %vm2709, %v3115, %v2339
      %v3256 = vsel %vm2709, %v3117, %v2341
      %v3259 = vsel %vm2709, %v3119, %v2343
      %v3262 = vsel %vm2709, %v3121, %v2345
      %v3265 = vsel %vm2709, %v3123, %v2347
      %v3268 = vsel %vm2709, %v3125, %v2349
      %v3271 = vsel %vm2709, %v3127, %v2351
      %v3274 = vsel %vm2709, %v3129, %v2353
      %v3277 = vsel %vm2709, %v3131, %v2355
      %v3280 = vsel %vm2709, %v3133, %v2357
      %v3283 = vsel %vm2709, %v3135, %v2359
      %v3286 = vsel %vm2709, %v3137, %v2361
      %v3289 = vsel %vm2709, %v3139, %v2363
      %v3292 = vsel %vm2709, %v3141, %v2365
      %v3295 = vsel %vm2709, %v3143, %v2367
      %v3298 = vsel %vm2709, %v3145, %v2369
      %v3301 = vsel %vm2709, %v3147, %v2371
      %v3304 = vsel %vm2709, %v3149, %v2373
      %v3307 = vsel %vm2709, %v3151, %v2375
      %v3310 = vsel %vm2709, %v3153, %v2377
      %v3313 = vsel %vm2709, %v3155, %v2379
      %v3316 = vsel %vm2709, %v3157, %v2381
      %v3319 = vsel %vm2709, %v3159, %v2383
      %v3322 = vsel %vm2709, %v3161, %v2385
      %v3325 = vsel %vm2709, %v3163, %v2387
      %v3328 = vsel %vm2709, %v3165, %v2389
      %v3331 = vsel %vm2709, %v3167, %v2391
      %v3334 = vsel %vm2709, %v3169, %v2393
      %v3337 = vsel %vm2709, %v3171, %v2395
      %v3340 = vsel %vm2709, %v3173, %v2397
      %v3343 = vsel %vm2709, %v3175, %v2399
      %v3346 = vsel %vm2709, %v3177, %v2401
      %v3349 = vsel %vm2709, %v3179, %v2403
      %v3352 = vsel %vm2709, %v3181, %v2405
      %v3355 = vsel %vm2709, %v3183, %v2407
      %v3358 = vsel %vm2709, %v3185, %v2409
      %v3361 = vsel %vm2709, %v3187, %v2411
      %v3364 = vsel %vm2709, %v3189, %v2413
      %v3367 = vsel %vm2709, %v3191, %v2415
      %v3370 = vsel %vm2709, %v3193, %v2417
      %v3373 = vsel %vm2709, %v3195, %v2419
      %v3376 = vsel %vm2709, %v3197, %v2421
      %v3379 = vsel %vm2709, %v3199, %v2423
      %v3382 = vsel %vm2709, %v3201, %v2425
      %v3385 = vsel %vm2709, %v3203, %v2427
      %v3388 = vsel %vm2709, %v3205, %v2429
      %v3391 = vsel %vm2709, %v3207, %v2431
      %v3394 = vsel %vm2709, %v3209, %v2433
      %v3397 = vsel %vm2709, %v3211, %v2435
      %v3400 = vsel %vm2709, %v3213, %v2437
      %v3403 = vsel %vm2709, %v3215, %v2439
      %v3406 = vsel %vm2709, %v3217, %v2441
      %v3409 = vsel %vm2709, %v3219, %v2443
      %v3412 = vsel %vm2709, %v3221, %v2445
      %v3414 = vld [vmem:[%s1] sm:$0xf]
      %v3415 = vld [vmem:[%s1 + $0x4] sm:$0xf]
      %v3416 = vld [vmem:[%s1 + $0x8] sm:$0xf]
      %v3417 = vld [vmem:[%s1 + $0xc] sm:$0xf]
      %v3418 = vld [vmem:[%s1 + $0x10] sm:$0xf]
      %v3419 = vld [vmem:[%s1 + $0x14] sm:$0xf]
      %v3420 = vld [vmem:[%s1 + $0x18] sm:$0xf]
      %v3421 = vld [vmem:[%s1 + $0x1c] sm:$0xf]
      %v3422 = vld [vmem:[%s1 + $0x20] sm:$0xf]
      %v3423 = vld [vmem:[%s1 + $0x24] sm:$0xf]
      %v3424 = vld [vmem:[%s1 + $0x28] sm:$0xf]
      %v3425 = vld [vmem:[%s1 + $0x2c] sm:$0xf]
      %v3426 = vld [vmem:[%s1 + $0x30] sm:$0xf]
      %v3427 = vld [vmem:[%s1 + $0x34] sm:$0xf]
      %v3428 = vld [vmem:[%s1 + $0x38] sm:$0xf]
      %v3429 = vld [vmem:[%s1 + $0x3c] sm:$0xf]
      %v3430 = vld [vmem:[%s1 + $0x40] sm:$0xf]
      %v3431 = vld [vmem:[%s1 + $0x44] sm:$0xf]
      %v3432 = vld [vmem:[%s1 + $0x48] sm:$0xf]
      %v3433 = vld [vmem:[%s1 + $0x4c] sm:$0xf]
      %v3434 = vld [vmem:[%s1 + $0x50] sm:$0xf]
      %v3435 = vld [vmem:[%s1 + $0x54] sm:$0xf]
      %v3436 = vld [vmem:[%s1 + $0x58] sm:$0xf]
      %v3437 = vld [vmem:[%s1 + $0x5c] sm:$0xf]
      %v3438 = vld [vmem:[%s1 + $0x60] sm:$0xf]
      %v3439 = vld [vmem:[%s1 + $0x64] sm:$0xf]
      %v3440 = vld [vmem:[%s1 + $0x68] sm:$0xf]
      %v3441 = vld [vmem:[%s1 + $0x6c] sm:$0xf]
      %v3442 = vld [vmem:[%s1 + $0x70] sm:$0xf]
      %v3443 = vld [vmem:[%s1 + $0x74] sm:$0xf]
      %v3444 = vld [vmem:[%s1 + $0x78] sm:$0xf]
      %v3445 = vld [vmem:[%s1 + $0x7c] sm:$0xf]
      %v3446 = vld [vmem:[%s1 + $0x80] sm:$0xf]
      %v3447 = vld [vmem:[%s1 + $0x84] sm:$0xf]
      %v3448 = vld [vmem:[%s1 + $0x88] sm:$0xf]
      %v3449 = vld [vmem:[%s1 + $0x8c] sm:$0xf]
      %v3450 = vld [vmem:[%s2] sm:$0x1]
      %v3452 = vlaneseq
      %v3453 = vshrl.u32 %v3452, 7
      %v3454 = vsub.s32 0, %v3453
      %v3455 = vrot.slane %v3450, %v3454
      %v3493 = vunpack.c.l.b16 %v3414
      %v3494 = vunpack.c.l.b16 %v3415
      %v3495 = vunpack.c.l.b16 %v3416
      %v3496 = vunpack.c.l.b16 %v3417
      %v3497 = vunpack.c.l.b16 %v3418
      %v3498 = vunpack.c.l.b16 %v3419
      %v3499 = vunpack.c.l.b16 %v3420
      %v3500 = vunpack.c.l.b16 %v3421
      %v3501 = vunpack.c.l.b16 %v3422
      %v3502 = vunpack.c.l.b16 %v3423
      %v3503 = vunpack.c.l.b16 %v3424
      %v3504 = vunpack.c.l.b16 %v3425
      %v3505 = vunpack.c.l.b16 %v3426
      %v3506 = vunpack.c.l.b16 %v3427
      %v3507 = vunpack.c.l.b16 %v3428
      %v3508 = vunpack.c.l.b16 %v3429
      %v3509 = vunpack.c.l.b16 %v3430
      %v3510 = vunpack.c.l.b16 %v3431
      %v3511 = vunpack.c.l.b16 %v3432
      %v3512 = vunpack.c.l.b16 %v3433
      %v3513 = vunpack.c.l.b16 %v3434
      %v3514 = vunpack.c.l.b16 %v3435
      %v3515 = vunpack.c.l.b16 %v3436
      %v3516 = vunpack.c.l.b16 %v3437
      %v3517 = vunpack.c.l.b16 %v3438
      %v3518 = vunpack.c.l.b16 %v3439
      %v3519 = vunpack.c.l.b16 %v3440
      %v3520 = vunpack.c.l.b16 %v3441
      %v3521 = vunpack.c.l.b16 %v3442
      %v3522 = vunpack.c.l.b16 %v3443
      %v3523 = vunpack.c.l.b16 %v3444
      %v3524 = vunpack.c.l.b16 %v3445
      %v3525 = vunpack.c.l.b16 %v3446
      %v3526 = vunpack.c.l.b16 %v3447
      %v3527 = vunpack.c.l.b16 %v3448
      %v3528 = vunpack.c.l.b16 %v3449
      %v3529 = vpack.c.b16 %v3494, %v3493
      %v3530 = vpack.c.b16 %v3496, %v3495
      %v3531 = vpack.c.b16 %v3498, %v3497
      %v3532 = vpack.c.b16 %v3500, %v3499
      %v3533 = vpack.c.b16 %v3502, %v3501
      %v3534 = vpack.c.b16 %v3504, %v3503
      %v3535 = vpack.c.b16 %v3506, %v3505
      %v3536 = vpack.c.b16 %v3508, %v3507
      %v3537 = vpack.c.b16 %v3510, %v3509
      %v3538 = vpack.c.b16 %v3512, %v3511
      %v3539 = vpack.c.b16 %v3514, %v3513
      %v3540 = vpack.c.b16 %v3516, %v3515
      %v3541 = vpack.c.b16 %v3518, %v3517
      %v3542 = vpack.c.b16 %v3520, %v3519
      %v3543 = vpack.c.b16 %v3522, %v3521
      %v3544 = vpack.c.b16 %v3524, %v3523
      %v3545 = vpack.c.b16 %v3526, %v3525
      %v3546 = vpack.c.b16 %v3528, %v3527
      %v3566 = vsel %vm2451, %v1587, 0
      %v3569 = vsel %vm2451, %v1589, 0
      %v3572 = vsel %vm2451, %v1592, 0
      %v3575 = vsel %vm2451, %v1594, 0
      %v3578 = vsel %vm2451, %v1597, 0
      %v3581 = vsel %vm2451, %v1599, 0
      %v3584 = vsel %vm2451, %v1602, 0
      %v3587 = vsel %vm2451, %v1604, 0
      %v3590 = vsel %vm2451, %v1607, 0
      %v3593 = vsel %vm2451, %v1609, 0
      %v3596 = vsel %vm2451, %v1612, 0
      %v3599 = vsel %vm2451, %v1614, 0
      %v3602 = vsel %vm2451, %v1617, 0
      %v3605 = vsel %vm2451, %v1619, 0
      %v3608 = vsel %vm2451, %v1622, 0
      %v3611 = vsel %vm2451, %v1624, 0
      %v3614 = vsel %vm2451, %v1627, 0
      %v3617 = vsel %vm2451, %v1629, 0
      %v3620 = vsel %vm2451, %v1632, 0
      %v3623 = vsel %vm2451, %v1634, 0
      %v3626 = vsel %vm2451, %v1637, 0
      %v3629 = vsel %vm2451, %v1639, 0
      %v3632 = vsel %vm2451, %v1642, 0
      %v3635 = vsel %vm2451, %v1644, 0
      %v3638 = vsel %vm2451, %v1647, 0
      %v3641 = vsel %vm2451, %v1649, 0
      %v3644 = vsel %vm2451, %v1652, 0
      %v3647 = vsel %vm2451, %v1654, 0
      %v3650 = vsel %vm2451, %v1657, 0
      %v3653 = vsel %vm2451, %v1659, 0
      %v3656 = vsel %vm2451, %v1662, 0
      %v3659 = vsel %vm2451, %v1664, 0
      %v3662 = vsel %vm2451, %v1667, 0
      %v3665 = vsel %vm2451, %v1669, 0
      %v3668 = vsel %vm2451, %v1672, 0
      %v3671 = vsel %vm2451, %v1674, 0
      %v3674 = vsel %vm2451, %v1677, 0
      %v3677 = vsel %vm2451, %v1679, 0
      %v3680 = vsel %vm2451, %v1682, 0
      %v3683 = vsel %vm2451, %v1684, 0
      %v3686 = vsel %vm2451, %v1687, 0
      %v3689 = vsel %vm2451, %v1689, 0
      %v3692 = vsel %vm2451, %v1692, 0
      %v3695 = vsel %vm2451, %v1694, 0
      %v3698 = vsel %vm2451, %v1697, 0
      %v3701 = vsel %vm2451, %v1699, 0
      %v3704 = vsel %vm2451, %v1702, 0
      %v3707 = vsel %vm2451, %v1704, 0
      %v3710 = vsel %vm2451, %v1707, 0
      %v3713 = vsel %vm2451, %v1709, 0
      %v3716 = vsel %vm2451, %v1712, 0
      %v3719 = vsel %vm2451, %v1714, 0
      %v3722 = vsel %vm2451, %v1717, 0
      %v3725 = vsel %vm2451, %v1719, 0
      %v3728 = vsel %vm2451, %v1722, 0
      %v3731 = vsel %vm2451, %v1724, 0
      %v3734 = vsel %vm2451, %v1727, 0
      %v3737 = vsel %vm2451, %v1729, 0
      %v3740 = vsel %vm2451, %v1732, 0
      %v3743 = vsel %vm2451, %v1734, 0
      %v3746 = vsel %vm2451, %v2026, 0
      %v3749 = vsel %vm2451, %v2028, 0
      %v3752 = vsel %vm2451, %v2448, 0
      %v3755 = vsel %vm2451, %v2450, 0
      %3757 = vmatprep.subr.bf16.mxu0 0
      %3758 = vmatpush1.bf16.msra.mxu0 %v3536
      %3759 = vmatprep.subr.bf16.mxu0 0
      %3760 = vmatpush1.bf16.msra.mxu0 %v3535
      %3761 = vmatprep.subr.bf16.mxu0 0
      %3762 = vmatpush1.bf16.msra.mxu0 %v3534
      %3763 = vmatprep.subr.bf16.mxu0 0
      %3764 = vmatpush1.bf16.msra.mxu0 %v3533
      %3765 = vmatprep.subr.bf16.mxu0 0
      %3766 = vmatpush1.bf16.msra.mxu0 %v3532
      %3767 = vmatprep.subr.bf16.mxu0 0
      %3768 = vmatpush1.bf16.msra.mxu0 %v3531
      %3769 = vmatprep.subr.bf16.mxu0 0
      %3770 = vmatpush1.bf16.msra.mxu0 %v3530
      %3771 = vmatprep.subr.bf16.mxu0 0
      %3772 = vmatpush1.bf16.msra.mxu0 %v3529
      %3773 = vmatprep.subr.bf16.mxu0 0
      %3774 = vmatpush2.bf16.msra.mxu0 %v3544
      %3775 = vmatprep.subr.bf16.mxu0 0
      %3776 = vmatpush2.bf16.msra.mxu0 %v3543
      %3777 = vmatprep.subr.bf16.mxu0 0
      %3778 = vmatpush2.bf16.msra.mxu0 %v3542
      %3779 = vmatprep.subr.bf16.mxu0 0
      %3780 = vmatpush2.bf16.msra.mxu0 %v3541
      %3781 = vmatprep.subr.bf16.mxu0 0
      %3782 = vmatpush2.bf16.msra.mxu0 %v3540
      %3783 = vmatprep.subr.bf16.mxu0 0
      %3784 = vmatpush2.bf16.msra.mxu0 %v3539
      %3785 = vmatprep.subr.bf16.mxu0 0
      %3786 = vmatpush2.bf16.msra.mxu0 %v3538
      %3787 = vmatprep.subr.bf16.mxu0 0
      %3788 = vmatpush2.bf16.msra.mxu0 %v3537
      %3789 = vmatprep.mubr.bf16.mxu0 %v3223
      %3790 = vmatmul.mubr.bf16.gmra.mxu0 %v2711
      %v3791 = vpop.f32.mrf.mxu0
      %v3792 = vadd.f32 %v3455, %v3791
      %v3793 = vpop.f32.mrf.mxu0
      %v3794 = vpop.f32.mrf.mxu0
      %v3795 = vadd.f32 %v3455, %v3794
      %v3796 = vpop.f32.mrf.mxu0
      %3797 = vmatprep.mubr.bf16.mxu0 %v3226
      %3798 = vmatmul.mubr.bf16.gmra.mxu0 %v2714
      %v3799 = vpop.f32.mrf.mxu0
      %v3800 = vadd.f32 %v3455, %v3799
      %v3801 = vpop.f32.mrf.mxu0
      %v3802 = vpop.f32.mrf.mxu0
      %v3803 = vadd.f32 %v3455, %v3802
      %v3804 = vpop.f32.mrf.mxu0
      %3805 = vmatprep.mubr.bf16.mxu0 %v3229
      %3806 = vmatmul.mubr.bf16.gmra.mxu0 %v2717
      %v3807 = vpop.f32.mrf.mxu0
      %v3808 = vadd.f32 %v3455, %v3807
      %v3809 = vpop.f32.mrf.mxu0
      %v3810 = vpop.f32.mrf.mxu0
      %v3811 = vadd.f32 %v3455, %v3810
      %v3812 = vpop.f32.mrf.mxu0
      %3813 = vmatprep.mubr.bf16.mxu0 %v3232
      %3814 = vmatmul.mubr.bf16.gmra.mxu0 %v2720
      %v3815 = vpop.f32.mrf.mxu0
      %v3816 = vadd.f32 %v3455, %v3815
      %v3817 = vpop.f32.mrf.mxu0
      %v3818 = vpop.f32.mrf.mxu0
      %v3819 = vadd.f32 %v3455, %v3818
      %v3820 = vpop.f32.mrf.mxu0
      %3821 = vmatprep.mubr.bf16.mxu0 %v3235
      %3822 = vmatmul.mubr.bf16.gmra.mxu0 %v2723
      %v3823 = vpop.f32.mrf.mxu0
      %v3824 = vadd.f32 %v3455, %v3823
      %v3825 = vpop.f32.mrf.mxu0
      %v3826 = vpop.f32.mrf.mxu0
      %v3827 = vadd.f32 %v3455, %v3826
      %v3828 = vpop.f32.mrf.mxu0
      %3829 = vmatprep.mubr.bf16.mxu0 %v3238
      %3830 = vmatmul.mubr.bf16.gmra.mxu0 %v2726
      %v3831 = vpop.f32.mrf.mxu0
      %v3832 = vadd.f32 %v3455, %v3831
      %v3833 = vpop.f32.mrf.mxu0
      %v3834 = vpop.f32.mrf.mxu0
      %v3835 = vadd.f32 %v3455, %v3834
      %v3836 = vpop.f32.mrf.mxu0
      %3837 = vmatprep.mubr.bf16.mxu0 %v3241
      %3838 = vmatmul.mubr.bf16.gmra.mxu0 %v2729
      %v3839 = vpop.f32.mrf.mxu0
      %v3840 = vadd.f32 %v3455, %v3839
      %v3841 = vpop.f32.mrf.mxu0
      %v3842 = vpop.f32.mrf.mxu0
      %v3843 = vadd.f32 %v3455, %v3842
      %v3844 = vpop.f32.mrf.mxu0
      %3845 = vmatprep.mubr.bf16.mxu0 %v3244
      %3846 = vmatmul.mubr.bf16.gmra.mxu0 %v2732
      %v3847 = vpop.f32.mrf.mxu0
      %v3848 = vadd.f32 %v3455, %v3847
      %v3849 = vpop.f32.mrf.mxu0
      %v3850 = vpop.f32.mrf.mxu0
      %v3851 = vadd.f32 %v3455, %v3850
      %v3852 = vpop.f32.mrf.mxu0
      %3853 = vmatprep.mubr.bf16.mxu0 %v3247
      %3854 = vmatmul.mubr.bf16.gmra.mxu0 %v2735
      %v3855 = vpop.f32.mrf.mxu0
      %v3856 = vadd.f32 %v3455, %v3855
      %v3857 = vpop.f32.mrf.mxu0
      %v3858 = vpop.f32.mrf.mxu0
      %v3859 = vadd.f32 %v3455, %v3858
      %v3860 = vpop.f32.mrf.mxu0
      %3861 = vmatprep.mubr.bf16.mxu0 %v3250
      %3862 = vmatmul.mubr.bf16.gmra.mxu0 %v2738
      %v3863 = vpop.f32.mrf.mxu0
      %v3864 = vadd.f32 %v3455, %v3863
      %v3865 = vpop.f32.mrf.mxu0
      %v3866 = vpop.f32.mrf.mxu0
      %v3867 = vadd.f32 %v3455, %v3866
      %v3868 = vpop.f32.mrf.mxu0
      %3869 = vmatprep.mubr.bf16.mxu0 %v3253
      %3870 = vmatmul.mubr.bf16.gmra.mxu0 %v2741
      %v3871 = vpop.f32.mrf.mxu0
      %v3872 = vadd.f32 %v3455, %v3871
      %v3873 = vpop.f32.mrf.mxu0
      %v3874 = vpop.f32.mrf.mxu0
      %v3875 = vadd.f32 %v3455, %v3874
      %v3876 = vpop.f32.mrf.mxu0
      %3877 = vmatprep.mubr.bf16.mxu0 %v3256
      %3878 = vmatmul.mubr.bf16.gmra.mxu0 %v2744
      %v3879 = vpop.f32.mrf.mxu0
      %v3880 = vadd.f32 %v3455, %v3879
      %v3881 = vpop.f32.mrf.mxu0
      %v3882 = vpop.f32.mrf.mxu0
      %v3883 = vadd.f32 %v3455, %v3882
      %v3884 = vpop.f32.mrf.mxu0
      %3885 = vmatprep.mubr.bf16.mxu0 %v3259
      %3886 = vmatmul.mubr.bf16.gmra.mxu0 %v2747
      %v3887 = vpop.f32.mrf.mxu0
      %v3888 = vadd.f32 %v3455, %v3887
      %v3889 = vpop.f32.mrf.mxu0
      %v3890 = vpop.f32.mrf.mxu0
      %v3891 = vadd.f32 %v3455, %v3890
      %v3892 = vpop.f32.mrf.mxu0
      %3893 = vmatprep.mubr.bf16.mxu0 %v3262
      %3894 = vmatmul.mubr.bf16.gmra.mxu0 %v2750
      %v3895 = vpop.f32.mrf.mxu0
      %v3896 = vadd.f32 %v3455, %v3895
      %v3897 = vpop.f32.mrf.mxu0
      %v3898 = vpop.f32.mrf.mxu0
      %v3899 = vadd.f32 %v3455, %v3898
      %v3900 = vpop.f32.mrf.mxu0
      %3901 = vmatprep.mubr.bf16.mxu0 %v3265
      %3902 = vmatmul.mubr.bf16.gmra.mxu0 %v2753
      %v3903 = vpop.f32.mrf.mxu0
      %v3904 = vadd.f32 %v3455, %v3903
      %v3905 = vpop.f32.mrf.mxu0
      %v3906 = vpop.f32.mrf.mxu0
      %v3907 = vadd.f32 %v3455, %v3906
      %v3908 = vpop.f32.mrf.mxu0
      %3909 = vmatprep.mubr.bf16.mxu0 %v3268
      %3910 = vmatmul.mubr.bf16.gmra.mxu0 %v2756
      %v3911 = vpop.f32.mrf.mxu0
      %v3912 = vadd.f32 %v3455, %v3911
      %v3913 = vpop.f32.mrf.mxu0
      %v3914 = vpop.f32.mrf.mxu0
      %v3915 = vadd.f32 %v3455, %v3914
      %v3916 = vpop.f32.mrf.mxu0
      %3917 = vmatprep.mubr.bf16.mxu0 %v3271
      %3918 = vmatmul.mubr.bf16.gmra.mxu0 %v2759
      %v3919 = vpop.f32.mrf.mxu0
      %v3920 = vadd.f32 %v3455, %v3919
      %v3921 = vpop.f32.mrf.mxu0
      %v3922 = vpop.f32.mrf.mxu0
      %v3923 = vadd.f32 %v3455, %v3922
      %v3924 = vpop.f32.mrf.mxu0
      %3925 = vmatprep.mubr.bf16.mxu0 %v3274
      %3926 = vmatmul.mubr.bf16.gmra.mxu0 %v2762
      %v3927 = vpop.f32.mrf.mxu0
      %v3928 = vadd.f32 %v3455, %v3927
      %v3929 = vpop.f32.mrf.mxu0
      %v3930 = vpop.f32.mrf.mxu0
      %v3931 = vadd.f32 %v3455, %v3930
      %v3932 = vpop.f32.mrf.mxu0
      %3933 = vmatprep.mubr.bf16.mxu0 %v3277
      %3934 = vmatmul.mubr.bf16.gmra.mxu0 %v2765
      %v3935 = vpop.f32.mrf.mxu0
      %v3936 = vadd.f32 %v3455, %v3935
      %v3937 = vpop.f32.mrf.mxu0
      %v3938 = vpop.f32.mrf.mxu0
      %v3939 = vadd.f32 %v3455, %v3938
      %v3940 = vpop.f32.mrf.mxu0
      %3941 = vmatprep.mubr.bf16.mxu0 %v3280
      %3942 = vmatmul.mubr.bf16.gmra.mxu0 %v2768
      %v3943 = vpop.f32.mrf.mxu0
      %v3944 = vadd.f32 %v3455, %v3943
      %v3945 = vpop.f32.mrf.mxu0
      %v3946 = vpop.f32.mrf.mxu0
      %v3947 = vadd.f32 %v3455, %v3946
      %v3948 = vpop.f32.mrf.mxu0
      %3949 = vmatprep.mubr.bf16.mxu0 %v3283
      %3950 = vmatmul.mubr.bf16.gmra.mxu0 %v2771
      %v3951 = vpop.f32.mrf.mxu0
      %v3952 = vadd.f32 %v3455, %v3951
      %v3953 = vpop.f32.mrf.mxu0
      %v3954 = vpop.f32.mrf.mxu0
      %v3955 = vadd.f32 %v3455, %v3954
      %v3956 = vpop.f32.mrf.mxu0
      %3957 = vmatprep.mubr.bf16.mxu0 %v3286
      %3958 = vmatmul.mubr.bf16.gmra.mxu0 %v2774
      %v3959 = vpop.f32.mrf.mxu0
      %v3960 = vadd.f32 %v3455, %v3959
      %v3961 = vpop.f32.mrf.mxu0
      %v3962 = vpop.f32.mrf.mxu0
      %v3963 = vadd.f32 %v3455, %v3962
      %v3964 = vpop.f32.mrf.mxu0
      %3965 = vmatprep.mubr.bf16.mxu0 %v3289
      %3966 = vmatmul.mubr.bf16.gmra.mxu0 %v2777
      %v3967 = vpop.f32.mrf.mxu0
      %v3968 = vadd.f32 %v3455, %v3967
      %v3969 = vpop.f32.mrf.mxu0
      %v3970 = vpop.f32.mrf.mxu0
      %v3971 = vadd.f32 %v3455, %v3970
      %v3972 = vpop.f32.mrf.mxu0
      %3973 = vmatprep.mubr.bf16.mxu0 %v3292
      %3974 = vmatmul.mubr.bf16.gmra.mxu0 %v2780
      %v3975 = vpop.f32.mrf.mxu0
      %v3976 = vadd.f32 %v3455, %v3975
      %v3977 = vpop.f32.mrf.mxu0
      %v3978 = vpop.f32.mrf.mxu0
      %v3979 = vadd.f32 %v3455, %v3978
      %v3980 = vpop.f32.mrf.mxu0
      %3981 = vmatprep.mubr.bf16.mxu0 %v3295
      %3982 = vmatmul.mubr.bf16.gmra.mxu0 %v2783
      %v3983 = vpop.f32.mrf.mxu0
      %v3984 = vadd.f32 %v3455, %v3983
      %v3985 = vpop.f32.mrf.mxu0
      %v3986 = vpop.f32.mrf.mxu0
      %v3987 = vadd.f32 %v3455, %v3986
      %v3988 = vpop.f32.mrf.mxu0
      %3989 = vmatprep.mubr.bf16.mxu0 %v3298
      %3990 = vmatmul.mubr.bf16.gmra.mxu0 %v2786
      %v3991 = vpop.f32.mrf.mxu0
      %v3992 = vadd.f32 %v3455, %v3991
      %v3993 = vpop.f32.mrf.mxu0
      %v3994 = vpop.f32.mrf.mxu0
      %v3995 = vadd.f32 %v3455, %v3994
      %v3996 = vpop.f32.mrf.mxu0
      %3997 = vmatprep.mubr.bf16.mxu0 %v3301
      %3998 = vmatmul.mubr.bf16.gmra.mxu0 %v2789
      %v3999 = vpop.f32.mrf.mxu0
      %v4000 = vadd.f32 %v3455, %v3999
      %v4001 = vpop.f32.mrf.mxu0
      %v4002 = vpop.f32.mrf.mxu0
      %v4003 = vadd.f32 %v3455, %v4002
      %v4004 = vpop.f32.mrf.mxu0
      %4005 = vmatprep.mubr.bf16.mxu0 %v3304
      %4006 = vmatmul.mubr.bf16.gmra.mxu0 %v2792
      %v4007 = vpop.f32.mrf.mxu0
      %v4008 = vadd.f32 %v3455, %v4007
      %v4009 = vpop.f32.mrf.mxu0
      %v4010 = vpop.f32.mrf.mxu0
      %v4011 = vadd.f32 %v3455, %v4010
      %v4012 = vpop.f32.mrf.mxu0
      %4013 = vmatprep.mubr.bf16.mxu0 %v3307
      %4014 = vmatmul.mubr.bf16.gmra.mxu0 %v2795
      %v4015 = vpop.f32.mrf.mxu0
      %v4016 = vadd.f32 %v3455, %v4015
      %v4017 = vpop.f32.mrf.mxu0
      %v4018 = vpop.f32.mrf.mxu0
      %v4019 = vadd.f32 %v3455, %v4018
      %v4020 = vpop.f32.mrf.mxu0
      %4021 = vmatprep.mubr.bf16.mxu0 %v3310
      %4022 = vmatmul.mubr.bf16.gmra.mxu0 %v2798
      %v4023 = vpop.f32.mrf.mxu0
      %v4024 = vadd.f32 %v3455, %v4023
      %v4025 = vpop.f32.mrf.mxu0
      %v4026 = vpop.f32.mrf.mxu0
      %v4027 = vadd.f32 %v3455, %v4026
      %v4028 = vpop.f32.mrf.mxu0
      %4029 = vmatprep.mubr.bf16.mxu0 %v3313
      %4030 = vmatmul.mubr.bf16.gmra.mxu0 %v2801
      %v4031 = vpop.f32.mrf.mxu0
      %v4032 = vadd.f32 %v3455, %v4031
      %v4033 = vpop.f32.mrf.mxu0
      %v4034 = vpop.f32.mrf.mxu0
      %v4035 = vadd.f32 %v3455, %v4034
      %v4036 = vpop.f32.mrf.mxu0
      %4037 = vmatprep.mubr.bf16.mxu0 %v3316
      %4038 = vmatmul.mubr.bf16.gmra.mxu0 %v2804
      %v4039 = vpop.f32.mrf.mxu0
      %v4040 = vadd.f32 %v3455, %v4039
      %v4041 = vpop.f32.mrf.mxu0
      %v4042 = vpop.f32.mrf.mxu0
      %v4043 = vadd.f32 %v3455, %v4042
      %v4044 = vpop.f32.mrf.mxu0
      %4045 = vmatprep.mubr.bf16.mxu0 %v3319
      %4046 = vmatmul.mubr.bf16.gmra.mxu0 %v2807
      %v4047 = vpop.f32.mrf.mxu0
      %v4048 = vadd.f32 %v3455, %v4047
      %v4049 = vpop.f32.mrf.mxu0
      %v4050 = vpop.f32.mrf.mxu0
      %v4051 = vadd.f32 %v3455, %v4050
      %v4052 = vpop.f32.mrf.mxu0
      %4053 = vmatprep.mubr.bf16.mxu0 %v3322
      %4054 = vmatmul.mubr.bf16.gmra.mxu0 %v2810
      %v4055 = vpop.f32.mrf.mxu0
      %v4056 = vadd.f32 %v3455, %v4055
      %v4057 = vpop.f32.mrf.mxu0
      %v4058 = vpop.f32.mrf.mxu0
      %v4059 = vadd.f32 %v3455, %v4058
      %v4060 = vpop.f32.mrf.mxu0
      %4061 = vmatprep.mubr.bf16.mxu0 %v3325
      %4062 = vmatmul.mubr.bf16.gmra.mxu0 %v2813
      %v4063 = vpop.f32.mrf.mxu0
      %v4064 = vadd.f32 %v3455, %v4063
      %v4065 = vpop.f32.mrf.mxu0
      %v4066 = vpop.f32.mrf.mxu0
      %v4067 = vadd.f32 %v3455, %v4066
      %v4068 = vpop.f32.mrf.mxu0
      %4069 = vmatprep.mubr.bf16.mxu0 %v3328
      %4070 = vmatmul.mubr.bf16.gmra.mxu0 %v2816
      %v4071 = vpop.f32.mrf.mxu0
      %v4072 = vadd.f32 %v3455, %v4071
      %v4073 = vpop.f32.mrf.mxu0
      %v4074 = vpop.f32.mrf.mxu0
      %v4075 = vadd.f32 %v3455, %v4074
      %v4076 = vpop.f32.mrf.mxu0
      %4077 = vmatprep.mubr.bf16.mxu0 %v3331
      %4078 = vmatmul.mubr.bf16.gmra.mxu0 %v2819
      %v4079 = vpop.f32.mrf.mxu0
      %v4080 = vadd.f32 %v3455, %v4079
      %v4081 = vpop.f32.mrf.mxu0
      %v4082 = vpop.f32.mrf.mxu0
      %v4083 = vadd.f32 %v3455, %v4082
      %v4084 = vpop.f32.mrf.mxu0
      %4085 = vmatprep.mubr.bf16.mxu0 %v3334
      %4086 = vmatmul.mubr.bf16.gmra.mxu0 %v2822
      %v4087 = vpop.f32.mrf.mxu0
      %v4088 = vadd.f32 %v3455, %v4087
      %v4089 = vpop.f32.mrf.mxu0
      %v4090 = vpop.f32.mrf.mxu0
      %v4091 = vadd.f32 %v3455, %v4090
      %v4092 = vpop.f32.mrf.mxu0
      %4093 = vmatprep.mubr.bf16.mxu0 %v3337
      %4094 = vmatmul.mubr.bf16.gmra.mxu0 %v2825
      %v4095 = vpop.f32.mrf.mxu0
      %v4096 = vadd.f32 %v3455, %v4095
      %v4097 = vpop.f32.mrf.mxu0
      %v4098 = vpop.f32.mrf.mxu0
      %v4099 = vadd.f32 %v3455, %v4098
      %v4100 = vpop.f32.mrf.mxu0
      %4101 = vmatprep.mubr.bf16.mxu0 %v3340
      %4102 = vmatmul.mubr.bf16.gmra.mxu0 %v2828
      %v4103 = vpop.f32.mrf.mxu0
      %v4104 = vadd.f32 %v3455, %v4103
      %v4105 = vpop.f32.mrf.mxu0
      %v4106 = vpop.f32.mrf.mxu0
      %v4107 = vadd.f32 %v3455, %v4106
      %v4108 = vpop.f32.mrf.mxu0
      %4109 = vmatprep.mubr.bf16.mxu0 %v3343
      %4110 = vmatmul.mubr.bf16.gmra.mxu0 %v2831
      %v4111 = vpop.f32.mrf.mxu0
      %v4112 = vadd.f32 %v3455, %v4111
      %v4113 = vpop.f32.mrf.mxu0
      %v4114 = vpop.f32.mrf.mxu0
      %v4115 = vadd.f32 %v3455, %v4114
      %v4116 = vpop.f32.mrf.mxu0
      %4117 = vmatprep.mubr.bf16.mxu0 %v3346
      %4118 = vmatmul.mubr.bf16.gmra.mxu0 %v2834
      %v4119 = vpop.f32.mrf.mxu0
      %v4120 = vadd.f32 %v3455, %v4119
      %v4121 = vpop.f32.mrf.mxu0
      %v4122 = vpop.f32.mrf.mxu0
      %v4123 = vadd.f32 %v3455, %v4122
      %v4124 = vpop.f32.mrf.mxu0
      %4125 = vmatprep.mubr.bf16.mxu0 %v3349
      %4126 = vmatmul.mubr.bf16.gmra.mxu0 %v2837
      %v4127 = vpop.f32.mrf.mxu0
      %v4128 = vadd.f32 %v3455, %v4127
      %v4129 = vpop.f32.mrf.mxu0
      %v4130 = vpop.f32.mrf.mxu0
      %v4131 = vadd.f32 %v3455, %v4130
      %v4132 = vpop.f32.mrf.mxu0
      %4133 = vmatprep.mubr.bf16.mxu0 %v3352
      %4134 = vmatmul.mubr.bf16.gmra.mxu0 %v2840
      %v4135 = vpop.f32.mrf.mxu0
      %v4136 = vadd.f32 %v3455, %v4135
      %v4137 = vpop.f32.mrf.mxu0
      %v4138 = vpop.f32.mrf.mxu0
      %v4139 = vadd.f32 %v3455, %v4138
      %v4140 = vpop.f32.mrf.mxu0
      %4141 = vmatprep.mubr.bf16.mxu0 %v3355
      %4142 = vmatmul.mubr.bf16.gmra.mxu0 %v2843
      %v4143 = vpop.f32.mrf.mxu0
      %v4144 = vadd.f32 %v3455, %v4143
      %v4145 = vpop.f32.mrf.mxu0
      %v4146 = vpop.f32.mrf.mxu0
      %v4147 = vadd.f32 %v3455, %v4146
      %v4148 = vpop.f32.mrf.mxu0
      %4149 = vmatprep.mubr.bf16.mxu0 %v3358
      %4150 = vmatmul.mubr.bf16.gmra.mxu0 %v2846
      %v4151 = vpop.f32.mrf.mxu0
      %v4152 = vadd.f32 %v3455, %v4151
      %v4153 = vpop.f32.mrf.mxu0
      %v4154 = vpop.f32.mrf.mxu0
      %v4155 = vadd.f32 %v3455, %v4154
      %v4156 = vpop.f32.mrf.mxu0
      %4157 = vmatprep.mubr.bf16.mxu0 %v3361
      %4158 = vmatmul.mubr.bf16.gmra.mxu0 %v2849
      %v4159 = vpop.f32.mrf.mxu0
      %v4160 = vadd.f32 %v3455, %v4159
      %v4161 = vpop.f32.mrf.mxu0
      %v4162 = vpop.f32.mrf.mxu0
      %v4163 = vadd.f32 %v3455, %v4162
      %v4164 = vpop.f32.mrf.mxu0
      %4165 = vmatprep.mubr.bf16.mxu0 %v3364
      %4166 = vmatmul.mubr.bf16.gmra.mxu0 %v2852
      %v4167 = vpop.f32.mrf.mxu0
      %v4168 = vadd.f32 %v3455, %v4167
      %v4169 = vpop.f32.mrf.mxu0
      %v4170 = vpop.f32.mrf.mxu0
      %v4171 = vadd.f32 %v3455, %v4170
      %v4172 = vpop.f32.mrf.mxu0
      %4173 = vmatprep.mubr.bf16.mxu0 %v3367
      %4174 = vmatmul.mubr.bf16.gmra.mxu0 %v2855
      %v4175 = vpop.f32.mrf.mxu0
      %v4176 = vadd.f32 %v3455, %v4175
      %v4177 = vpop.f32.mrf.mxu0
      %v4178 = vpop.f32.mrf.mxu0
      %v4179 = vadd.f32 %v3455, %v4178
      %v4180 = vpop.f32.mrf.mxu0
      %4181 = vmatprep.mubr.bf16.mxu0 %v3370
      %4182 = vmatmul.mubr.bf16.gmra.mxu0 %v2858
      %v4183 = vpop.f32.mrf.mxu0
      %v4184 = vadd.f32 %v3455, %v4183
      %v4185 = vpop.f32.mrf.mxu0
      %v4186 = vpop.f32.mrf.mxu0
      %v4187 = vadd.f32 %v3455, %v4186
      %v4188 = vpop.f32.mrf.mxu0
      %4189 = vmatprep.mubr.bf16.mxu0 %v3373
      %4190 = vmatmul.mubr.bf16.gmra.mxu0 %v2861
      %v4191 = vpop.f32.mrf.mxu0
      %v4192 = vadd.f32 %v3455, %v4191
      %v4193 = vpop.f32.mrf.mxu0
      %v4194 = vpop.f32.mrf.mxu0
      %v4195 = vadd.f32 %v3455, %v4194
      %v4196 = vpop.f32.mrf.mxu0
      %4197 = vmatprep.mubr.bf16.mxu0 %v3376
      %4198 = vmatmul.mubr.bf16.gmra.mxu0 %v2864
      %v4199 = vpop.f32.mrf.mxu0
      %v4200 = vadd.f32 %v3455, %v4199
      %v4201 = vpop.f32.mrf.mxu0
      %v4202 = vpop.f32.mrf.mxu0
      %v4203 = vadd.f32 %v3455, %v4202
      %v4204 = vpop.f32.mrf.mxu0
      %4205 = vmatprep.mubr.bf16.mxu0 %v3379
      %4206 = vmatmul.mubr.bf16.gmra.mxu0 %v2867
      %v4207 = vpop.f32.mrf.mxu0
      %v4208 = vadd.f32 %v3455, %v4207
      %v4209 = vpop.f32.mrf.mxu0
      %v4210 = vpop.f32.mrf.mxu0
      %v4211 = vadd.f32 %v3455, %v4210
      %v4212 = vpop.f32.mrf.mxu0
      %4213 = vmatprep.mubr.bf16.mxu0 %v3382
      %4214 = vmatmul.mubr.bf16.gmra.mxu0 %v2870
      %v4215 = vpop.f32.mrf.mxu0
      %v4216 = vadd.f32 %v3455, %v4215
      %v4217 = vpop.f32.mrf.mxu0
      %v4218 = vpop.f32.mrf.mxu0
      %v4219 = vadd.f32 %v3455, %v4218
      %v4220 = vpop.f32.mrf.mxu0
      %4221 = vmatprep.mubr.bf16.mxu0 %v3385
      %4222 = vmatmul.mubr.bf16.gmra.mxu0 %v2873
      %v4223 = vpop.f32.mrf.mxu0
      %v4224 = vadd.f32 %v3455, %v4223
      %v4225 = vpop.f32.mrf.mxu0
      %v4226 = vpop.f32.mrf.mxu0
      %v4227 = vadd.f32 %v3455, %v4226
      %v4228 = vpop.f32.mrf.mxu0
      %4229 = vmatprep.mubr.bf16.mxu0 %v3388
      %4230 = vmatmul.mubr.bf16.gmra.mxu0 %v2876
      %v4231 = vpop.f32.mrf.mxu0
      %v4232 = vadd.f32 %v3455, %v4231
      %v4233 = vpop.f32.mrf.mxu0
      %v4234 = vpop.f32.mrf.mxu0
      %v4235 = vadd.f32 %v3455, %v4234
      %v4236 = vpop.f32.mrf.mxu0
      %4237 = vmatprep.mubr.bf16.mxu0 %v3391
      %4238 = vmatmul.mubr.bf16.gmra.mxu0 %v2879
      %v4239 = vpop.f32.mrf.mxu0
      %v4240 = vadd.f32 %v3455, %v4239
      %v4241 = vpop.f32.mrf.mxu0
      %v4242 = vpop.f32.mrf.mxu0
      %v4243 = vadd.f32 %v3455, %v4242
      %v4244 = vpop.f32.mrf.mxu0
      %4245 = vmatprep.mubr.bf16.mxu0 %v3394
      %4246 = vmatmul.mubr.bf16.gmra.mxu0 %v2882
      %v4247 = vpop.f32.mrf.mxu0
      %v4248 = vadd.f32 %v3455, %v4247
      %v4249 = vpop.f32.mrf.mxu0
      %v4250 = vpop.f32.mrf.mxu0
      %v4251 = vadd.f32 %v3455, %v4250
      %v4252 = vpop.f32.mrf.mxu0
      %4253 = vmatprep.mubr.bf16.mxu0 %v3397
      %4254 = vmatmul.mubr.bf16.gmra.mxu0 %v2885
      %v4255 = vpop.f32.mrf.mxu0
      %v4256 = vadd.f32 %v3455, %v4255
      %v4257 = vpop.f32.mrf.mxu0
      %v4258 = vpop.f32.mrf.mxu0
      %v4259 = vadd.f32 %v3455, %v4258
      %v4260 = vpop.f32.mrf.mxu0
      %4261 = vmatprep.mubr.bf16.mxu0 %v3400
      %4262 = vmatmul.mubr.bf16.gmra.mxu0 %v2888
      %v4263 = vpop.f32.mrf.mxu0
      %v4264 = vadd.f32 %v3455, %v4263
      %v4265 = vpop.f32.mrf.mxu0
      %v4266 = vpop.f32.mrf.mxu0
      %v4267 = vadd.f32 %v3455, %v4266
      %v4268 = vpop.f32.mrf.mxu0
      %4269 = vmatprep.mubr.bf16.mxu0 %v3403
      %4270 = vmatmul.mubr.bf16.gmra.mxu0 %v2891
      %v4271 = vpop.f32.mrf.mxu0
      %v4272 = vadd.f32 %v3455, %v4271
      %v4273 = vpop.f32.mrf.mxu0
      %v4274 = vpop.f32.mrf.mxu0
      %v4275 = vadd.f32 %v3455, %v4274
      %v4276 = vpop.f32.mrf.mxu0
      %4277 = vmatprep.mubr.bf16.mxu0 %v3406
      %4278 = vmatmul.mubr.bf16.gmra.mxu0 %v2894
      %v4279 = vpop.f32.mrf.mxu0
      %v4280 = vadd.f32 %v3455, %v4279
      %v4281 = vpop.f32.mrf.mxu0
      %v4282 = vpop.f32.mrf.mxu0
      %v4283 = vadd.f32 %v3455, %v4282
      %v4284 = vpop.f32.mrf.mxu0
      %4285 = vmatprep.mubr.bf16.mxu0 %v3409
      %4286 = vmatmul.mubr.bf16.gmra.mxu0 %v2897
      %v4287 = vpop.f32.mrf.mxu0
      %v4288 = vadd.f32 %v3455, %v4287
      %v4289 = vpop.f32.mrf.mxu0
      %v4290 = vpop.f32.mrf.mxu0
      %v4291 = vadd.f32 %v3455, %v4290
      %v4292 = vpop.f32.mrf.mxu0
      %4293 = vmatprep.mubr.bf16.mxu0 %v3412
      %4294 = vmatmul.mubr.bf16.gmra.mxu0 %v2900
      %v4295 = vpop.f32.mrf.mxu0
      %v4296 = vadd.f32 %v3455, %v4295
      %v4297 = vpop.f32.mrf.mxu0
      %v4298 = vpop.f32.mrf.mxu0
      %v4299 = vadd.f32 %v3455, %v4298
      %v4300 = vpop.f32.mrf.mxu0
      %4301 = vdwg.mxu0
      %4302 = vmatprep.subr.bf16.mxu0 0
      %4303 = vmatpush1.bf16.msra.mxu0 0
      %4304 = vmatprep.subr.bf16.mxu0 0
      %4305 = vmatpush1.bf16.msra.mxu0 0
      %4306 = vmatprep.subr.bf16.mxu0 0
      %4307 = vmatpush1.bf16.msra.mxu0 0
      %4308 = vmatprep.subr.bf16.mxu0 0
      %4309 = vmatpush1.bf16.msra.mxu0 0
      %4310 = vmatprep.subr.bf16.mxu0 0
      %4311 = vmatpush1.bf16.msra.mxu0 0
      %4312 = vmatprep.subr.bf16.mxu0 0
      %4313 = vmatpush1.bf16.msra.mxu0 0
      %4314 = vmatprep.subr.bf16.mxu0 0
      %4315 = vmatpush1.bf16.msra.mxu0 %v3546
      %4316 = vmatprep.subr.bf16.mxu0 0
      %4317 = vmatpush1.bf16.msra.mxu0 %v3545
      %4318 = vmatprep.subr.bf16.mxu0 0
      %4319 = vmatpush2.bf16.msra.mxu0 0
      %4320 = vmatprep.subr.bf16.mxu0 0
      %4321 = vmatpush2.bf16.msra.mxu0 0
      %4322 = vmatprep.subr.bf16.mxu0 0
      %4323 = vmatpush2.bf16.msra.mxu0 0
      %4324 = vmatprep.subr.bf16.mxu0 0
      %4325 = vmatpush2.bf16.msra.mxu0 0
      %4326 = vmatprep.subr.bf16.mxu0 0
      %4327 = vmatpush2.bf16.msra.mxu0 0
      %4328 = vmatprep.subr.bf16.mxu0 0
      %4329 = vmatpush2.bf16.msra.mxu0 0
      %4330 = vmatprep.subr.bf16.mxu0 0
      %4331 = vmatpush2.bf16.msra.mxu0 0
      %4332 = vmatprep.subr.bf16.mxu0 0
      %4333 = vmatpush2.bf16.msra.mxu0 0
      %4334 = vmatprep.mubr.bf16.mxu0 0
      %4335 = vmatmul.mubr.bf16.gmra.mxu0 %v3566
      %v4336 = vpop.f32.mrf.mxu0
      %v4337 = vadd.f32 %v3792, %v4336
      %v4338 = vpop.f32.mrf.mxu0
      %v4339 = vpop.f32.mrf.mxu0
      %v4340 = vadd.f32 %v3795, %v4339
      %v4341 = vpop.f32.mrf.mxu0
      %4342 = vmatprep.mubr.bf16.mxu0 0
      %4343 = vmatmul.mubr.bf16.gmra.mxu0 %v3569
      %v4344 = vpop.f32.mrf.mxu0
      %v4345 = vadd.f32 %v3800, %v4344
      %v4346 = vpop.f32.mrf.mxu0
      %v4347 = vpop.f32.mrf.mxu0
      %v4348 = vadd.f32 %v3803, %v4347
      %v4349 = vpop.f32.mrf.mxu0
      %4350 = vmatprep.mubr.bf16.mxu0 0
      %4351 = vmatmul.mubr.bf16.gmra.mxu0 %v3572
      %v4352 = vpop.f32.mrf.mxu0
      %v4353 = vadd.f32 %v3808, %v4352
      %v4354 = vpop.f32.mrf.mxu0
      %v4355 = vpop.f32.mrf.mxu0
      %v4356 = vadd.f32 %v3811, %v4355
      %v4357 = vpop.f32.mrf.mxu0
      %4358 = vmatprep.mubr.bf16.mxu0 0
      %4359 = vmatmul.mubr.bf16.gmra.mxu0 %v3575
      %v4360 = vpop.f32.mrf.mxu0
      %v4361 = vadd.f32 %v3816, %v4360
      %v4362 = vpop.f32.mrf.mxu0
      %v4363 = vpop.f32.mrf.mxu0
      %v4364 = vadd.f32 %v3819, %v4363
      %v4365 = vpop.f32.mrf.mxu0
      %4366 = vmatprep.mubr.bf16.mxu0 0
      %4367 = vmatmul.mubr.bf16.gmra.mxu0 %v3578
      %v4368 = vpop.f32.mrf.mxu0
      %v4369 = vadd.f32 %v3824, %v4368
      %v4370 = vpop.f32.mrf.mxu0
      %v4371 = vpop.f32.mrf.mxu0
      %v4372 = vadd.f32 %v3827, %v4371
      %v4373 = vpop.f32.mrf.mxu0
      %4374 = vmatprep.mubr.bf16.mxu0 0
      %4375 = vmatmul.mubr.bf16.gmra.mxu0 %v3581
      %v4376 = vpop.f32.mrf.mxu0
      %v4377 = vadd.f32 %v3832, %v4376
      %v4378 = vpop.f32.mrf.mxu0
      %v4379 = vpop.f32.mrf.mxu0
      %v4380 = vadd.f32 %v3835, %v4379
      %v4381 = vpop.f32.mrf.mxu0
      %4382 = vmatprep.mubr.bf16.mxu0 0
      %4383 = vmatmul.mubr.bf16.gmra.mxu0 %v3584
      %v4384 = vpop.f32.mrf.mxu0
      %v4385 = vadd.f32 %v3840, %v4384
      %v4386 = vpop.f32.mrf.mxu0
      %v4387 = vpop.f32.mrf.mxu0
      %v4388 = vadd.f32 %v3843, %v4387
      %v4389 = vpop.f32.mrf.mxu0
      %4390 = vmatprep.mubr.bf16.mxu0 0
      %4391 = vmatmul.mubr.bf16.gmra.mxu0 %v3587
      %v4392 = vpop.f32.mrf.mxu0
      %v4393 = vadd.f32 %v3848, %v4392
      %v4394 = vpop.f32.mrf.mxu0
      %v4395 = vpop.f32.mrf.mxu0
      %v4396 = vadd.f32 %v3851, %v4395
      %v4397 = vpop.f32.mrf.mxu0
      %4398 = vmatprep.mubr.bf16.mxu0 0
      %4399 = vmatmul.mubr.bf16.gmra.mxu0 %v3590
      %v4400 = vpop.f32.mrf.mxu0
      %v4401 = vadd.f32 %v3856, %v4400
      %v4402 = vpop.f32.mrf.mxu0
      %v4403 = vpop.f32.mrf.mxu0
      %v4404 = vadd.f32 %v3859, %v4403
      %v4405 = vpop.f32.mrf.mxu0
      %4406 = vmatprep.mubr.bf16.mxu0 0
      %4407 = vmatmul.mubr.bf16.gmra.mxu0 %v3593
      %v4408 = vpop.f32.mrf.mxu0
      %v4409 = vadd.f32 %v3864, %v4408
      %v4410 = vpop.f32.mrf.mxu0
      %v4411 = vpop.f32.mrf.mxu0
      %v4412 = vadd.f32 %v3867, %v4411
      %v4413 = vpop.f32.mrf.mxu0
      %4414 = vmatprep.mubr.bf16.mxu0 0
      %4415 = vmatmul.mubr.bf16.gmra.mxu0 %v3596
      %v4416 = vpop.f32.mrf.mxu0
      %v4417 = vadd.f32 %v3872, %v4416
      %v4418 = vpop.f32.mrf.mxu0
      %v4419 = vpop.f32.mrf.mxu0
      %v4420 = vadd.f32 %v3875, %v4419
      %v4421 = vpop.f32.mrf.mxu0
      %4422 = vmatprep.mubr.bf16.mxu0 0
      %4423 = vmatmul.mubr.bf16.gmra.mxu0 %v3599
      %v4424 = vpop.f32.mrf.mxu0
      %v4425 = vadd.f32 %v3880, %v4424
      %v4426 = vpop.f32.mrf.mxu0
      %v4427 = vpop.f32.mrf.mxu0
      %v4428 = vadd.f32 %v3883, %v4427
      %v4429 = vpop.f32.mrf.mxu0
      %4430 = vmatprep.mubr.bf16.mxu0 0
      %4431 = vmatmul.mubr.bf16.gmra.mxu0 %v3602
      %v4432 = vpop.f32.mrf.mxu0
      %v4433 = vadd.f32 %v3888, %v4432
      %v4434 = vpop.f32.mrf.mxu0
      %v4435 = vpop.f32.mrf.mxu0
      %v4436 = vadd.f32 %v3891, %v4435
      %v4437 = vpop.f32.mrf.mxu0
      %4438 = vmatprep.mubr.bf16.mxu0 0
      %4439 = vmatmul.mubr.bf16.gmra.mxu0 %v3605
      %v4440 = vpop.f32.mrf.mxu0
      %v4441 = vadd.f32 %v3896, %v4440
      %v4442 = vpop.f32.mrf.mxu0
      %v4443 = vpop.f32.mrf.mxu0
      %v4444 = vadd.f32 %v3899, %v4443
      %v4445 = vpop.f32.mrf.mxu0
      %4446 = vmatprep.mubr.bf16.mxu0 0
      %4447 = vmatmul.mubr.bf16.gmra.mxu0 %v3608
      %v4448 = vpop.f32.mrf.mxu0
      %v4449 = vadd.f32 %v3904, %v4448
      %v4450 = vpop.f32.mrf.mxu0
      %v4451 = vpop.f32.mrf.mxu0
      %v4452 = vadd.f32 %v3907, %v4451
      %v4453 = vpop.f32.mrf.mxu0
      %4454 = vmatprep.mubr.bf16.mxu0 0
      %4455 = vmatmul.mubr.bf16.gmra.mxu0 %v3611
      %v4456 = vpop.f32.mrf.mxu0
      %v4457 = vadd.f32 %v3912, %v4456
      %v4458 = vpop.f32.mrf.mxu0
      %v4459 = vpop.f32.mrf.mxu0
      %v4460 = vadd.f32 %v3915, %v4459
      %v4461 = vpop.f32.mrf.mxu0
      %4462 = vmatprep.mubr.bf16.mxu0 0
      %4463 = vmatmul.mubr.bf16.gmra.mxu0 %v3614
      %v4464 = vpop.f32.mrf.mxu0
      %v4465 = vadd.f32 %v3920, %v4464
      %v4466 = vpop.f32.mrf.mxu0
      %v4467 = vpop.f32.mrf.mxu0
      %v4468 = vadd.f32 %v3923, %v4467
      %v4469 = vpop.f32.mrf.mxu0
      %4470 = vmatprep.mubr.bf16.mxu0 0
      %4471 = vmatmul.mubr.bf16.gmra.mxu0 %v3617
      %v4472 = vpop.f32.mrf.mxu0
      %v4473 = vadd.f32 %v3928, %v4472
      %v4474 = vpop.f32.mrf.mxu0
      %v4475 = vpop.f32.mrf.mxu0
      %v4476 = vadd.f32 %v3931, %v4475
      %v4477 = vpop.f32.mrf.mxu0
      %4478 = vmatprep.mubr.bf16.mxu0 0
      %4479 = vmatmul.mubr.bf16.gmra.mxu0 %v3620
      %v4480 = vpop.f32.mrf.mxu0
      %v4481 = vadd.f32 %v3936, %v4480
      %v4482 = vpop.f32.mrf.mxu0
      %v4483 = vpop.f32.mrf.mxu0
      %v4484 = vadd.f32 %v3939, %v4483
      %v4485 = vpop.f32.mrf.mxu0
      %4486 = vmatprep.mubr.bf16.mxu0 0
      %4487 = vmatmul.mubr.bf16.gmra.mxu0 %v3623
      %v4488 = vpop.f32.mrf.mxu0
      %v4489 = vadd.f32 %v3944, %v4488
      %v4490 = vpop.f32.mrf.mxu0
      %v4491 = vpop.f32.mrf.mxu0
      %v4492 = vadd.f32 %v3947, %v4491
      %v4493 = vpop.f32.mrf.mxu0
      %4494 = vmatprep.mubr.bf16.mxu0 0
      %4495 = vmatmul.mubr.bf16.gmra.mxu0 %v3626
      %v4496 = vpop.f32.mrf.mxu0
      %v4497 = vadd.f32 %v3952, %v4496
      %v4498 = vpop.f32.mrf.mxu0
      %v4499 = vpop.f32.mrf.mxu0
      %v4500 = vadd.f32 %v3955, %v4499
      %v4501 = vpop.f32.mrf.mxu0
      %4502 = vmatprep.mubr.bf16.mxu0 0
      %4503 = vmatmul.mubr.bf16.gmra.mxu0 %v3629
      %v4504 = vpop.f32.mrf.mxu0
      %v4505 = vadd.f32 %v3960, %v4504
      %v4506 = vpop.f32.mrf.mxu0
      %v4507 = vpop.f32.mrf.mxu0
      %v4508 = vadd.f32 %v3963, %v4507
      %v4509 = vpop.f32.mrf.mxu0
      %4510 = vmatprep.mubr.bf16.mxu0 0
      %4511 = vmatmul.mubr.bf16.gmra.mxu0 %v3632
      %v4512 = vpop.f32.mrf.mxu0
      %v4513 = vadd.f32 %v3968, %v4512
      %v4514 = vpop.f32.mrf.mxu0
      %v4515 = vpop.f32.mrf.mxu0
      %v4516 = vadd.f32 %v3971, %v4515
      %v4517 = vpop.f32.mrf.mxu0
      %4518 = vmatprep.mubr.bf16.mxu0 0
      %4519 = vmatmul.mubr.bf16.gmra.mxu0 %v3635
      %v4520 = vpop.f32.mrf.mxu0
      %v4521 = vadd.f32 %v3976, %v4520
      %v4522 = vpop.f32.mrf.mxu0
      %v4523 = vpop.f32.mrf.mxu0
      %v4524 = vadd.f32 %v3979, %v4523
      %v4525 = vpop.f32.mrf.mxu0
      %4526 = vmatprep.mubr.bf16.mxu0 0
      %4527 = vmatmul.mubr.bf16.gmra.mxu0 %v3638
      %v4528 = vpop.f32.mrf.mxu0
      %v4529 = vadd.f32 %v3984, %v4528
      %v4530 = vpop.f32.mrf.mxu0
      %v4531 = vpop.f32.mrf.mxu0
      %v4532 = vadd.f32 %v3987, %v4531
      %v4533 = vpop.f32.mrf.mxu0
      %4534 = vmatprep.mubr.bf16.mxu0 0
      %4535 = vmatmul.mubr.bf16.gmra.mxu0 %v3641
      %v4536 = vpop.f32.mrf.mxu0
      %v4537 = vadd.f32 %v3992, %v4536
      %v4538 = vpop.f32.mrf.mxu0
      %v4539 = vpop.f32.mrf.mxu0
      %v4540 = vadd.f32 %v3995, %v4539
      %v4541 = vpop.f32.mrf.mxu0
      %4542 = vmatprep.mubr.bf16.mxu0 0
      %4543 = vmatmul.mubr.bf16.gmra.mxu0 %v3644
      %v4544 = vpop.f32.mrf.mxu0
      %v4545 = vadd.f32 %v4000, %v4544
      %v4546 = vpop.f32.mrf.mxu0
      %v4547 = vpop.f32.mrf.mxu0
      %v4548 = vadd.f32 %v4003, %v4547
      %v4549 = vpop.f32.mrf.mxu0
      %4550 = vmatprep.mubr.bf16.mxu0 0
      %4551 = vmatmul.mubr.bf16.gmra.mxu0 %v3647
      %v4552 = vpop.f32.mrf.mxu0
      %v4553 = vadd.f32 %v4008, %v4552
      %v4554 = vpop.f32.mrf.mxu0
      %v4555 = vpop.f32.mrf.mxu0
      %v4556 = vadd.f32 %v4011, %v4555
      %v4557 = vpop.f32.mrf.mxu0
      %4558 = vmatprep.mubr.bf16.mxu0 0
      %4559 = vmatmul.mubr.bf16.gmra.mxu0 %v3650
      %v4560 = vpop.f32.mrf.mxu0
      %v4561 = vadd.f32 %v4016, %v4560
      %v4562 = vpop.f32.mrf.mxu0
      %v4563 = vpop.f32.mrf.mxu0
      %v4564 = vadd.f32 %v4019, %v4563
      %v4565 = vpop.f32.mrf.mxu0
      %4566 = vmatprep.mubr.bf16.mxu0 0
      %4567 = vmatmul.mubr.bf16.gmra.mxu0 %v3653
      %v4568 = vpop.f32.mrf.mxu0
      %v4569 = vadd.f32 %v4024, %v4568
      %v4570 = vpop.f32.mrf.mxu0
      %v4571 = vpop.f32.mrf.mxu0
      %v4572 = vadd.f32 %v4027, %v4571
      %v4573 = vpop.f32.mrf.mxu0
      %4574 = vmatprep.mubr.bf16.mxu0 0
      %4575 = vmatmul.mubr.bf16.gmra.mxu0 %v3656
      %v4576 = vpop.f32.mrf.mxu0
      %v4577 = vadd.f32 %v4032, %v4576
      %v4578 = vpop.f32.mrf.mxu0
      %v4579 = vpop.f32.mrf.mxu0
      %v4580 = vadd.f32 %v4035, %v4579
      %v4581 = vpop.f32.mrf.mxu0
      %4582 = vmatprep.mubr.bf16.mxu0 0
      %4583 = vmatmul.mubr.bf16.gmra.mxu0 %v3659
      %v4584 = vpop.f32.mrf.mxu0
      %v4585 = vadd.f32 %v4040, %v4584
      %v4586 = vpop.f32.mrf.mxu0
      %v4587 = vpop.f32.mrf.mxu0
      %v4588 = vadd.f32 %v4043, %v4587
      %v4589 = vpop.f32.mrf.mxu0
      %4590 = vmatprep.mubr.bf16.mxu0 0
      %4591 = vmatmul.mubr.bf16.gmra.mxu0 %v3662
      %v4592 = vpop.f32.mrf.mxu0
      %v4593 = vadd.f32 %v4048, %v4592
      %v4594 = vpop.f32.mrf.mxu0
      %v4595 = vpop.f32.mrf.mxu0
      %v4596 = vadd.f32 %v4051, %v4595
      %v4597 = vpop.f32.mrf.mxu0
      %4598 = vmatprep.mubr.bf16.mxu0 0
      %4599 = vmatmul.mubr.bf16.gmra.mxu0 %v3665
      %v4600 = vpop.f32.mrf.mxu0
      %v4601 = vadd.f32 %v4056, %v4600
      %v4602 = vpop.f32.mrf.mxu0
      %v4603 = vpop.f32.mrf.mxu0
      %v4604 = vadd.f32 %v4059, %v4603
      %v4605 = vpop.f32.mrf.mxu0
      %4606 = vmatprep.mubr.bf16.mxu0 0
      %4607 = vmatmul.mubr.bf16.gmra.mxu0 %v3668
      %v4608 = vpop.f32.mrf.mxu0
      %v4609 = vadd.f32 %v4064, %v4608
      %v4610 = vpop.f32.mrf.mxu0
      %v4611 = vpop.f32.mrf.mxu0
      %v4612 = vadd.f32 %v4067, %v4611
      %v4613 = vpop.f32.mrf.mxu0
      %4614 = vmatprep.mubr.bf16.mxu0 0
      %4615 = vmatmul.mubr.bf16.gmra.mxu0 %v3671
      %v4616 = vpop.f32.mrf.mxu0
      %v4617 = vadd.f32 %v4072, %v4616
      %v4618 = vpop.f32.mrf.mxu0
      %v4619 = vpop.f32.mrf.mxu0
      %v4620 = vadd.f32 %v4075, %v4619
      %v4621 = vpop.f32.mrf.mxu0
      %4622 = vmatprep.mubr.bf16.mxu0 0
      %4623 = vmatmul.mubr.bf16.gmra.mxu0 %v3674
      %v4624 = vpop.f32.mrf.mxu0
      %v4625 = vadd.f32 %v4080, %v4624
      %v4626 = vpop.f32.mrf.mxu0
      %v4627 = vpop.f32.mrf.mxu0
      %v4628 = vadd.f32 %v4083, %v4627
      %v4629 = vpop.f32.mrf.mxu0
      %4630 = vmatprep.mubr.bf16.mxu0 0
      %4631 = vmatmul.mubr.bf16.gmra.mxu0 %v3677
      %v4632 = vpop.f32.mrf.mxu0
      %v4633 = vadd.f32 %v4088, %v4632
      %v4634 = vpop.f32.mrf.mxu0
      %v4635 = vpop.f32.mrf.mxu0
      %v4636 = vadd.f32 %v4091, %v4635
      %v4637 = vpop.f32.mrf.mxu0
      %4638 = vmatprep.mubr.bf16.mxu0 0
      %4639 = vmatmul.mubr.bf16.gmra.mxu0 %v3680
      %v4640 = vpop.f32.mrf.mxu0
      %v4641 = vadd.f32 %v4096, %v4640
      %v4642 = vpop.f32.mrf.mxu0
      %v4643 = vpop.f32.mrf.mxu0
      %v4644 = vadd.f32 %v4099, %v4643
      %v4645 = vpop.f32.mrf.mxu0
      %4646 = vmatprep.mubr.bf16.mxu0 0
      %4647 = vmatmul.mubr.bf16.gmra.mxu0 %v3683
      %v4648 = vpop.f32.mrf.mxu0
      %v4649 = vadd.f32 %v4104, %v4648
      %v4650 = vpop.f32.mrf.mxu0
      %v4651 = vpop.f32.mrf.mxu0
      %v4652 = vadd.f32 %v4107, %v4651
      %v4653 = vpop.f32.mrf.mxu0
      %4654 = vmatprep.mubr.bf16.mxu0 0
      %4655 = vmatmul.mubr.bf16.gmra.mxu0 %v3686
      %v4656 = vpop.f32.mrf.mxu0
      %v4657 = vadd.f32 %v4112, %v4656
      %v4658 = vpop.f32.mrf.mxu0
      %v4659 = vpop.f32.mrf.mxu0
      %v4660 = vadd.f32 %v4115, %v4659
      %v4661 = vpop.f32.mrf.mxu0
      %4662 = vmatprep.mubr.bf16.mxu0 0
      %4663 = vmatmul.mubr.bf16.gmra.mxu0 %v3689
      %v4664 = vpop.f32.mrf.mxu0
      %v4665 = vadd.f32 %v4120, %v4664
      %v4666 = vpop.f32.mrf.mxu0
      %v4667 = vpop.f32.mrf.mxu0
      %v4668 = vadd.f32 %v4123, %v4667
      %v4669 = vpop.f32.mrf.mxu0
      %4670 = vmatprep.mubr.bf16.mxu0 0
      %4671 = vmatmul.mubr.bf16.gmra.mxu0 %v3692
      %v4672 = vpop.f32.mrf.mxu0
      %v4673 = vadd.f32 %v4128, %v4672
      %v4674 = vpop.f32.mrf.mxu0
      %v4675 = vpop.f32.mrf.mxu0
      %v4676 = vadd.f32 %v4131, %v4675
      %v4677 = vpop.f32.mrf.mxu0
      %4678 = vmatprep.mubr.bf16.mxu0 0
      %4679 = vmatmul.mubr.bf16.gmra.mxu0 %v3695
      %v4680 = vpop.f32.mrf.mxu0
      %v4681 = vadd.f32 %v4136, %v4680
      %v4682 = vpop.f32.mrf.mxu0
      %v4683 = vpop.f32.mrf.mxu0
      %v4684 = vadd.f32 %v4139, %v4683
      %v4685 = vpop.f32.mrf.mxu0
      %4686 = vmatprep.mubr.bf16.mxu0 0
      %4687 = vmatmul.mubr.bf16.gmra.mxu0 %v3698
      %v4688 = vpop.f32.mrf.mxu0
      %v4689 = vadd.f32 %v4144, %v4688
      %v4690 = vpop.f32.mrf.mxu0
      %v4691 = vpop.f32.mrf.mxu0
      %v4692 = vadd.f32 %v4147, %v4691
      %v4693 = vpop.f32.mrf.mxu0
      %4694 = vmatprep.mubr.bf16.mxu0 0
      %4695 = vmatmul.mubr.bf16.gmra.mxu0 %v3701
      %v4696 = vpop.f32.mrf.mxu0
      %v4697 = vadd.f32 %v4152, %v4696
      %v4698 = vpop.f32.mrf.mxu0
      %v4699 = vpop.f32.mrf.mxu0
      %v4700 = vadd.f32 %v4155, %v4699
      %v4701 = vpop.f32.mrf.mxu0
      %4702 = vmatprep.mubr.bf16.mxu0 0
      %4703 = vmatmul.mubr.bf16.gmra.mxu0 %v3704
      %v4704 = vpop.f32.mrf.mxu0
      %v4705 = vadd.f32 %v4160, %v4704
      %v4706 = vpop.f32.mrf.mxu0
      %v4707 = vpop.f32.mrf.mxu0
      %v4708 = vadd.f32 %v4163, %v4707
      %v4709 = vpop.f32.mrf.mxu0
      %4710 = vmatprep.mubr.bf16.mxu0 0
      %4711 = vmatmul.mubr.bf16.gmra.mxu0 %v3707
      %v4712 = vpop.f32.mrf.mxu0
      %v4713 = vadd.f32 %v4168, %v4712
      %v4714 = vpop.f32.mrf.mxu0
      %v4715 = vpop.f32.mrf.mxu0
      %v4716 = vadd.f32 %v4171, %v4715
      %v4717 = vpop.f32.mrf.mxu0
      %4718 = vmatprep.mubr.bf16.mxu0 0
      %4719 = vmatmul.mubr.bf16.gmra.mxu0 %v3710
      %v4720 = vpop.f32.mrf.mxu0
      %v4721 = vadd.f32 %v4176, %v4720
      %v4722 = vpop.f32.mrf.mxu0
      %v4723 = vpop.f32.mrf.mxu0
      %v4724 = vadd.f32 %v4179, %v4723
      %v4725 = vpop.f32.mrf.mxu0
      %4726 = vmatprep.mubr.bf16.mxu0 0
      %4727 = vmatmul.mubr.bf16.gmra.mxu0 %v3713
      %v4728 = vpop.f32.mrf.mxu0
      %v4729 = vadd.f32 %v4184, %v4728
      %v4730 = vpop.f32.mrf.mxu0
      %v4731 = vpop.f32.mrf.mxu0
      %v4732 = vadd.f32 %v4187, %v4731
      %v4733 = vpop.f32.mrf.mxu0
      %4734 = vmatprep.mubr.bf16.mxu0 0
      %4735 = vmatmul.mubr.bf16.gmra.mxu0 %v3716
      %v4736 = vpop.f32.mrf.mxu0
      %v4737 = vadd.f32 %v4192, %v4736
      %v4738 = vpop.f32.mrf.mxu0
      %v4739 = vpop.f32.mrf.mxu0
      %v4740 = vadd.f32 %v4195, %v4739
      %v4741 = vpop.f32.mrf.mxu0
      %4742 = vmatprep.mubr.bf16.mxu0 0
      %4743 = vmatmul.mubr.bf16.gmra.mxu0 %v3719
      %v4744 = vpop.f32.mrf.mxu0
      %v4745 = vadd.f32 %v4200, %v4744
      %v4746 = vpop.f32.mrf.mxu0
      %v4747 = vpop.f32.mrf.mxu0
      %v4748 = vadd.f32 %v4203, %v4747
      %v4749 = vpop.f32.mrf.mxu0
      %4750 = vmatprep.mubr.bf16.mxu0 0
      %4751 = vmatmul.mubr.bf16.gmra.mxu0 %v3722
      %v4752 = vpop.f32.mrf.mxu0
      %v4753 = vadd.f32 %v4208, %v4752
      %v4754 = vpop.f32.mrf.mxu0
      %v4755 = vpop.f32.mrf.mxu0
      %v4756 = vadd.f32 %v4211, %v4755
      %v4757 = vpop.f32.mrf.mxu0
      %4758 = vmatprep.mubr.bf16.mxu0 0
      %4759 = vmatmul.mubr.bf16.gmra.mxu0 %v3725
      %v4760 = vpop.f32.mrf.mxu0
      %v4761 = vadd.f32 %v4216, %v4760
      %v4762 = vpop.f32.mrf.mxu0
      %v4763 = vpop.f32.mrf.mxu0
      %v4764 = vadd.f32 %v4219, %v4763
      %v4765 = vpop.f32.mrf.mxu0
      %4766 = vmatprep.mubr.bf16.mxu0 0
      %4767 = vmatmul.mubr.bf16.gmra.mxu0 %v3728
      %v4768 = vpop.f32.mrf.mxu0
      %v4769 = vadd.f32 %v4224, %v4768
      %v4770 = vpop.f32.mrf.mxu0
      %v4771 = vpop.f32.mrf.mxu0
      %v4772 = vadd.f32 %v4227, %v4771
      %v4773 = vpop.f32.mrf.mxu0
      %4774 = vmatprep.mubr.bf16.mxu0 0
      %4775 = vmatmul.mubr.bf16.gmra.mxu0 %v3731
      %v4776 = vpop.f32.mrf.mxu0
      %v4777 = vadd.f32 %v4232, %v4776
      %v4778 = vpop.f32.mrf.mxu0
      %v4779 = vpop.f32.mrf.mxu0
      %v4780 = vadd.f32 %v4235, %v4779
      %v4781 = vpop.f32.mrf.mxu0
      %4782 = vmatprep.mubr.bf16.mxu0 0
      %4783 = vmatmul.mubr.bf16.gmra.mxu0 %v3734
      %v4784 = vpop.f32.mrf.mxu0
      %v4785 = vadd.f32 %v4240, %v4784
      %v4786 = vpop.f32.mrf.mxu0
      %v4787 = vpop.f32.mrf.mxu0
      %v4788 = vadd.f32 %v4243, %v4787
      %v4789 = vpop.f32.mrf.mxu0
      %4790 = vmatprep.mubr.bf16.mxu0 0
      %4791 = vmatmul.mubr.bf16.gmra.mxu0 %v3737
      %v4792 = vpop.f32.mrf.mxu0
      %v4793 = vadd.f32 %v4248, %v4792
      %v4794 = vpop.f32.mrf.mxu0
      %v4795 = vpop.f32.mrf.mxu0
      %v4796 = vadd.f32 %v4251, %v4795
      %v4797 = vpop.f32.mrf.mxu0
      %4798 = vmatprep.mubr.bf16.mxu0 0
      %4799 = vmatmul.mubr.bf16.gmra.mxu0 %v3740
      %v4800 = vpop.f32.mrf.mxu0
      %v4801 = vadd.f32 %v4256, %v4800
      %v4802 = vpop.f32.mrf.mxu0
      %v4803 = vpop.f32.mrf.mxu0
      %v4804 = vadd.f32 %v4259, %v4803
      %v4805 = vpop.f32.mrf.mxu0
      %4806 = vmatprep.mubr.bf16.mxu0 0
      %4807 = vmatmul.mubr.bf16.gmra.mxu0 %v3743
      %v4808 = vpop.f32.mrf.mxu0
      %v4809 = vadd.f32 %v4264, %v4808
      %v4810 = vpop.f32.mrf.mxu0
      %v4811 = vpop.f32.mrf.mxu0
      %v4812 = vadd.f32 %v4267, %v4811
      %v4813 = vpop.f32.mrf.mxu0
      %4814 = vmatprep.mubr.bf16.mxu0 0
      %4815 = vmatmul.mubr.bf16.gmra.mxu0 %v3746
      %v4816 = vpop.f32.mrf.mxu0
      %v4817 = vadd.f32 %v4272, %v4816
      %v4818 = vpop.f32.mrf.mxu0
      %v4819 = vpop.f32.mrf.mxu0
      %v4820 = vadd.f32 %v4275, %v4819
      %v4821 = vpop.f32.mrf.mxu0
      %4822 = vmatprep.mubr.bf16.mxu0 0
      %4823 = vmatmul.mubr.bf16.gmra.mxu0 %v3749
      %v4824 = vpop.f32.mrf.mxu0
      %v4825 = vadd.f32 %v4280, %v4824
      %v4826 = vpop.f32.mrf.mxu0
      %v4827 = vpop.f32.mrf.mxu0
      %v4828 = vadd.f32 %v4283, %v4827
      %v4829 = vpop.f32.mrf.mxu0
      %4830 = vmatprep.mubr.bf16.mxu0 0
      %4831 = vmatmul.mubr.bf16.gmra.mxu0 %v3752
      %v4832 = vpop.f32.mrf.mxu0
      %v4833 = vadd.f32 %v4288, %v4832
      %v4834 = vpop.f32.mrf.mxu0
      %v4835 = vpop.f32.mrf.mxu0
      %v4836 = vadd.f32 %v4291, %v4835
      %v4837 = vpop.f32.mrf.mxu0
      %4838 = vmatprep.mubr.bf16.mxu0 0
      %4839 = vmatmul.mubr.bf16.gmra.mxu0 %v3755
      %v4840 = vpop.f32.mrf.mxu0
      %v4841 = vadd.f32 %v4296, %v4840
      %v4842 = vpop.f32.mrf.mxu0
      %v4843 = vpop.f32.mrf.mxu0
      %v4844 = vadd.f32 %v4299, %v4843
      %v4845 = vpop.f32.mrf.mxu0
      %4846 = vdwg.mxu0
      %v4847 = vld [vmem:[%s212] sm:$0xff]
      %v4848 = vld [vmem:[%s212 + $0x8] sm:$0xff]
      %v4849 = vld [vmem:[%s212 + $0x10] sm:$0xff]
      %v4850 = vld [vmem:[%s212 + $0x18] sm:$0xff]
      %v4851 = vld [vmem:[%s212 + $0x20] sm:$0xff]
      %v4852 = vld [vmem:[%s212 + $0x28] sm:$0xff]
      %v4853 = vld [vmem:[%s212 + $0x30] sm:$0xff]
      %v4854 = vld [vmem:[%s212 + $0x38] sm:$0xff]
      %v4855 = vld [vmem:[%s212 + $0x40] sm:$0xff]
      %v4856 = vld [vmem:[%s212 + $0x48] sm:$0xff]
      %v4857 = vld [vmem:[%s212 + $0x50] sm:$0xff]
      %v4858 = vld [vmem:[%s212 + $0x58] sm:$0xff]
      %v4859 = vld [vmem:[%s212 + $0x60] sm:$0xff]
      %v4860 = vld [vmem:[%s212 + $0x68] sm:$0xff]
      %v4861 = vld [vmem:[%s212 + $0x70] sm:$0xff]
      %v4862 = vld [vmem:[%s212 + $0x78] sm:$0xff]
      %v4863 = vld [vmem:[%s212 + $0x80] sm:$0xff]
      %v4864 = vld [vmem:[%s212 + $0x88] sm:$0xff]
      %v4865 = vld [vmem:[%s212 + $0x90] sm:$0xff]
      %v4866 = vld [vmem:[%s212 + $0x98] sm:$0xff]
      %v4867 = vld [vmem:[%s212 + $0xa0] sm:$0xff]
      %v4868 = vld [vmem:[%s212 + $0xa8] sm:$0xff]
      %v4869 = vld [vmem:[%s212 + $0xb0] sm:$0xff]
      %v4870 = vld [vmem:[%s212 + $0xb8] sm:$0xff]
      %v4871 = vld [vmem:[%s212 + $0xc0] sm:$0xff]
      %v4872 = vld [vmem:[%s212 + $0xc8] sm:$0xff]
      %v4873 = vld [vmem:[%s212 + $0xd0] sm:$0xff]
      %v4874 = vld [vmem:[%s212 + $0xd8] sm:$0xff]
      %v4875 = vld [vmem:[%s212 + $0xe0] sm:$0xff]
      %v4876 = vld [vmem:[%s212 + $0xe8] sm:$0xff]
      %v4877 = vld [vmem:[%s212 + $0xf0] sm:$0xff]
      %v4878 = vld [vmem:[%s212 + $0xf8] sm:$0xff]
      %v4879 = vld [vmem:[%s212 + $0x100] sm:$0xff]
      %v4880 = vld [vmem:[%s212 + $0x108] sm:$0xff]
      %v4881 = vld [vmem:[%s212 + $0x110] sm:$0xff]
      %v4882 = vld [vmem:[%s212 + $0x118] sm:$0xff]
      %v4883 = vld [vmem:[%s212 + $0x120] sm:$0xff]
      %v4884 = vld [vmem:[%s212 + $0x128] sm:$0xff]
      %v4885 = vld [vmem:[%s212 + $0x130] sm:$0xff]
      %v4886 = vld [vmem:[%s212 + $0x138] sm:$0xff]
      %v4887 = vld [vmem:[%s212 + $0x140] sm:$0xff]
      %v4888 = vld [vmem:[%s212 + $0x148] sm:$0xff]
      %v4889 = vld [vmem:[%s212 + $0x150] sm:$0xff]
      %v4890 = vld [vmem:[%s212 + $0x158] sm:$0xff]
      %v4891 = vld [vmem:[%s212 + $0x160] sm:$0xff]
      %v4892 = vld [vmem:[%s212 + $0x168] sm:$0xff]
      %v4893 = vld [vmem:[%s212 + $0x170] sm:$0xff]
      %v4894 = vld [vmem:[%s212 + $0x178] sm:$0xff]
      %v4895 = vld [vmem:[%s212 + $0x180] sm:$0xff]
      %v4896 = vld [vmem:[%s212 + $0x188] sm:$0xff]
      %v4897 = vld [vmem:[%s212 + $0x190] sm:$0xff]
      %v4898 = vld [vmem:[%s212 + $0x198] sm:$0xff]
      %v4899 = vld [vmem:[%s212 + $0x1a0] sm:$0xff]
      %v4900 = vld [vmem:[%s212 + $0x1a8] sm:$0xff]
      %v4901 = vld [vmem:[%s212 + $0x1b0] sm:$0xff]
      %v4902 = vld [vmem:[%s212 + $0x1b8] sm:$0xff]
      %v4903 = vld [vmem:[%s212 + $0x1c0] sm:$0xff]
      %v4904 = vld [vmem:[%s212 + $0x1c8] sm:$0xff]
      %v4905 = vld [vmem:[%s212 + $0x1d0] sm:$0xff]
      %v4906 = vld [vmem:[%s212 + $0x1d8] sm:$0xff]
      %v4907 = vld [vmem:[%s212 + $0x1e0] sm:$0xff]
      %v4908 = vld [vmem:[%s212 + $0x1e8] sm:$0xff]
      %v4909 = vld [vmem:[%s212 + $0x1f0] sm:$0xff]
      %v4910 = vld [vmem:[%s212 + $0x1f8] sm:$0xff]
      %v4911 = vld [vmem:[%s212 + $0x200] sm:$0xff]
      %v4912 = vld [vmem:[%s212 + $0x208] sm:$0xff]
      %v4913 = vld [vmem:[%s212 + $0x210] sm:$0xff]
      %v4914 = vld [vmem:[%s212 + $0x218] sm:$0xff]
      %v4915 = vld [vmem:[%s212 + $0x220] sm:$0xff]
      %v4916 = vld [vmem:[%s212 + $0x228] sm:$0xff]
      %v4917 = vld [vmem:[%s212 + $0x230] sm:$0xff]
      %v4918 = vld [vmem:[%s212 + $0x238] sm:$0xff]
      %v4919 = vld [vmem:[%s212 + $0x240] sm:$0xff]
      %v4920 = vld [vmem:[%s212 + $0x248] sm:$0xff]
      %v4921 = vld [vmem:[%s212 + $0x250] sm:$0xff]
      %v4922 = vld [vmem:[%s212 + $0x258] sm:$0xff]
      %v4923 = vld [vmem:[%s212 + $0x260] sm:$0xff]
      %v4924 = vld [vmem:[%s212 + $0x268] sm:$0xff]
      %v4925 = vld [vmem:[%s212 + $0x270] sm:$0xff]
      %v4926 = vld [vmem:[%s212 + $0x278] sm:$0xff]
      %v4927 = vld [vmem:[%s212 + $0x280] sm:$0xff]
      %v4928 = vld [vmem:[%s212 + $0x288] sm:$0xff]
      %v4929 = vld [vmem:[%s212 + $0x290] sm:$0xff]
      %v4930 = vld [vmem:[%s212 + $0x298] sm:$0xff]
      %v4931 = vld [vmem:[%s212 + $0x2a0] sm:$0xff]
      %v4932 = vld [vmem:[%s212 + $0x2a8] sm:$0xff]
      %v4933 = vld [vmem:[%s212 + $0x2b0] sm:$0xff]
      %v4934 = vld [vmem:[%s212 + $0x2b8] sm:$0xff]
      %v4935 = vld [vmem:[%s212 + $0x2c0] sm:$0xff]
      %v4936 = vld [vmem:[%s212 + $0x2c8] sm:$0xff]
      %v4937 = vld [vmem:[%s212 + $0x2d0] sm:$0xff]
      %v4938 = vld [vmem:[%s212 + $0x2d8] sm:$0xff]
      %v4939 = vld [vmem:[%s212 + $0x2e0] sm:$0xff]
      %v4940 = vld [vmem:[%s212 + $0x2e8] sm:$0xff]
      %v4941 = vld [vmem:[%s212 + $0x2f0] sm:$0xff]
      %v4942 = vld [vmem:[%s212 + $0x2f8] sm:$0xff]
      %v4943 = vld [vmem:[%s212 + $0x300] sm:$0xff]
      %v4944 = vld [vmem:[%s212 + $0x308] sm:$0xff]
      %v4945 = vld [vmem:[%s212 + $0x310] sm:$0xff]
      %v4946 = vld [vmem:[%s212 + $0x318] sm:$0xff]
      %v4947 = vld [vmem:[%s212 + $0x320] sm:$0xff]
      %v4948 = vld [vmem:[%s212 + $0x328] sm:$0xff]
      %v4949 = vld [vmem:[%s212 + $0x330] sm:$0xff]
      %v4950 = vld [vmem:[%s212 + $0x338] sm:$0xff]
      %v4951 = vld [vmem:[%s212 + $0x340] sm:$0xff]
      %v4952 = vld [vmem:[%s212 + $0x348] sm:$0xff]
      %v4953 = vld [vmem:[%s212 + $0x350] sm:$0xff]
      %v4954 = vld [vmem:[%s212 + $0x358] sm:$0xff]
      %v4955 = vld [vmem:[%s212 + $0x360] sm:$0xff]
      %v4956 = vld [vmem:[%s212 + $0x368] sm:$0xff]
      %v4957 = vld [vmem:[%s212 + $0x370] sm:$0xff]
      %v4958 = vld [vmem:[%s212 + $0x378] sm:$0xff]
      %v4959 = vld [vmem:[%s212 + $0x380] sm:$0xff]
      %v4960 = vld [vmem:[%s212 + $0x388] sm:$0xff]
      %v4961 = vld [vmem:[%s212 + $0x390] sm:$0xff]
      %v4962 = vld [vmem:[%s212 + $0x398] sm:$0xff]
      %v4963 = vld [vmem:[%s212 + $0x3a0] sm:$0xff]
      %v4964 = vld [vmem:[%s212 + $0x3a8] sm:$0xff]
      %v4965 = vld [vmem:[%s212 + $0x3b0] sm:$0xff]
      %v4966 = vld [vmem:[%s212 + $0x3b8] sm:$0xff]
      %v4967 = vld [vmem:[%s212 + $0x3c0] sm:$0xff]
      %v4968 = vld [vmem:[%s212 + $0x3c8] sm:$0xff]
      %v4969 = vld [vmem:[%s212 + $0x3d0] sm:$0xff]
      %v4970 = vld [vmem:[%s212 + $0x3d8] sm:$0xff]
      %v4971 = vld [vmem:[%s212 + $0x3e0] sm:$0xff]
      %v4972 = vld [vmem:[%s212 + $0x3e8] sm:$0xff]
      %v4973 = vld [vmem:[%s212 + $0x3f0] sm:$0xff]
      %v4974 = vld [vmem:[%s212 + $0x3f8] sm:$0xff]
      %v4975 = vadd.f32 %v4337, %v4847
      %v4976 = vadd.f32 %v4340, %v4848
      %v4977 = vadd.f32 %v4345, %v4849
      %v4978 = vadd.f32 %v4348, %v4850
      %v4979 = vadd.f32 %v4353, %v4851
      %v4980 = vadd.f32 %v4356, %v4852
      %v4981 = vadd.f32 %v4361, %v4853
      %v4982 = vadd.f32 %v4364, %v4854
      %v4983 = vadd.f32 %v4369, %v4855
      %v4984 = vadd.f32 %v4372, %v4856
      %v4985 = vadd.f32 %v4377, %v4857
      %v4986 = vadd.f32 %v4380, %v4858
      %v4987 = vadd.f32 %v4385, %v4859
      %v4988 = vadd.f32 %v4388, %v4860
      %v4989 = vadd.f32 %v4393, %v4861
      %v4990 = vadd.f32 %v4396, %v4862
      %v4991 = vadd.f32 %v4401, %v4863
      %v4992 = vadd.f32 %v4404, %v4864
      %v4993 = vadd.f32 %v4409, %v4865
      %v4994 = vadd.f32 %v4412, %v4866
      %v4995 = vadd.f32 %v4417, %v4867
      %v4996 = vadd.f32 %v4420, %v4868
      %v4997 = vadd.f32 %v4425, %v4869
      %v4998 = vadd.f32 %v4428, %v4870
      %v4999 = vadd.f32 %v4433, %v4871
      %v5000 = vadd.f32 %v4436, %v4872
      %v5001 = vadd.f32 %v4441, %v4873
      %v5002 = vadd.f32 %v4444, %v4874
      %v5003 = vadd.f32 %v4449, %v4875
      %v5004 = vadd.f32 %v4452, %v4876
      %v5005 = vadd.f32 %v4457, %v4877
      %v5006 = vadd.f32 %v4460, %v4878
      %v5007 = vadd.f32 %v4465, %v4879
      %v5008 = vadd.f32 %v4468, %v4880
      %v5009 = vadd.f32 %v4473, %v4881
      %v5010 = vadd.f32 %v4476, %v4882
      %v5011 = vadd.f32 %v4481, %v4883
      %v5012 = vadd.f32 %v4484, %v4884
      %v5013 = vadd.f32 %v4489, %v4885
      %v5014 = vadd.f32 %v4492, %v4886
      %v5015 = vadd.f32 %v4497, %v4887
      %v5016 = vadd.f32 %v4500, %v4888
      %v5017 = vadd.f32 %v4505, %v4889
      %v5018 = vadd.f32 %v4508, %v4890
      %v5019 = vadd.f32 %v4513, %v4891
      %v5020 = vadd.f32 %v4516, %v4892
      %v5021 = vadd.f32 %v4521, %v4893
      %v5022 = vadd.f32 %v4524, %v4894
      %v5023 = vadd.f32 %v4529, %v4895
      %v5024 = vadd.f32 %v4532, %v4896
      %v5025 = vadd.f32 %v4537, %v4897
      %v5026 = vadd.f32 %v4540, %v4898
      %v5027 = vadd.f32 %v4545, %v4899
      %v5028 = vadd.f32 %v4548, %v4900
      %v5029 = vadd.f32 %v4553, %v4901
      %v5030 = vadd.f32 %v4556, %v4902
      %v5031 = vadd.f32 %v4561, %v4903
      %v5032 = vadd.f32 %v4564, %v4904
      %v5033 = vadd.f32 %v4569, %v4905
      %v5034 = vadd.f32 %v4572, %v4906
      %v5035 = vadd.f32 %v4577, %v4907
      %v5036 = vadd.f32 %v4580, %v4908
      %v5037 = vadd.f32 %v4585, %v4909
      %v5038 = vadd.f32 %v4588, %v4910
      %v5039 = vadd.f32 %v4593, %v4911
      %v5040 = vadd.f32 %v4596, %v4912
      %v5041 = vadd.f32 %v4601, %v4913
      %v5042 = vadd.f32 %v4604, %v4914
      %v5043 = vadd.f32 %v4609, %v4915
      %v5044 = vadd.f32 %v4612, %v4916
      %v5045 = vadd.f32 %v4617, %v4917
      %v5046 = vadd.f32 %v4620, %v4918
      %v5047 = vadd.f32 %v4625, %v4919
      %v5048 = vadd.f32 %v4628, %v4920
      %v5049 = vadd.f32 %v4633, %v4921
      %v5050 = vadd.f32 %v4636, %v4922
      %v5051 = vadd.f32 %v4641, %v4923
      %v5052 = vadd.f32 %v4644, %v4924
      %v5053 = vadd.f32 %v4649, %v4925
      %v5054 = vadd.f32 %v4652, %v4926
      %v5055 = vadd.f32 %v4657, %v4927
      %v5056 = vadd.f32 %v4660, %v4928
      %v5057 = vadd.f32 %v4665, %v4929
      %v5058 = vadd.f32 %v4668, %v4930
      %v5059 = vadd.f32 %v4673, %v4931
      %v5060 = vadd.f32 %v4676, %v4932
      %v5061 = vadd.f32 %v4681, %v4933
      %v5062 = vadd.f32 %v4684, %v4934
      %v5063 = vadd.f32 %v4689, %v4935
      %v5064 = vadd.f32 %v4692, %v4936
      %v5065 = vadd.f32 %v4697, %v4937
      %v5066 = vadd.f32 %v4700, %v4938
      %v5067 = vadd.f32 %v4705, %v4939
      %v5068 = vadd.f32 %v4708, %v4940
      %v5069 = vadd.f32 %v4713, %v4941
      %v5070 = vadd.f32 %v4716, %v4942
      %v5071 = vadd.f32 %v4721, %v4943
      %v5072 = vadd.f32 %v4724, %v4944
      %v5073 = vadd.f32 %v4729, %v4945
      %v5074 = vadd.f32 %v4732, %v4946
      %v5075 = vadd.f32 %v4737, %v4947
      %v5076 = vadd.f32 %v4740, %v4948
      %v5077 = vadd.f32 %v4745, %v4949
      %v5078 = vadd.f32 %v4748, %v4950
      %v5079 = vadd.f32 %v4753, %v4951
      %v5080 = vadd.f32 %v4756, %v4952
      %v5081 = vadd.f32 %v4761, %v4953
      %v5082 = vadd.f32 %v4764, %v4954
      %v5083 = vadd.f32 %v4769, %v4955
      %v5084 = vadd.f32 %v4772, %v4956
      %v5085 = vadd.f32 %v4777, %v4957
      %v5086 = vadd.f32 %v4780, %v4958
      %v5087 = vadd.f32 %v4785, %v4959
      %v5088 = vadd.f32 %v4788, %v4960
      %v5089 = vadd.f32 %v4793, %v4961
      %v5090 = vadd.f32 %v4796, %v4962
      %v5091 = vadd.f32 %v4801, %v4963
      %v5092 = vadd.f32 %v4804, %v4964
      %v5093 = vadd.f32 %v4809, %v4965
      %v5094 = vadd.f32 %v4812, %v4966
      %v5095 = vadd.f32 %v4817, %v4967
      %v5096 = vadd.f32 %v4820, %v4968
      %v5097 = vadd.f32 %v4825, %v4969
      %v5098 = vadd.f32 %v4828, %v4970
      %v5099 = vadd.f32 %v4833, %v4971
      %v5100 = vadd.f32 %v4836, %v4972
      %v5101 = vadd.f32 %v4841, %v4973
      %v5102 = vadd.f32 %v4844, %v4974
      %vm5103 = vcmask 23552
      %5104 = vst.msk [vmem:[%s217] sm:$0xff] %vm5103, %v4975
      %5105 = vst.msk [vmem:[%s217 + $0x8] sm:$0xff] %vm5103, %v4976
      %5106 = vst.msk [vmem:[%s217 + $0x10] sm:$0xff] %vm5103, %v4977
      %5107 = vst.msk [vmem:[%s217 + $0x18] sm:$0xff] %vm5103, %v4978
      %5108 = vst.msk [vmem:[%s217 + $0x20] sm:$0xff] %vm5103, %v4979
      %5109 = vst.msk [vmem:[%s217 + $0x28] sm:$0xff] %vm5103, %v4980
      %5110 = vst.msk [vmem:[%s217 + $0x30] sm:$0xff] %vm5103, %v4981
      %5111 = vst.msk [vmem:[%s217 + $0x38] sm:$0xff] %vm5103, %v4982
      %5112 = vst.msk [vmem:[%s217 + $0x40] sm:$0xff] %vm5103, %v4983
      %5113 = vst.msk [vmem:[%s217 + $0x48] sm:$0xff] %vm5103, %v4984
      %5114 = vst.msk [vmem:[%s217 + $0x50] sm:$0xff] %vm5103, %v4985
      %5115 = vst.msk [vmem:[%s217 + $0x58] sm:$0xff] %vm5103, %v4986
      %5116 = vst.msk [vmem:[%s217 + $0x60] sm:$0xff] %vm5103, %v4987
      %5117 = vst.msk [vmem:[%s217 + $0x68] sm:$0xff] %vm5103, %v4988
      %5118 = vst.msk [vmem:[%s217 + $0x70] sm:$0xff] %vm5103, %v4989
      %5119 = vst.msk [vmem:[%s217 + $0x78] sm:$0xff] %vm5103, %v4990
      %5120 = vst.msk [vmem:[%s217 + $0x80] sm:$0xff] %vm5103, %v4991
      %5121 = vst.msk [vmem:[%s217 + $0x88] sm:$0xff] %vm5103, %v4992
      %5122 = vst.msk [vmem:[%s217 + $0x90] sm:$0xff] %vm5103, %v4993
      %5123 = vst.msk [vmem:[%s217 + $0x98] sm:$0xff] %vm5103, %v4994
      %5124 = vst.msk [vmem:[%s217 + $0xa0] sm:$0xff] %vm5103, %v4995
      %5125 = vst.msk [vmem:[%s217 + $0xa8] sm:$0xff] %vm5103, %v4996
      %5126 = vst.msk [vmem:[%s217 + $0xb0] sm:$0xff] %vm5103, %v4997
      %5127 = vst.msk [vmem:[%s217 + $0xb8] sm:$0xff] %vm5103, %v4998
      %5128 = vst.msk [vmem:[%s217 + $0xc0] sm:$0xff] %vm5103, %v4999
      %5129 = vst.msk [vmem:[%s217 + $0xc8] sm:$0xff] %vm5103, %v5000
      %5130 = vst.msk [vmem:[%s217 + $0xd0] sm:$0xff] %vm5103, %v5001
      %5131 = vst.msk [vmem:[%s217 + $0xd8] sm:$0xff] %vm5103, %v5002
      %5132 = vst.msk [vmem:[%s217 + $0xe0] sm:$0xff] %vm5103, %v5003
      %5133 = vst.msk [vmem:[%s217 + $0xe8] sm:$0xff] %vm5103, %v5004
      %5134 = vst.msk [vmem:[%s217 + $0xf0] sm:$0xff] %vm5103, %v5005
      %5135 = vst.msk [vmem:[%s217 + $0xf8] sm:$0xff] %vm5103, %v5006
      %5136 = vst.msk [vmem:[%s217 + $0x100] sm:$0xff] %vm5103, %v5007
      %5137 = vst.msk [vmem:[%s217 + $0x108] sm:$0xff] %vm5103, %v5008
      %5138 = vst.msk [vmem:[%s217 + $0x110] sm:$0xff] %vm5103, %v5009
      %5139 = vst.msk [vmem:[%s217 + $0x118] sm:$0xff] %vm5103, %v5010
      %5140 = vst.msk [vmem:[%s217 + $0x120] sm:$0xff] %vm5103, %v5011
      %5141 = vst.msk [vmem:[%s217 + $0x128] sm:$0xff] %vm5103, %v5012
      %5142 = vst.msk [vmem:[%s217 + $0x130] sm:$0xff] %vm5103, %v5013
      %5143 = vst.msk [vmem:[%s217 + $0x138] sm:$0xff] %vm5103, %v5014
      %5144 = vst.msk [vmem:[%s217 + $0x140] sm:$0xff] %vm5103, %v5015
      %5145 = vst.msk [vmem:[%s217 + $0x148] sm:$0xff] %vm5103, %v5016
      %5146 = vst.msk [vmem:[%s217 + $0x150] sm:$0xff] %vm5103, %v5017
      %5147 = vst.msk [vmem:[%s217 + $0x158] sm:$0xff] %vm5103, %v5018
      %5148 = vst.msk [vmem:[%s217 + $0x160] sm:$0xff] %vm5103, %v5019
      %5149 = vst.msk [vmem:[%s217 + $0x168] sm:$0xff] %vm5103, %v5020
      %5150 = vst.msk [vmem:[%s217 + $0x170] sm:$0xff] %vm5103, %v5021
      %5151 = vst.msk [vmem:[%s217 + $0x178] sm:$0xff] %vm5103, %v5022
      %5152 = vst.msk [vmem:[%s217 + $0x180] sm:$0xff] %vm5103, %v5023
      %5153 = vst.msk [vmem:[%s217 + $0x188] sm:$0xff] %vm5103, %v5024
      %5154 = vst.msk [vmem:[%s217 + $0x190] sm:$0xff] %vm5103, %v5025
      %5155 = vst.msk [vmem:[%s217 + $0x198] sm:$0xff] %vm5103, %v5026
      %5156 = vst.msk [vmem:[%s217 + $0x1a0] sm:$0xff] %vm5103, %v5027
      %5157 = vst.msk [vmem:[%s217 + $0x1a8] sm:$0xff] %vm5103, %v5028
      %5158 = vst.msk [vmem:[%s217 + $0x1b0] sm:$0xff] %vm5103, %v5029
      %5159 = vst.msk [vmem:[%s217 + $0x1b8] sm:$0xff] %vm5103, %v5030
      %5160 = vst.msk [vmem:[%s217 + $0x1c0] sm:$0xff] %vm5103, %v5031
      %5161 = vst.msk [vmem:[%s217 + $0x1c8] sm:$0xff] %vm5103, %v5032
      %5162 = vst.msk [vmem:[%s217 + $0x1d0] sm:$0xff] %vm5103, %v5033
      %5163 = vst.msk [vmem:[%s217 + $0x1d8] sm:$0xff] %vm5103, %v5034
      %5164 = vst.msk [vmem:[%s217 + $0x1e0] sm:$0xff] %vm5103, %v5035
      %5165 = vst.msk [vmem:[%s217 + $0x1e8] sm:$0xff] %vm5103, %v5036
      %5166 = vst.msk [vmem:[%s217 + $0x1f0] sm:$0xff] %vm5103, %v5037
      %5167 = vst.msk [vmem:[%s217 + $0x1f8] sm:$0xff] %vm5103, %v5038
      %5168 = vst.msk [vmem:[%s217 + $0x200] sm:$0xff] %vm5103, %v5039
      %5169 = vst.msk [vmem:[%s217 + $0x208] sm:$0xff] %vm5103, %v5040
      %5170 = vst.msk [vmem:[%s217 + $0x210] sm:$0xff] %vm5103, %v5041
      %5171 = vst.msk [vmem:[%s217 + $0x218] sm:$0xff] %vm5103, %v5042
      %5172 = vst.msk [vmem:[%s217 + $0x220] sm:$0xff] %vm5103, %v5043
      %5173 = vst.msk [vmem:[%s217 + $0x228] sm:$0xff] %vm5103, %v5044
      %5174 = vst.msk [vmem:[%s217 + $0x230] sm:$0xff] %vm5103, %v5045
      %5175 = vst.msk [vmem:[%s217 + $0x238] sm:$0xff] %vm5103, %v5046
      %5176 = vst.msk [vmem:[%s217 + $0x240] sm:$0xff] %vm5103, %v5047
      %5177 = vst.msk [vmem:[%s217 + $0x248] sm:$0xff] %vm5103, %v5048
      %5178 = vst.msk [vmem:[%s217 + $0x250] sm:$0xff] %vm5103, %v5049
      %5179 = vst.msk [vmem:[%s217 + $0x258] sm:$0xff] %vm5103, %v5050
      %5180 = vst.msk [vmem:[%s217 + $0x260] sm:$0xff] %vm5103, %v5051
      %5181 = vst.msk [vmem:[%s217 + $0x268] sm:$0xff] %vm5103, %v5052
      %5182 = vst.msk [vmem:[%s217 + $0x270] sm:$0xff] %vm5103, %v5053
      %5183 = vst.msk [vmem:[%s217 + $0x278] sm:$0xff] %vm5103, %v5054
      %5184 = vst.msk [vmem:[%s217 + $0x280] sm:$0xff] %vm5103, %v5055
      %5185 = vst.msk [vmem:[%s217 + $0x288] sm:$0xff] %vm5103, %v5056
      %5186 = vst.msk [vmem:[%s217 + $0x290] sm:$0xff] %vm5103, %v5057
      %5187 = vst.msk [vmem:[%s217 + $0x298] sm:$0xff] %vm5103, %v5058
      %5188 = vst.msk [vmem:[%s217 + $0x2a0] sm:$0xff] %vm5103, %v5059
      %5189 = vst.msk [vmem:[%s217 + $0x2a8] sm:$0xff] %vm5103, %v5060
      %5190 = vst.msk [vmem:[%s217 + $0x2b0] sm:$0xff] %vm5103, %v5061
      %5191 = vst.msk [vmem:[%s217 + $0x2b8] sm:$0xff] %vm5103, %v5062
      %5192 = vst.msk [vmem:[%s217 + $0x2c0] sm:$0xff] %vm5103, %v5063
      %5193 = vst.msk [vmem:[%s217 + $0x2c8] sm:$0xff] %vm5103, %v5064
      %5194 = vst.msk [vmem:[%s217 + $0x2d0] sm:$0xff] %vm5103, %v5065
      %5195 = vst.msk [vmem:[%s217 + $0x2d8] sm:$0xff] %vm5103, %v5066
      %5196 = vst.msk [vmem:[%s217 + $0x2e0] sm:$0xff] %vm5103, %v5067
      %5197 = vst.msk [vmem:[%s217 + $0x2e8] sm:$0xff] %vm5103, %v5068
      %5198 = vst.msk [vmem:[%s217 + $0x2f0] sm:$0xff] %vm5103, %v5069
      %5199 = vst.msk [vmem:[%s217 + $0x2f8] sm:$0xff] %vm5103, %v5070
      %5200 = vst.msk [vmem:[%s217 + $0x300] sm:$0xff] %vm5103, %v5071
      %5201 = vst.msk [vmem:[%s217 + $0x308] sm:$0xff] %vm5103, %v5072
      %5202 = vst.msk [vmem:[%s217 + $0x310] sm:$0xff] %vm5103, %v5073
      %5203 = vst.msk [vmem:[%s217 + $0x318] sm:$0xff] %vm5103, %v5074
      %5204 = vst.msk [vmem:[%s217 + $0x320] sm:$0xff] %vm5103, %v5075
      %5205 = vst.msk [vmem:[%s217 + $0x328] sm:$0xff] %vm5103, %v5076
      %5206 = vst.msk [vmem:[%s217 + $0x330] sm:$0xff] %vm5103, %v5077
      %5207 = vst.msk [vmem:[%s217 + $0x338] sm:$0xff] %vm5103, %v5078
      %5208 = vst.msk [vmem:[%s217 + $0x340] sm:$0xff] %vm5103, %v5079
      %5209 = vst.msk [vmem:[%s217 + $0x348] sm:$0xff] %vm5103, %v5080
      %5210 = vst.msk [vmem:[%s217 + $0x350] sm:$0xff] %vm5103, %v5081
      %5211 = vst.msk [vmem:[%s217 + $0x358] sm:$0xff] %vm5103, %v5082
      %5212 = vst.msk [vmem:[%s217 + $0x360] sm:$0xff] %vm5103, %v5083
      %5213 = vst.msk [vmem:[%s217 + $0x368] sm:$0xff] %vm5103, %v5084
      %5214 = vst.msk [vmem:[%s217 + $0x370] sm:$0xff] %vm5103, %v5085
      %5215 = vst.msk [vmem:[%s217 + $0x378] sm:$0xff] %vm5103, %v5086
      %5216 = vst.msk [vmem:[%s217 + $0x380] sm:$0xff] %vm5103, %v5087
      %5217 = vst.msk [vmem:[%s217 + $0x388] sm:$0xff] %vm5103, %v5088
      %5218 = vst.msk [vmem:[%s217 + $0x390] sm:$0xff] %vm5103, %v5089
      %5219 = vst.msk [vmem:[%s217 + $0x398] sm:$0xff] %vm5103, %v5090
      %5220 = vst.msk [vmem:[%s217 + $0x3a0] sm:$0xff] %vm5103, %v5091
      %5221 = vst.msk [vmem:[%s217 + $0x3a8] sm:$0xff] %vm5103, %v5092
      %5222 = vst.msk [vmem:[%s217 + $0x3b0] sm:$0xff] %vm5103, %v5093
      %5223 = vst.msk [vmem:[%s217 + $0x3b8] sm:$0xff] %vm5103, %v5094
      %5224 = vst.msk [vmem:[%s217 + $0x3c0] sm:$0xff] %vm5103, %v5095
      %5225 = vst.msk [vmem:[%s217 + $0x3c8] sm:$0xff] %vm5103, %v5096
      %5226 = vst.msk [vmem:[%s217 + $0x3d0] sm:$0xff] %vm5103, %v5097
      %5227 = vst.msk [vmem:[%s217 + $0x3d8] sm:$0xff] %vm5103, %v5098
      %5228 = vst.msk [vmem:[%s217 + $0x3e0] sm:$0xff] %vm5103, %v5099
      %5229 = vst.msk [vmem:[%s217 + $0x3e8] sm:$0xff] %vm5103, %v5100
      %5230 = vst.msk [vmem:[%s217 + $0x3f0] sm:$0xff] %vm5103, %v5101
      %5231 = vst.msk [vmem:[%s217 + $0x3f8] sm:$0xff] %vm5103, %v5102
      %p5232 = scmp.lt.s32.totalorder %s15, 1
      %s5233 = scalar_select %p5232, %s15, 1
      %s5234 = smul.addr %s5233, 128
      %s5235 = smul.addr %s5234, 8
      %s5236 = scalar_lea.vmem %s4, %s5235
      // Predicated region
      $region37: #{srnet_forward.11} parent=35 // pred_check
        %p5237 = pneg %p127
      $region38: #{srnet_forward.11} parent=35 // pred_check_branch
        %5239 = sbr.rel (%p5237) target = $region40
      $region39: #{srnet_forward.11} parent=35 // pred_region
        _
      $region40: #{srnet_forward.11} parent=35 // pred_fallthru
        _
    $region36: #{srnet_forward.11} parent=5 // pred_fallthru
      _
    %p5240 = scmp.le.s32.totalorder 2, %s10
    // Predicated region
    $region41: #{srnet_forward.11} parent=5 // pred_check
      %p5241 = pneg %p5240
    $region42: #{srnet_forward.11} parent=5 // pred_check_branch
      %5243 = sbr.rel (%p5241) target = $region44
    $region43: #{srnet_forward.11} parent=5 // pred_region
      %s5244 = ssub.s32 %s10, 2
      // Predicated region
      $region45: #{srnet_forward.11} parent=43 // pred_check
        %p5245 = pneg %p133
      $region46: #{srnet_forward.11} parent=43 // pred_check_branch
        %5247 = sbr.rel (%p5245) target = $region48
      $region47: #{srnet_forward.11} parent=43 // pred_region
        %p5248 = scmp.lt.s32.totalorder %s16, 1
        %s5249 = scalar_select %p5248, %s16, 1
        %s5250 = smul.addr %s5249, 128
        %s5251 = smul.addr %s5250, 8
        %s5252 = scalar_lea.vmem %s4, %s5251
      $region48: #{srnet_forward.11} parent=43 // pred_fallthru
        _
    $region44: #{srnet_forward.11} parent=5 // pred_fallthru
      _
  $region6: #{srnet_forward.11} parent=0 // loop_footer
    %s14 = sadd.s32 1, %s10
  $region7: #{srnet_forward.11} parent=0 // loop_footer_branch
    %9 = sbr.rel target = $region3
  $region8: #{srnet_forward.11} parent=0 // loop_exit
    _

</llo_original>
